<compile_context>
chip_gen: v7x
topology: tpu7x:2x2x1
jax: 0.10.0
libtpu: 0.0.40
codegen_flags: <defaults>
</compile_context>

<pallas_src>
import functools

import jax
import jax.numpy as jnp
from jax import lax
from jax.experimental import pallas as pl
from jax.experimental.pallas import tpu as pltpu


_LPAD = 16        # image starts at this column inside the halo'ed scratch
                  # (bf16 sublane tile = 16 -> interior stores are aligned);
                  # column _LPAD-1 is the left zero halo, _LPAD+W the right halo.
_UNROLL_MAX = 8   # row loops with <= this many trips stay fully unrolled


def _round_up(x, m):
    return (x + m - 1) // m * m


def _pick_row_tile(H, W, target):
    """Largest RT dividing H with RT*W <= target (MXU-friendly M tile)."""
    rt = max(1, min(H, target // max(W, 1)))
    while H % rt:
        rt -= 1
    return rt


def _downconv_kernel(x_ref, w0_ref, w1_ref, w2_ref, s0_ref, s1_ref, s2_ref,
                     o_ref, pad1_ref, pad2_ref,
                     *, H, W, K0, C1, C2p, C3p, RT12, RT3):
    wpad = pad1_ref.shape[1]

    # --- halo-only zeroing (scratch persists across grid steps & per core) ---
    # Only rows 0 / H+1 and the +-1 halo columns are ever read without being
    # rewritten; the interior is fully overwritten by the producing layer.
    # Column bands are zeroed at bf16-tile-aligned offsets (cols 0.._LPAD-2 are
    # dead but zeroing them keeps every store aligned/unmasked).
    def zero_halo(ref, C):
        dt = ref.dtype
        ref[0:1, :, :] = jnp.zeros((1, wpad, C), dt)                       # top halo row
        ref[H + 1:H + 2, :, :] = jnp.zeros((1, wpad, C), dt)               # bottom halo row
        ref[:, 0:_LPAD, :] = jnp.zeros((H + 2, _LPAD, C), dt)              # left band
        ref[:, _LPAD + W:wpad, :] = jnp.zeros((H + 2, wpad - _LPAD - W, C), dt)  # right band

    zero_halo(pad1_ref, C1)
    zero_halo(pad2_ref, C2p)

    def row_loop(trips, body):
        if trips <= _UNROLL_MAX:
            for t in range(trips):          # short: keep unrolled (LLO visibility)
                body(t)
        else:                               # long: bound live ranges / code size
            lax.fori_loop(0, trips, lambda t, c: (body(t), c)[1], 0)

    # ---- layer 1: im2col'd input, single K=9*cin matmul per row tile ----
    w0 = w0_ref[...]                                       # (K0, C1) bf16
    s0b = jnp.broadcast_to(s0_ref[0], (RT12 * W, C1))      # hoisted shift broadcast

    def layer1_body(t):
        r0 = t * RT12
        patch = x_ref[0, pl.ds(r0, RT12), :, :].reshape(RT12 * W, K0)
        acc = jnp.dot(patch, w0, preferred_element_type=jnp.float32)
        y = jnp.maximum(acc + s0b, 0.0)                    # folded-BN shift + ReLU
        pad1_ref[pl.ds(r0 + 1, RT12), _LPAD:_LPAD + W, :] = (
            y.reshape(RT12, W, C1).astype(pad1_ref.dtype))

    row_loop(H // RT12, layer1_body)

    # ---- layers 2 & 3: dx-folded 3x3 conv from halo'ed bf16 VMEM scratch ----
    def conv_layer(src_ref, w_ref, s_ref, cin, cout, RT, write):
        sb = jnp.broadcast_to(s_ref[0], (RT * W, cout))    # hoisted shift broadcast

        def body(t):
            r0 = t * RT
            acc = jnp.zeros((RT * W, cout), jnp.float32)
            for dy in range(3):
                # Tap (dy, dx) needs x[h+dy-1, w+dx-1] == scratch[r0+dy+i, _LPAD-1+dx+w].
                # The dx=0/2 taps are sublane-misaligned loads; acceptable while the
                # MXU remains the binding slot (see review note for v6e/XLU).
                taps = [src_ref[pl.ds(r0 + dy, RT),
                                _LPAD - 1 + dx:_LPAD - 1 + dx + W, :]
                        for dx in range(3)]
                patch = jnp.concatenate(taps, axis=-1).reshape(RT * W, 3 * cin)
                acc = acc + jnp.dot(patch, w_ref[dy],
                                    preferred_element_type=jnp.float32)
            write(r0, jnp.maximum(acc + sb, 0.0))          # f32 epilogue

        row_loop(H // RT, body)

    def write_pad2(r0, y):
        pad2_ref[pl.ds(r0 + 1, RT12), _LPAD:_LPAD + W, :] = (
            y.reshape(RT12, W, C2p).astype(pad2_ref.dtype))

    def write_out(r0, y):
        o_ref[0, pl.ds(r0, RT3), :, :] = y.reshape(RT3, W, C3p).astype(o_ref.dtype)

    conv_layer(pad1_ref, w1_ref, s1_ref, C1, C2p, RT12, write_pad2)
    conv_layer(pad2_ref, w2_ref, s2_ref, C2p, C3p, RT3, write_out)


def init_downconv_params(key, in_channels, out_channels, eps=1e-5):
    """Deterministic synthetic parameters; eval-mode BN scale is pre-folded into
    the conv weights.  Returns [(w_hwio_folded_f32, shift_f32), ...] x 3."""
    chans = [in_channels, 128, 196, out_channels]
    layers = []
    for i in range(3):
        cin, cout = chans[i], chans[i + 1]
        key, kw, kg, kb, km, kv = jax.random.split(key, 6)
        bound = 1.0 / jnp.sqrt(float(cin * 9))
        w = jax.random.uniform(kw, (3, 3, cin, cout), jnp.float32, -bound, bound)
        gamma = 1.0 + 0.1 * jax.random.normal(kg, (cout,), jnp.float32)
        beta = 0.1 * jax.random.normal(kb, (cout,), jnp.float32)
        mean = 0.1 * jax.random.normal(km, (cout,), jnp.float32)
        var = 1.0 + 0.1 * jnp.abs(jax.random.normal(kv, (cout,), jnp.float32))
        scale = gamma / jnp.sqrt(var + eps)                # BN folded (eval semantics)
        shift = beta - mean * scale
        layers.append((w * scale, shift))
    return layers


def prep_kernel_params(layers):
    """Kernel-ready params: bf16 weights (BN scale folded), im2col layout for
    layer 1, dx-folded K layouts for layers 2/3, channel dims zero-padded to
    128-lane multiples (padded cout lanes have zero weight AND zero shift)."""
    (w0, s0), (w1, s1), (w2, s2) = layers
    C0, C1 = w0.shape[2], w0.shape[3]
    C2, C3 = w2.shape[2], w2.shape[3]
    C2p = _round_up(C2, 128)
    C3p = _round_up(C3, 128)

    # layer 1: im2col weight (9*C0, C1); ordering (dy, dx, cin) matches the
    # wrapper-side patch concatenation.
    w0k = w0.reshape(9 * C0, C1).astype(jnp.bfloat16)
    s0k = s0.reshape(1, C1).astype(jnp.float32)

    # layer 2: pad cout C2 -> C2p with zeros; dx-fold K = 3*C1.
    w1k = jnp.pad(w1, ((0, 0), (0, 0), (0, 0), (0, C2p - C2))) \
             .reshape(3, 3 * C1, C2p).astype(jnp.bfloat16)
    s1k = jnp.pad(s1, (0, C2p - C2)).reshape(1, C2p).astype(jnp.float32)

    # layer 3: pad cin C2 -> C2p (zero rows) and cout C3 -> C3p; dx-fold K = 3*C2p.
    w2k = jnp.pad(w2, ((0, 0), (0, 0), (0, C2p - C2), (0, C3p - C3))) \
             .reshape(3, 3 * C2p, C3p).astype(jnp.bfloat16)
    s2k = jnp.pad(s2, (0, C3p - C3)).reshape(1, C3p).astype(jnp.float32)

    return dict(w0=w0k, w1=w1k, w2=w2k, s0=s0k, s1=s1k, s2=s2k,
                in_channels=C0, out_channels=C3)


def downconv_forward(x_nchw, params):
    """Full Downconv forward; PyTorch NCHW in/out convention."""
    w0, w1, w2 = params["w0"], params["w1"], params["w2"]
    s0, s1, s2 = params["s0"], params["s1"], params["s2"]
    C3 = params["out_channels"]

    N, C0, H, W = x_nchw.shape
    K0 = w0.shape[0]                               # 9 * C0
    C1, C2p, C3p = w0.shape[1], w1.shape[2], w2.shape[2]
    assert K0 == 9 * C0

    RT12 = _pick_row_tile(H, W, 128)               # wide-cout layers (acc ~32 vregs)
    RT3 = _pick_row_tile(H, W, 256)                # last layer: deeper M stream

    # Wrapper-side im2col for layer 1 (cin is tiny): (N, H, W, 9*C0) bf16.
    x = jnp.transpose(x_nchw, (0, 2, 3, 1))        # NCHW -> NHWC
    xp = jnp.pad(x, ((0, 0), (1, 1), (1, 1), (0, 0)))
    patches = jnp.concatenate(
        [xp[:, dy:dy + H, dx:dx + W, :] for dy in range(3) for dx in range(3)],
        axis=-1).astype(jnp.bfloat16)

    wpad = _round_up(_LPAD + W + 1, 16)            # halo'ed scratch width, tile-aligned

    kernel = functools.partial(
        _downconv_kernel, H=H, W=W, K0=K0, C1=C1, C2p=C2p, C3p=C3p,
        RT12=RT12, RT3=RT3)

    def full_spec(arr):
        return pl.BlockSpec(arr.shape, lambda n, _nd=arr.ndim: (0,) * _nd)

    # Explicit VMEM budget: double-buffered I/O blocks + weights + persistent
    # scratch, with headroom (at least the 32 MiB v6e default, capped below v7x).
    block_bytes = 2 * (H * W * K0 * 2 + H * W * C3p * 4)
    weight_bytes = 2 * (w0.nbytes + w1.nbytes + w2.nbytes
                        + s0.nbytes + s1.nbytes + s2.nbytes)
    scratch_bytes = (H + 2) * wpad * (C1 + C2p) * 2
    vmem_limit = min(max(int(1.5 * (block_bytes + weight_bytes + scratch_bytes))
                         + (4 << 20), 32 << 20), 96 << 20)

    out_pad = pl.pallas_call(
        kernel,
        out_shape=jax.ShapeDtypeStruct((N, H, W, C3p), jnp.float32),
        grid_spec=pltpu.PrefetchScalarGridSpec(
            num_scalar_prefetch=0,
            grid=(N,),
            in_specs=[
                pl.BlockSpec((1, H, W, K0), lambda n: (n, 0, 0, 0)),
                full_spec(w0), full_spec(w1), full_spec(w2),
                full_spec(s0), full_spec(s1), full_spec(s2),
            ],
            out_specs=pl.BlockSpec((1, H, W, C3p), lambda n: (n, 0, 0, 0)),
            scratch_shapes=[
                # bf16 halo'ed activation scratch: intermediates never touch HBM.
                pltpu.VMEM((H + 2, wpad, C1), jnp.bfloat16),
                pltpu.VMEM((H + 2, wpad, C2p), jnp.bfloat16),
            ],
        ),
        compiler_params=pltpu.CompilerParams(
            # TODO(synk): for large H*W add a halo'ed row-band grid axis (also
            # "parallel") so v7x's two TensorCores stay busy at small batch and
            # the per-step working set fits v7x's 64 MiB VMEM.
            dimension_semantics=("parallel",),
            vmem_limit_bytes=vmem_limit,
        ),
    )(patches, w0, w1, w2, s0, s1, s2)

    out = out_pad[..., :C3]                        # drop zero-padded output channels
    return jnp.transpose(out, (0, 3, 1, 2))        # NHWC -> NCHW


def downconv_reference(x_nchw, layers):
    """Pure-JAX f32 reference (same eval-mode BN folding, no bf16)."""
    x = jnp.transpose(x_nchw, (0, 2, 3, 1))
    for w, shift in layers:
        x = lax.conv_general_dilated(
            x, w, window_strides=(1, 1), padding=((1, 1), (1, 1)),
            dimension_numbers=("NHWC", "HWIO", "NHWC"))
        x = jnp.maximum(x + shift, 0.0)
    return jnp.transpose(x, (0, 3, 1, 2))


if __name__ == "__main__":
    key = jax.random.PRNGKey(0)
    kx, kp = jax.random.split(key)

    N, Cin, H, W, Cout = 2, 4, 16, 16, 32
    x = jax.random.normal(kx, (N, Cin, H, W), jnp.float32)
    layers = init_downconv_params(kp, Cin, Cout)
    params = prep_kernel_params(layers)

    out = jax.block_until_ready(downconv_forward(x, params))

    assert out.shape == (N, Cout, H, W), out.shape
    assert bool(jnp.all(out >= 0.0))              # ReLU output
    assert bool(jnp.all(jnp.isfinite(out)))

    # Loose-tolerance check vs a pure-JAX f32 reference (bf16 MXU inputs and bf16
    # intermediate scratch give ~1e-2 relative error at most through 3 layers).
    ref = downconv_reference(x, layers)
    rel = float(jnp.linalg.norm(out - ref) / (jnp.linalg.norm(ref) + 1e-8))
    assert rel < 5e-2, f"relative error too high: {rel}"

    print("KERNEL_OK")
</pallas_src>

<mosaic_0001>
module attributes {stable_mosaic.version = 11 : i64} {
  func.func @_downconv_kernel(%arg0: i32, %arg1: memref<1x16x16x36xbf16, #tpu.memory_space<vmem>>, %arg2: memref<36x128xbf16, #tpu.memory_space<vmem>>, %arg3: memref<3x384x256xbf16, #tpu.memory_space<vmem>>, %arg4: memref<3x768x128xbf16, #tpu.memory_space<vmem>>, %arg5: memref<1x128xf32, #tpu.memory_space<vmem>>, %arg6: memref<1x256xf32, #tpu.memory_space<vmem>>, %arg7: memref<1x128xf32, #tpu.memory_space<vmem>>, %arg8: memref<1x16x16x128xf32, #tpu.memory_space<vmem>>, %arg9: memref<18x48x128xbf16, #tpu.memory_space<vmem>>, %arg10: memref<18x48x256xbf16, #tpu.memory_space<vmem>>) attributes {dimension_semantics = [#tpu.dimension_semantics<parallel>], iteration_bounds = array<i64: 2>, scalar_prefetch = 0 : i64, scratch_operands = 2 : i64, tpu.core_type = #tpu.core_type<tc>, window_params = [{transform_indices = @transform_0, window_bounds = array<i64: 1, 16, 16, 36>}, {pipeline_mode = #tpu.pipeline_mode<synchronous>, transform_indices = @transform_1, window_bounds = array<i64: 36, 128>}, {pipeline_mode = #tpu.pipeline_mode<synchronous>, transform_indices = @transform_2, window_bounds = array<i64: 3, 384, 256>}, {pipeline_mode = #tpu.pipeline_mode<synchronous>, transform_indices = @transform_3, window_bounds = array<i64: 3, 768, 128>}, {pipeline_mode = #tpu.pipeline_mode<synchronous>, transform_indices = @transform_4, window_bounds = array<i64: 1, 128>}, {pipeline_mode = #tpu.pipeline_mode<synchronous>, transform_indices = @transform_5, window_bounds = array<i64: 1, 256>}, {pipeline_mode = #tpu.pipeline_mode<synchronous>, transform_indices = @transform_6, window_bounds = array<i64: 1, 128>}, {transform_indices = @transform_7, window_bounds = array<i64: 1, 16, 16, 128>}]} {
    %cst = arith.constant 0.000000e+00 : bf16
    %0 = vector.broadcast %cst : bf16 to vector<1x48x128xbf16>
    %c0 = arith.constant 0 : index
    %c0_0 = arith.constant 0 : index
    %c0_1 = arith.constant 0 : index
    %1 = vector.load %arg9[%c0, %c0_0, %c0_1] : memref<18x48x128xbf16, #tpu.memory_space<vmem>>, vector<1x48x128xbf16>
    tpu.vector_store %arg9[%c0, %c0_0, %c0_1], %0 {strides = array<i32>} : memref<18x48x128xbf16, #tpu.memory_space<vmem>>, vector<1x48x128xbf16>,
    %cst_2 = arith.constant 0.000000e+00 : bf16
    %2 = vector.broadcast %cst_2 : bf16 to vector<1x48x128xbf16>
    %c17 = arith.constant 17 : index
    %c0_3 = arith.constant 0 : index
    %c0_4 = arith.constant 0 : index
    %3 = vector.load %arg9[%c17, %c0_3, %c0_4] : memref<18x48x128xbf16, #tpu.memory_space<vmem>>, vector<1x48x128xbf16>
    tpu.vector_store %arg9[%c17, %c0_3, %c0_4], %2 {strides = array<i32>} : memref<18x48x128xbf16, #tpu.memory_space<vmem>>, vector<1x48x128xbf16>,
    %cst_5 = arith.constant 0.000000e+00 : bf16
    %4 = vector.broadcast %cst_5 : bf16 to vector<18x16x128xbf16>
    %c0_6 = arith.constant 0 : index
    %c0_7 = arith.constant 0 : index
    %c0_8 = arith.constant 0 : index
    %5 = vector.load %arg9[%c0_6, %c0_7, %c0_8] : memref<18x48x128xbf16, #tpu.memory_space<vmem>>, vector<18x16x128xbf16>
    tpu.vector_store %arg9[%c0_6, %c0_7, %c0_8], %4 {strides = array<i32>} : memref<18x48x128xbf16, #tpu.memory_space<vmem>>, vector<18x16x128xbf16>,
    %cst_9 = arith.constant 0.000000e+00 : bf16
    %6 = vector.broadcast %cst_9 : bf16 to vector<18x16x128xbf16>
    %c0_10 = arith.constant 0 : index
    %c32 = arith.constant 32 : index
    %c0_11 = arith.constant 0 : index
    %7 = vector.load %arg9[%c0_10, %c32, %c0_11] : memref<18x48x128xbf16, #tpu.memory_space<vmem>>, vector<18x16x128xbf16>
    tpu.vector_store %arg9[%c0_10, %c32, %c0_11], %6 {strides = array<i32>} : memref<18x48x128xbf16, #tpu.memory_space<vmem>>, vector<18x16x128xbf16>,
    %cst_12 = arith.constant 0.000000e+00 : bf16
    %8 = vector.broadcast %cst_12 : bf16 to vector<1x48x256xbf16>
    %c0_13 = arith.constant 0 : index
    %c0_14 = arith.constant 0 : index
    %c0_15 = arith.constant 0 : index
    %9 = vector.load %arg10[%c0_13, %c0_14, %c0_15] : memref<18x48x256xbf16, #tpu.memory_space<vmem>>, vector<1x48x256xbf16>
    tpu.vector_store %arg10[%c0_13, %c0_14, %c0_15], %8 {strides = array<i32>} : memref<18x48x256xbf16, #tpu.memory_space<vmem>>, vector<1x48x256xbf16>,
    %cst_16 = arith.constant 0.000000e+00 : bf16
    %10 = vector.broadcast %cst_16 : bf16 to vector<1x48x256xbf16>
    %c17_17 = arith.constant 17 : index
    %c0_18 = arith.constant 0 : index
    %c0_19 = arith.constant 0 : index
    %11 = vector.load %arg10[%c17_17, %c0_18, %c0_19] : memref<18x48x256xbf16, #tpu.memory_space<vmem>>, vector<1x48x256xbf16>
    tpu.vector_store %arg10[%c17_17, %c0_18, %c0_19], %10 {strides = array<i32>} : memref<18x48x256xbf16, #tpu.memory_space<vmem>>, vector<1x48x256xbf16>,
    %cst_20 = arith.constant 0.000000e+00 : bf16
    %12 = vector.broadcast %cst_20 : bf16 to vector<18x16x256xbf16>
    %c0_21 = arith.constant 0 : index
    %c0_22 = arith.constant 0 : index
    %c0_23 = arith.constant 0 : index
    %13 = vector.load %arg10[%c0_21, %c0_22, %c0_23] : memref<18x48x256xbf16, #tpu.memory_space<vmem>>, vector<18x16x256xbf16>
    tpu.vector_store %arg10[%c0_21, %c0_22, %c0_23], %12 {strides = array<i32>} : memref<18x48x256xbf16, #tpu.memory_space<vmem>>, vector<18x16x256xbf16>,
    %cst_24 = arith.constant 0.000000e+00 : bf16
    %14 = vector.broadcast %cst_24 : bf16 to vector<18x16x256xbf16>
    %c0_25 = arith.constant 0 : index
    %c32_26 = arith.constant 32 : index
    %c0_27 = arith.constant 0 : index
    %15 = vector.load %arg10[%c0_25, %c32_26, %c0_27] : memref<18x48x256xbf16, #tpu.memory_space<vmem>>, vector<18x16x256xbf16>
    tpu.vector_store %arg10[%c0_25, %c32_26, %c0_27], %14 {strides = array<i32>} : memref<18x48x256xbf16, #tpu.memory_space<vmem>>, vector<18x16x256xbf16>,
    %c0_28 = arith.constant 0 : index
    %c0_29 = arith.constant 0 : index
    %16 = vector.load %arg2[%c0_28, %c0_29] : memref<36x128xbf16, #tpu.memory_space<vmem>>, vector<36x128xbf16>
    %c0_30 = arith.constant 0 : index
    %c0_31 = arith.constant 0 : index
    %17 = vector.load %arg5[%c0_30, %c0_31] : memref<1x128xf32, #tpu.memory_space<vmem>>, vector<1x128xf32>
    %18 = vector.shape_cast %17 : vector<1x128xf32> to vector<128xf32>
    %19 = vector.shape_cast %18 : vector<128xf32> to vector<1x128xf32>
    %20 = vector.broadcast %19 : vector<1x128xf32> to vector<128x128xf32>
    %c0_32 = arith.constant 0 : index
    %c0_33 = arith.constant 0 : index
    %c0_34 = arith.constant 0 : index
    %c0_35 = arith.constant 0 : index
    %21 = vector.load %arg1[%c0_32, %c0_33, %c0_34, %c0_35] : memref<1x16x16x36xbf16, #tpu.memory_space<vmem>>, vector<1x8x16x36xbf16>
    %22 = vector.shape_cast %21 : vector<1x8x16x36xbf16> to vector<8x16x36xbf16>
    %23 = vector.shape_cast %22 : vector<8x16x36xbf16> to vector<128x36xbf16>
    %cst_36 = arith.constant dense<0.000000e+00> : vector<128x128xf32>
    %24 = tpu.matmul %23, %16, %cst_36 {dimension_numbers = #tpu.dot_dimension_numbers<[1], [0], [0], [1], [0, 0, 1, 1], [], []>} : vector<128x36xbf16>, vector<36x128xbf16>, vector<128x128xf32> -> vector<128x128xf32>
    %25 = arith.addf %24, %20 : vector<128x128xf32>
    %cst_37 = arith.constant 0.000000e+00 : f32
    %26 = vector.broadcast %cst_37 : f32 to vector<128x128xf32>
    %27 = arith.maximumf %25, %26 : vector<128x128xf32>
    %28 = vector.shape_cast %27 : vector<128x128xf32> to vector<8x16x128xf32>
    %29 = arith.truncf %28 : vector<8x16x128xf32> to vector<8x16x128xbf16>
    %c1 = arith.constant 1 : index
    %c16 = arith.constant 16 : index
    %c0_38 = arith.constant 0 : index
    %30 = vector.load %arg9[%c1, %c16, %c0_38] : memref<18x48x128xbf16, #tpu.memory_space<vmem>>, vector<8x16x128xbf16>
    tpu.vector_store %arg9[%c1, %c16, %c0_38], %29 {strides = array<i32>} : memref<18x48x128xbf16, #tpu.memory_space<vmem>>, vector<8x16x128xbf16>,
    %c0_39 = arith.constant 0 : index
    %c8 = arith.constant 8 : index
    %c0_40 = arith.constant 0 : index
    %c0_41 = arith.constant 0 : index
    %31 = vector.load %arg1[%c0_39, %c8, %c0_40, %c0_41] : memref<1x16x16x36xbf16, #tpu.memory_space<vmem>>, vector<1x8x16x36xbf16>
    %32 = vector.shape_cast %31 : vector<1x8x16x36xbf16> to vector<8x16x36xbf16>
    %33 = vector.shape_cast %32 : vector<8x16x36xbf16> to vector<128x36xbf16>
    %cst_42 = arith.constant dense<0.000000e+00> : vector<128x128xf32>
    %34 = tpu.matmul %33, %16, %cst_42 {dimension_numbers = #tpu.dot_dimension_numbers<[1], [0], [0], [1], [0, 0, 1, 1], [], []>} : vector<128x36xbf16>, vector<36x128xbf16>, vector<128x128xf32> -> vector<128x128xf32>
    %35 = arith.addf %34, %20 : vector<128x128xf32>
    %cst_43 = arith.constant 0.000000e+00 : f32
    %36 = vector.broadcast %cst_43 : f32 to vector<128x128xf32>
    %37 = arith.maximumf %35, %36 : vector<128x128xf32>
    %38 = vector.shape_cast %37 : vector<128x128xf32> to vector<8x16x128xf32>
    %39 = arith.truncf %38 : vector<8x16x128xf32> to vector<8x16x128xbf16>
    %c9 = arith.constant 9 : index
    %c16_44 = arith.constant 16 : index
    %c0_45 = arith.constant 0 : index
    %40 = vector.load %arg9[%c9, %c16_44, %c0_45] : memref<18x48x128xbf16, #tpu.memory_space<vmem>>, vector<8x16x128xbf16>
    tpu.vector_store %arg9[%c9, %c16_44, %c0_45], %39 {strides = array<i32>} : memref<18x48x128xbf16, #tpu.memory_space<vmem>>, vector<8x16x128xbf16>,
    %c0_46 = arith.constant 0 : index
    %c0_47 = arith.constant 0 : index
    %41 = vector.load %arg6[%c0_46, %c0_47] : memref<1x256xf32, #tpu.memory_space<vmem>>, vector<1x256xf32>
    %42 = vector.shape_cast %41 : vector<1x256xf32> to vector<256xf32>
    %43 = vector.shape_cast %42 : vector<256xf32> to vector<1x256xf32>
    %44 = vector.broadcast %43 : vector<1x256xf32> to vector<128x256xf32>
    %cst_48 = arith.constant 0.000000e+00 : f32
    %45 = vector.broadcast %cst_48 : f32 to vector<128x256xf32>
    %c0_49 = arith.constant 0 : index
    %c15 = arith.constant 15 : index
    %c0_50 = arith.constant 0 : index
    %46 = vector.load %arg9[%c0_49, %c15, %c0_50] : memref<18x48x128xbf16, #tpu.memory_space<vmem>>, vector<8x16x128xbf16>
    %c0_51 = arith.constant 0 : index
    %c16_52 = arith.constant 16 : index
    %c0_53 = arith.constant 0 : index
    %47 = vector.load %arg9[%c0_51, %c16_52, %c0_53] : memref<18x48x128xbf16, #tpu.memory_space<vmem>>, vector<8x16x128xbf16>
    %c0_54 = arith.constant 0 : index
    %c17_55 = arith.constant 17 : index
    %c0_56 = arith.constant 0 : index
    %48 = vector.load %arg9[%c0_54, %c17_55, %c0_56] : memref<18x48x128xbf16, #tpu.memory_space<vmem>>, vector<8x16x128xbf16>
    %49 = tpu.concatenate %46, %47, %48 in 2 : vector<8x16x128xbf16>, vector<8x16x128xbf16>, vector<8x16x128xbf16> -> vector<8x16x384xbf16>
    %50 = vector.shape_cast %49 : vector<8x16x384xbf16> to vector<128x384xbf16>
    %c0_57 = arith.constant 0 : index
    %c0_58 = arith.constant 0 : index
    %c0_59 = arith.constant 0 : index
    %51 = vector.load %arg3[%c0_57, %c0_58, %c0_59] : memref<3x384x256xbf16, #tpu.memory_space<vmem>>, vector<1x384x256xbf16>
    %52 = vector.shape_cast %51 : vector<1x384x256xbf16> to vector<384x256xbf16>
    %cst_60 = arith.constant dense<0.000000e+00> : vector<128x256xf32>
    %53 = tpu.matmul %50, %52, %cst_60 {dimension_numbers = #tpu.dot_dimension_numbers<[1], [0], [0], [1], [0, 0, 1, 1], [], []>} : vector<128x384xbf16>, vector<384x256xbf16>, vector<128x256xf32> -> vector<128x256xf32>
    %54 = arith.addf %45, %53 : vector<128x256xf32>
    %c1_61 = arith.constant 1 : index
    %c15_62 = arith.constant 15 : index
    %c0_63 = arith.constant 0 : index
    %55 = vector.load %arg9[%c1_61, %c15_62, %c0_63] : memref<18x48x128xbf16, #tpu.memory_space<vmem>>, vector<8x16x128xbf16>
    %c1_64 = arith.constant 1 : index
    %c16_65 = arith.constant 16 : index
    %c0_66 = arith.constant 0 : index
    %56 = vector.load %arg9[%c1_64, %c16_65, %c0_66] : memref<18x48x128xbf16, #tpu.memory_space<vmem>>, vector<8x16x128xbf16>
    %c1_67 = arith.constant 1 : index
    %c17_68 = arith.constant 17 : index
    %c0_69 = arith.constant 0 : index
    %57 = vector.load %arg9[%c1_67, %c17_68, %c0_69] : memref<18x48x128xbf16, #tpu.memory_space<vmem>>, vector<8x16x128xbf16>
    %58 = tpu.concatenate %55, %56, %57 in 2 : vector<8x16x128xbf16>, vector<8x16x128xbf16>, vector<8x16x128xbf16> -> vector<8x16x384xbf16>
    %59 = vector.shape_cast %58 : vector<8x16x384xbf16> to vector<128x384xbf16>
    %c1_70 = arith.constant 1 : index
    %c0_71 = arith.constant 0 : index
    %c0_72 = arith.constant 0 : index
    %60 = vector.load %arg3[%c1_70, %c0_71, %c0_72] : memref<3x384x256xbf16, #tpu.memory_space<vmem>>, vector<1x384x256xbf16>
    %61 = vector.shape_cast %60 : vector<1x384x256xbf16> to vector<384x256xbf16>
    %cst_73 = arith.constant dense<0.000000e+00> : vector<128x256xf32>
    %62 = tpu.matmul %59, %61, %cst_73 {dimension_numbers = #tpu.dot_dimension_numbers<[1], [0], [0], [1], [0, 0, 1, 1], [], []>} : vector<128x384xbf16>, vector<384x256xbf16>, vector<128x256xf32> -> vector<128x256xf32>
    %63 = arith.addf %54, %62 : vector<128x256xf32>
    %c2 = arith.constant 2 : index
    %c15_74 = arith.constant 15 : index
    %c0_75 = arith.constant 0 : index
    %64 = vector.load %arg9[%c2, %c15_74, %c0_75] : memref<18x48x128xbf16, #tpu.memory_space<vmem>>, vector<8x16x128xbf16>
    %c2_76 = arith.constant 2 : index
    %c16_77 = arith.constant 16 : index
    %c0_78 = arith.constant 0 : index
    %65 = vector.load %arg9[%c2_76, %c16_77, %c0_78] : memref<18x48x128xbf16, #tpu.memory_space<vmem>>, vector<8x16x128xbf16>
    %c2_79 = arith.constant 2 : index
    %c17_80 = arith.constant 17 : index
    %c0_81 = arith.constant 0 : index
    %66 = vector.load %arg9[%c2_79, %c17_80, %c0_81] : memref<18x48x128xbf16, #tpu.memory_space<vmem>>, vector<8x16x128xbf16>
    %67 = tpu.concatenate %64, %65, %66 in 2 : vector<8x16x128xbf16>, vector<8x16x128xbf16>, vector<8x16x128xbf16> -> vector<8x16x384xbf16>
    %68 = vector.shape_cast %67 : vector<8x16x384xbf16> to vector<128x384xbf16>
    %c2_82 = arith.constant 2 : index
    %c0_83 = arith.constant 0 : index
    %c0_84 = arith.constant 0 : index
    %69 = vector.load %arg3[%c2_82, %c0_83, %c0_84] : memref<3x384x256xbf16, #tpu.memory_space<vmem>>, vector<1x384x256xbf16>
    %70 = vector.shape_cast %69 : vector<1x384x256xbf16> to vector<384x256xbf16>
    %cst_85 = arith.constant dense<0.000000e+00> : vector<128x256xf32>
    %71 = tpu.matmul %68, %70, %cst_85 {dimension_numbers = #tpu.dot_dimension_numbers<[1], [0], [0], [1], [0, 0, 1, 1], [], []>} : vector<128x384xbf16>, vector<384x256xbf16>, vector<128x256xf32> -> vector<128x256xf32>
    %72 = arith.addf %63, %71 : vector<128x256xf32>
    %73 = arith.addf %72, %44 : vector<128x256xf32>
    %cst_86 = arith.constant 0.000000e+00 : f32
    %74 = vector.broadcast %cst_86 : f32 to vector<128x256xf32>
    %75 = arith.maximumf %73, %74 : vector<128x256xf32>
    %76 = vector.shape_cast %75 : vector<128x256xf32> to vector<8x16x256xf32>
    %77 = arith.truncf %76 : vector<8x16x256xf32> to vector<8x16x256xbf16>
    %c1_87 = arith.constant 1 : index
    %c16_88 = arith.constant 16 : index
    %c0_89 = arith.constant 0 : index
    %78 = vector.load %arg10[%c1_87, %c16_88, %c0_89] : memref<18x48x256xbf16, #tpu.memory_space<vmem>>, vector<8x16x256xbf16>
    tpu.vector_store %arg10[%c1_87, %c16_88, %c0_89], %77 {strides = array<i32>} : memref<18x48x256xbf16, #tpu.memory_space<vmem>>, vector<8x16x256xbf16>,
    %cst_90 = arith.constant 0.000000e+00 : f32
    %79 = vector.broadcast %cst_90 : f32 to vector<128x256xf32>
    %c8_91 = arith.constant 8 : index
    %c15_92 = arith.constant 15 : index
    %c0_93 = arith.constant 0 : index
    %80 = vector.load %arg9[%c8_91, %c15_92, %c0_93] : memref<18x48x128xbf16, #tpu.memory_space<vmem>>, vector<8x16x128xbf16>
    %c8_94 = arith.constant 8 : index
    %c16_95 = arith.constant 16 : index
    %c0_96 = arith.constant 0 : index
    %81 = vector.load %arg9[%c8_94, %c16_95, %c0_96] : memref<18x48x128xbf16, #tpu.memory_space<vmem>>, vector<8x16x128xbf16>
    %c8_97 = arith.constant 8 : index
    %c17_98 = arith.constant 17 : index
    %c0_99 = arith.constant 0 : index
    %82 = vector.load %arg9[%c8_97, %c17_98, %c0_99] : memref<18x48x128xbf16, #tpu.memory_space<vmem>>, vector<8x16x128xbf16>
    %83 = tpu.concatenate %80, %81, %82 in 2 : vector<8x16x128xbf16>, vector<8x16x128xbf16>, vector<8x16x128xbf16> -> vector<8x16x384xbf16>
    %84 = vector.shape_cast %83 : vector<8x16x384xbf16> to vector<128x384xbf16>
    %c0_100 = arith.constant 0 : index
    %c0_101 = arith.constant 0 : index
    %c0_102 = arith.constant 0 : index
    %85 = vector.load %arg3[%c0_100, %c0_101, %c0_102] : memref<3x384x256xbf16, #tpu.memory_space<vmem>>, vector<1x384x256xbf16>
    %86 = vector.shape_cast %85 : vector<1x384x256xbf16> to vector<384x256xbf16>
    %cst_103 = arith.constant dense<0.000000e+00> : vector<128x256xf32>
    %87 = tpu.matmul %84, %86, %cst_103 {dimension_numbers = #tpu.dot_dimension_numbers<[1], [0], [0], [1], [0, 0, 1, 1], [], []>} : vector<128x384xbf16>, vector<384x256xbf16>, vector<128x256xf32> -> vector<128x256xf32>
    %88 = arith.addf %79, %87 : vector<128x256xf32>
    %c9_104 = arith.constant 9 : index
    %c15_105 = arith.constant 15 : index
    %c0_106 = arith.constant 0 : index
    %89 = vector.load %arg9[%c9_104, %c15_105, %c0_106] : memref<18x48x128xbf16, #tpu.memory_space<vmem>>, vector<8x16x128xbf16>
    %c9_107 = arith.constant 9 : index
    %c16_108 = arith.constant 16 : index
    %c0_109 = arith.constant 0 : index
    %90 = vector.load %arg9[%c9_107, %c16_108, %c0_109] : memref<18x48x128xbf16, #tpu.memory_space<vmem>>, vector<8x16x128xbf16>
    %c9_110 = arith.constant 9 : index
    %c17_111 = arith.constant 17 : index
    %c0_112 = arith.constant 0 : index
    %91 = vector.load %arg9[%c9_110, %c17_111, %c0_112] : memref<18x48x128xbf16, #tpu.memory_space<vmem>>, vector<8x16x128xbf16>
    %92 = tpu.concatenate %89, %90, %91 in 2 : vector<8x16x128xbf16>, vector<8x16x128xbf16>, vector<8x16x128xbf16> -> vector<8x16x384xbf16>
    %93 = vector.shape_cast %92 : vector<8x16x384xbf16> to vector<128x384xbf16>
    %c1_113 = arith.constant 1 : index
    %c0_114 = arith.constant 0 : index
    %c0_115 = arith.constant 0 : index
    %94 = vector.load %arg3[%c1_113, %c0_114, %c0_115] : memref<3x384x256xbf16, #tpu.memory_space<vmem>>, vector<1x384x256xbf16>
    %95 = vector.shape_cast %94 : vector<1x384x256xbf16> to vector<384x256xbf16>
    %cst_116 = arith.constant dense<0.000000e+00> : vector<128x256xf32>
    %96 = tpu.matmul %93, %95, %cst_116 {dimension_numbers = #tpu.dot_dimension_numbers<[1], [0], [0], [1], [0, 0, 1, 1], [], []>} : vector<128x384xbf16>, vector<384x256xbf16>, vector<128x256xf32> -> vector<128x256xf32>
    %97 = arith.addf %88, %96 : vector<128x256xf32>
    %c10 = arith.constant 10 : index
    %c15_117 = arith.constant 15 : index
    %c0_118 = arith.constant 0 : index
    %98 = vector.load %arg9[%c10, %c15_117, %c0_118] : memref<18x48x128xbf16, #tpu.memory_space<vmem>>, vector<8x16x128xbf16>
    %c10_119 = arith.constant 10 : index
    %c16_120 = arith.constant 16 : index
    %c0_121 = arith.constant 0 : index
    %99 = vector.load %arg9[%c10_119, %c16_120, %c0_121] : memref<18x48x128xbf16, #tpu.memory_space<vmem>>, vector<8x16x128xbf16>
    %c10_122 = arith.constant 10 : index
    %c17_123 = arith.constant 17 : index
    %c0_124 = arith.constant 0 : index
    %100 = vector.load %arg9[%c10_122, %c17_123, %c0_124] : memref<18x48x128xbf16, #tpu.memory_space<vmem>>, vector<8x16x128xbf16>
    %101 = tpu.concatenate %98, %99, %100 in 2 : vector<8x16x128xbf16>, vector<8x16x128xbf16>, vector<8x16x128xbf16> -> vector<8x16x384xbf16>
    %102 = vector.shape_cast %101 : vector<8x16x384xbf16> to vector<128x384xbf16>
    %c2_125 = arith.constant 2 : index
    %c0_126 = arith.constant 0 : index
    %c0_127 = arith.constant 0 : index
    %103 = vector.load %arg3[%c2_125, %c0_126, %c0_127] : memref<3x384x256xbf16, #tpu.memory_space<vmem>>, vector<1x384x256xbf16>
    %104 = vector.shape_cast %103 : vector<1x384x256xbf16> to vector<384x256xbf16>
    %cst_128 = arith.constant dense<0.000000e+00> : vector<128x256xf32>
    %105 = tpu.matmul %102, %104, %cst_128 {dimension_numbers = #tpu.dot_dimension_numbers<[1], [0], [0], [1], [0, 0, 1, 1], [], []>} : vector<128x384xbf16>, vector<384x256xbf16>, vector<128x256xf32> -> vector<128x256xf32>
    %106 = arith.addf %97, %105 : vector<128x256xf32>
    %107 = arith.addf %106, %44 : vector<128x256xf32>
    %cst_129 = arith.constant 0.000000e+00 : f32
    %108 = vector.broadcast %cst_129 : f32 to vector<128x256xf32>
    %109 = arith.maximumf %107, %108 : vector<128x256xf32>
    %110 = vector.shape_cast %109 : vector<128x256xf32> to vector<8x16x256xf32>
    %111 = arith.truncf %110 : vector<8x16x256xf32> to vector<8x16x256xbf16>
    %c9_130 = arith.constant 9 : index
    %c16_131 = arith.constant 16 : index
    %c0_132 = arith.constant 0 : index
    %112 = vector.load %arg10[%c9_130, %c16_131, %c0_132] : memref<18x48x256xbf16, #tpu.memory_space<vmem>>, vector<8x16x256xbf16>
    tpu.vector_store %arg10[%c9_130, %c16_131, %c0_132], %111 {strides = array<i32>} : memref<18x48x256xbf16, #tpu.memory_space<vmem>>, vector<8x16x256xbf16>,
    %c0_133 = arith.constant 0 : index
    %c0_134 = arith.constant 0 : index
    %113 = vector.load %arg7[%c0_133, %c0_134] : memref<1x128xf32, #tpu.memory_space<vmem>>, vector<1x128xf32>
    %114 = vector.shape_cast %113 : vector<1x128xf32> to vector<128xf32>
    %115 = vector.shape_cast %114 : vector<128xf32> to vector<1x128xf32>
    %116 = vector.broadcast %115 : vector<1x128xf32> to vector<256x128xf32>
    %cst_135 = arith.constant 0.000000e+00 : f32
    %117 = vector.broadcast %cst_135 : f32 to vector<256x128xf32>
    %c0_136 = arith.constant 0 : index
    %c15_137 = arith.constant 15 : index
    %c0_138 = arith.constant 0 : index
    %118 = vector.load %arg10[%c0_136, %c15_137, %c0_138] : memref<18x48x256xbf16, #tpu.memory_space<vmem>>, vector<16x16x256xbf16>
    %c0_139 = arith.constant 0 : index
    %c16_140 = arith.constant 16 : index
    %c0_141 = arith.constant 0 : index
    %119 = vector.load %arg10[%c0_139, %c16_140, %c0_141] : memref<18x48x256xbf16, #tpu.memory_space<vmem>>, vector<16x16x256xbf16>
    %c0_142 = arith.constant 0 : index
    %c17_143 = arith.constant 17 : index
    %c0_144 = arith.constant 0 : index
    %120 = vector.load %arg10[%c0_142, %c17_143, %c0_144] : memref<18x48x256xbf16, #tpu.memory_space<vmem>>, vector<16x16x256xbf16>
    %121 = tpu.concatenate %118, %119, %120 in 2 : vector<16x16x256xbf16>, vector<16x16x256xbf16>, vector<16x16x256xbf16> -> vector<16x16x768xbf16>
    %122 = vector.shape_cast %121 : vector<16x16x768xbf16> to vector<256x768xbf16>
    %c0_145 = arith.constant 0 : index
    %c0_146 = arith.constant 0 : index
    %c0_147 = arith.constant 0 : index
    %123 = vector.load %arg4[%c0_145, %c0_146, %c0_147] : memref<3x768x128xbf16, #tpu.memory_space<vmem>>, vector<1x768x128xbf16>
    %124 = vector.shape_cast %123 : vector<1x768x128xbf16> to vector<768x128xbf16>
    %cst_148 = arith.constant dense<0.000000e+00> : vector<256x128xf32>
    %125 = tpu.matmul %122, %124, %cst_148 {dimension_numbers = #tpu.dot_dimension_numbers<[1], [0], [0], [1], [0, 0, 1, 1], [], []>} : vector<256x768xbf16>, vector<768x128xbf16>, vector<256x128xf32> -> vector<256x128xf32>
    %126 = arith.addf %117, %125 : vector<256x128xf32>
    %c1_149 = arith.constant 1 : index
    %c15_150 = arith.constant 15 : index
    %c0_151 = arith.constant 0 : index
    %127 = vector.load %arg10[%c1_149, %c15_150, %c0_151] : memref<18x48x256xbf16, #tpu.memory_space<vmem>>, vector<16x16x256xbf16>
    %c1_152 = arith.constant 1 : index
    %c16_153 = arith.constant 16 : index
    %c0_154 = arith.constant 0 : index
    %128 = vector.load %arg10[%c1_152, %c16_153, %c0_154] : memref<18x48x256xbf16, #tpu.memory_space<vmem>>, vector<16x16x256xbf16>
    %c1_155 = arith.constant 1 : index
    %c17_156 = arith.constant 17 : index
    %c0_157 = arith.constant 0 : index
    %129 = vector.load %arg10[%c1_155, %c17_156, %c0_157] : memref<18x48x256xbf16, #tpu.memory_space<vmem>>, vector<16x16x256xbf16>
    %130 = tpu.concatenate %127, %128, %129 in 2 : vector<16x16x256xbf16>, vector<16x16x256xbf16>, vector<16x16x256xbf16> -> vector<16x16x768xbf16>
    %131 = vector.shape_cast %130 : vector<16x16x768xbf16> to vector<256x768xbf16>
    %c1_158 = arith.constant 1 : index
    %c0_159 = arith.constant 0 : index
    %c0_160 = arith.constant 0 : index
    %132 = vector.load %arg4[%c1_158, %c0_159, %c0_160] : memref<3x768x128xbf16, #tpu.memory_space<vmem>>, vector<1x768x128xbf16>
    %133 = vector.shape_cast %132 : vector<1x768x128xbf16> to vector<768x128xbf16>
    %cst_161 = arith.constant dense<0.000000e+00> : vector<256x128xf32>
    %134 = tpu.matmul %131, %133, %cst_161 {dimension_numbers = #tpu.dot_dimension_numbers<[1], [0], [0], [1], [0, 0, 1, 1], [], []>} : vector<256x768xbf16>, vector<768x128xbf16>, vector<256x128xf32> -> vector<256x128xf32>
    %135 = arith.addf %126, %134 : vector<256x128xf32>
    %c2_162 = arith.constant 2 : index
    %c15_163 = arith.constant 15 : index
    %c0_164 = arith.constant 0 : index
    %136 = vector.load %arg10[%c2_162, %c15_163, %c0_164] : memref<18x48x256xbf16, #tpu.memory_space<vmem>>, vector<16x16x256xbf16>
    %c2_165 = arith.constant 2 : index
    %c16_166 = arith.constant 16 : index
    %c0_167 = arith.constant 0 : index
    %137 = vector.load %arg10[%c2_165, %c16_166, %c0_167] : memref<18x48x256xbf16, #tpu.memory_space<vmem>>, vector<16x16x256xbf16>
    %c2_168 = arith.constant 2 : index
    %c17_169 = arith.constant 17 : index
    %c0_170 = arith.constant 0 : index
    %138 = vector.load %arg10[%c2_168, %c17_169, %c0_170] : memref<18x48x256xbf16, #tpu.memory_space<vmem>>, vector<16x16x256xbf16>
    %139 = tpu.concatenate %136, %137, %138 in 2 : vector<16x16x256xbf16>, vector<16x16x256xbf16>, vector<16x16x256xbf16> -> vector<16x16x768xbf16>
    %140 = vector.shape_cast %139 : vector<16x16x768xbf16> to vector<256x768xbf16>
    %c2_171 = arith.constant 2 : index
    %c0_172 = arith.constant 0 : index
    %c0_173 = arith.constant 0 : index
    %141 = vector.load %arg4[%c2_171, %c0_172, %c0_173] : memref<3x768x128xbf16, #tpu.memory_space<vmem>>, vector<1x768x128xbf16>
    %142 = vector.shape_cast %141 : vector<1x768x128xbf16> to vector<768x128xbf16>
    %cst_174 = arith.constant dense<0.000000e+00> : vector<256x128xf32>
    %143 = tpu.matmul %140, %142, %cst_174 {dimension_numbers = #tpu.dot_dimension_numbers<[1], [0], [0], [1], [0, 0, 1, 1], [], []>} : vector<256x768xbf16>, vector<768x128xbf16>, vector<256x128xf32> -> vector<256x128xf32>
    %144 = arith.addf %135, %143 : vector<256x128xf32>
    %145 = arith.addf %144, %116 : vector<256x128xf32>
    %cst_175 = arith.constant 0.000000e+00 : f32
    %146 = vector.broadcast %cst_175 : f32 to vector<256x128xf32>
    %147 = arith.maximumf %145, %146 : vector<256x128xf32>
    %148 = vector.shape_cast %147 : vector<256x128xf32> to vector<16x16x128xf32>
    %c0_176 = arith.constant 0 : index
    %c0_177 = arith.constant 0 : index
    %c0_178 = arith.constant 0 : index
    %c0_179 = arith.constant 0 : index
    %149 = vector.load %arg8[%c0_176, %c0_177, %c0_178, %c0_179] : memref<1x16x16x128xf32, #tpu.memory_space<vmem>>, vector<1x16x16x128xf32>
    %150 = vector.shape_cast %149 : vector<1x16x16x128xf32> to vector<16x16x128xf32>
    %151 = vector.shape_cast %148 : vector<16x16x128xf32> to vector<1x16x16x128xf32>
    tpu.vector_store %arg8[%c0_176, %c0_177, %c0_178, %c0_179], %151 {strides = array<i32>} : memref<1x16x16x128xf32, #tpu.memory_space<vmem>>, vector<1x16x16x128xf32>,
    return
  }
  func.func @transform_0(%arg0: i32) -> (i32, i32, i32, i32) {
    %c0_i32 = arith.constant 0 : i32
    %c0_i32_0 = arith.constant 0 : i32
    %c0_i32_1 = arith.constant 0 : i32
    %c0_i32_2 = arith.constant 0 : i32
    return %arg0, %c0_i32, %c0_i32_0, %c0_i32_1 : i32, i32, i32, i32
  }
  func.func @transform_1(%arg0: i32) -> (i32, i32) {
    %c0_i32 = arith.constant 0 : i32
    %c0_i32_0 = arith.constant 0 : i32
    %c0_i32_1 = arith.constant 0 : i32
    return %c0_i32, %c0_i32_0 : i32, i32
  }
  func.func @transform_2(%arg0: i32) -> (i32, i32, i32) {
    %c0_i32 = arith.constant 0 : i32
    %c0_i32_0 = arith.constant 0 : i32
    %c0_i32_1 = arith.constant 0 : i32
    %c0_i32_2 = arith.constant 0 : i32
    return %c0_i32, %c0_i32_0, %c0_i32_1 : i32, i32, i32
  }
  func.func @transform_3(%arg0: i32) -> (i32, i32, i32) {
    %c0_i32 = arith.constant 0 : i32
    %c0_i32_0 = arith.constant 0 : i32
    %c0_i32_1 = arith.constant 0 : i32
    %c0_i32_2 = arith.constant 0 : i32
    return %c0_i32, %c0_i32_0, %c0_i32_1 : i32, i32, i32
  }
  func.func @transform_4(%arg0: i32) -> (i32, i32) {
    %c0_i32 = arith.constant 0 : i32
    %c0_i32_0 = arith.constant 0 : i32
    %c0_i32_1 = arith.constant 0 : i32
    return %c0_i32, %c0_i32_0 : i32, i32
  }
  func.func @transform_5(%arg0: i32) -> (i32, i32) {
    %c0_i32 = arith.constant 0 : i32
    %c0_i32_0 = arith.constant 0 : i32
    %c0_i32_1 = arith.constant 0 : i32
    return %c0_i32, %c0_i32_0 : i32, i32
  }
  func.func @transform_6(%arg0: i32) -> (i32, i32) {
    %c0_i32 = arith.constant 0 : i32
    %c0_i32_0 = arith.constant 0 : i32
    %c0_i32_1 = arith.constant 0 : i32
    return %c0_i32, %c0_i32_0 : i32, i32
  }
  func.func @transform_7(%arg0: i32) -> (i32, i32, i32, i32) {
    %c0_i32 = arith.constant 0 : i32
    %c0_i32_0 = arith.constant 0 : i32
    %c0_i32_1 = arith.constant 0 : i32
    %c0_i32_2 = arith.constant 0 : i32
    return %arg0, %c0_i32, %c0_i32_0, %c0_i32_1 : i32, i32, i32, i32
  }
}

</mosaic_0001>

<llo_original>
// kernel: tpu_custom_call.1
$region0: #{tpu_custom_call.1}
  #allocation0 [shape = 'u32[]', space=smem, size = 0x4, offset = 0x4, fixed_abs, tag = 'smem constant byte address 0x4 - core index']
  #allocation1 [shape = 'u32[144,128]{1,0:T(1,128)}', space=vmem, size = 0x12000, scoped, tag = 'internal scratch']
  #allocation2 [shape = 'bf16[18,48,128]{2,1,0:T(16,128)(2,1)}', space=vmem, size = 0x36000, scoped, tag = 'scratch operand']
  #allocation3 [shape = 'bf16[18,48,256]{2,1,0:T(16,128)(2,1)}', space=vmem, size = 0x6c000, scoped, tag = 'scratch operand']
  %s0 = inlined_call_operand.hbm [shape: bf16[2,16,16,36], index: 0, kind: input, shape index: {}]
  %s1 = inlined_call_operand.hbm [shape: bf16[36,128], index: 1, kind: input, shape index: {}]
  %s2 = inlined_call_operand.hbm [shape: bf16[3,384,256], index: 2, kind: input, shape index: {}]
  %s3 = inlined_call_operand.hbm [shape: bf16[3,768,128], index: 3, kind: input, shape index: {}]
  %s4 = inlined_call_operand.vmem [shape: f32[1,128], index: 4, kind: input, shape index: {}]
  %s5 = inlined_call_operand.vmem [shape: f32[1,256], index: 5, kind: input, shape index: {}]
  %s6 = inlined_call_operand.vmem [shape: f32[1,128], index: 6, kind: input, shape index: {}]
  %s7 = inlined_call_operand.hbm [shape: f32[2,16,16,128], index: 7, kind: output, shape index: {}]
  %s8 = sld [smem:[#allocation0]]
  $region77: #{tpu_custom_call.1} parent=0
    _
  %s10 = ssub.s32 1, %s8
  %s11 = scalar_select 0, %s10, %s8
  $region1: #{tpu_custom_call.1} parent=0
    #allocation4 [shape = 'u8[131072]{0}', space=vmem, size = 0x20000, scoped, tag = 'input window, operand 0']
    #allocation5 [shape = 's32[2]{0}', space=sflag, size = 0x8, scoped, tag = 'scoped memory for tpu_custom_call.1']
    #allocation6 [shape = 's32[2]{0}', space=sflag, size = 0x8, scoped, tag = 'scoped memory for tpu_custom_call.1']
    #allocation7 [shape = 'u8[10240]{0}', space=vmem, size = 0x2800, scoped, tag = 'input window, operand 1, single buffered']
    #allocation8 [shape = 's32[1]{0}', space=sflag, size = 0x4, scoped, tag = 'scoped memory for tpu_custom_call.1']
    #allocation9 [shape = 'u8[589824]{0}', space=vmem, size = 0x90000, scoped, tag = 'input window, operand 2, single buffered']
    #allocation10 [shape = 'u8[589824]{0}', space=vmem, size = 0x90000, scoped, tag = 'input window, operand 3, single buffered']
    #allocation11 [shape = 's32[1]{0}', space=sflag, size = 0x4, scoped, tag = 'scoped memory for tpu_custom_call.1']
    #allocation12 [shape = 'u8[262144]{0}', space=vmem, size = 0x40000, scoped, tag = 'output window, operand 0']
    %12 = vsyncpa [#allocation5], 0
    %s13 = scalar_lea.sflag [#allocation5], 1
    %14 = vsyncpa %s13, 0
    %15 = vsyncpa [#allocation8], 0
    %16 = vsyncpa [#allocation11], 0
    %17 = vsyncpa [#allocation6], 0
    %s18 = scalar_lea.sflag [#allocation6], 1
    %19 = vsyncpa %s18, 0
    loop: start=0, step=1, limit=4
    $region2: #{tpu_custom_call.1} parent=1 // loop_pre_header
      _
    $region3: #{tpu_custom_call.1} parent=1 // loop_header
      %s21 = sphi 0, %s25
      %p22 = scmp.ge.s32.totalorder %s21, 4
      %s31 = sphi 0, %s33
      %s34 = sphi 0, %s31
      %s35 = sphi 0, %s34
      %s51 = sphi 0, %s35
      %s55 = sphi 0, %s55
      %s57 = sphi 0, %s55
      %s58 = sphi 0, %s57
      %s72 = sphi 0, %s58
      %s76 = sphi 0, %s76
      %s78 = sphi 0, %s76
      %s79 = sphi 0, %s78
      %s93 = sphi 0, %s79
      %s97 = sphi 0, %s97
      %s99 = sphi 0, %s97
      %s100 = sphi 0, %s99
      %s114 = sphi 0, %s100
      %s118 = sphi 0, %s118
      %s120 = sphi 0, %s118
      %s121 = sphi 0, %s120
      %s135 = sphi 0, %s121
      %s139 = sphi 0, %s139
      %s141 = sphi 0, %s139
      %s142 = sphi 0, %s141
      %s156 = sphi 0, %s142
      %s160 = sphi 0, %s160
      %s162 = sphi 0, %s160
      %s163 = sphi 0, %s162
      %s177 = sphi 0, %s163
      %s183 = sphi 0, %s185
      %s186 = sphi 0, %s183
      %s187 = sphi 0, %s186
      %s203 = sphi 0, %s187
    $region4: #{tpu_custom_call.1} parent=1 // loop_header_branch
      %24 = sbr.rel (%p22) target = $region8
    $region5: #{tpu_custom_call.1} parent=1 // loop_body
      %s26 = ssub.s32 %s21, 1
      %s27 = ssub.s32 %s21, 2
      %s28 = sadd.s32 %s21, 1
      %s29 = ssub.s32 %s21, %s28
      %p30 = scmp.eq.s32.totalorder %s29, 0
      %s32 = sadd.s32 %s31, 1
      %s33 = scalar_select %p30, %s31, %s32
      %p36 = pneg %p30
      %p37 = scmp.eq.s32.totalorder %s21, 1
      %p38 = por %p36, %p37
      %p39 = scmp.ne.s32.totalorder %s31, %s34
      %p40 = scmp.eq.s32.totalorder %s21, 0
      %p41 = por %p39, %p40
      %p42 = scmp.ne.s32.totalorder %s31, %s34
      %p43 = scmp.eq.s32.totalorder %s26, 1
      %p44 = por %p42, %p43
      %p45 = scmp.ne.s32.totalorder %s34, %s35
      %p46 = scmp.eq.s32.totalorder %s26, 0
      %p47 = por %p45, %p46
      %p48 = scmp.ne.s32.totalorder %s34, %s35
      %p49 = scmp.eq.s32.totalorder %s27, 1
      %p50 = por %p48, %p49
      %p52 = scmp.ne.s32.totalorder %s35, %s51
      %p53 = scmp.eq.s32.totalorder %s27, 0
      %p54 = por %p52, %p53
      %s56 = sadd.s32 %s55, 1
      %p59 = scmp.eq.s32.totalorder %s21, 1
      %p60 = scmp.ne.s32.totalorder %s55, %s57
      %p61 = scmp.eq.s32.totalorder %s21, 0
      %p62 = por %p60, %p61
      %p63 = scmp.ne.s32.totalorder %s55, %s57
      %p64 = scmp.eq.s32.totalorder %s26, 1
      %p65 = por %p63, %p64
      %p66 = scmp.ne.s32.totalorder %s57, %s58
      %p67 = scmp.eq.s32.totalorder %s26, 0
      %p68 = por %p66, %p67
      %p69 = scmp.ne.s32.totalorder %s57, %s58
      %p70 = scmp.eq.s32.totalorder %s27, 1
      %p71 = por %p69, %p70
      %p73 = scmp.ne.s32.totalorder %s58, %s72
      %p74 = scmp.eq.s32.totalorder %s27, 0
      %p75 = por %p73, %p74
      %s77 = sadd.s32 %s76, 1
      %p80 = scmp.eq.s32.totalorder %s21, 1
      %p81 = scmp.ne.s32.totalorder %s76, %s78
      %p82 = scmp.eq.s32.totalorder %s21, 0
      %p83 = por %p81, %p82
      %p84 = scmp.ne.s32.totalorder %s76, %s78
      %p85 = scmp.eq.s32.totalorder %s26, 1
      %p86 = por %p84, %p85
      %p87 = scmp.ne.s32.totalorder %s78, %s79
      %p88 = scmp.eq.s32.totalorder %s26, 0
      %p89 = por %p87, %p88
      %p90 = scmp.ne.s32.totalorder %s78, %s79
      %p91 = scmp.eq.s32.totalorder %s27, 1
      %p92 = por %p90, %p91
      %p94 = scmp.ne.s32.totalorder %s79, %s93
      %p95 = scmp.eq.s32.totalorder %s27, 0
      %p96 = por %p94, %p95
      %s98 = sadd.s32 %s97, 1
      %p101 = scmp.eq.s32.totalorder %s21, 1
      %p102 = scmp.ne.s32.totalorder %s97, %s99
      %p103 = scmp.eq.s32.totalorder %s21, 0
      %p104 = por %p102, %p103
      %p105 = scmp.ne.s32.totalorder %s97, %s99
      %p106 = scmp.eq.s32.totalorder %s26, 1
      %p107 = por %p105, %p106
      %p108 = scmp.ne.s32.totalorder %s99, %s100
      %p109 = scmp.eq.s32.totalorder %s26, 0
      %p110 = por %p108, %p109
      %p111 = scmp.ne.s32.totalorder %s99, %s100
      %p112 = scmp.eq.s32.totalorder %s27, 1
      %p113 = por %p111, %p112
      %p115 = scmp.ne.s32.totalorder %s100, %s114
      %p116 = scmp.eq.s32.totalorder %s27, 0
      %p117 = por %p115, %p116
      %s119 = sadd.s32 %s118, 1
      %p122 = scmp.eq.s32.totalorder %s21, 1
      %p123 = scmp.ne.s32.totalorder %s118, %s120
      %p124 = scmp.eq.s32.totalorder %s21, 0
      %p125 = por %p123, %p124
      %p126 = scmp.ne.s32.totalorder %s118, %s120
      %p127 = scmp.eq.s32.totalorder %s26, 1
      %p128 = por %p126, %p127
      %p129 = scmp.ne.s32.totalorder %s120, %s121
      %p130 = scmp.eq.s32.totalorder %s26, 0
      %p131 = por %p129, %p130
      %p132 = scmp.ne.s32.totalorder %s120, %s121
      %p133 = scmp.eq.s32.totalorder %s27, 1
      %p134 = por %p132, %p133
      %p136 = scmp.ne.s32.totalorder %s121, %s135
      %p137 = scmp.eq.s32.totalorder %s27, 0
      %p138 = por %p136, %p137
      %s140 = sadd.s32 %s139, 1
      %p143 = scmp.eq.s32.totalorder %s21, 1
      %p144 = scmp.ne.s32.totalorder %s139, %s141
      %p145 = scmp.eq.s32.totalorder %s21, 0
      %p146 = por %p144, %p145
      %p147 = scmp.ne.s32.totalorder %s139, %s141
      %p148 = scmp.eq.s32.totalorder %s26, 1
      %p149 = por %p147, %p148
      %p150 = scmp.ne.s32.totalorder %s141, %s142
      %p151 = scmp.eq.s32.totalorder %s26, 0
      %p152 = por %p150, %p151
      %p153 = scmp.ne.s32.totalorder %s141, %s142
      %p154 = scmp.eq.s32.totalorder %s27, 1
      %p155 = por %p153, %p154
      %p157 = scmp.ne.s32.totalorder %s142, %s156
      %p158 = scmp.eq.s32.totalorder %s27, 0
      %p159 = por %p157, %p158
      %s161 = sadd.s32 %s160, 1
      %p164 = scmp.eq.s32.totalorder %s21, 1
      %p165 = scmp.ne.s32.totalorder %s160, %s162
      %p166 = scmp.eq.s32.totalorder %s21, 0
      %p167 = por %p165, %p166
      %p168 = scmp.ne.s32.totalorder %s160, %s162
      %p169 = scmp.eq.s32.totalorder %s26, 1
      %p170 = por %p168, %p169
      %p171 = scmp.ne.s32.totalorder %s162, %s163
      %p172 = scmp.eq.s32.totalorder %s26, 0
      %p173 = por %p171, %p172
      %p174 = scmp.ne.s32.totalorder %s162, %s163
      %p175 = scmp.eq.s32.totalorder %s27, 1
      %p176 = por %p174, %p175
      %p178 = scmp.ne.s32.totalorder %s163, %s177
      %p179 = scmp.eq.s32.totalorder %s27, 0
      %p180 = por %p178, %p179
      %s181 = ssub.s32 %s21, %s28
      %p182 = scmp.eq.s32.totalorder %s181, 0
      %s184 = sadd.s32 %s183, 1
      %s185 = scalar_select %p182, %s183, %s184
      %p188 = pneg %p182
      %p189 = scmp.eq.s32.totalorder %s21, 1
      %p190 = por %p188, %p189
      %p191 = scmp.ne.s32.totalorder %s183, %s186
      %p192 = scmp.eq.s32.totalorder %s21, 0
      %p193 = por %p191, %p192
      %p194 = scmp.ne.s32.totalorder %s183, %s186
      %p195 = scmp.eq.s32.totalorder %s26, 1
      %p196 = por %p194, %p195
      %p197 = scmp.ne.s32.totalorder %s186, %s187
      %p198 = scmp.eq.s32.totalorder %s26, 0
      %p199 = por %p197, %p198
      %p200 = scmp.ne.s32.totalorder %s186, %s187
      %p201 = scmp.eq.s32.totalorder %s27, 1
      %p202 = por %p200, %p201
      %p204 = scmp.ne.s32.totalorder %s187, %s203
      %p205 = scmp.eq.s32.totalorder %s27, 0
      %p206 = por %p204, %p205
      %p207 = scmp.le.s32.totalorder 1, %s21
      %p208 = scmp.lt.s32.totalorder %s21, 3
      %p209 = pnand %p207, %p208
      %p210 = pneg %p209
      // Predicated region
      $region9: #{tpu_custom_call.1} parent=5 // pred_check
        _
      $region10: #{tpu_custom_call.1} parent=5 // pred_check_branch
        %212 = sbr.rel (%p209) target = $region12
      $region11: #{tpu_custom_call.1} parent=5 // pred_region
        %s213 = ssub.s32 %s21, 1
        // Predicated region
        $region13: #{tpu_custom_call.1} parent=11 // pred_check
          %p214 = pneg %p68
        $region14: #{tpu_custom_call.1} parent=11 // pred_check_branch
          %216 = sbr.rel (%p214) target = $region16
        $region15: #{tpu_custom_call.1} parent=11 // pred_region
          %s218 = ssub.s32 320, 320
          %219 = vsyncadd [#allocation8], %s218
          %s220 = sshll.u32 [#allocation7], 4
          %s221 = int_to_ptr.vmem [resolvable:$true] %s220
          %226 = dma.hbm_to_vmem [thread:$0]  %s1, 320, %s221, [#allocation8], 64, 64, 4
        $region16: #{tpu_custom_call.1} parent=11 // pred_fallthru
          _
        // Predicated region
        $region17: #{tpu_custom_call.1} parent=11 // pred_check
          %p227 = pneg %p89
        $region18: #{tpu_custom_call.1} parent=11 // pred_check_branch
          %229 = sbr.rel (%p227) target = $region20
        $region19: #{tpu_custom_call.1} parent=11 // pred_region
          %s231 = ssub.s32 18432, 18432
          %232 = vsyncadd [#allocation8], %s231
          %s233 = sshll.u32 [#allocation9], 4
          %s234 = int_to_ptr.vmem [resolvable:$true] %s233
          %239 = dma.hbm_to_vmem [thread:$0]  %s2, 18432, %s234, [#allocation8], 128, 128, 8
        $region20: #{tpu_custom_call.1} parent=11 // pred_fallthru
          _
        // Predicated region
        $region21: #{tpu_custom_call.1} parent=11 // pred_check
          %p240 = pneg %p110
        $region22: #{tpu_custom_call.1} parent=11 // pred_check_branch
          %242 = sbr.rel (%p240) target = $region24
        $region23: #{tpu_custom_call.1} parent=11 // pred_region
          %s244 = ssub.s32 18432, 18432
          %245 = vsyncadd [#allocation11], %s244
          %s246 = sshll.u32 [#allocation10], 4
          %s247 = int_to_ptr.vmem [resolvable:$true] %s246
          %252 = dma.hbm_to_vmem [thread:$0]  %s3, 18432, %s247, [#allocation11], 64, 64, 4
        $region24: #{tpu_custom_call.1} parent=11 // pred_fallthru
          _
        // Predicated region
        $region25: #{tpu_custom_call.1} parent=11 // pred_check
          %p253 = pneg %p131
        $region26: #{tpu_custom_call.1} parent=11 // pred_check_branch
          %255 = sbr.rel (%p253) target = $region28
        $region27: #{tpu_custom_call.1} parent=11 // pred_region
          _
        $region28: #{tpu_custom_call.1} parent=11 // pred_fallthru
          _
        // Predicated region
        $region29: #{tpu_custom_call.1} parent=11 // pred_check
          %p256 = pneg %p152
        $region30: #{tpu_custom_call.1} parent=11 // pred_check_branch
          %258 = sbr.rel (%p256) target = $region32
        $region31: #{tpu_custom_call.1} parent=11 // pred_region
          _
        $region32: #{tpu_custom_call.1} parent=11 // pred_fallthru
          _
        // Predicated region
        $region33: #{tpu_custom_call.1} parent=11 // pred_check
          %p259 = pneg %p173
        $region34: #{tpu_custom_call.1} parent=11 // pred_check_branch
          %261 = sbr.rel (%p259) target = $region36
        $region35: #{tpu_custom_call.1} parent=11 // pred_region
          _
        $region36: #{tpu_custom_call.1} parent=11 // pred_fallthru
          _
      $region12: #{tpu_custom_call.1} parent=5 // pred_fallthru
        _
      %p262 = scmp.lt.s32.totalorder %s21, 2
      // Predicated region
      $region37: #{tpu_custom_call.1} parent=5 // pred_check
        %p263 = pneg %p262
      $region38: #{tpu_custom_call.1} parent=5 // pred_check_branch
        %265 = sbr.rel (%p263) target = $region40
      $region39: #{tpu_custom_call.1} parent=5 // pred_region
        // Predicated region
        $region41: #{tpu_custom_call.1} parent=39 // pred_check
          %p266 = pneg %p41
        $region42: #{tpu_custom_call.1} parent=39 // pred_check_branch
          %268 = sbr.rel (%p266) target = $region44
        $region43: #{tpu_custom_call.1} parent=39 // pred_region
          %s269 = sand.u32 %s31, 1
          %s270 = scalar_lea.sflag [#allocation5], %s269
          %s271 = sand.u32 %s31, 1
          %s272 = smul.addr %s271, 128
          %s273 = scalar_lea.vmem [#allocation4], %s272
          %s275 = ssub.s32 2048, 2048
          %276 = vsyncadd %s270, %s275
          %s277 = smul.addr %s21, 32
          %s278 = smul.addr %s277, 64
          %s279 = scalar_lea.hbm %s0, %s278
          %s280 = sshll.u32 %s273, 4
          %s281 = int_to_ptr.vmem [resolvable:$true] %s280
          %286 = dma.hbm_to_vmem [thread:$0]  %s279, 2048, %s281, %s270, 64, 64, 4
        $region44: #{tpu_custom_call.1} parent=39 // pred_fallthru
          _
      $region40: #{tpu_custom_call.1} parent=5 // pred_fallthru
        _
      %p287 = scmp.le.s32.totalorder 1, %s21
      %p288 = scmp.lt.s32.totalorder %s21, 3
      %p289 = pnand %p287, %p288
      %p290 = pneg %p289
      // Predicated region
      $region45: #{tpu_custom_call.1} parent=5 // pred_check
        _
      $region46: #{tpu_custom_call.1} parent=5 // pred_check_branch
        %292 = sbr.rel (%p289) target = $region48
      $region47: #{tpu_custom_call.1} parent=5 // pred_region
        %s293 = ssub.s32 %s21, 1
        %s294 = sand.u32 %s34, 1
        %s295 = scalar_lea.sflag [#allocation5], %s294
        %s296 = sand.u32 %s34, 1
        %s297 = smul.addr %s296, 128
        %s298 = scalar_lea.vmem [#allocation4], %s297
        // Predicated region
        $region49: #{tpu_custom_call.1} parent=47 // pred_check
          %p299 = pneg %p47
        $region50: #{tpu_custom_call.1} parent=47 // pred_check_branch
          %301 = sbr.rel (%p299) target = $region52
        $region51: #{tpu_custom_call.1} parent=47 // pred_region
          %302 = dma.done %s295, 2048
        $region52: #{tpu_custom_call.1} parent=47 // pred_fallthru
          _
        // Predicated region
        $region53: #{tpu_custom_call.1} parent=47 // pred_check
          %p303 = pneg %p68
        $region54: #{tpu_custom_call.1} parent=47 // pred_check_branch
          %305 = sbr.rel (%p303) target = $region56
        $region55: #{tpu_custom_call.1} parent=47 // pred_region
          %306 = dma.done [#allocation8], 320
        $region56: #{tpu_custom_call.1} parent=47 // pred_fallthru
          _
        // Predicated region
        $region57: #{tpu_custom_call.1} parent=47 // pred_check
          %p307 = pneg %p89
        $region58: #{tpu_custom_call.1} parent=47 // pred_check_branch
          %309 = sbr.rel (%p307) target = $region60
        $region59: #{tpu_custom_call.1} parent=47 // pred_region
          %310 = dma.done [#allocation8], 18432
        $region60: #{tpu_custom_call.1} parent=47 // pred_fallthru
          _
        // Predicated region
        $region61: #{tpu_custom_call.1} parent=47 // pred_check
          %p311 = pneg %p110
        $region62: #{tpu_custom_call.1} parent=47 // pred_check_branch
          %313 = sbr.rel (%p311) target = $region64
        $region63: #{tpu_custom_call.1} parent=47 // pred_region
          %314 = dma.done [#allocation11], 18432
        $region64: #{tpu_custom_call.1} parent=47 // pred_fallthru
          _
        %s315 = sand.u32 %s34, 1
        %s316 = scalar_lea.sflag [#allocation5], %s315
        %s317 = sand.u32 %s34, 1
        %s318 = smul.addr %s317, 128
        %s319 = scalar_lea.vmem [#allocation4], %s318
        %p320 = pneg %p47
        %p321 = pneg %p44
        %p322 = pneg %p68
        %p323 = pneg %p65
        %p324 = pneg %p89
        %p325 = pneg %p86
        %p326 = pneg %p110
        %p327 = pneg %p107
        %p328 = pneg %p131
        %p329 = pneg %p128
        %p330 = pneg %p152
        %p331 = pneg %p149
        %p332 = pneg %p173
        %p333 = pneg %p170
        %p334 = pneg %p199
        %p335 = pneg %p196
        %s336 = sand.u32 %s186, 1
        %s337 = scalar_lea.sflag [#allocation6], %s336
        %s338 = sand.u32 %s186, 1
        %s339 = smul.addr %s338, 256
        %s340 = scalar_lea.vmem [#allocation12], %s339
        %342 = vst [vmem:[#allocation2] sm:$0xff] 0
        %343 = vst [vmem:[#allocation2 + $0x8] sm:$0xff] 0
        %344 = vst [vmem:[#allocation2 + $0x10] sm:$0xff] 0
        %s345 = scalar_lea.vmem [#allocation2], 408
        %346 = vst [vmem:[%s345] sm:$0xff] 0
        %347 = vst [vmem:[%s345 + $0x8] sm:$0xff] 0
        %348 = vst [vmem:[%s345 + $0x10] sm:$0xff] 0
        %349 = vst [vmem:[#allocation2] sm:$0xff] 0
        %350 = vst [vmem:[#allocation2 + $0x18] sm:$0xff] 0
        %351 = vst [vmem:[#allocation2 + $0x30] sm:$0xff] 0
        %352 = vst [vmem:[#allocation2 + $0x48] sm:$0xff] 0
        %353 = vst [vmem:[#allocation2 + $0x60] sm:$0xff] 0
        %354 = vst [vmem:[#allocation2 + $0x78] sm:$0xff] 0
        %355 = vst [vmem:[#allocation2 + $0x90] sm:$0xff] 0
        %356 = vst [vmem:[#allocation2 + $0xa8] sm:$0xff] 0
        %357 = vst [vmem:[#allocation2 + $0xc0] sm:$0xff] 0
        %358 = vst [vmem:[#allocation2 + $0xd8] sm:$0xff] 0
        %359 = vst [vmem:[#allocation2 + $0xf0] sm:$0xff] 0
        %360 = vst [vmem:[#allocation2 + $0x108] sm:$0xff] 0
        %361 = vst [vmem:[#allocation2 + $0x120] sm:$0xff] 0
        %362 = vst [vmem:[#allocation2 + $0x138] sm:$0xff] 0
        %363 = vst [vmem:[#allocation2 + $0x150] sm:$0xff] 0
        %364 = vst [vmem:[#allocation2 + $0x168] sm:$0xff] 0
        %365 = vst [vmem:[#allocation2 + $0x180] sm:$0xff] 0
        %366 = vst [vmem:[#allocation2 + $0x198] sm:$0xff] 0
        %367 = vst [vmem:[#allocation2 + $0x10] sm:$0xff] 0
        %368 = vst [vmem:[#allocation2 + $0x28] sm:$0xff] 0
        %369 = vst [vmem:[#allocation2 + $0x40] sm:$0xff] 0
        %370 = vst [vmem:[#allocation2 + $0x58] sm:$0xff] 0
        %371 = vst [vmem:[#allocation2 + $0x70] sm:$0xff] 0
        %372 = vst [vmem:[#allocation2 + $0x88] sm:$0xff] 0
        %373 = vst [vmem:[#allocation2 + $0xa0] sm:$0xff] 0
        %374 = vst [vmem:[#allocation2 + $0xb8] sm:$0xff] 0
        %375 = vst [vmem:[#allocation2 + $0xd0] sm:$0xff] 0
        %376 = vst [vmem:[#allocation2 + $0xe8] sm:$0xff] 0
        %377 = vst [vmem:[#allocation2 + $0x100] sm:$0xff] 0
        %378 = vst [vmem:[#allocation2 + $0x118] sm:$0xff] 0
        %379 = vst [vmem:[#allocation2 + $0x130] sm:$0xff] 0
        %380 = vst [vmem:[#allocation2 + $0x148] sm:$0xff] 0
        %381 = vst [vmem:[#allocation2 + $0x160] sm:$0xff] 0
        %382 = vst [vmem:[#allocation2 + $0x178] sm:$0xff] 0
        %383 = vst [vmem:[#allocation2 + $0x190] sm:$0xff] 0
        %384 = vst [vmem:[#allocation2 + $0x1a8] sm:$0xff] 0
        %385 = vst [vmem:[#allocation3] sm:$0xff] 0
        %386 = vst [vmem:[#allocation3 + $0x8] sm:$0xff] 0
        %387 = vst [vmem:[#allocation3 + $0x10] sm:$0xff] 0
        %388 = vst [vmem:[#allocation3 + $0x18] sm:$0xff] 0
        %389 = vst [vmem:[#allocation3 + $0x20] sm:$0xff] 0
        %390 = vst [vmem:[#allocation3 + $0x28] sm:$0xff] 0
        %s391 = scalar_lea.vmem [#allocation3], 816
        %392 = vst [vmem:[%s391] sm:$0xff] 0
        %393 = vst [vmem:[%s391 + $0x8] sm:$0xff] 0
        %394 = vst [vmem:[%s391 + $0x10] sm:$0xff] 0
        %395 = vst [vmem:[%s391 + $0x18] sm:$0xff] 0
        %396 = vst [vmem:[%s391 + $0x20] sm:$0xff] 0
        %397 = vst [vmem:[%s391 + $0x28] sm:$0xff] 0
        %398 = vst [vmem:[#allocation3] sm:$0xff] 0
        %399 = vst [vmem:[#allocation3 + $0x8] sm:$0xff] 0
        %400 = vst [vmem:[#allocation3 + $0x30] sm:$0xff] 0
        %401 = vst [vmem:[#allocation3 + $0x38] sm:$0xff] 0
        %402 = vst [vmem:[#allocation3 + $0x60] sm:$0xff] 0
        %403 = vst [vmem:[#allocation3 + $0x68] sm:$0xff] 0
        %404 = vst [vmem:[#allocation3 + $0x90] sm:$0xff] 0
        %405 = vst [vmem:[#allocation3 + $0x98] sm:$0xff] 0
        %406 = vst [vmem:[#allocation3 + $0xc0] sm:$0xff] 0
        %407 = vst [vmem:[#allocation3 + $0xc8] sm:$0xff] 0
        %408 = vst [vmem:[#allocation3 + $0xf0] sm:$0xff] 0
        %409 = vst [vmem:[#allocation3 + $0xf8] sm:$0xff] 0
        %410 = vst [vmem:[#allocation3 + $0x120] sm:$0xff] 0
        %411 = vst [vmem:[#allocation3 + $0x128] sm:$0xff] 0
        %412 = vst [vmem:[#allocation3 + $0x150] sm:$0xff] 0
        %413 = vst [vmem:[#allocation3 + $0x158] sm:$0xff] 0
        %414 = vst [vmem:[#allocation3 + $0x180] sm:$0xff] 0
        %415 = vst [vmem:[#allocation3 + $0x188] sm:$0xff] 0
        %416 = vst [vmem:[#allocation3 + $0x1b0] sm:$0xff] 0
        %417 = vst [vmem:[#allocation3 + $0x1b8] sm:$0xff] 0
        %418 = vst [vmem:[#allocation3 + $0x1e0] sm:$0xff] 0
        %419 = vst [vmem:[#allocation3 + $0x1e8] sm:$0xff] 0
        %420 = vst [vmem:[#allocation3 + $0x210] sm:$0xff] 0
        %421 = vst [vmem:[#allocation3 + $0x218] sm:$0xff] 0
        %422 = vst [vmem:[#allocation3 + $0x240] sm:$0xff] 0
        %423 = vst [vmem:[#allocation3 + $0x248] sm:$0xff] 0
        %424 = vst [vmem:[#allocation3 + $0x270] sm:$0xff] 0
        %425 = vst [vmem:[#allocation3 + $0x278] sm:$0xff] 0
        %426 = vst [vmem:[#allocation3 + $0x2a0] sm:$0xff] 0
        %427 = vst [vmem:[#allocation3 + $0x2a8] sm:$0xff] 0
        %428 = vst [vmem:[#allocation3 + $0x2d0] sm:$0xff] 0
        %429 = vst [vmem:[#allocation3 + $0x2d8] sm:$0xff] 0
        %430 = vst [vmem:[#allocation3 + $0x300] sm:$0xff] 0
        %431 = vst [vmem:[#allocation3 + $0x308] sm:$0xff] 0
        %432 = vst [vmem:[#allocation3 + $0x330] sm:$0xff] 0
        %433 = vst [vmem:[#allocation3 + $0x338] sm:$0xff] 0
        %434 = vst [vmem:[#allocation3 + $0x20] sm:$0xff] 0
        %435 = vst [vmem:[#allocation3 + $0x28] sm:$0xff] 0
        %436 = vst [vmem:[#allocation3 + $0x50] sm:$0xff] 0
        %437 = vst [vmem:[#allocation3 + $0x58] sm:$0xff] 0
        %438 = vst [vmem:[#allocation3 + $0x80] sm:$0xff] 0
        %439 = vst [vmem:[#allocation3 + $0x88] sm:$0xff] 0
        %440 = vst [vmem:[#allocation3 + $0xb0] sm:$0xff] 0
        %441 = vst [vmem:[#allocation3 + $0xb8] sm:$0xff] 0
        %442 = vst [vmem:[#allocation3 + $0xe0] sm:$0xff] 0
        %443 = vst [vmem:[#allocation3 + $0xe8] sm:$0xff] 0
        %444 = vst [vmem:[#allocation3 + $0x110] sm:$0xff] 0
        %445 = vst [vmem:[#allocation3 + $0x118] sm:$0xff] 0
        %446 = vst [vmem:[#allocation3 + $0x140] sm:$0xff] 0
        %447 = vst [vmem:[#allocation3 + $0x148] sm:$0xff] 0
        %448 = vst [vmem:[#allocation3 + $0x170] sm:$0xff] 0
        %449 = vst [vmem:[#allocation3 + $0x178] sm:$0xff] 0
        %450 = vst [vmem:[#allocation3 + $0x1a0] sm:$0xff] 0
        %451 = vst [vmem:[#allocation3 + $0x1a8] sm:$0xff] 0
        %452 = vst [vmem:[#allocation3 + $0x1d0] sm:$0xff] 0
        %453 = vst [vmem:[#allocation3 + $0x1d8] sm:$0xff] 0
        %454 = vst [vmem:[#allocation3 + $0x200] sm:$0xff] 0
        %455 = vst [vmem:[#allocation3 + $0x208] sm:$0xff] 0
        %456 = vst [vmem:[#allocation3 + $0x230] sm:$0xff] 0
        %457 = vst [vmem:[#allocation3 + $0x238] sm:$0xff] 0
        %458 = vst [vmem:[#allocation3 + $0x260] sm:$0xff] 0
        %459 = vst [vmem:[#allocation3 + $0x268] sm:$0xff] 0
        %460 = vst [vmem:[#allocation3 + $0x290] sm:$0xff] 0
        %461 = vst [vmem:[#allocation3 + $0x298] sm:$0xff] 0
        %462 = vst [vmem:[#allocation3 + $0x2c0] sm:$0xff] 0
        %463 = vst [vmem:[#allocation3 + $0x2c8] sm:$0xff] 0
        %464 = vst [vmem:[#allocation3 + $0x2f0] sm:$0xff] 0
        %465 = vst [vmem:[#allocation3 + $0x2f8] sm:$0xff] 0
        %466 = vst [vmem:[#allocation3 + $0x320] sm:$0xff] 0
        %467 = vst [vmem:[#allocation3 + $0x328] sm:$0xff] 0
        %468 = vst [vmem:[#allocation3 + $0x350] sm:$0xff] 0
        %469 = vst [vmem:[#allocation3 + $0x358] sm:$0xff] 0
        %v470 = vld [vmem:[#allocation7] sm:$0xf]
        %v471 = vld [vmem:[#allocation7 + $0x4] sm:$0xf]
        %v472 = vld [vmem:[#allocation7 + $0x8] sm:$0xf]
        %v473 = vld [vmem:[#allocation7 + $0xc] sm:$0xf]
        %v474 = vld [vmem:[#allocation7 + $0x10] sm:$0x3]
        %v475 = vld [vmem:[%s4] sm:$0x1]
        %v477 = vlaneseq
        %v478 = vshrl.u32 %v477, 7
        %v479 = vsub.s32 0, %v478
        %v480 = vrot.slane %v475, %v479
        %v482 = vld [vmem:[%s298] sm:$0xf]
        %v483 = vld [vmem:[%s298 + $0x4] sm:$0xf]
        %v484 = vld [vmem:[%s298 + $0x8] sm:$0xf]
        %v485 = vld [vmem:[%s298 + $0xc] sm:$0xf]
        %v486 = vld [vmem:[%s298 + $0x10] sm:$0xf]
        %v487 = vld [vmem:[%s298 + $0x14] sm:$0xf]
        %v488 = vld [vmem:[%s298 + $0x18] sm:$0xf]
        %v489 = vld [vmem:[%s298 + $0x1c] sm:$0xf]
        %v490 = vld [vmem:[%s298 + $0x20] sm:$0xf]
        %v491 = vld [vmem:[%s298 + $0x24] sm:$0xf]
        %v492 = vld [vmem:[%s298 + $0x28] sm:$0xf]
        %v493 = vld [vmem:[%s298 + $0x2c] sm:$0xf]
        %v494 = vld [vmem:[%s298 + $0x30] sm:$0xf]
        %v495 = vld [vmem:[%s298 + $0x34] sm:$0xf]
        %v496 = vld [vmem:[%s298 + $0x38] sm:$0xf]
        %v497 = vld [vmem:[%s298 + $0x3c] sm:$0xf]
        %v514 = vunpack.c.l.b16 %v482
        %v515 = vunpack.c.l.b16 %v483
        %v516 = vunpack.c.l.b16 %v484
        %v517 = vunpack.c.l.b16 %v485
        %v518 = vunpack.c.l.b16 %v486
        %v519 = vunpack.c.l.b16 %v487
        %v520 = vunpack.c.l.b16 %v488
        %v521 = vunpack.c.l.b16 %v489
        %v522 = vunpack.c.l.b16 %v490
        %v523 = vunpack.c.l.b16 %v491
        %v524 = vunpack.c.l.b16 %v492
        %v525 = vunpack.c.l.b16 %v493
        %v526 = vunpack.c.l.b16 %v494
        %v527 = vunpack.c.l.b16 %v495
        %v528 = vunpack.c.l.b16 %v496
        %v529 = vunpack.c.l.b16 %v497
        %v530 = vpack.c.b16 %v515, %v514
        %v531 = vpack.c.b16 %v517, %v516
        %v532 = vpack.c.b16 %v519, %v518
        %v533 = vpack.c.b16 %v521, %v520
        %v534 = vpack.c.b16 %v523, %v522
        %v535 = vpack.c.b16 %v525, %v524
        %v536 = vpack.c.b16 %v527, %v526
        %v537 = vpack.c.b16 %v529, %v528
        %v543 = vunpack.c.l.b16 %v470
        %v544 = vunpack.c.l.b16 %v471
        %v545 = vunpack.c.l.b16 %v472
        %v546 = vunpack.c.l.b16 %v473
        %v547 = vunpack.c.l.b16 %v474
        %v548 = vpack.c.b16 %v544, %v543
        %v549 = vpack.c.b16 %v546, %v545
        %v550 = vpack.c.b16 %v547, %v547
        %vm553 = vcmask 293888
        %v555 = vsel %vm553, %v530, 0
        %v558 = vsel %vm553, %v531, 0
        %v561 = vsel %vm553, %v532, 0
        %v564 = vsel %vm553, %v533, 0
        %v567 = vsel %vm553, %v534, 0
        %v570 = vsel %vm553, %v535, 0
        %v573 = vsel %vm553, %v536, 0
        %v576 = vsel %vm553, %v537, 0
        %vm578 = vcmask 1041408
        %v580 = vsel %vm578, %v550, 0
        %582 = vmatprep.subr.bf16.mxu0 0
        %583 = vmatpush1.bf16.msra.mxu0 %v548
        %584 = vmatprep.subr.bf16.mxu0 0
        %585 = vmatpush1.bf16.msra.mxu0 %v549
        %586 = vmatprep.subr.bf16.mxu0 0
        %587 = vmatpush1.bf16.msra.mxu0 %v580
        %588 = vmatprep.subr.bf16.mxu0 0
        %589 = vmatpush1.bf16.msra.mxu0 0
        %590 = vmatprep.subr.bf16.mxu0 0
        %591 = vmatpush1.bf16.msra.mxu0 0
        %592 = vmatprep.subr.bf16.mxu0 0
        %593 = vmatpush1.bf16.msra.mxu0 0
        %594 = vmatprep.subr.bf16.mxu0 0
        %595 = vmatpush1.bf16.msra.mxu0 0
        %596 = vmatprep.subr.bf16.mxu0 0
        %597 = vmatpush1.bf16.msra.mxu0 0
        %598 = vmatprep.subr.bf16.mxu0 0
        %599 = vmatpush1.bf16.msra.mxu0 0
        %600 = vmatprep.subr.bf16.mxu0 0
        %601 = vmatpush1.bf16.msra.mxu0 0
        %602 = vmatprep.subr.bf16.mxu0 0
        %603 = vmatpush1.bf16.msra.mxu0 0
        %604 = vmatprep.subr.bf16.mxu0 0
        %605 = vmatpush1.bf16.msra.mxu0 0
        %606 = vmatprep.subr.bf16.mxu0 0
        %607 = vmatpush1.bf16.msra.mxu0 0
        %608 = vmatprep.subr.bf16.mxu0 0
        %609 = vmatpush1.bf16.msra.mxu0 0
        %610 = vmatprep.subr.bf16.mxu0 0
        %611 = vmatpush1.bf16.msra.mxu0 0
        %612 = vmatprep.subr.bf16.mxu0 0
        %613 = vmatpush1.bf16.msra.mxu0 0
        %614 = vmatprep.mubr.bf16.mxu0 0
        %615 = vmatmul.mubr.bf16.gmra.mrb[0].mxu0 %v555
        %v616 = vpop.f32.mrb[0].mxu0
        %v617 = vadd.f32 %v480, %v616
        %v618 = vpop.f32.mrb[0].mxu0
        %v619 = vpop.f32.mrb[0].mxu0
        %v620 = vadd.f32 %v480, %v619
        %v621 = vpop.f32.mrb[0].mxu0
        %622 = vmatprep.mubr.bf16.mxu0 0
        %623 = vmatmul.mubr.bf16.gmra.mrb[0].mxu0 %v558
        %v624 = vpop.f32.mrb[0].mxu0
        %v625 = vadd.f32 %v480, %v624
        %v626 = vpop.f32.mrb[0].mxu0
        %v627 = vpop.f32.mrb[0].mxu0
        %v628 = vadd.f32 %v480, %v627
        %v629 = vpop.f32.mrb[0].mxu0
        %630 = vmatprep.mubr.bf16.mxu0 0
        %631 = vmatmul.mubr.bf16.gmra.mrb[0].mxu0 %v561
        %v632 = vpop.f32.mrb[0].mxu0
        %v633 = vadd.f32 %v480, %v632
        %v634 = vpop.f32.mrb[0].mxu0
        %v635 = vpop.f32.mrb[0].mxu0
        %v636 = vadd.f32 %v480, %v635
        %v637 = vpop.f32.mrb[0].mxu0
        %638 = vmatprep.mubr.bf16.mxu0 0
        %639 = vmatmul.mubr.bf16.gmra.mrb[0].mxu0 %v564
        %v640 = vpop.f32.mrb[0].mxu0
        %v641 = vadd.f32 %v480, %v640
        %v642 = vpop.f32.mrb[0].mxu0
        %v643 = vpop.f32.mrb[0].mxu0
        %v644 = vadd.f32 %v480, %v643
        %v645 = vpop.f32.mrb[0].mxu0
        %646 = vmatprep.mubr.bf16.mxu0 0
        %647 = vmatmul.mubr.bf16.gmra.mrb[0].mxu0 %v567
        %v648 = vpop.f32.mrb[0].mxu0
        %v649 = vadd.f32 %v480, %v648
        %v650 = vpop.f32.mrb[0].mxu0
        %v651 = vpop.f32.mrb[0].mxu0
        %v652 = vadd.f32 %v480, %v651
        %v653 = vpop.f32.mrb[0].mxu0
        %654 = vmatprep.mubr.bf16.mxu0 0
        %655 = vmatmul.mubr.bf16.gmra.mrb[0].mxu0 %v570
        %v656 = vpop.f32.mrb[0].mxu0
        %v657 = vadd.f32 %v480, %v656
        %v658 = vpop.f32.mrb[0].mxu0
        %v659 = vpop.f32.mrb[0].mxu0
        %v660 = vadd.f32 %v480, %v659
        %v661 = vpop.f32.mrb[0].mxu0
        %662 = vmatprep.mubr.bf16.mxu0 0
        %663 = vmatmul.mubr.bf16.gmra.mrb[0].mxu0 %v573
        %v664 = vpop.f32.mrb[0].mxu0
        %v665 = vadd.f32 %v480, %v664
        %v666 = vpop.f32.mrb[0].mxu0
        %v667 = vpop.f32.mrb[0].mxu0
        %v668 = vadd.f32 %v480, %v667
        %v669 = vpop.f32.mrb[0].mxu0
        %670 = vmatprep.mubr.bf16.mxu0 0
        %671 = vmatmul.mubr.bf16.gmra.mrb[0].mxu0 %v576
        %v672 = vpop.f32.mrb[0].mxu0
        %v673 = vadd.f32 %v480, %v672
        %v674 = vpop.f32.mrb[0].mxu0
        %v675 = vpop.f32.mrb[0].mxu0
        %v676 = vadd.f32 %v480, %v675
        %v677 = vpop.f32.mrb[0].mxu0
        %678 = vdwg.mxu0
        %v679 = vmax.f32 %v617, 0.0
        %v680 = vmax.f32 %v620, 0.0
        %v681 = vmax.f32 %v625, 0.0
        %v682 = vmax.f32 %v628, 0.0
        %v683 = vmax.f32 %v633, 0.0
        %v684 = vmax.f32 %v636, 0.0
        %v685 = vmax.f32 %v641, 0.0
        %v686 = vmax.f32 %v644, 0.0
        %v687 = vmax.f32 %v649, 0.0
        %v688 = vmax.f32 %v652, 0.0
        %v689 = vmax.f32 %v657, 0.0
        %v690 = vmax.f32 %v660, 0.0
        %v691 = vmax.f32 %v665, 0.0
        %v692 = vmax.f32 %v668, 0.0
        %v693 = vmax.f32 %v673, 0.0
        %v694 = vmax.f32 %v676, 0.0
        %v695 = vpack.c.bf16 %v680, %v679
        %v696 = vpack.c.bf16 %v682, %v681
        %v697 = vpack.c.bf16 %v684, %v683
        %v698 = vpack.c.bf16 %v686, %v685
        %v699 = vpack.c.bf16 %v688, %v687
        %v700 = vpack.c.bf16 %v690, %v689
        %v701 = vpack.c.bf16 %v692, %v691
        %v702 = vpack.c.bf16 %v694, %v693
        %s703 = scalar_lea.vmem [#allocation2], 24
        %704 = vst [vmem:[%s703 + $0x8] sm:$0xff] %v695
        %705 = vst [vmem:[%s703 + $0x20] sm:$0xff] %v696
        %706 = vst [vmem:[%s703 + $0x38] sm:$0xff] %v697
        %707 = vst [vmem:[%s703 + $0x50] sm:$0xff] %v698
        %708 = vst [vmem:[%s703 + $0x68] sm:$0xff] %v699
        %709 = vst [vmem:[%s703 + $0x80] sm:$0xff] %v700
        %710 = vst [vmem:[%s703 + $0x98] sm:$0xff] %v701
        %711 = vst [vmem:[%s703 + $0xb0] sm:$0xff] %v702
        %s712 = scalar_lea.vmem %s298, 64 [#allocation4]
        %v713 = vld [vmem:[%s712] sm:$0xf]
        %v714 = vld [vmem:[%s712 + $0x4] sm:$0xf]
        %v715 = vld [vmem:[%s712 + $0x8] sm:$0xf]
        %v716 = vld [vmem:[%s712 + $0xc] sm:$0xf]
        %v717 = vld [vmem:[%s712 + $0x10] sm:$0xf]
        %v718 = vld [vmem:[%s712 + $0x14] sm:$0xf]
        %v719 = vld [vmem:[%s712 + $0x18] sm:$0xf]
        %v720 = vld [vmem:[%s712 + $0x1c] sm:$0xf]
        %v721 = vld [vmem:[%s712 + $0x20] sm:$0xf]
        %v722 = vld [vmem:[%s712 + $0x24] sm:$0xf]
        %v723 = vld [vmem:[%s712 + $0x28] sm:$0xf]
        %v724 = vld [vmem:[%s712 + $0x2c] sm:$0xf]
        %v725 = vld [vmem:[%s712 + $0x30] sm:$0xf]
        %v726 = vld [vmem:[%s712 + $0x34] sm:$0xf]
        %v727 = vld [vmem:[%s712 + $0x38] sm:$0xf]
        %v728 = vld [vmem:[%s712 + $0x3c] sm:$0xf]
        %v745 = vunpack.c.l.b16 %v713
        %v746 = vunpack.c.l.b16 %v714
        %v747 = vunpack.c.l.b16 %v715
        %v748 = vunpack.c.l.b16 %v716
        %v749 = vunpack.c.l.b16 %v717
        %v750 = vunpack.c.l.b16 %v718
        %v751 = vunpack.c.l.b16 %v719
        %v752 = vunpack.c.l.b16 %v720
        %v753 = vunpack.c.l.b16 %v721
        %v754 = vunpack.c.l.b16 %v722
        %v755 = vunpack.c.l.b16 %v723
        %v756 = vunpack.c.l.b16 %v724
        %v757 = vunpack.c.l.b16 %v725
        %v758 = vunpack.c.l.b16 %v726
        %v759 = vunpack.c.l.b16 %v727
        %v760 = vunpack.c.l.b16 %v728
        %v761 = vpack.c.b16 %v746, %v745
        %v762 = vpack.c.b16 %v748, %v747
        %v763 = vpack.c.b16 %v750, %v749
        %v764 = vpack.c.b16 %v752, %v751
        %v765 = vpack.c.b16 %v754, %v753
        %v766 = vpack.c.b16 %v756, %v755
        %v767 = vpack.c.b16 %v758, %v757
        %v768 = vpack.c.b16 %v760, %v759
        %v770 = vsel %vm553, %v761, 0
        %v773 = vsel %vm553, %v762, 0
        %v776 = vsel %vm553, %v763, 0
        %v779 = vsel %vm553, %v764, 0
        %v782 = vsel %vm553, %v765, 0
        %v785 = vsel %vm553, %v766, 0
        %v788 = vsel %vm553, %v767, 0
        %v791 = vsel %vm553, %v768, 0
        %793 = vmatprep.subr.bf16.mxu0 0
        %794 = vmatpush1.bf16.msra.mxu0 %v548
        %795 = vmatprep.subr.bf16.mxu0 0
        %796 = vmatpush1.bf16.msra.mxu0 %v549
        %797 = vmatprep.subr.bf16.mxu0 0
        %798 = vmatpush1.bf16.msra.mxu0 %v580
        %799 = vmatprep.subr.bf16.mxu0 0
        %800 = vmatpush1.bf16.msra.mxu0 0
        %801 = vmatprep.subr.bf16.mxu0 0
        %802 = vmatpush1.bf16.msra.mxu0 0
        %803 = vmatprep.subr.bf16.mxu0 0
        %804 = vmatpush1.bf16.msra.mxu0 0
        %805 = vmatprep.subr.bf16.mxu0 0
        %806 = vmatpush1.bf16.msra.mxu0 0
        %807 = vmatprep.subr.bf16.mxu0 0
        %808 = vmatpush1.bf16.msra.mxu0 0
        %809 = vmatprep.subr.bf16.mxu0 0
        %810 = vmatpush1.bf16.msra.mxu0 0
        %811 = vmatprep.subr.bf16.mxu0 0
        %812 = vmatpush1.bf16.msra.mxu0 0
        %813 = vmatprep.subr.bf16.mxu0 0
        %814 = vmatpush1.bf16.msra.mxu0 0
        %815 = vmatprep.subr.bf16.mxu0 0
        %816 = vmatpush1.bf16.msra.mxu0 0
        %817 = vmatprep.subr.bf16.mxu0 0
        %818 = vmatpush1.bf16.msra.mxu0 0
        %819 = vmatprep.subr.bf16.mxu0 0
        %820 = vmatpush1.bf16.msra.mxu0 0
        %821 = vmatprep.subr.bf16.mxu0 0
        %822 = vmatpush1.bf16.msra.mxu0 0
        %823 = vmatprep.subr.bf16.mxu0 0
        %824 = vmatpush1.bf16.msra.mxu0 0
        %825 = vmatprep.mubr.bf16.mxu0 0
        %826 = vmatmul.mubr.bf16.gmra.mrb[0].mxu0 %v770
        %v827 = vpop.f32.mrb[0].mxu0
        %v828 = vadd.f32 %v480, %v827
        %v829 = vpop.f32.mrb[0].mxu0
        %v830 = vpop.f32.mrb[0].mxu0
        %v831 = vadd.f32 %v480, %v830
        %v832 = vpop.f32.mrb[0].mxu0
        %833 = vmatprep.mubr.bf16.mxu0 0
        %834 = vmatmul.mubr.bf16.gmra.mrb[0].mxu0 %v773
        %v835 = vpop.f32.mrb[0].mxu0
        %v836 = vadd.f32 %v480, %v835
        %v837 = vpop.f32.mrb[0].mxu0
        %v838 = vpop.f32.mrb[0].mxu0
        %v839 = vadd.f32 %v480, %v838
        %v840 = vpop.f32.mrb[0].mxu0
        %841 = vmatprep.mubr.bf16.mxu0 0
        %842 = vmatmul.mubr.bf16.gmra.mrb[0].mxu0 %v776
        %v843 = vpop.f32.mrb[0].mxu0
        %v844 = vadd.f32 %v480, %v843
        %v845 = vpop.f32.mrb[0].mxu0
        %v846 = vpop.f32.mrb[0].mxu0
        %v847 = vadd.f32 %v480, %v846
        %v848 = vpop.f32.mrb[0].mxu0
        %849 = vmatprep.mubr.bf16.mxu0 0
        %850 = vmatmul.mubr.bf16.gmra.mrb[0].mxu0 %v779
        %v851 = vpop.f32.mrb[0].mxu0
        %v852 = vadd.f32 %v480, %v851
        %v853 = vpop.f32.mrb[0].mxu0
        %v854 = vpop.f32.mrb[0].mxu0
        %v855 = vadd.f32 %v480, %v854
        %v856 = vpop.f32.mrb[0].mxu0
        %857 = vmatprep.mubr.bf16.mxu0 0
        %858 = vmatmul.mubr.bf16.gmra.mrb[0].mxu0 %v782
        %v859 = vpop.f32.mrb[0].mxu0
        %v860 = vadd.f32 %v480, %v859
        %v861 = vpop.f32.mrb[0].mxu0
        %v862 = vpop.f32.mrb[0].mxu0
        %v863 = vadd.f32 %v480, %v862
        %v864 = vpop.f32.mrb[0].mxu0
        %865 = vmatprep.mubr.bf16.mxu0 0
        %866 = vmatmul.mubr.bf16.gmra.mrb[0].mxu0 %v785
        %v867 = vpop.f32.mrb[0].mxu0
        %v868 = vadd.f32 %v480, %v867
        %v869 = vpop.f32.mrb[0].mxu0
        %v870 = vpop.f32.mrb[0].mxu0
        %v871 = vadd.f32 %v480, %v870
        %v872 = vpop.f32.mrb[0].mxu0
        %873 = vmatprep.mubr.bf16.mxu0 0
        %874 = vmatmul.mubr.bf16.gmra.mrb[0].mxu0 %v788
        %v875 = vpop.f32.mrb[0].mxu0
        %v876 = vadd.f32 %v480, %v875
        %v877 = vpop.f32.mrb[0].mxu0
        %v878 = vpop.f32.mrb[0].mxu0
        %v879 = vadd.f32 %v480, %v878
        %v880 = vpop.f32.mrb[0].mxu0
        %881 = vmatprep.mubr.bf16.mxu0 0
        %882 = vmatmul.mubr.bf16.gmra.mrb[0].mxu0 %v791
        %v883 = vpop.f32.mrb[0].mxu0
        %v884 = vadd.f32 %v480, %v883
        %v885 = vpop.f32.mrb[0].mxu0
        %v886 = vpop.f32.mrb[0].mxu0
        %v887 = vadd.f32 %v480, %v886
        %v888 = vpop.f32.mrb[0].mxu0
        %889 = vdwg.mxu0
        %v890 = vmax.f32 %v828, 0.0
        %v891 = vmax.f32 %v831, 0.0
        %v892 = vmax.f32 %v836, 0.0
        %v893 = vmax.f32 %v839, 0.0
        %v894 = vmax.f32 %v844, 0.0
        %v895 = vmax.f32 %v847, 0.0
        %v896 = vmax.f32 %v852, 0.0
        %v897 = vmax.f32 %v855, 0.0
        %v898 = vmax.f32 %v860, 0.0
        %v899 = vmax.f32 %v863, 0.0
        %v900 = vmax.f32 %v868, 0.0
        %v901 = vmax.f32 %v871, 0.0
        %v902 = vmax.f32 %v876, 0.0
        %v903 = vmax.f32 %v879, 0.0
        %v904 = vmax.f32 %v884, 0.0
        %v905 = vmax.f32 %v887, 0.0
        %v906 = vpack.c.bf16 %v891, %v890
        %v907 = vpack.c.bf16 %v893, %v892
        %v908 = vpack.c.bf16 %v895, %v894
        %v909 = vpack.c.bf16 %v897, %v896
        %v910 = vpack.c.bf16 %v899, %v898
        %v911 = vpack.c.bf16 %v901, %v900
        %v912 = vpack.c.bf16 %v903, %v902
        %v913 = vpack.c.bf16 %v905, %v904
        %s914 = scalar_lea.vmem [#allocation2], 216
        %915 = vst [vmem:[%s914 + $0x8] sm:$0xff] %v906
        %916 = vst [vmem:[%s914 + $0x20] sm:$0xff] %v907
        %917 = vst [vmem:[%s914 + $0x38] sm:$0xff] %v908
        %918 = vst [vmem:[%s914 + $0x50] sm:$0xff] %v909
        %919 = vst [vmem:[%s914 + $0x68] sm:$0xff] %v910
        %920 = vst [vmem:[%s914 + $0x80] sm:$0xff] %v911
        %921 = vst [vmem:[%s914 + $0x98] sm:$0xff] %v912
        %922 = vst [vmem:[%s914 + $0xb0] sm:$0xff] %v913
        %v923 = vld [vmem:[%s5] sm:$0x3]
        %v925 = vlaneseq
        %v926 = vshrl.u32 %v925, 7
        %v927 = vsub.s32 0, %v926
        %v928 = vrot.slane %v923, %v927
        %v929 = vlaneseq
        %v930 = vshrl.u32 %v929, 7
        %v931 = vsub.s32 1, %v930
        %v932 = vrot.slane %v923, %v931
        %v935 = vld [vmem:[#allocation2] sm:$0x80]
        %v936 = vld [vmem:[#allocation2 + $0x8] sm:$0xff]
        %v937 = vld [vmem:[#allocation2 + $0x18] sm:$0x80]
        %v938 = vld [vmem:[#allocation2 + $0x20] sm:$0xff]
        %v939 = vld [vmem:[#allocation2 + $0x30] sm:$0x80]
        %v940 = vld [vmem:[#allocation2 + $0x38] sm:$0xff]
        %v941 = vld [vmem:[#allocation2 + $0x48] sm:$0x80]
        %v942 = vld [vmem:[#allocation2 + $0x50] sm:$0xff]
        %v943 = vld [vmem:[#allocation2 + $0x60] sm:$0x80]
        %v944 = vld [vmem:[#allocation2 + $0x68] sm:$0xff]
        %v945 = vld [vmem:[#allocation2 + $0x78] sm:$0x80]
        %v946 = vld [vmem:[#allocation2 + $0x80] sm:$0xff]
        %v947 = vld [vmem:[#allocation2 + $0x90] sm:$0x80]
        %v948 = vld [vmem:[#allocation2 + $0x98] sm:$0xff]
        %v949 = vld [vmem:[#allocation2 + $0xa8] sm:$0x80]
        %v950 = vld [vmem:[#allocation2 + $0xb0] sm:$0xff]
        %v951 = vld [vmem:[#allocation2 + $0x10] sm:$0x1]
        %v952 = vld [vmem:[#allocation2 + $0x28] sm:$0x1]
        %v953 = vld [vmem:[#allocation2 + $0x40] sm:$0x1]
        %v954 = vld [vmem:[#allocation2 + $0x58] sm:$0x1]
        %v955 = vld [vmem:[#allocation2 + $0x70] sm:$0x1]
        %v956 = vld [vmem:[#allocation2 + $0x88] sm:$0x1]
        %v957 = vld [vmem:[#allocation2 + $0xa0] sm:$0x1]
        %v958 = vld [vmem:[#allocation2 + $0xb8] sm:$0x1]
        %v960 = vshll.u32 %v936, 16
        %v962 = vrot.slane %v960, 1
        %v963 = vshrl.u32 %v936, 16
        %v965 = vor.u32 %v963, %v962
        %v967 = vshll.u32 %v938, 16
        %v969 = vrot.slane %v967, 1
        %v970 = vshrl.u32 %v938, 16
        %v972 = vor.u32 %v970, %v969
        %v974 = vshll.u32 %v940, 16
        %v976 = vrot.slane %v974, 1
        %v977 = vshrl.u32 %v940, 16
        %v979 = vor.u32 %v977, %v976
        %v981 = vshll.u32 %v942, 16
        %v983 = vrot.slane %v981, 1
        %v984 = vshrl.u32 %v942, 16
        %v986 = vor.u32 %v984, %v983
        %v988 = vshll.u32 %v944, 16
        %v990 = vrot.slane %v988, 1
        %v991 = vshrl.u32 %v944, 16
        %v993 = vor.u32 %v991, %v990
        %v995 = vshll.u32 %v946, 16
        %v997 = vrot.slane %v995, 1
        %v998 = vshrl.u32 %v946, 16
        %v1000 = vor.u32 %v998, %v997
        %v1002 = vshll.u32 %v948, 16
        %v1004 = vrot.slane %v1002, 1
        %v1005 = vshrl.u32 %v948, 16
        %v1007 = vor.u32 %v1005, %v1004
        %v1009 = vshll.u32 %v950, 16
        %v1011 = vrot.slane %v1009, 1
        %v1012 = vshrl.u32 %v950, 16
        %v1014 = vor.u32 %v1012, %v1011
        %vm1031 = vcmask 1046528
        %v1032 = vrot.slane %v936, 1
        %v1033 = vrot.slane %v951, 1
        %v1034 = vsel %vm1031, %v1032, %v1033
        %v1035 = vrot.slane %v938, 1
        %v1036 = vrot.slane %v952, 1
        %v1037 = vsel %vm1031, %v1035, %v1036
        %v1038 = vrot.slane %v940, 1
        %v1039 = vrot.slane %v953, 1
        %v1040 = vsel %vm1031, %v1038, %v1039
        %v1041 = vrot.slane %v942, 1
        %v1042 = vrot.slane %v954, 1
        %v1043 = vsel %vm1031, %v1041, %v1042
        %v1044 = vrot.slane %v944, 1
        %v1045 = vrot.slane %v955, 1
        %v1046 = vsel %vm1031, %v1044, %v1045
        %v1047 = vrot.slane %v946, 1
        %v1048 = vrot.slane %v956, 1
        %v1049 = vsel %vm1031, %v1047, %v1048
        %v1050 = vrot.slane %v948, 1
        %v1051 = vrot.slane %v957, 1
        %v1052 = vsel %vm1031, %v1050, %v1051
        %v1053 = vrot.slane %v950, 1
        %v1054 = vrot.slane %v958, 1
        %v1055 = vsel %vm1031, %v1053, %v1054
        %vm1056 = vsmask.f32 256
        %v1058 = vshrl.u32 %v935, 16
        %v1060 = vrot.slane %v1058, 7
        %v1061 = vrot.slane %v963, 7
        %v1062 = vor.u32 %v1061, %v960
        %v1063 = vsel %vm1056, %v1060, %v1062
        %v1065 = vshrl.u32 %v962, 16
        %v1067 = vrot.slane %v1065, 7
        %v1069 = vshrl.u32 %v965, 16
        %v1071 = vrot.slane %v1069, 7
        %v1072 = vshll.u32 %v965, 16
        %v1074 = vor.u32 %v1071, %v1072
        %v1075 = vsel %vm1056, %v1067, %v1074
        %v1077 = vshrl.u32 %v1032, 16
        %v1079 = vrot.slane %v1077, 7
        %v1081 = vshrl.u32 %v1034, 16
        %v1083 = vrot.slane %v1081, 7
        %v1084 = vshll.u32 %v1034, 16
        %v1086 = vor.u32 %v1083, %v1084
        %v1087 = vsel %vm1056, %v1079, %v1086
        %v1089 = vshrl.u32 %v937, 16
        %v1091 = vrot.slane %v1089, 7
        %v1092 = vrot.slane %v970, 7
        %v1093 = vor.u32 %v1092, %v967
        %v1094 = vsel %vm1056, %v1091, %v1093
        %v1096 = vshrl.u32 %v969, 16
        %v1098 = vrot.slane %v1096, 7
        %v1100 = vshrl.u32 %v972, 16
        %v1102 = vrot.slane %v1100, 7
        %v1103 = vshll.u32 %v972, 16
        %v1105 = vor.u32 %v1102, %v1103
        %v1106 = vsel %vm1056, %v1098, %v1105
        %v1108 = vshrl.u32 %v1035, 16
        %v1110 = vrot.slane %v1108, 7
        %v1112 = vshrl.u32 %v1037, 16
        %v1114 = vrot.slane %v1112, 7
        %v1115 = vshll.u32 %v1037, 16
        %v1117 = vor.u32 %v1114, %v1115
        %v1118 = vsel %vm1056, %v1110, %v1117
        %v1120 = vshrl.u32 %v939, 16
        %v1122 = vrot.slane %v1120, 7
        %v1123 = vrot.slane %v977, 7
        %v1124 = vor.u32 %v1123, %v974
        %v1125 = vsel %vm1056, %v1122, %v1124
        %v1127 = vshrl.u32 %v976, 16
        %v1129 = vrot.slane %v1127, 7
        %v1131 = vshrl.u32 %v979, 16
        %v1133 = vrot.slane %v1131, 7
        %v1134 = vshll.u32 %v979, 16
        %v1136 = vor.u32 %v1133, %v1134
        %v1137 = vsel %vm1056, %v1129, %v1136
        %v1139 = vshrl.u32 %v1038, 16
        %v1141 = vrot.slane %v1139, 7
        %v1143 = vshrl.u32 %v1040, 16
        %v1145 = vrot.slane %v1143, 7
        %v1146 = vshll.u32 %v1040, 16
        %v1148 = vor.u32 %v1145, %v1146
        %v1149 = vsel %vm1056, %v1141, %v1148
        %v1151 = vshrl.u32 %v941, 16
        %v1153 = vrot.slane %v1151, 7
        %v1154 = vrot.slane %v984, 7
        %v1155 = vor.u32 %v1154, %v981
        %v1156 = vsel %vm1056, %v1153, %v1155
        %v1158 = vshrl.u32 %v983, 16
        %v1160 = vrot.slane %v1158, 7
        %v1162 = vshrl.u32 %v986, 16
        %v1164 = vrot.slane %v1162, 7
        %v1165 = vshll.u32 %v986, 16
        %v1167 = vor.u32 %v1164, %v1165
        %v1168 = vsel %vm1056, %v1160, %v1167
        %v1170 = vshrl.u32 %v1041, 16
        %v1172 = vrot.slane %v1170, 7
        %v1174 = vshrl.u32 %v1043, 16
        %v1176 = vrot.slane %v1174, 7
        %v1177 = vshll.u32 %v1043, 16
        %v1179 = vor.u32 %v1176, %v1177
        %v1180 = vsel %vm1056, %v1172, %v1179
        %v1182 = vshrl.u32 %v943, 16
        %v1184 = vrot.slane %v1182, 7
        %v1185 = vrot.slane %v991, 7
        %v1186 = vor.u32 %v1185, %v988
        %v1187 = vsel %vm1056, %v1184, %v1186
        %v1189 = vshrl.u32 %v990, 16
        %v1191 = vrot.slane %v1189, 7
        %v1193 = vshrl.u32 %v993, 16
        %v1195 = vrot.slane %v1193, 7
        %v1196 = vshll.u32 %v993, 16
        %v1198 = vor.u32 %v1195, %v1196
        %v1199 = vsel %vm1056, %v1191, %v1198
        %v1201 = vshrl.u32 %v1044, 16
        %v1203 = vrot.slane %v1201, 7
        %v1205 = vshrl.u32 %v1046, 16
        %v1207 = vrot.slane %v1205, 7
        %v1208 = vshll.u32 %v1046, 16
        %v1210 = vor.u32 %v1207, %v1208
        %v1211 = vsel %vm1056, %v1203, %v1210
        %v1213 = vshrl.u32 %v945, 16
        %v1215 = vrot.slane %v1213, 7
        %v1216 = vrot.slane %v998, 7
        %v1217 = vor.u32 %v1216, %v995
        %v1218 = vsel %vm1056, %v1215, %v1217
        %v1220 = vshrl.u32 %v997, 16
        %v1222 = vrot.slane %v1220, 7
        %v1224 = vshrl.u32 %v1000, 16
        %v1226 = vrot.slane %v1224, 7
        %v1227 = vshll.u32 %v1000, 16
        %v1229 = vor.u32 %v1226, %v1227
        %v1230 = vsel %vm1056, %v1222, %v1229
        %v1232 = vshrl.u32 %v1047, 16
        %v1234 = vrot.slane %v1232, 7
        %v1236 = vshrl.u32 %v1049, 16
        %v1238 = vrot.slane %v1236, 7
        %v1239 = vshll.u32 %v1049, 16
        %v1241 = vor.u32 %v1238, %v1239
        %v1242 = vsel %vm1056, %v1234, %v1241
        %v1244 = vshrl.u32 %v947, 16
        %v1246 = vrot.slane %v1244, 7
        %v1247 = vrot.slane %v1005, 7
        %v1248 = vor.u32 %v1247, %v1002
        %v1249 = vsel %vm1056, %v1246, %v1248
        %v1251 = vshrl.u32 %v1004, 16
        %v1253 = vrot.slane %v1251, 7
        %v1255 = vshrl.u32 %v1007, 16
        %v1257 = vrot.slane %v1255, 7
        %v1258 = vshll.u32 %v1007, 16
        %v1260 = vor.u32 %v1257, %v1258
        %v1261 = vsel %vm1056, %v1253, %v1260
        %v1263 = vshrl.u32 %v1050, 16
        %v1265 = vrot.slane %v1263, 7
        %v1267 = vshrl.u32 %v1052, 16
        %v1269 = vrot.slane %v1267, 7
        %v1270 = vshll.u32 %v1052, 16
        %v1272 = vor.u32 %v1269, %v1270
        %v1273 = vsel %vm1056, %v1265, %v1272
        %v1275 = vshrl.u32 %v949, 16
        %v1277 = vrot.slane %v1275, 7
        %v1278 = vrot.slane %v1012, 7
        %v1279 = vor.u32 %v1278, %v1009
        %v1280 = vsel %vm1056, %v1277, %v1279
        %v1282 = vshrl.u32 %v1011, 16
        %v1284 = vrot.slane %v1282, 7
        %v1286 = vshrl.u32 %v1014, 16
        %v1288 = vrot.slane %v1286, 7
        %v1289 = vshll.u32 %v1014, 16
        %v1291 = vor.u32 %v1288, %v1289
        %v1292 = vsel %vm1056, %v1284, %v1291
        %v1294 = vshrl.u32 %v1053, 16
        %v1296 = vrot.slane %v1294, 7
        %v1298 = vshrl.u32 %v1055, 16
        %v1300 = vrot.slane %v1298, 7
        %v1301 = vshll.u32 %v1055, 16
        %v1303 = vor.u32 %v1300, %v1301
        %v1304 = vsel %vm1056, %v1296, %v1303
        %v1329 = vld [vmem:[#allocation9] sm:$0xff]
        %v1330 = vld [vmem:[#allocation9 + $0x8] sm:$0xff]
        %v1331 = vld [vmem:[#allocation9 + $0x10] sm:$0xff]
        %v1332 = vld [vmem:[#allocation9 + $0x18] sm:$0xff]
        %v1333 = vld [vmem:[#allocation9 + $0x20] sm:$0xff]
        %v1334 = vld [vmem:[#allocation9 + $0x28] sm:$0xff]
        %v1335 = vld [vmem:[#allocation9 + $0x30] sm:$0xff]
        %v1336 = vld [vmem:[#allocation9 + $0x38] sm:$0xff]
        %v1337 = vld [vmem:[#allocation9 + $0x40] sm:$0xff]
        %v1338 = vld [vmem:[#allocation9 + $0x48] sm:$0xff]
        %v1339 = vld [vmem:[#allocation9 + $0x50] sm:$0xff]
        %v1340 = vld [vmem:[#allocation9 + $0x58] sm:$0xff]
        %v1341 = vld [vmem:[#allocation9 + $0x60] sm:$0xff]
        %v1342 = vld [vmem:[#allocation9 + $0x68] sm:$0xff]
        %v1343 = vld [vmem:[#allocation9 + $0x70] sm:$0xff]
        %v1344 = vld [vmem:[#allocation9 + $0x78] sm:$0xff]
        %v1345 = vld [vmem:[#allocation9 + $0x80] sm:$0xff]
        %v1346 = vld [vmem:[#allocation9 + $0x88] sm:$0xff]
        %v1347 = vld [vmem:[#allocation9 + $0x90] sm:$0xff]
        %v1348 = vld [vmem:[#allocation9 + $0x98] sm:$0xff]
        %v1349 = vld [vmem:[#allocation9 + $0xa0] sm:$0xff]
        %v1350 = vld [vmem:[#allocation9 + $0xa8] sm:$0xff]
        %v1351 = vld [vmem:[#allocation9 + $0xb0] sm:$0xff]
        %v1352 = vld [vmem:[#allocation9 + $0xb8] sm:$0xff]
        %v1353 = vld [vmem:[#allocation9 + $0xc0] sm:$0xff]
        %v1354 = vld [vmem:[#allocation9 + $0xc8] sm:$0xff]
        %v1355 = vld [vmem:[#allocation9 + $0xd0] sm:$0xff]
        %v1356 = vld [vmem:[#allocation9 + $0xd8] sm:$0xff]
        %v1357 = vld [vmem:[#allocation9 + $0xe0] sm:$0xff]
        %v1358 = vld [vmem:[#allocation9 + $0xe8] sm:$0xff]
        %v1359 = vld [vmem:[#allocation9 + $0xf0] sm:$0xff]
        %v1360 = vld [vmem:[#allocation9 + $0xf8] sm:$0xff]
        %v1361 = vld [vmem:[#allocation9 + $0x100] sm:$0xff]
        %v1362 = vld [vmem:[#allocation9 + $0x108] sm:$0xff]
        %v1363 = vld [vmem:[#allocation9 + $0x110] sm:$0xff]
        %v1364 = vld [vmem:[#allocation9 + $0x118] sm:$0xff]
        %v1365 = vld [vmem:[#allocation9 + $0x120] sm:$0xff]
        %v1366 = vld [vmem:[#allocation9 + $0x128] sm:$0xff]
        %v1367 = vld [vmem:[#allocation9 + $0x130] sm:$0xff]
        %v1368 = vld [vmem:[#allocation9 + $0x138] sm:$0xff]
        %v1369 = vld [vmem:[#allocation9 + $0x140] sm:$0xff]
        %v1370 = vld [vmem:[#allocation9 + $0x148] sm:$0xff]
        %v1371 = vld [vmem:[#allocation9 + $0x150] sm:$0xff]
        %v1372 = vld [vmem:[#allocation9 + $0x158] sm:$0xff]
        %v1373 = vld [vmem:[#allocation9 + $0x160] sm:$0xff]
        %v1374 = vld [vmem:[#allocation9 + $0x168] sm:$0xff]
        %v1375 = vld [vmem:[#allocation9 + $0x170] sm:$0xff]
        %v1376 = vld [vmem:[#allocation9 + $0x178] sm:$0xff]
        %v1377 = vld [vmem:[%s703] sm:$0x80]
        %v1378 = vld [vmem:[%s703 + $0x8] sm:$0xff]
        %v1379 = vld [vmem:[%s703 + $0x18] sm:$0x80]
        %v1380 = vld [vmem:[%s703 + $0x20] sm:$0xff]
        %v1381 = vld [vmem:[%s703 + $0x30] sm:$0x80]
        %v1382 = vld [vmem:[%s703 + $0x38] sm:$0xff]
        %v1383 = vld [vmem:[%s703 + $0x48] sm:$0x80]
        %v1384 = vld [vmem:[%s703 + $0x50] sm:$0xff]
        %v1385 = vld [vmem:[%s703 + $0x60] sm:$0x80]
        %v1386 = vld [vmem:[%s703 + $0x68] sm:$0xff]
        %v1387 = vld [vmem:[%s703 + $0x78] sm:$0x80]
        %v1388 = vld [vmem:[%s703 + $0x80] sm:$0xff]
        %v1389 = vld [vmem:[%s703 + $0x90] sm:$0x80]
        %v1390 = vld [vmem:[%s703 + $0x98] sm:$0xff]
        %v1391 = vld [vmem:[%s703 + $0xa8] sm:$0x80]
        %v1392 = vld [vmem:[%s703 + $0xb0] sm:$0xff]
        %v1393 = vld [vmem:[%s703 + $0x10] sm:$0x1]
        %v1394 = vld [vmem:[%s703 + $0x28] sm:$0x1]
        %v1395 = vld [vmem:[%s703 + $0x40] sm:$0x1]
        %v1396 = vld [vmem:[%s703 + $0x58] sm:$0x1]
        %v1397 = vld [vmem:[%s703 + $0x70] sm:$0x1]
        %v1398 = vld [vmem:[%s703 + $0x88] sm:$0x1]
        %v1399 = vld [vmem:[%s703 + $0xa0] sm:$0x1]
        %v1400 = vld [vmem:[%s703 + $0xb8] sm:$0x1]
        %v1402 = vshll.u32 %v1378, 16
        %v1404 = vrot.slane %v1402, 1
        %v1405 = vshrl.u32 %v1378, 16
        %v1407 = vor.u32 %v1405, %v1404
        %v1409 = vshll.u32 %v1380, 16
        %v1411 = vrot.slane %v1409, 1
        %v1412 = vshrl.u32 %v1380, 16
        %v1414 = vor.u32 %v1412, %v1411
        %v1416 = vshll.u32 %v1382, 16
        %v1418 = vrot.slane %v1416, 1
        %v1419 = vshrl.u32 %v1382, 16
        %v1421 = vor.u32 %v1419, %v1418
        %v1423 = vshll.u32 %v1384, 16
        %v1425 = vrot.slane %v1423, 1
        %v1426 = vshrl.u32 %v1384, 16
        %v1428 = vor.u32 %v1426, %v1425
        %v1430 = vshll.u32 %v1386, 16
        %v1432 = vrot.slane %v1430, 1
        %v1433 = vshrl.u32 %v1386, 16
        %v1435 = vor.u32 %v1433, %v1432
        %v1437 = vshll.u32 %v1388, 16
        %v1439 = vrot.slane %v1437, 1
        %v1440 = vshrl.u32 %v1388, 16
        %v1442 = vor.u32 %v1440, %v1439
        %v1444 = vshll.u32 %v1390, 16
        %v1446 = vrot.slane %v1444, 1
        %v1447 = vshrl.u32 %v1390, 16
        %v1449 = vor.u32 %v1447, %v1446
        %v1451 = vshll.u32 %v1392, 16
        %v1453 = vrot.slane %v1451, 1
        %v1454 = vshrl.u32 %v1392, 16
        %v1456 = vor.u32 %v1454, %v1453
        %v1473 = vrot.slane %v1378, 1
        %v1474 = vrot.slane %v1393, 1
        %v1475 = vsel %vm1031, %v1473, %v1474
        %v1476 = vrot.slane %v1380, 1
        %v1477 = vrot.slane %v1394, 1
        %v1478 = vsel %vm1031, %v1476, %v1477
        %v1479 = vrot.slane %v1382, 1
        %v1480 = vrot.slane %v1395, 1
        %v1481 = vsel %vm1031, %v1479, %v1480
        %v1482 = vrot.slane %v1384, 1
        %v1483 = vrot.slane %v1396, 1
        %v1484 = vsel %vm1031, %v1482, %v1483
        %v1485 = vrot.slane %v1386, 1
        %v1486 = vrot.slane %v1397, 1
        %v1487 = vsel %vm1031, %v1485, %v1486
        %v1488 = vrot.slane %v1388, 1
        %v1489 = vrot.slane %v1398, 1
        %v1490 = vsel %vm1031, %v1488, %v1489
        %v1491 = vrot.slane %v1390, 1
        %v1492 = vrot.slane %v1399, 1
        %v1493 = vsel %vm1031, %v1491, %v1492
        %v1494 = vrot.slane %v1392, 1
        %v1495 = vrot.slane %v1400, 1
        %v1496 = vsel %vm1031, %v1494, %v1495
        %v1498 = vshrl.u32 %v1377, 16
        %v1500 = vrot.slane %v1498, 7
        %v1501 = vrot.slane %v1405, 7
        %v1502 = vor.u32 %v1501, %v1402
        %v1503 = vsel %vm1056, %v1500, %v1502
        %v1505 = vshrl.u32 %v1404, 16
        %v1507 = vrot.slane %v1505, 7
        %v1509 = vshrl.u32 %v1407, 16
        %v1511 = vrot.slane %v1509, 7
        %v1512 = vshll.u32 %v1407, 16
        %v1514 = vor.u32 %v1511, %v1512
        %v1515 = vsel %vm1056, %v1507, %v1514
        %v1517 = vshrl.u32 %v1473, 16
        %v1519 = vrot.slane %v1517, 7
        %v1521 = vshrl.u32 %v1475, 16
        %v1523 = vrot.slane %v1521, 7
        %v1524 = vshll.u32 %v1475, 16
        %v1526 = vor.u32 %v1523, %v1524
        %v1527 = vsel %vm1056, %v1519, %v1526
        %v1529 = vshrl.u32 %v1379, 16
        %v1531 = vrot.slane %v1529, 7
        %v1532 = vrot.slane %v1412, 7
        %v1533 = vor.u32 %v1532, %v1409
        %v1534 = vsel %vm1056, %v1531, %v1533
        %v1536 = vshrl.u32 %v1411, 16
        %v1538 = vrot.slane %v1536, 7
        %v1540 = vshrl.u32 %v1414, 16
        %v1542 = vrot.slane %v1540, 7
        %v1543 = vshll.u32 %v1414, 16
        %v1545 = vor.u32 %v1542, %v1543
        %v1546 = vsel %vm1056, %v1538, %v1545
        %v1548 = vshrl.u32 %v1476, 16
        %v1550 = vrot.slane %v1548, 7
        %v1552 = vshrl.u32 %v1478, 16
        %v1554 = vrot.slane %v1552, 7
        %v1555 = vshll.u32 %v1478, 16
        %v1557 = vor.u32 %v1554, %v1555
        %v1558 = vsel %vm1056, %v1550, %v1557
        %v1560 = vshrl.u32 %v1381, 16
        %v1562 = vrot.slane %v1560, 7
        %v1563 = vrot.slane %v1419, 7
        %v1564 = vor.u32 %v1563, %v1416
        %v1565 = vsel %vm1056, %v1562, %v1564
        %v1567 = vshrl.u32 %v1418, 16
        %v1569 = vrot.slane %v1567, 7
        %v1571 = vshrl.u32 %v1421, 16
        %v1573 = vrot.slane %v1571, 7
        %v1574 = vshll.u32 %v1421, 16
        %v1576 = vor.u32 %v1573, %v1574
        %v1577 = vsel %vm1056, %v1569, %v1576
        %v1579 = vshrl.u32 %v1479, 16
        %v1581 = vrot.slane %v1579, 7
        %v1583 = vshrl.u32 %v1481, 16
        %v1585 = vrot.slane %v1583, 7
        %v1586 = vshll.u32 %v1481, 16
        %v1588 = vor.u32 %v1585, %v1586
        %v1589 = vsel %vm1056, %v1581, %v1588
        %v1591 = vshrl.u32 %v1383, 16
        %v1593 = vrot.slane %v1591, 7
        %v1594 = vrot.slane %v1426, 7
        %v1595 = vor.u32 %v1594, %v1423
        %v1596 = vsel %vm1056, %v1593, %v1595
        %v1598 = vshrl.u32 %v1425, 16
        %v1600 = vrot.slane %v1598, 7
        %v1602 = vshrl.u32 %v1428, 16
        %v1604 = vrot.slane %v1602, 7
        %v1605 = vshll.u32 %v1428, 16
        %v1607 = vor.u32 %v1604, %v1605
        %v1608 = vsel %vm1056, %v1600, %v1607
        %v1610 = vshrl.u32 %v1482, 16
        %v1612 = vrot.slane %v1610, 7
        %v1614 = vshrl.u32 %v1484, 16
        %v1616 = vrot.slane %v1614, 7
        %v1617 = vshll.u32 %v1484, 16
        %v1619 = vor.u32 %v1616, %v1617
        %v1620 = vsel %vm1056, %v1612, %v1619
        %v1622 = vshrl.u32 %v1385, 16
        %v1624 = vrot.slane %v1622, 7
        %v1625 = vrot.slane %v1433, 7
        %v1626 = vor.u32 %v1625, %v1430
        %v1627 = vsel %vm1056, %v1624, %v1626
        %v1629 = vshrl.u32 %v1432, 16
        %v1631 = vrot.slane %v1629, 7
        %v1633 = vshrl.u32 %v1435, 16
        %v1635 = vrot.slane %v1633, 7
        %v1636 = vshll.u32 %v1435, 16
        %v1638 = vor.u32 %v1635, %v1636
        %v1639 = vsel %vm1056, %v1631, %v1638
        %v1641 = vshrl.u32 %v1485, 16
        %v1643 = vrot.slane %v1641, 7
        %v1645 = vshrl.u32 %v1487, 16
        %v1647 = vrot.slane %v1645, 7
        %v1648 = vshll.u32 %v1487, 16
        %v1650 = vor.u32 %v1647, %v1648
        %v1651 = vsel %vm1056, %v1643, %v1650
        %v1653 = vshrl.u32 %v1387, 16
        %v1655 = vrot.slane %v1653, 7
        %v1656 = vrot.slane %v1440, 7
        %v1657 = vor.u32 %v1656, %v1437
        %v1658 = vsel %vm1056, %v1655, %v1657
        %v1660 = vshrl.u32 %v1439, 16
        %v1662 = vrot.slane %v1660, 7
        %v1664 = vshrl.u32 %v1442, 16
        %v1666 = vrot.slane %v1664, 7
        %v1667 = vshll.u32 %v1442, 16
        %v1669 = vor.u32 %v1666, %v1667
        %v1670 = vsel %vm1056, %v1662, %v1669
        %v1672 = vshrl.u32 %v1488, 16
        %v1674 = vrot.slane %v1672, 7
        %v1676 = vshrl.u32 %v1490, 16
        %v1678 = vrot.slane %v1676, 7
        %v1679 = vshll.u32 %v1490, 16
        %v1681 = vor.u32 %v1678, %v1679
        %v1682 = vsel %vm1056, %v1674, %v1681
        %v1684 = vshrl.u32 %v1389, 16
        %v1686 = vrot.slane %v1684, 7
        %v1687 = vrot.slane %v1447, 7
        %v1688 = vor.u32 %v1687, %v1444
        %v1689 = vsel %vm1056, %v1686, %v1688
        %v1691 = vshrl.u32 %v1446, 16
        %v1693 = vrot.slane %v1691, 7
        %v1695 = vshrl.u32 %v1449, 16
        %v1697 = vrot.slane %v1695, 7
        %v1698 = vshll.u32 %v1449, 16
        %v1700 = vor.u32 %v1697, %v1698
        %v1701 = vsel %vm1056, %v1693, %v1700
        %v1703 = vshrl.u32 %v1491, 16
        %v1705 = vrot.slane %v1703, 7
        %v1707 = vshrl.u32 %v1493, 16
        %v1709 = vrot.slane %v1707, 7
        %v1710 = vshll.u32 %v1493, 16
        %v1712 = vor.u32 %v1709, %v1710
        %v1713 = vsel %vm1056, %v1705, %v1712
        %v1715 = vshrl.u32 %v1391, 16
        %v1717 = vrot.slane %v1715, 7
        %v1718 = vrot.slane %v1454, 7
        %v1719 = vor.u32 %v1718, %v1451
        %v1720 = vsel %vm1056, %v1717, %v1719
        %v1722 = vshrl.u32 %v1453, 16
        %v1724 = vrot.slane %v1722, 7
        %v1726 = vshrl.u32 %v1456, 16
        %v1728 = vrot.slane %v1726, 7
        %v1729 = vshll.u32 %v1456, 16
        %v1731 = vor.u32 %v1728, %v1729
        %v1732 = vsel %vm1056, %v1724, %v1731
        %v1734 = vshrl.u32 %v1494, 16
        %v1736 = vrot.slane %v1734, 7
        %v1738 = vshrl.u32 %v1496, 16
        %v1740 = vrot.slane %v1738, 7
        %v1741 = vshll.u32 %v1496, 16
        %v1743 = vor.u32 %v1740, %v1741
        %v1744 = vsel %vm1056, %v1736, %v1743
        %s1769 = scalar_lea.vmem [#allocation9], 384
        %v1770 = vld [vmem:[%s1769] sm:$0xff]
        %v1771 = vld [vmem:[%s1769 + $0x8] sm:$0xff]
        %v1772 = vld [vmem:[%s1769 + $0x10] sm:$0xff]
        %v1773 = vld [vmem:[%s1769 + $0x18] sm:$0xff]
        %v1774 = vld [vmem:[%s1769 + $0x20] sm:$0xff]
        %v1775 = vld [vmem:[%s1769 + $0x28] sm:$0xff]
        %v1776 = vld [vmem:[%s1769 + $0x30] sm:$0xff]
        %v1777 = vld [vmem:[%s1769 + $0x38] sm:$0xff]
        %v1778 = vld [vmem:[%s1769 + $0x40] sm:$0xff]
        %v1779 = vld [vmem:[%s1769 + $0x48] sm:$0xff]
        %v1780 = vld [vmem:[%s1769 + $0x50] sm:$0xff]
        %v1781 = vld [vmem:[%s1769 + $0x58] sm:$0xff]
        %v1782 = vld [vmem:[%s1769 + $0x60] sm:$0xff]
        %v1783 = vld [vmem:[%s1769 + $0x68] sm:$0xff]
        %v1784 = vld [vmem:[%s1769 + $0x70] sm:$0xff]
        %v1785 = vld [vmem:[%s1769 + $0x78] sm:$0xff]
        %v1786 = vld [vmem:[%s1769 + $0x80] sm:$0xff]
        %v1787 = vld [vmem:[%s1769 + $0x88] sm:$0xff]
        %v1788 = vld [vmem:[%s1769 + $0x90] sm:$0xff]
        %v1789 = vld [vmem:[%s1769 + $0x98] sm:$0xff]
        %v1790 = vld [vmem:[%s1769 + $0xa0] sm:$0xff]
        %v1791 = vld [vmem:[%s1769 + $0xa8] sm:$0xff]
        %v1792 = vld [vmem:[%s1769 + $0xb0] sm:$0xff]
        %v1793 = vld [vmem:[%s1769 + $0xb8] sm:$0xff]
        %v1794 = vld [vmem:[%s1769 + $0xc0] sm:$0xff]
        %v1795 = vld [vmem:[%s1769 + $0xc8] sm:$0xff]
        %v1796 = vld [vmem:[%s1769 + $0xd0] sm:$0xff]
        %v1797 = vld [vmem:[%s1769 + $0xd8] sm:$0xff]
        %v1798 = vld [vmem:[%s1769 + $0xe0] sm:$0xff]
        %v1799 = vld [vmem:[%s1769 + $0xe8] sm:$0xff]
        %v1800 = vld [vmem:[%s1769 + $0xf0] sm:$0xff]
        %v1801 = vld [vmem:[%s1769 + $0xf8] sm:$0xff]
        %v1802 = vld [vmem:[%s1769 + $0x100] sm:$0xff]
        %v1803 = vld [vmem:[%s1769 + $0x108] sm:$0xff]
        %v1804 = vld [vmem:[%s1769 + $0x110] sm:$0xff]
        %v1805 = vld [vmem:[%s1769 + $0x118] sm:$0xff]
        %v1806 = vld [vmem:[%s1769 + $0x120] sm:$0xff]
        %v1807 = vld [vmem:[%s1769 + $0x128] sm:$0xff]
        %v1808 = vld [vmem:[%s1769 + $0x130] sm:$0xff]
        %v1809 = vld [vmem:[%s1769 + $0x138] sm:$0xff]
        %v1810 = vld [vmem:[%s1769 + $0x140] sm:$0xff]
        %v1811 = vld [vmem:[%s1769 + $0x148] sm:$0xff]
        %v1812 = vld [vmem:[%s1769 + $0x150] sm:$0xff]
        %v1813 = vld [vmem:[%s1769 + $0x158] sm:$0xff]
        %v1814 = vld [vmem:[%s1769 + $0x160] sm:$0xff]
        %v1815 = vld [vmem:[%s1769 + $0x168] sm:$0xff]
        %v1816 = vld [vmem:[%s1769 + $0x170] sm:$0xff]
        %v1817 = vld [vmem:[%s1769 + $0x178] sm:$0xff]
        %v1866 = vunpack.c.l.b16 %v1770
        %v1867 = vunpack.c.h.b16 %v1770
        %v1868 = vunpack.c.l.b16 %v1771
        %v1869 = vunpack.c.h.b16 %v1771
        %v1870 = vunpack.c.l.b16 %v1772
        %v1871 = vunpack.c.h.b16 %v1772
        %v1872 = vunpack.c.l.b16 %v1773
        %v1873 = vunpack.c.h.b16 %v1773
        %v1874 = vunpack.c.l.b16 %v1774
        %v1875 = vunpack.c.h.b16 %v1774
        %v1876 = vunpack.c.l.b16 %v1775
        %v1877 = vunpack.c.h.b16 %v1775
        %v1878 = vunpack.c.l.b16 %v1776
        %v1879 = vunpack.c.h.b16 %v1776
        %v1880 = vunpack.c.l.b16 %v1777
        %v1881 = vunpack.c.h.b16 %v1777
        %v1882 = vunpack.c.l.b16 %v1778
        %v1883 = vunpack.c.h.b16 %v1778
        %v1884 = vunpack.c.l.b16 %v1779
        %v1885 = vunpack.c.h.b16 %v1779
        %v1886 = vunpack.c.l.b16 %v1780
        %v1887 = vunpack.c.h.b16 %v1780
        %v1888 = vunpack.c.l.b16 %v1781
        %v1889 = vunpack.c.h.b16 %v1781
        %v1890 = vunpack.c.l.b16 %v1782
        %v1891 = vunpack.c.h.b16 %v1782
        %v1892 = vunpack.c.l.b16 %v1783
        %v1893 = vunpack.c.h.b16 %v1783
        %v1894 = vunpack.c.l.b16 %v1784
        %v1895 = vunpack.c.h.b16 %v1784
        %v1896 = vunpack.c.l.b16 %v1785
        %v1897 = vunpack.c.h.b16 %v1785
        %v1898 = vunpack.c.l.b16 %v1786
        %v1899 = vunpack.c.h.b16 %v1786
        %v1900 = vunpack.c.l.b16 %v1787
        %v1901 = vunpack.c.h.b16 %v1787
        %v1902 = vunpack.c.l.b16 %v1788
        %v1903 = vunpack.c.h.b16 %v1788
        %v1904 = vunpack.c.l.b16 %v1789
        %v1905 = vunpack.c.h.b16 %v1789
        %v1906 = vunpack.c.l.b16 %v1790
        %v1907 = vunpack.c.h.b16 %v1790
        %v1908 = vunpack.c.l.b16 %v1791
        %v1909 = vunpack.c.h.b16 %v1791
        %v1910 = vunpack.c.l.b16 %v1792
        %v1911 = vunpack.c.h.b16 %v1792
        %v1912 = vunpack.c.l.b16 %v1793
        %v1913 = vunpack.c.h.b16 %v1793
        %v1914 = vunpack.c.l.b16 %v1794
        %v1915 = vunpack.c.h.b16 %v1794
        %v1916 = vunpack.c.l.b16 %v1795
        %v1917 = vunpack.c.h.b16 %v1795
        %v1918 = vunpack.c.l.b16 %v1796
        %v1919 = vunpack.c.h.b16 %v1796
        %v1920 = vunpack.c.l.b16 %v1797
        %v1921 = vunpack.c.h.b16 %v1797
        %v1922 = vunpack.c.l.b16 %v1798
        %v1923 = vunpack.c.h.b16 %v1798
        %v1924 = vunpack.c.l.b16 %v1799
        %v1925 = vunpack.c.h.b16 %v1799
        %v1926 = vunpack.c.l.b16 %v1800
        %v1927 = vunpack.c.h.b16 %v1800
        %v1928 = vunpack.c.l.b16 %v1801
        %v1929 = vunpack.c.h.b16 %v1801
        %v1930 = vunpack.c.l.b16 %v1802
        %v1931 = vunpack.c.h.b16 %v1802
        %v1932 = vunpack.c.l.b16 %v1803
        %v1933 = vunpack.c.h.b16 %v1803
        %v1934 = vunpack.c.l.b16 %v1804
        %v1935 = vunpack.c.h.b16 %v1804
        %v1936 = vunpack.c.l.b16 %v1805
        %v1937 = vunpack.c.h.b16 %v1805
        %v1938 = vunpack.c.l.b16 %v1806
        %v1939 = vunpack.c.h.b16 %v1806
        %v1940 = vunpack.c.l.b16 %v1807
        %v1941 = vunpack.c.h.b16 %v1807
        %v1942 = vunpack.c.l.b16 %v1808
        %v1943 = vunpack.c.h.b16 %v1808
        %v1944 = vunpack.c.l.b16 %v1809
        %v1945 = vunpack.c.h.b16 %v1809
        %v1946 = vunpack.c.l.b16 %v1810
        %v1947 = vunpack.c.h.b16 %v1810
        %v1948 = vunpack.c.l.b16 %v1811
        %v1949 = vunpack.c.h.b16 %v1811
        %v1950 = vunpack.c.l.b16 %v1812
        %v1951 = vunpack.c.h.b16 %v1812
        %v1952 = vunpack.c.l.b16 %v1813
        %v1953 = vunpack.c.h.b16 %v1813
        %v1954 = vunpack.c.l.b16 %v1814
        %v1955 = vunpack.c.h.b16 %v1814
        %v1956 = vunpack.c.l.b16 %v1815
        %v1957 = vunpack.c.h.b16 %v1815
        %v1958 = vunpack.c.l.b16 %v1816
        %v1959 = vunpack.c.h.b16 %v1816
        %v1960 = vunpack.c.l.b16 %v1817
        %v1961 = vunpack.c.h.b16 %v1817
        %v1962 = vpack.c.b16 %v1868, %v1866
        %v1963 = vpack.c.b16 %v1869, %v1867
        %v1964 = vpack.c.b16 %v1872, %v1870
        %v1965 = vpack.c.b16 %v1873, %v1871
        %v1966 = vpack.c.b16 %v1876, %v1874
        %v1967 = vpack.c.b16 %v1877, %v1875
        %v1968 = vpack.c.b16 %v1880, %v1878
        %v1969 = vpack.c.b16 %v1881, %v1879
        %v1970 = vpack.c.b16 %v1884, %v1882
        %v1971 = vpack.c.b16 %v1885, %v1883
        %v1972 = vpack.c.b16 %v1888, %v1886
        %v1973 = vpack.c.b16 %v1889, %v1887
        %v1974 = vpack.c.b16 %v1892, %v1890
        %v1975 = vpack.c.b16 %v1893, %v1891
        %v1976 = vpack.c.b16 %v1896, %v1894
        %v1977 = vpack.c.b16 %v1897, %v1895
        %v1978 = vpack.c.b16 %v1900, %v1898
        %v1979 = vpack.c.b16 %v1901, %v1899
        %v1980 = vpack.c.b16 %v1904, %v1902
        %v1981 = vpack.c.b16 %v1905, %v1903
        %v1982 = vpack.c.b16 %v1908, %v1906
        %v1983 = vpack.c.b16 %v1909, %v1907
        %v1984 = vpack.c.b16 %v1912, %v1910
        %v1985 = vpack.c.b16 %v1913, %v1911
        %v1986 = vpack.c.b16 %v1916, %v1914
        %v1987 = vpack.c.b16 %v1917, %v1915
        %v1988 = vpack.c.b16 %v1920, %v1918
        %v1989 = vpack.c.b16 %v1921, %v1919
        %v1990 = vpack.c.b16 %v1924, %v1922
        %v1991 = vpack.c.b16 %v1925, %v1923
        %v1992 = vpack.c.b16 %v1928, %v1926
        %v1993 = vpack.c.b16 %v1929, %v1927
        %v1994 = vpack.c.b16 %v1932, %v1930
        %v1995 = vpack.c.b16 %v1933, %v1931
        %v1996 = vpack.c.b16 %v1936, %v1934
        %v1997 = vpack.c.b16 %v1937, %v1935
        %v1998 = vpack.c.b16 %v1940, %v1938
        %v1999 = vpack.c.b16 %v1941, %v1939
        %v2000 = vpack.c.b16 %v1944, %v1942
        %v2001 = vpack.c.b16 %v1945, %v1943
        %v2002 = vpack.c.b16 %v1948, %v1946
        %v2003 = vpack.c.b16 %v1949, %v1947
        %v2004 = vpack.c.b16 %v1952, %v1950
        %v2005 = vpack.c.b16 %v1953, %v1951
        %v2006 = vpack.c.b16 %v1956, %v1954
        %v2007 = vpack.c.b16 %v1957, %v1955
        %v2008 = vpack.c.b16 %v1960, %v1958
        %v2009 = vpack.c.b16 %v1961, %v1959
        %2058 = vmatprep.subr.bf16.mxu0 %v1963
        %2059 = vmatpush1.bf16.msra.mxu0 %v1962
        %2060 = vmatprep.subr.bf16.mxu0 %v1965
        %2061 = vmatpush1.bf16.msra.mxu0 %v1964
        %2062 = vmatprep.subr.bf16.mxu0 %v1967
        %2063 = vmatpush1.bf16.msra.mxu0 %v1966
        %2064 = vmatprep.subr.bf16.mxu0 %v1969
        %2065 = vmatpush1.bf16.msra.mxu0 %v1968
        %2066 = vmatprep.subr.bf16.mxu0 %v1971
        %2067 = vmatpush1.bf16.msra.mxu0 %v1970
        %2068 = vmatprep.subr.bf16.mxu0 %v1973
        %2069 = vmatpush1.bf16.msra.mxu0 %v1972
        %2070 = vmatprep.subr.bf16.mxu0 %v1975
        %2071 = vmatpush1.bf16.msra.mxu0 %v1974
        %2072 = vmatprep.subr.bf16.mxu0 %v1977
        %2073 = vmatpush1.bf16.msra.mxu0 %v1976
        %2074 = vmatprep.subr.bf16.mxu0 %v1979
        %2075 = vmatpush1.bf16.msra.mxu0 %v1978
        %2076 = vmatprep.subr.bf16.mxu0 %v1981
        %2077 = vmatpush1.bf16.msra.mxu0 %v1980
        %2078 = vmatprep.subr.bf16.mxu0 %v1983
        %2079 = vmatpush1.bf16.msra.mxu0 %v1982
        %2080 = vmatprep.subr.bf16.mxu0 %v1985
        %2081 = vmatpush1.bf16.msra.mxu0 %v1984
        %2082 = vmatprep.subr.bf16.mxu0 %v1987
        %2083 = vmatpush1.bf16.msra.mxu0 %v1986
        %2084 = vmatprep.subr.bf16.mxu0 %v1989
        %2085 = vmatpush1.bf16.msra.mxu0 %v1988
        %2086 = vmatprep.subr.bf16.mxu0 %v1991
        %2087 = vmatpush1.bf16.msra.mxu0 %v1990
        %2088 = vmatprep.subr.bf16.mxu0 %v1993
        %2089 = vmatpush1.bf16.msra.mxu0 %v1992
        %2090 = vmatprep.mubr.bf16.mxu0 %v1515
        %2091 = vmatmul.mubr.bf16.gmra.mrb[0].mxu0 %v1503
        %v2092 = vpop.f32.mrb[0].mxu0
        %v2093 = vadd.f32 0.0, %v2092
        %v2094 = vpop.f32.mrb[0].mxu0
        %v2095 = vadd.f32 0.0, %v2094
        %v2096 = vpop.f32.mrb[0].mxu0
        %v2097 = vadd.f32 0.0, %v2096
        %v2098 = vpop.f32.mrb[0].mxu0
        %v2099 = vadd.f32 0.0, %v2098
        %2100 = vmatprep.mubr.bf16.mxu0 %v1546
        %2101 = vmatmul.mubr.bf16.gmra.mrb[0].mxu0 %v1534
        %v2102 = vpop.f32.mrb[0].mxu0
        %v2103 = vadd.f32 0.0, %v2102
        %v2104 = vpop.f32.mrb[0].mxu0
        %v2105 = vadd.f32 0.0, %v2104
        %v2106 = vpop.f32.mrb[0].mxu0
        %v2107 = vadd.f32 0.0, %v2106
        %v2108 = vpop.f32.mrb[0].mxu0
        %v2109 = vadd.f32 0.0, %v2108
        %2110 = vmatprep.mubr.bf16.mxu0 %v1577
        %2111 = vmatmul.mubr.bf16.gmra.mrb[0].mxu0 %v1565
        %v2112 = vpop.f32.mrb[0].mxu0
        %v2113 = vadd.f32 0.0, %v2112
        %v2114 = vpop.f32.mrb[0].mxu0
        %v2115 = vadd.f32 0.0, %v2114
        %v2116 = vpop.f32.mrb[0].mxu0
        %v2117 = vadd.f32 0.0, %v2116
        %v2118 = vpop.f32.mrb[0].mxu0
        %v2119 = vadd.f32 0.0, %v2118
        %2120 = vmatprep.mubr.bf16.mxu0 %v1608
        %2121 = vmatmul.mubr.bf16.gmra.mrb[0].mxu0 %v1596
        %v2122 = vpop.f32.mrb[0].mxu0
        %v2123 = vadd.f32 0.0, %v2122
        %v2124 = vpop.f32.mrb[0].mxu0
        %v2125 = vadd.f32 0.0, %v2124
        %v2126 = vpop.f32.mrb[0].mxu0
        %v2127 = vadd.f32 0.0, %v2126
        %v2128 = vpop.f32.mrb[0].mxu0
        %v2129 = vadd.f32 0.0, %v2128
        %2130 = vmatprep.mubr.bf16.mxu0 %v1639
        %2131 = vmatmul.mubr.bf16.gmra.mrb[0].mxu0 %v1627
        %v2132 = vpop.f32.mrb[0].mxu0
        %v2133 = vadd.f32 0.0, %v2132
        %v2134 = vpop.f32.mrb[0].mxu0
        %v2135 = vadd.f32 0.0, %v2134
        %v2136 = vpop.f32.mrb[0].mxu0
        %v2137 = vadd.f32 0.0, %v2136
        %v2138 = vpop.f32.mrb[0].mxu0
        %v2139 = vadd.f32 0.0, %v2138
        %2140 = vmatprep.mubr.bf16.mxu0 %v1670
        %2141 = vmatmul.mubr.bf16.gmra.mrb[0].mxu0 %v1658
        %v2142 = vpop.f32.mrb[0].mxu0
        %v2143 = vadd.f32 0.0, %v2142
        %v2144 = vpop.f32.mrb[0].mxu0
        %v2145 = vadd.f32 0.0, %v2144
        %v2146 = vpop.f32.mrb[0].mxu0
        %v2147 = vadd.f32 0.0, %v2146
        %v2148 = vpop.f32.mrb[0].mxu0
        %v2149 = vadd.f32 0.0, %v2148
        %2150 = vmatprep.mubr.bf16.mxu0 %v1701
        %2151 = vmatmul.mubr.bf16.gmra.mrb[0].mxu0 %v1689
        %v2152 = vpop.f32.mrb[0].mxu0
        %v2153 = vadd.f32 0.0, %v2152
        %v2154 = vpop.f32.mrb[0].mxu0
        %v2155 = vadd.f32 0.0, %v2154
        %v2156 = vpop.f32.mrb[0].mxu0
        %v2157 = vadd.f32 0.0, %v2156
        %v2158 = vpop.f32.mrb[0].mxu0
        %v2159 = vadd.f32 0.0, %v2158
        %2160 = vmatprep.mubr.bf16.mxu0 %v1732
        %2161 = vmatmul.mubr.bf16.gmra.mrb[0].mxu0 %v1720
        %v2162 = vpop.f32.mrb[0].mxu0
        %v2163 = vadd.f32 0.0, %v2162
        %v2164 = vpop.f32.mrb[0].mxu0
        %v2165 = vadd.f32 0.0, %v2164
        %v2166 = vpop.f32.mrb[0].mxu0
        %v2167 = vadd.f32 0.0, %v2166
        %v2168 = vpop.f32.mrb[0].mxu0
        %v2169 = vadd.f32 0.0, %v2168
        %2170 = vdwg.mxu0
        %2171 = vmatprep.subr.bf16.mxu0 %v1995
        %2172 = vmatpush1.bf16.msra.mxu0 %v1994
        %2173 = vmatprep.subr.bf16.mxu0 %v1997
        %2174 = vmatpush1.bf16.msra.mxu0 %v1996
        %2175 = vmatprep.subr.bf16.mxu0 %v1999
        %2176 = vmatpush1.bf16.msra.mxu0 %v1998
        %2177 = vmatprep.subr.bf16.mxu0 %v2001
        %2178 = vmatpush1.bf16.msra.mxu0 %v2000
        %2179 = vmatprep.subr.bf16.mxu0 %v2003
        %2180 = vmatpush1.bf16.msra.mxu0 %v2002
        %2181 = vmatprep.subr.bf16.mxu0 %v2005
        %2182 = vmatpush1.bf16.msra.mxu0 %v2004
        %2183 = vmatprep.subr.bf16.mxu0 %v2007
        %2184 = vmatpush1.bf16.msra.mxu0 %v2006
        %2185 = vmatprep.subr.bf16.mxu0 %v2009
        %2186 = vmatpush1.bf16.msra.mxu0 %v2008
        %2187 = vmatprep.subr.bf16.mxu0 0
        %2188 = vmatpush1.bf16.msra.mxu0 0
        %2189 = vmatprep.subr.bf16.mxu0 0
        %2190 = vmatpush1.bf16.msra.mxu0 0
        %2191 = vmatprep.subr.bf16.mxu0 0
        %2192 = vmatpush1.bf16.msra.mxu0 0
        %2193 = vmatprep.subr.bf16.mxu0 0
        %2194 = vmatpush1.bf16.msra.mxu0 0
        %2195 = vmatprep.subr.bf16.mxu0 0
        %2196 = vmatpush1.bf16.msra.mxu0 0
        %2197 = vmatprep.subr.bf16.mxu0 0
        %2198 = vmatpush1.bf16.msra.mxu0 0
        %2199 = vmatprep.subr.bf16.mxu0 0
        %2200 = vmatpush1.bf16.msra.mxu0 0
        %2201 = vmatprep.subr.bf16.mxu0 0
        %2202 = vmatpush1.bf16.msra.mxu0 0
        %2203 = vmatprep.mubr.bf16.mxu0 0
        %2204 = vmatmul.mubr.bf16.gmra.mrb[0].mxu0 %v1527
        %v2205 = vpop.f32.mrb[0].mxu0
        %v2206 = vadd.f32 %v2093, %v2205
        %v2207 = vpop.f32.mrb[0].mxu0
        %v2208 = vadd.f32 %v2095, %v2207
        %v2209 = vpop.f32.mrb[0].mxu0
        %v2210 = vadd.f32 %v2097, %v2209
        %v2211 = vpop.f32.mrb[0].mxu0
        %v2212 = vadd.f32 %v2099, %v2211
        %2213 = vmatprep.mubr.bf16.mxu0 0
        %2214 = vmatmul.mubr.bf16.gmra.mrb[0].mxu0 %v1558
        %v2215 = vpop.f32.mrb[0].mxu0
        %v2216 = vadd.f32 %v2103, %v2215
        %v2217 = vpop.f32.mrb[0].mxu0
        %v2218 = vadd.f32 %v2105, %v2217
        %v2219 = vpop.f32.mrb[0].mxu0
        %v2220 = vadd.f32 %v2107, %v2219
        %v2221 = vpop.f32.mrb[0].mxu0
        %v2222 = vadd.f32 %v2109, %v2221
        %2223 = vmatprep.mubr.bf16.mxu0 0
        %2224 = vmatmul.mubr.bf16.gmra.mrb[0].mxu0 %v1589
        %v2225 = vpop.f32.mrb[0].mxu0
        %v2226 = vadd.f32 %v2113, %v2225
        %v2227 = vpop.f32.mrb[0].mxu0
        %v2228 = vadd.f32 %v2115, %v2227
        %v2229 = vpop.f32.mrb[0].mxu0
        %v2230 = vadd.f32 %v2117, %v2229
        %v2231 = vpop.f32.mrb[0].mxu0
        %v2232 = vadd.f32 %v2119, %v2231
        %2233 = vmatprep.mubr.bf16.mxu0 0
        %2234 = vmatmul.mubr.bf16.gmra.mrb[0].mxu0 %v1620
        %v2235 = vpop.f32.mrb[0].mxu0
        %v2236 = vadd.f32 %v2123, %v2235
        %v2237 = vpop.f32.mrb[0].mxu0
        %v2238 = vadd.f32 %v2125, %v2237
        %v2239 = vpop.f32.mrb[0].mxu0
        %v2240 = vadd.f32 %v2127, %v2239
        %v2241 = vpop.f32.mrb[0].mxu0
        %v2242 = vadd.f32 %v2129, %v2241
        %2243 = vmatprep.mubr.bf16.mxu0 0
        %2244 = vmatmul.mubr.bf16.gmra.mrb[0].mxu0 %v1651
        %v2245 = vpop.f32.mrb[0].mxu0
        %v2246 = vadd.f32 %v2133, %v2245
        %v2247 = vpop.f32.mrb[0].mxu0
        %v2248 = vadd.f32 %v2135, %v2247
        %v2249 = vpop.f32.mrb[0].mxu0
        %v2250 = vadd.f32 %v2137, %v2249
        %v2251 = vpop.f32.mrb[0].mxu0
        %v2252 = vadd.f32 %v2139, %v2251
        %2253 = vmatprep.mubr.bf16.mxu0 0
        %2254 = vmatmul.mubr.bf16.gmra.mrb[0].mxu0 %v1682
        %v2255 = vpop.f32.mrb[0].mxu0
        %v2256 = vadd.f32 %v2143, %v2255
        %v2257 = vpop.f32.mrb[0].mxu0
        %v2258 = vadd.f32 %v2145, %v2257
        %v2259 = vpop.f32.mrb[0].mxu0
        %v2260 = vadd.f32 %v2147, %v2259
        %v2261 = vpop.f32.mrb[0].mxu0
        %v2262 = vadd.f32 %v2149, %v2261
        %2263 = vmatprep.mubr.bf16.mxu0 0
        %2264 = vmatmul.mubr.bf16.gmra.mrb[0].mxu0 %v1713
        %v2265 = vpop.f32.mrb[0].mxu0
        %v2266 = vadd.f32 %v2153, %v2265
        %v2267 = vpop.f32.mrb[0].mxu0
        %v2268 = vadd.f32 %v2155, %v2267
        %v2269 = vpop.f32.mrb[0].mxu0
        %v2270 = vadd.f32 %v2157, %v2269
        %v2271 = vpop.f32.mrb[0].mxu0
        %v2272 = vadd.f32 %v2159, %v2271
        %2273 = vmatprep.mubr.bf16.mxu0 0
        %2274 = vmatmul.mubr.bf16.gmra.mrb[0].mxu0 %v1744
        %v2275 = vpop.f32.mrb[0].mxu0
        %v2276 = vadd.f32 %v2163, %v2275
        %v2277 = vpop.f32.mrb[0].mxu0
        %v2278 = vadd.f32 %v2165, %v2277
        %v2279 = vpop.f32.mrb[0].mxu0
        %v2280 = vadd.f32 %v2167, %v2279
        %v2281 = vpop.f32.mrb[0].mxu0
        %v2282 = vadd.f32 %v2169, %v2281
        %2283 = vdwg.mxu0
        %v2332 = vunpack.c.l.b16 %v1329
        %v2333 = vunpack.c.h.b16 %v1329
        %v2334 = vunpack.c.l.b16 %v1330
        %v2335 = vunpack.c.h.b16 %v1330
        %v2336 = vunpack.c.l.b16 %v1331
        %v2337 = vunpack.c.h.b16 %v1331
        %v2338 = vunpack.c.l.b16 %v1332
        %v2339 = vunpack.c.h.b16 %v1332
        %v2340 = vunpack.c.l.b16 %v1333
        %v2341 = vunpack.c.h.b16 %v1333
        %v2342 = vunpack.c.l.b16 %v1334
        %v2343 = vunpack.c.h.b16 %v1334
        %v2344 = vunpack.c.l.b16 %v1335
        %v2345 = vunpack.c.h.b16 %v1335
        %v2346 = vunpack.c.l.b16 %v1336
        %v2347 = vunpack.c.h.b16 %v1336
        %v2348 = vunpack.c.l.b16 %v1337
        %v2349 = vunpack.c.h.b16 %v1337
        %v2350 = vunpack.c.l.b16 %v1338
        %v2351 = vunpack.c.h.b16 %v1338
        %v2352 = vunpack.c.l.b16 %v1339
        %v2353 = vunpack.c.h.b16 %v1339
        %v2354 = vunpack.c.l.b16 %v1340
        %v2355 = vunpack.c.h.b16 %v1340
        %v2356 = vunpack.c.l.b16 %v1341
        %v2357 = vunpack.c.h.b16 %v1341
        %v2358 = vunpack.c.l.b16 %v1342
        %v2359 = vunpack.c.h.b16 %v1342
        %v2360 = vunpack.c.l.b16 %v1343
        %v2361 = vunpack.c.h.b16 %v1343
        %v2362 = vunpack.c.l.b16 %v1344
        %v2363 = vunpack.c.h.b16 %v1344
        %v2364 = vunpack.c.l.b16 %v1345
        %v2365 = vunpack.c.h.b16 %v1345
        %v2366 = vunpack.c.l.b16 %v1346
        %v2367 = vunpack.c.h.b16 %v1346
        %v2368 = vunpack.c.l.b16 %v1347
        %v2369 = vunpack.c.h.b16 %v1347
        %v2370 = vunpack.c.l.b16 %v1348
        %v2371 = vunpack.c.h.b16 %v1348
        %v2372 = vunpack.c.l.b16 %v1349
        %v2373 = vunpack.c.h.b16 %v1349
        %v2374 = vunpack.c.l.b16 %v1350
        %v2375 = vunpack.c.h.b16 %v1350
        %v2376 = vunpack.c.l.b16 %v1351
        %v2377 = vunpack.c.h.b16 %v1351
        %v2378 = vunpack.c.l.b16 %v1352
        %v2379 = vunpack.c.h.b16 %v1352
        %v2380 = vunpack.c.l.b16 %v1353
        %v2381 = vunpack.c.h.b16 %v1353
        %v2382 = vunpack.c.l.b16 %v1354
        %v2383 = vunpack.c.h.b16 %v1354
        %v2384 = vunpack.c.l.b16 %v1355
        %v2385 = vunpack.c.h.b16 %v1355
        %v2386 = vunpack.c.l.b16 %v1356
        %v2387 = vunpack.c.h.b16 %v1356
        %v2388 = vunpack.c.l.b16 %v1357
        %v2389 = vunpack.c.h.b16 %v1357
        %v2390 = vunpack.c.l.b16 %v1358
        %v2391 = vunpack.c.h.b16 %v1358
        %v2392 = vunpack.c.l.b16 %v1359
        %v2393 = vunpack.c.h.b16 %v1359
        %v2394 = vunpack.c.l.b16 %v1360
        %v2395 = vunpack.c.h.b16 %v1360
        %v2396 = vunpack.c.l.b16 %v1361
        %v2397 = vunpack.c.h.b16 %v1361
        %v2398 = vunpack.c.l.b16 %v1362
        %v2399 = vunpack.c.h.b16 %v1362
        %v2400 = vunpack.c.l.b16 %v1363
        %v2401 = vunpack.c.h.b16 %v1363
        %v2402 = vunpack.c.l.b16 %v1364
        %v2403 = vunpack.c.h.b16 %v1364
        %v2404 = vunpack.c.l.b16 %v1365
        %v2405 = vunpack.c.h.b16 %v1365
        %v2406 = vunpack.c.l.b16 %v1366
        %v2407 = vunpack.c.h.b16 %v1366
        %v2408 = vunpack.c.l.b16 %v1367
        %v2409 = vunpack.c.h.b16 %v1367
        %v2410 = vunpack.c.l.b16 %v1368
        %v2411 = vunpack.c.h.b16 %v1368
        %v2412 = vunpack.c.l.b16 %v1369
        %v2413 = vunpack.c.h.b16 %v1369
        %v2414 = vunpack.c.l.b16 %v1370
        %v2415 = vunpack.c.h.b16 %v1370
        %v2416 = vunpack.c.l.b16 %v1371
        %v2417 = vunpack.c.h.b16 %v1371
        %v2418 = vunpack.c.l.b16 %v1372
        %v2419 = vunpack.c.h.b16 %v1372
        %v2420 = vunpack.c.l.b16 %v1373
        %v2421 = vunpack.c.h.b16 %v1373
        %v2422 = vunpack.c.l.b16 %v1374
        %v2423 = vunpack.c.h.b16 %v1374
        %v2424 = vunpack.c.l.b16 %v1375
        %v2425 = vunpack.c.h.b16 %v1375
        %v2426 = vunpack.c.l.b16 %v1376
        %v2427 = vunpack.c.h.b16 %v1376
        %v2428 = vpack.c.b16 %v2334, %v2332
        %v2429 = vpack.c.b16 %v2335, %v2333
        %v2430 = vpack.c.b16 %v2338, %v2336
        %v2431 = vpack.c.b16 %v2339, %v2337
        %v2432 = vpack.c.b16 %v2342, %v2340
        %v2433 = vpack.c.b16 %v2343, %v2341
        %v2434 = vpack.c.b16 %v2346, %v2344
        %v2435 = vpack.c.b16 %v2347, %v2345
        %v2436 = vpack.c.b16 %v2350, %v2348
        %v2437 = vpack.c.b16 %v2351, %v2349
        %v2438 = vpack.c.b16 %v2354, %v2352
        %v2439 = vpack.c.b16 %v2355, %v2353
        %v2440 = vpack.c.b16 %v2358, %v2356
        %v2441 = vpack.c.b16 %v2359, %v2357
        %v2442 = vpack.c.b16 %v2362, %v2360
        %v2443 = vpack.c.b16 %v2363, %v2361
        %v2444 = vpack.c.b16 %v2366, %v2364
        %v2445 = vpack.c.b16 %v2367, %v2365
        %v2446 = vpack.c.b16 %v2370, %v2368
        %v2447 = vpack.c.b16 %v2371, %v2369
        %v2448 = vpack.c.b16 %v2374, %v2372
        %v2449 = vpack.c.b16 %v2375, %v2373
        %v2450 = vpack.c.b16 %v2378, %v2376
        %v2451 = vpack.c.b16 %v2379, %v2377
        %v2452 = vpack.c.b16 %v2382, %v2380
        %v2453 = vpack.c.b16 %v2383, %v2381
        %v2454 = vpack.c.b16 %v2386, %v2384
        %v2455 = vpack.c.b16 %v2387, %v2385
        %v2456 = vpack.c.b16 %v2390, %v2388
        %v2457 = vpack.c.b16 %v2391, %v2389
        %v2458 = vpack.c.b16 %v2394, %v2392
        %v2459 = vpack.c.b16 %v2395, %v2393
        %v2460 = vpack.c.b16 %v2398, %v2396
        %v2461 = vpack.c.b16 %v2399, %v2397
        %v2462 = vpack.c.b16 %v2402, %v2400
        %v2463 = vpack.c.b16 %v2403, %v2401
        %v2464 = vpack.c.b16 %v2406, %v2404
        %v2465 = vpack.c.b16 %v2407, %v2405
        %v2466 = vpack.c.b16 %v2410, %v2408
        %v2467 = vpack.c.b16 %v2411, %v2409
        %v2468 = vpack.c.b16 %v2414, %v2412
        %v2469 = vpack.c.b16 %v2415, %v2413
        %v2470 = vpack.c.b16 %v2418, %v2416
        %v2471 = vpack.c.b16 %v2419, %v2417
        %v2472 = vpack.c.b16 %v2422, %v2420
        %v2473 = vpack.c.b16 %v2423, %v2421
        %v2474 = vpack.c.b16 %v2426, %v2424
        %v2475 = vpack.c.b16 %v2427, %v2425
        %2524 = vmatprep.subr.bf16.mxu0 %v2429
        %2525 = vmatpush1.bf16.msra.mxu0 %v2428
        %2526 = vmatprep.subr.bf16.mxu0 %v2431
        %2527 = vmatpush1.bf16.msra.mxu0 %v2430
        %2528 = vmatprep.subr.bf16.mxu0 %v2433
        %2529 = vmatpush1.bf16.msra.mxu0 %v2432
        %2530 = vmatprep.subr.bf16.mxu0 %v2435
        %2531 = vmatpush1.bf16.msra.mxu0 %v2434
        %2532 = vmatprep.subr.bf16.mxu0 %v2437
        %2533 = vmatpush1.bf16.msra.mxu0 %v2436
        %2534 = vmatprep.subr.bf16.mxu0 %v2439
        %2535 = vmatpush1.bf16.msra.mxu0 %v2438
        %2536 = vmatprep.subr.bf16.mxu0 %v2441
        %2537 = vmatpush1.bf16.msra.mxu0 %v2440
        %2538 = vmatprep.subr.bf16.mxu0 %v2443
        %2539 = vmatpush1.bf16.msra.mxu0 %v2442
        %2540 = vmatprep.subr.bf16.mxu0 %v2445
        %2541 = vmatpush1.bf16.msra.mxu0 %v2444
        %2542 = vmatprep.subr.bf16.mxu0 %v2447
        %2543 = vmatpush1.bf16.msra.mxu0 %v2446
        %2544 = vmatprep.subr.bf16.mxu0 %v2449
        %2545 = vmatpush1.bf16.msra.mxu0 %v2448
        %2546 = vmatprep.subr.bf16.mxu0 %v2451
        %2547 = vmatpush1.bf16.msra.mxu0 %v2450
        %2548 = vmatprep.subr.bf16.mxu0 %v2453
        %2549 = vmatpush1.bf16.msra.mxu0 %v2452
        %2550 = vmatprep.subr.bf16.mxu0 %v2455
        %2551 = vmatpush1.bf16.msra.mxu0 %v2454
        %2552 = vmatprep.subr.bf16.mxu0 %v2457
        %2553 = vmatpush1.bf16.msra.mxu0 %v2456
        %2554 = vmatprep.subr.bf16.mxu0 %v2459
        %2555 = vmatpush1.bf16.msra.mxu0 %v2458
        %2556 = vmatprep.mubr.bf16.mxu0 %v1075
        %2557 = vmatmul.mubr.bf16.gmra.mrb[0].mxu0 %v1063
        %v2558 = vpop.f32.mrb[0].mxu0
        %v2559 = vadd.f32 %v2206, %v2558
        %v2560 = vpop.f32.mrb[0].mxu0
        %v2561 = vadd.f32 %v2208, %v2560
        %v2562 = vpop.f32.mrb[0].mxu0
        %v2563 = vadd.f32 %v2210, %v2562
        %v2564 = vpop.f32.mrb[0].mxu0
        %v2565 = vadd.f32 %v2212, %v2564
        %2566 = vmatprep.mubr.bf16.mxu0 %v1106
        %2567 = vmatmul.mubr.bf16.gmra.mrb[0].mxu0 %v1094
        %v2568 = vpop.f32.mrb[0].mxu0
        %v2569 = vadd.f32 %v2216, %v2568
        %v2570 = vpop.f32.mrb[0].mxu0
        %v2571 = vadd.f32 %v2218, %v2570
        %v2572 = vpop.f32.mrb[0].mxu0
        %v2573 = vadd.f32 %v2220, %v2572
        %v2574 = vpop.f32.mrb[0].mxu0
        %v2575 = vadd.f32 %v2222, %v2574
        %2576 = vmatprep.mubr.bf16.mxu0 %v1137
        %2577 = vmatmul.mubr.bf16.gmra.mrb[0].mxu0 %v1125
        %v2578 = vpop.f32.mrb[0].mxu0
        %v2579 = vadd.f32 %v2226, %v2578
        %v2580 = vpop.f32.mrb[0].mxu0
        %v2581 = vadd.f32 %v2228, %v2580
        %v2582 = vpop.f32.mrb[0].mxu0
        %v2583 = vadd.f32 %v2230, %v2582
        %v2584 = vpop.f32.mrb[0].mxu0
        %v2585 = vadd.f32 %v2232, %v2584
        %2586 = vmatprep.mubr.bf16.mxu0 %v1168
        %2587 = vmatmul.mubr.bf16.gmra.mrb[0].mxu0 %v1156
        %v2588 = vpop.f32.mrb[0].mxu0
        %v2589 = vadd.f32 %v2236, %v2588
        %v2590 = vpop.f32.mrb[0].mxu0
        %v2591 = vadd.f32 %v2238, %v2590
        %v2592 = vpop.f32.mrb[0].mxu0
        %v2593 = vadd.f32 %v2240, %v2592
        %v2594 = vpop.f32.mrb[0].mxu0
        %v2595 = vadd.f32 %v2242, %v2594
        %2596 = vmatprep.mubr.bf16.mxu0 %v1199
        %2597 = vmatmul.mubr.bf16.gmra.mrb[0].mxu0 %v1187
        %v2598 = vpop.f32.mrb[0].mxu0
        %v2599 = vadd.f32 %v2246, %v2598
        %v2600 = vpop.f32.mrb[0].mxu0
        %v2601 = vadd.f32 %v2248, %v2600
        %v2602 = vpop.f32.mrb[0].mxu0
        %v2603 = vadd.f32 %v2250, %v2602
        %v2604 = vpop.f32.mrb[0].mxu0
        %v2605 = vadd.f32 %v2252, %v2604
        %2606 = vmatprep.mubr.bf16.mxu0 %v1230
        %2607 = vmatmul.mubr.bf16.gmra.mrb[0].mxu0 %v1218
        %v2608 = vpop.f32.mrb[0].mxu0
        %v2609 = vadd.f32 %v2256, %v2608
        %v2610 = vpop.f32.mrb[0].mxu0
        %v2611 = vadd.f32 %v2258, %v2610
        %v2612 = vpop.f32.mrb[0].mxu0
        %v2613 = vadd.f32 %v2260, %v2612
        %v2614 = vpop.f32.mrb[0].mxu0
        %v2615 = vadd.f32 %v2262, %v2614
        %2616 = vmatprep.mubr.bf16.mxu0 %v1261
        %2617 = vmatmul.mubr.bf16.gmra.mrb[0].mxu0 %v1249
        %v2618 = vpop.f32.mrb[0].mxu0
        %v2619 = vadd.f32 %v2266, %v2618
        %v2620 = vpop.f32.mrb[0].mxu0
        %v2621 = vadd.f32 %v2268, %v2620
        %v2622 = vpop.f32.mrb[0].mxu0
        %v2623 = vadd.f32 %v2270, %v2622
        %v2624 = vpop.f32.mrb[0].mxu0
        %v2625 = vadd.f32 %v2272, %v2624
        %2626 = vmatprep.mubr.bf16.mxu0 %v1292
        %2627 = vmatmul.mubr.bf16.gmra.mrb[0].mxu0 %v1280
        %v2628 = vpop.f32.mrb[0].mxu0
        %v2629 = vadd.f32 %v2276, %v2628
        %v2630 = vpop.f32.mrb[0].mxu0
        %v2631 = vadd.f32 %v2278, %v2630
        %v2632 = vpop.f32.mrb[0].mxu0
        %v2633 = vadd.f32 %v2280, %v2632
        %v2634 = vpop.f32.mrb[0].mxu0
        %v2635 = vadd.f32 %v2282, %v2634
        %2636 = vdwg.mxu0
        %2637 = vmatprep.subr.bf16.mxu0 %v2461
        %2638 = vmatpush1.bf16.msra.mxu0 %v2460
        %2639 = vmatprep.subr.bf16.mxu0 %v2463
        %2640 = vmatpush1.bf16.msra.mxu0 %v2462
        %2641 = vmatprep.subr.bf16.mxu0 %v2465
        %2642 = vmatpush1.bf16.msra.mxu0 %v2464
        %2643 = vmatprep.subr.bf16.mxu0 %v2467
        %2644 = vmatpush1.bf16.msra.mxu0 %v2466
        %2645 = vmatprep.subr.bf16.mxu0 %v2469
        %2646 = vmatpush1.bf16.msra.mxu0 %v2468
        %2647 = vmatprep.subr.bf16.mxu0 %v2471
        %2648 = vmatpush1.bf16.msra.mxu0 %v2470
        %2649 = vmatprep.subr.bf16.mxu0 %v2473
        %2650 = vmatpush1.bf16.msra.mxu0 %v2472
        %2651 = vmatprep.subr.bf16.mxu0 %v2475
        %2652 = vmatpush1.bf16.msra.mxu0 %v2474
        %2653 = vmatprep.subr.bf16.mxu0 0
        %2654 = vmatpush1.bf16.msra.mxu0 0
        %2655 = vmatprep.subr.bf16.mxu0 0
        %2656 = vmatpush1.bf16.msra.mxu0 0
        %2657 = vmatprep.subr.bf16.mxu0 0
        %2658 = vmatpush1.bf16.msra.mxu0 0
        %2659 = vmatprep.subr.bf16.mxu0 0
        %2660 = vmatpush1.bf16.msra.mxu0 0
        %2661 = vmatprep.subr.bf16.mxu0 0
        %2662 = vmatpush1.bf16.msra.mxu0 0
        %2663 = vmatprep.subr.bf16.mxu0 0
        %2664 = vmatpush1.bf16.msra.mxu0 0
        %2665 = vmatprep.subr.bf16.mxu0 0
        %2666 = vmatpush1.bf16.msra.mxu0 0
        %2667 = vmatprep.subr.bf16.mxu0 0
        %2668 = vmatpush1.bf16.msra.mxu0 0
        %2669 = vmatprep.mubr.bf16.mxu0 0
        %2670 = vmatmul.mubr.bf16.gmra.mrb[0].mxu0 %v1087
        %v2671 = vpop.f32.mrb[0].mxu0
        %v2672 = vadd.f32 %v2559, %v2671
        %v2673 = vpop.f32.mrb[0].mxu0
        %v2674 = vadd.f32 %v2561, %v2673
        %v2675 = vpop.f32.mrb[0].mxu0
        %v2676 = vadd.f32 %v2563, %v2675
        %v2677 = vpop.f32.mrb[0].mxu0
        %v2678 = vadd.f32 %v2565, %v2677
        %2679 = vmatprep.mubr.bf16.mxu0 0
        %2680 = vmatmul.mubr.bf16.gmra.mrb[0].mxu0 %v1118
        %v2681 = vpop.f32.mrb[0].mxu0
        %v2682 = vadd.f32 %v2569, %v2681
        %v2683 = vpop.f32.mrb[0].mxu0
        %v2684 = vadd.f32 %v2571, %v2683
        %v2685 = vpop.f32.mrb[0].mxu0
        %v2686 = vadd.f32 %v2573, %v2685
        %v2687 = vpop.f32.mrb[0].mxu0
        %v2688 = vadd.f32 %v2575, %v2687
        %2689 = vmatprep.mubr.bf16.mxu0 0
        %2690 = vmatmul.mubr.bf16.gmra.mrb[0].mxu0 %v1149
        %v2691 = vpop.f32.mrb[0].mxu0
        %v2692 = vadd.f32 %v2579, %v2691
        %v2693 = vpop.f32.mrb[0].mxu0
        %v2694 = vadd.f32 %v2581, %v2693
        %v2695 = vpop.f32.mrb[0].mxu0
        %v2696 = vadd.f32 %v2583, %v2695
        %v2697 = vpop.f32.mrb[0].mxu0
        %v2698 = vadd.f32 %v2585, %v2697
        %2699 = vmatprep.mubr.bf16.mxu0 0
        %2700 = vmatmul.mubr.bf16.gmra.mrb[0].mxu0 %v1180
        %v2701 = vpop.f32.mrb[0].mxu0
        %v2702 = vadd.f32 %v2589, %v2701
        %v2703 = vpop.f32.mrb[0].mxu0
        %v2704 = vadd.f32 %v2591, %v2703
        %v2705 = vpop.f32.mrb[0].mxu0
        %v2706 = vadd.f32 %v2593, %v2705
        %v2707 = vpop.f32.mrb[0].mxu0
        %v2708 = vadd.f32 %v2595, %v2707
        %2709 = vmatprep.mubr.bf16.mxu0 0
        %2710 = vmatmul.mubr.bf16.gmra.mrb[0].mxu0 %v1211
        %v2711 = vpop.f32.mrb[0].mxu0
        %v2712 = vadd.f32 %v2599, %v2711
        %v2713 = vpop.f32.mrb[0].mxu0
        %v2714 = vadd.f32 %v2601, %v2713
        %v2715 = vpop.f32.mrb[0].mxu0
        %v2716 = vadd.f32 %v2603, %v2715
        %v2717 = vpop.f32.mrb[0].mxu0
        %v2718 = vadd.f32 %v2605, %v2717
        %2719 = vmatprep.mubr.bf16.mxu0 0
        %2720 = vmatmul.mubr.bf16.gmra.mrb[0].mxu0 %v1242
        %v2721 = vpop.f32.mrb[0].mxu0
        %v2722 = vadd.f32 %v2609, %v2721
        %v2723 = vpop.f32.mrb[0].mxu0
        %v2724 = vadd.f32 %v2611, %v2723
        %v2725 = vpop.f32.mrb[0].mxu0
        %v2726 = vadd.f32 %v2613, %v2725
        %v2727 = vpop.f32.mrb[0].mxu0
        %v2728 = vadd.f32 %v2615, %v2727
        %2729 = vmatprep.mubr.bf16.mxu0 0
        %2730 = vmatmul.mubr.bf16.gmra.mrb[0].mxu0 %v1273
        %v2731 = vpop.f32.mrb[0].mxu0
        %v2732 = vadd.f32 %v2619, %v2731
        %v2733 = vpop.f32.mrb[0].mxu0
        %v2734 = vadd.f32 %v2621, %v2733
        %v2735 = vpop.f32.mrb[0].mxu0
        %v2736 = vadd.f32 %v2623, %v2735
        %v2737 = vpop.f32.mrb[0].mxu0
        %v2738 = vadd.f32 %v2625, %v2737
        %2739 = vmatprep.mubr.bf16.mxu0 0
        %2740 = vmatmul.mubr.bf16.gmra.mrb[0].mxu0 %v1304
        %v2741 = vpop.f32.mrb[0].mxu0
        %v2742 = vadd.f32 %v2629, %v2741
        %v2743 = vpop.f32.mrb[0].mxu0
        %v2744 = vadd.f32 %v2631, %v2743
        %v2745 = vpop.f32.mrb[0].mxu0
        %v2746 = vadd.f32 %v2633, %v2745
        %v2747 = vpop.f32.mrb[0].mxu0
        %v2748 = vadd.f32 %v2635, %v2747
        %2749 = vdwg.mxu0
        %s2750 = scalar_lea.vmem [#allocation2], 48
        %v2751 = vld [vmem:[%s2750] sm:$0x80]
        %v2752 = vld [vmem:[%s2750 + $0x8] sm:$0xff]
        %v2753 = vld [vmem:[%s2750 + $0x18] sm:$0x80]
        %v2754 = vld [vmem:[%s2750 + $0x20] sm:$0xff]
        %v2755 = vld [vmem:[%s2750 + $0x30] sm:$0x80]
        %v2756 = vld [vmem:[%s2750 + $0x38] sm:$0xff]
        %v2757 = vld [vmem:[%s2750 + $0x48] sm:$0x80]
        %v2758 = vld [vmem:[%s2750 + $0x50] sm:$0xff]
        %v2759 = vld [vmem:[%s2750 + $0x60] sm:$0x80]
        %v2760 = vld [vmem:[%s2750 + $0x68] sm:$0xff]
        %v2761 = vld [vmem:[%s2750 + $0x78] sm:$0x80]
        %v2762 = vld [vmem:[%s2750 + $0x80] sm:$0xff]
        %v2763 = vld [vmem:[%s2750 + $0x90] sm:$0x80]
        %v2764 = vld [vmem:[%s2750 + $0x98] sm:$0xff]
        %v2765 = vld [vmem:[%s2750 + $0xa8] sm:$0x80]
        %v2766 = vld [vmem:[%s2750 + $0xb0] sm:$0xff]
        %v2767 = vld [vmem:[%s2750 + $0x10] sm:$0x1]
        %v2768 = vld [vmem:[%s2750 + $0x28] sm:$0x1]
        %v2769 = vld [vmem:[%s2750 + $0x40] sm:$0x1]
        %v2770 = vld [vmem:[%s2750 + $0x58] sm:$0x1]
        %v2771 = vld [vmem:[%s2750 + $0x70] sm:$0x1]
        %v2772 = vld [vmem:[%s2750 + $0x88] sm:$0x1]
        %v2773 = vld [vmem:[%s2750 + $0xa0] sm:$0x1]
        %v2774 = vld [vmem:[%s2750 + $0xb8] sm:$0x1]
        %v2776 = vshll.u32 %v2752, 16
        %v2778 = vrot.slane %v2776, 1
        %v2779 = vshrl.u32 %v2752, 16
        %v2781 = vor.u32 %v2779, %v2778
        %v2783 = vshll.u32 %v2754, 16
        %v2785 = vrot.slane %v2783, 1
        %v2786 = vshrl.u32 %v2754, 16
        %v2788 = vor.u32 %v2786, %v2785
        %v2790 = vshll.u32 %v2756, 16
        %v2792 = vrot.slane %v2790, 1
        %v2793 = vshrl.u32 %v2756, 16
        %v2795 = vor.u32 %v2793, %v2792
        %v2797 = vshll.u32 %v2758, 16
        %v2799 = vrot.slane %v2797, 1
        %v2800 = vshrl.u32 %v2758, 16
        %v2802 = vor.u32 %v2800, %v2799
        %v2804 = vshll.u32 %v2760, 16
        %v2806 = vrot.slane %v2804, 1
        %v2807 = vshrl.u32 %v2760, 16
        %v2809 = vor.u32 %v2807, %v2806
        %v2811 = vshll.u32 %v2762, 16
        %v2813 = vrot.slane %v2811, 1
        %v2814 = vshrl.u32 %v2762, 16
        %v2816 = vor.u32 %v2814, %v2813
        %v2818 = vshll.u32 %v2764, 16
        %v2820 = vrot.slane %v2818, 1
        %v2821 = vshrl.u32 %v2764, 16
        %v2823 = vor.u32 %v2821, %v2820
        %v2825 = vshll.u32 %v2766, 16
        %v2827 = vrot.slane %v2825, 1
        %v2828 = vshrl.u32 %v2766, 16
        %v2830 = vor.u32 %v2828, %v2827
        %v2847 = vrot.slane %v2752, 1
        %v2848 = vrot.slane %v2767, 1
        %v2849 = vsel %vm1031, %v2847, %v2848
        %v2850 = vrot.slane %v2754, 1
        %v2851 = vrot.slane %v2768, 1
        %v2852 = vsel %vm1031, %v2850, %v2851
        %v2853 = vrot.slane %v2756, 1
        %v2854 = vrot.slane %v2769, 1
        %v2855 = vsel %vm1031, %v2853, %v2854
        %v2856 = vrot.slane %v2758, 1
        %v2857 = vrot.slane %v2770, 1
        %v2858 = vsel %vm1031, %v2856, %v2857
        %v2859 = vrot.slane %v2760, 1
        %v2860 = vrot.slane %v2771, 1
        %v2861 = vsel %vm1031, %v2859, %v2860
        %v2862 = vrot.slane %v2762, 1
        %v2863 = vrot.slane %v2772, 1
        %v2864 = vsel %vm1031, %v2862, %v2863
        %v2865 = vrot.slane %v2764, 1
        %v2866 = vrot.slane %v2773, 1
        %v2867 = vsel %vm1031, %v2865, %v2866
        %v2868 = vrot.slane %v2766, 1
        %v2869 = vrot.slane %v2774, 1
        %v2870 = vsel %vm1031, %v2868, %v2869
        %v2872 = vshrl.u32 %v2751, 16
        %v2874 = vrot.slane %v2872, 7
        %v2875 = vrot.slane %v2779, 7
        %v2876 = vor.u32 %v2875, %v2776
        %v2877 = vsel %vm1056, %v2874, %v2876
        %v2879 = vshrl.u32 %v2778, 16
        %v2881 = vrot.slane %v2879, 7
        %v2883 = vshrl.u32 %v2781, 16
        %v2885 = vrot.slane %v2883, 7
        %v2886 = vshll.u32 %v2781, 16
        %v2888 = vor.u32 %v2885, %v2886
        %v2889 = vsel %vm1056, %v2881, %v2888
        %v2891 = vshrl.u32 %v2847, 16
        %v2893 = vrot.slane %v2891, 7
        %v2895 = vshrl.u32 %v2849, 16
        %v2897 = vrot.slane %v2895, 7
        %v2898 = vshll.u32 %v2849, 16
        %v2900 = vor.u32 %v2897, %v2898
        %v2901 = vsel %vm1056, %v2893, %v2900
        %v2903 = vshrl.u32 %v2753, 16
        %v2905 = vrot.slane %v2903, 7
        %v2906 = vrot.slane %v2786, 7
        %v2907 = vor.u32 %v2906, %v2783
        %v2908 = vsel %vm1056, %v2905, %v2907
        %v2910 = vshrl.u32 %v2785, 16
        %v2912 = vrot.slane %v2910, 7
        %v2914 = vshrl.u32 %v2788, 16
        %v2916 = vrot.slane %v2914, 7
        %v2917 = vshll.u32 %v2788, 16
        %v2919 = vor.u32 %v2916, %v2917
        %v2920 = vsel %vm1056, %v2912, %v2919
        %v2922 = vshrl.u32 %v2850, 16
        %v2924 = vrot.slane %v2922, 7
        %v2926 = vshrl.u32 %v2852, 16
        %v2928 = vrot.slane %v2926, 7
        %v2929 = vshll.u32 %v2852, 16
        %v2931 = vor.u32 %v2928, %v2929
        %v2932 = vsel %vm1056, %v2924, %v2931
        %v2934 = vshrl.u32 %v2755, 16
        %v2936 = vrot.slane %v2934, 7
        %v2937 = vrot.slane %v2793, 7
        %v2938 = vor.u32 %v2937, %v2790
        %v2939 = vsel %vm1056, %v2936, %v2938
        %v2941 = vshrl.u32 %v2792, 16
        %v2943 = vrot.slane %v2941, 7
        %v2945 = vshrl.u32 %v2795, 16
        %v2947 = vrot.slane %v2945, 7
        %v2948 = vshll.u32 %v2795, 16
        %v2950 = vor.u32 %v2947, %v2948
        %v2951 = vsel %vm1056, %v2943, %v2950
        %v2953 = vshrl.u32 %v2853, 16
        %v2955 = vrot.slane %v2953, 7
        %v2957 = vshrl.u32 %v2855, 16
        %v2959 = vrot.slane %v2957, 7
        %v2960 = vshll.u32 %v2855, 16
        %v2962 = vor.u32 %v2959, %v2960
        %v2963 = vsel %vm1056, %v2955, %v2962
        %v2965 = vshrl.u32 %v2757, 16
        %v2967 = vrot.slane %v2965, 7
        %v2968 = vrot.slane %v2800, 7
        %v2969 = vor.u32 %v2968, %v2797
        %v2970 = vsel %vm1056, %v2967, %v2969
        %v2972 = vshrl.u32 %v2799, 16
        %v2974 = vrot.slane %v2972, 7
        %v2976 = vshrl.u32 %v2802, 16
        %v2978 = vrot.slane %v2976, 7
        %v2979 = vshll.u32 %v2802, 16
        %v2981 = vor.u32 %v2978, %v2979
        %v2982 = vsel %vm1056, %v2974, %v2981
        %v2984 = vshrl.u32 %v2856, 16
        %v2986 = vrot.slane %v2984, 7
        %v2988 = vshrl.u32 %v2858, 16
        %v2990 = vrot.slane %v2988, 7
        %v2991 = vshll.u32 %v2858, 16
        %v2993 = vor.u32 %v2990, %v2991
        %v2994 = vsel %vm1056, %v2986, %v2993
        %v2996 = vshrl.u32 %v2759, 16
        %v2998 = vrot.slane %v2996, 7
        %v2999 = vrot.slane %v2807, 7
        %v3000 = vor.u32 %v2999, %v2804
        %v3001 = vsel %vm1056, %v2998, %v3000
        %v3003 = vshrl.u32 %v2806, 16
        %v3005 = vrot.slane %v3003, 7
        %v3007 = vshrl.u32 %v2809, 16
        %v3009 = vrot.slane %v3007, 7
        %v3010 = vshll.u32 %v2809, 16
        %v3012 = vor.u32 %v3009, %v3010
        %v3013 = vsel %vm1056, %v3005, %v3012
        %v3015 = vshrl.u32 %v2859, 16
        %v3017 = vrot.slane %v3015, 7
        %v3019 = vshrl.u32 %v2861, 16
        %v3021 = vrot.slane %v3019, 7
        %v3022 = vshll.u32 %v2861, 16
        %v3024 = vor.u32 %v3021, %v3022
        %v3025 = vsel %vm1056, %v3017, %v3024
        %v3027 = vshrl.u32 %v2761, 16
        %v3029 = vrot.slane %v3027, 7
        %v3030 = vrot.slane %v2814, 7
        %v3031 = vor.u32 %v3030, %v2811
        %v3032 = vsel %vm1056, %v3029, %v3031
        %v3034 = vshrl.u32 %v2813, 16
        %v3036 = vrot.slane %v3034, 7
        %v3038 = vshrl.u32 %v2816, 16
        %v3040 = vrot.slane %v3038, 7
        %v3041 = vshll.u32 %v2816, 16
        %v3043 = vor.u32 %v3040, %v3041
        %v3044 = vsel %vm1056, %v3036, %v3043
        %v3046 = vshrl.u32 %v2862, 16
        %v3048 = vrot.slane %v3046, 7
        %v3050 = vshrl.u32 %v2864, 16
        %v3052 = vrot.slane %v3050, 7
        %v3053 = vshll.u32 %v2864, 16
        %v3055 = vor.u32 %v3052, %v3053
        %v3056 = vsel %vm1056, %v3048, %v3055
        %v3058 = vshrl.u32 %v2763, 16
        %v3060 = vrot.slane %v3058, 7
        %v3061 = vrot.slane %v2821, 7
        %v3062 = vor.u32 %v3061, %v2818
        %v3063 = vsel %vm1056, %v3060, %v3062
        %v3065 = vshrl.u32 %v2820, 16
        %v3067 = vrot.slane %v3065, 7
        %v3069 = vshrl.u32 %v2823, 16
        %v3071 = vrot.slane %v3069, 7
        %v3072 = vshll.u32 %v2823, 16
        %v3074 = vor.u32 %v3071, %v3072
        %v3075 = vsel %vm1056, %v3067, %v3074
        %v3077 = vshrl.u32 %v2865, 16
        %v3079 = vrot.slane %v3077, 7
        %v3081 = vshrl.u32 %v2867, 16
        %v3083 = vrot.slane %v3081, 7
        %v3084 = vshll.u32 %v2867, 16
        %v3086 = vor.u32 %v3083, %v3084
        %v3087 = vsel %vm1056, %v3079, %v3086
        %v3089 = vshrl.u32 %v2765, 16
        %v3091 = vrot.slane %v3089, 7
        %v3092 = vrot.slane %v2828, 7
        %v3093 = vor.u32 %v3092, %v2825
        %v3094 = vsel %vm1056, %v3091, %v3093
        %v3096 = vshrl.u32 %v2827, 16
        %v3098 = vrot.slane %v3096, 7
        %v3100 = vshrl.u32 %v2830, 16
        %v3102 = vrot.slane %v3100, 7
        %v3103 = vshll.u32 %v2830, 16
        %v3105 = vor.u32 %v3102, %v3103
        %v3106 = vsel %vm1056, %v3098, %v3105
        %v3108 = vshrl.u32 %v2868, 16
        %v3110 = vrot.slane %v3108, 7
        %v3112 = vshrl.u32 %v2870, 16
        %v3114 = vrot.slane %v3112, 7
        %v3115 = vshll.u32 %v2870, 16
        %v3117 = vor.u32 %v3114, %v3115
        %v3118 = vsel %vm1056, %v3110, %v3117
        %s3143 = scalar_lea.vmem [#allocation9], 768
        %v3144 = vld [vmem:[%s3143] sm:$0xff]
        %v3145 = vld [vmem:[%s3143 + $0x8] sm:$0xff]
        %v3146 = vld [vmem:[%s3143 + $0x10] sm:$0xff]
        %v3147 = vld [vmem:[%s3143 + $0x18] sm:$0xff]
        %v3148 = vld [vmem:[%s3143 + $0x20] sm:$0xff]
        %v3149 = vld [vmem:[%s3143 + $0x28] sm:$0xff]
        %v3150 = vld [vmem:[%s3143 + $0x30] sm:$0xff]
        %v3151 = vld [vmem:[%s3143 + $0x38] sm:$0xff]
        %v3152 = vld [vmem:[%s3143 + $0x40] sm:$0xff]
        %v3153 = vld [vmem:[%s3143 + $0x48] sm:$0xff]
        %v3154 = vld [vmem:[%s3143 + $0x50] sm:$0xff]
        %v3155 = vld [vmem:[%s3143 + $0x58] sm:$0xff]
        %v3156 = vld [vmem:[%s3143 + $0x60] sm:$0xff]
        %v3157 = vld [vmem:[%s3143 + $0x68] sm:$0xff]
        %v3158 = vld [vmem:[%s3143 + $0x70] sm:$0xff]
        %v3159 = vld [vmem:[%s3143 + $0x78] sm:$0xff]
        %v3160 = vld [vmem:[%s3143 + $0x80] sm:$0xff]
        %v3161 = vld [vmem:[%s3143 + $0x88] sm:$0xff]
        %v3162 = vld [vmem:[%s3143 + $0x90] sm:$0xff]
        %v3163 = vld [vmem:[%s3143 + $0x98] sm:$0xff]
        %v3164 = vld [vmem:[%s3143 + $0xa0] sm:$0xff]
        %v3165 = vld [vmem:[%s3143 + $0xa8] sm:$0xff]
        %v3166 = vld [vmem:[%s3143 + $0xb0] sm:$0xff]
        %v3167 = vld [vmem:[%s3143 + $0xb8] sm:$0xff]
        %v3168 = vld [vmem:[%s3143 + $0xc0] sm:$0xff]
        %v3169 = vld [vmem:[%s3143 + $0xc8] sm:$0xff]
        %v3170 = vld [vmem:[%s3143 + $0xd0] sm:$0xff]
        %v3171 = vld [vmem:[%s3143 + $0xd8] sm:$0xff]
        %v3172 = vld [vmem:[%s3143 + $0xe0] sm:$0xff]
        %v3173 = vld [vmem:[%s3143 + $0xe8] sm:$0xff]
        %v3174 = vld [vmem:[%s3143 + $0xf0] sm:$0xff]
        %v3175 = vld [vmem:[%s3143 + $0xf8] sm:$0xff]
        %v3176 = vld [vmem:[%s3143 + $0x100] sm:$0xff]
        %v3177 = vld [vmem:[%s3143 + $0x108] sm:$0xff]
        %v3178 = vld [vmem:[%s3143 + $0x110] sm:$0xff]
        %v3179 = vld [vmem:[%s3143 + $0x118] sm:$0xff]
        %v3180 = vld [vmem:[%s3143 + $0x120] sm:$0xff]
        %v3181 = vld [vmem:[%s3143 + $0x128] sm:$0xff]
        %v3182 = vld [vmem:[%s3143 + $0x130] sm:$0xff]
        %v3183 = vld [vmem:[%s3143 + $0x138] sm:$0xff]
        %v3184 = vld [vmem:[%s3143 + $0x140] sm:$0xff]
        %v3185 = vld [vmem:[%s3143 + $0x148] sm:$0xff]
        %v3186 = vld [vmem:[%s3143 + $0x150] sm:$0xff]
        %v3187 = vld [vmem:[%s3143 + $0x158] sm:$0xff]
        %v3188 = vld [vmem:[%s3143 + $0x160] sm:$0xff]
        %v3189 = vld [vmem:[%s3143 + $0x168] sm:$0xff]
        %v3190 = vld [vmem:[%s3143 + $0x170] sm:$0xff]
        %v3191 = vld [vmem:[%s3143 + $0x178] sm:$0xff]
        %v3240 = vunpack.c.l.b16 %v3144
        %v3241 = vunpack.c.h.b16 %v3144
        %v3242 = vunpack.c.l.b16 %v3145
        %v3243 = vunpack.c.h.b16 %v3145
        %v3244 = vunpack.c.l.b16 %v3146
        %v3245 = vunpack.c.h.b16 %v3146
        %v3246 = vunpack.c.l.b16 %v3147
        %v3247 = vunpack.c.h.b16 %v3147
        %v3248 = vunpack.c.l.b16 %v3148
        %v3249 = vunpack.c.h.b16 %v3148
        %v3250 = vunpack.c.l.b16 %v3149
        %v3251 = vunpack.c.h.b16 %v3149
        %v3252 = vunpack.c.l.b16 %v3150
        %v3253 = vunpack.c.h.b16 %v3150
        %v3254 = vunpack.c.l.b16 %v3151
        %v3255 = vunpack.c.h.b16 %v3151
        %v3256 = vunpack.c.l.b16 %v3152
        %v3257 = vunpack.c.h.b16 %v3152
        %v3258 = vunpack.c.l.b16 %v3153
        %v3259 = vunpack.c.h.b16 %v3153
        %v3260 = vunpack.c.l.b16 %v3154
        %v3261 = vunpack.c.h.b16 %v3154
        %v3262 = vunpack.c.l.b16 %v3155
        %v3263 = vunpack.c.h.b16 %v3155
        %v3264 = vunpack.c.l.b16 %v3156
        %v3265 = vunpack.c.h.b16 %v3156
        %v3266 = vunpack.c.l.b16 %v3157
        %v3267 = vunpack.c.h.b16 %v3157
        %v3268 = vunpack.c.l.b16 %v3158
        %v3269 = vunpack.c.h.b16 %v3158
        %v3270 = vunpack.c.l.b16 %v3159
        %v3271 = vunpack.c.h.b16 %v3159
        %v3272 = vunpack.c.l.b16 %v3160
        %v3273 = vunpack.c.h.b16 %v3160
        %v3274 = vunpack.c.l.b16 %v3161
        %v3275 = vunpack.c.h.b16 %v3161
        %v3276 = vunpack.c.l.b16 %v3162
        %v3277 = vunpack.c.h.b16 %v3162
        %v3278 = vunpack.c.l.b16 %v3163
        %v3279 = vunpack.c.h.b16 %v3163
        %v3280 = vunpack.c.l.b16 %v3164
        %v3281 = vunpack.c.h.b16 %v3164
        %v3282 = vunpack.c.l.b16 %v3165
        %v3283 = vunpack.c.h.b16 %v3165
        %v3284 = vunpack.c.l.b16 %v3166
        %v3285 = vunpack.c.h.b16 %v3166
        %v3286 = vunpack.c.l.b16 %v3167
        %v3287 = vunpack.c.h.b16 %v3167
        %v3288 = vunpack.c.l.b16 %v3168
        %v3289 = vunpack.c.h.b16 %v3168
        %v3290 = vunpack.c.l.b16 %v3169
        %v3291 = vunpack.c.h.b16 %v3169
        %v3292 = vunpack.c.l.b16 %v3170
        %v3293 = vunpack.c.h.b16 %v3170
        %v3294 = vunpack.c.l.b16 %v3171
        %v3295 = vunpack.c.h.b16 %v3171
        %v3296 = vunpack.c.l.b16 %v3172
        %v3297 = vunpack.c.h.b16 %v3172
        %v3298 = vunpack.c.l.b16 %v3173
        %v3299 = vunpack.c.h.b16 %v3173
        %v3300 = vunpack.c.l.b16 %v3174
        %v3301 = vunpack.c.h.b16 %v3174
        %v3302 = vunpack.c.l.b16 %v3175
        %v3303 = vunpack.c.h.b16 %v3175
        %v3304 = vunpack.c.l.b16 %v3176
        %v3305 = vunpack.c.h.b16 %v3176
        %v3306 = vunpack.c.l.b16 %v3177
        %v3307 = vunpack.c.h.b16 %v3177
        %v3308 = vunpack.c.l.b16 %v3178
        %v3309 = vunpack.c.h.b16 %v3178
        %v3310 = vunpack.c.l.b16 %v3179
        %v3311 = vunpack.c.h.b16 %v3179
        %v3312 = vunpack.c.l.b16 %v3180
        %v3313 = vunpack.c.h.b16 %v3180
        %v3314 = vunpack.c.l.b16 %v3181
        %v3315 = vunpack.c.h.b16 %v3181
        %v3316 = vunpack.c.l.b16 %v3182
        %v3317 = vunpack.c.h.b16 %v3182
        %v3318 = vunpack.c.l.b16 %v3183
        %v3319 = vunpack.c.h.b16 %v3183
        %v3320 = vunpack.c.l.b16 %v3184
        %v3321 = vunpack.c.h.b16 %v3184
        %v3322 = vunpack.c.l.b16 %v3185
        %v3323 = vunpack.c.h.b16 %v3185
        %v3324 = vunpack.c.l.b16 %v3186
        %v3325 = vunpack.c.h.b16 %v3186
        %v3326 = vunpack.c.l.b16 %v3187
        %v3327 = vunpack.c.h.b16 %v3187
        %v3328 = vunpack.c.l.b16 %v3188
        %v3329 = vunpack.c.h.b16 %v3188
        %v3330 = vunpack.c.l.b16 %v3189
        %v3331 = vunpack.c.h.b16 %v3189
        %v3332 = vunpack.c.l.b16 %v3190
        %v3333 = vunpack.c.h.b16 %v3190
        %v3334 = vunpack.c.l.b16 %v3191
        %v3335 = vunpack.c.h.b16 %v3191
        %v3336 = vpack.c.b16 %v3242, %v3240
        %v3337 = vpack.c.b16 %v3243, %v3241
        %v3338 = vpack.c.b16 %v3246, %v3244
        %v3339 = vpack.c.b16 %v3247, %v3245
        %v3340 = vpack.c.b16 %v3250, %v3248
        %v3341 = vpack.c.b16 %v3251, %v3249
        %v3342 = vpack.c.b16 %v3254, %v3252
        %v3343 = vpack.c.b16 %v3255, %v3253
        %v3344 = vpack.c.b16 %v3258, %v3256
        %v3345 = vpack.c.b16 %v3259, %v3257
        %v3346 = vpack.c.b16 %v3262, %v3260
        %v3347 = vpack.c.b16 %v3263, %v3261
        %v3348 = vpack.c.b16 %v3266, %v3264
        %v3349 = vpack.c.b16 %v3267, %v3265
        %v3350 = vpack.c.b16 %v3270, %v3268
        %v3351 = vpack.c.b16 %v3271, %v3269
        %v3352 = vpack.c.b16 %v3274, %v3272
        %v3353 = vpack.c.b16 %v3275, %v3273
        %v3354 = vpack.c.b16 %v3278, %v3276
        %v3355 = vpack.c.b16 %v3279, %v3277
        %v3356 = vpack.c.b16 %v3282, %v3280
        %v3357 = vpack.c.b16 %v3283, %v3281
        %v3358 = vpack.c.b16 %v3286, %v3284
        %v3359 = vpack.c.b16 %v3287, %v3285
        %v3360 = vpack.c.b16 %v3290, %v3288
        %v3361 = vpack.c.b16 %v3291, %v3289
        %v3362 = vpack.c.b16 %v3294, %v3292
        %v3363 = vpack.c.b16 %v3295, %v3293
        %v3364 = vpack.c.b16 %v3298, %v3296
        %v3365 = vpack.c.b16 %v3299, %v3297
        %v3366 = vpack.c.b16 %v3302, %v3300
        %v3367 = vpack.c.b16 %v3303, %v3301
        %v3368 = vpack.c.b16 %v3306, %v3304
        %v3369 = vpack.c.b16 %v3307, %v3305
        %v3370 = vpack.c.b16 %v3310, %v3308
        %v3371 = vpack.c.b16 %v3311, %v3309
        %v3372 = vpack.c.b16 %v3314, %v3312
        %v3373 = vpack.c.b16 %v3315, %v3313
        %v3374 = vpack.c.b16 %v3318, %v3316
        %v3375 = vpack.c.b16 %v3319, %v3317
        %v3376 = vpack.c.b16 %v3322, %v3320
        %v3377 = vpack.c.b16 %v3323, %v3321
        %v3378 = vpack.c.b16 %v3326, %v3324
        %v3379 = vpack.c.b16 %v3327, %v3325
        %v3380 = vpack.c.b16 %v3330, %v3328
        %v3381 = vpack.c.b16 %v3331, %v3329
        %v3382 = vpack.c.b16 %v3334, %v3332
        %v3383 = vpack.c.b16 %v3335, %v3333
        %3432 = vmatprep.subr.bf16.mxu0 %v3337
        %3433 = vmatpush1.bf16.msra.mxu0 %v3336
        %3434 = vmatprep.subr.bf16.mxu0 %v3339
        %3435 = vmatpush1.bf16.msra.mxu0 %v3338
        %3436 = vmatprep.subr.bf16.mxu0 %v3341
        %3437 = vmatpush1.bf16.msra.mxu0 %v3340
        %3438 = vmatprep.subr.bf16.mxu0 %v3343
        %3439 = vmatpush1.bf16.msra.mxu0 %v3342
        %3440 = vmatprep.subr.bf16.mxu0 %v3345
        %3441 = vmatpush1.bf16.msra.mxu0 %v3344
        %3442 = vmatprep.subr.bf16.mxu0 %v3347
        %3443 = vmatpush1.bf16.msra.mxu0 %v3346
        %3444 = vmatprep.subr.bf16.mxu0 %v3349
        %3445 = vmatpush1.bf16.msra.mxu0 %v3348
        %3446 = vmatprep.subr.bf16.mxu0 %v3351
        %3447 = vmatpush1.bf16.msra.mxu0 %v3350
        %3448 = vmatprep.subr.bf16.mxu0 %v3353
        %3449 = vmatpush1.bf16.msra.mxu0 %v3352
        %3450 = vmatprep.subr.bf16.mxu0 %v3355
        %3451 = vmatpush1.bf16.msra.mxu0 %v3354
        %3452 = vmatprep.subr.bf16.mxu0 %v3357
        %3453 = vmatpush1.bf16.msra.mxu0 %v3356
        %3454 = vmatprep.subr.bf16.mxu0 %v3359
        %3455 = vmatpush1.bf16.msra.mxu0 %v3358
        %3456 = vmatprep.subr.bf16.mxu0 %v3361
        %3457 = vmatpush1.bf16.msra.mxu0 %v3360
        %3458 = vmatprep.subr.bf16.mxu0 %v3363
        %3459 = vmatpush1.bf16.msra.mxu0 %v3362
        %3460 = vmatprep.subr.bf16.mxu0 %v3365
        %3461 = vmatpush1.bf16.msra.mxu0 %v3364
        %3462 = vmatprep.subr.bf16.mxu0 %v3367
        %3463 = vmatpush1.bf16.msra.mxu0 %v3366
        %3464 = vmatprep.mubr.bf16.mxu0 %v2889
        %3465 = vmatmul.mubr.bf16.gmra.mrb[0].mxu0 %v2877
        %v3466 = vpop.f32.mrb[0].mxu0
        %v3467 = vadd.f32 0.0, %v3466
        %v3468 = vpop.f32.mrb[0].mxu0
        %v3469 = vadd.f32 0.0, %v3468
        %v3470 = vpop.f32.mrb[0].mxu0
        %v3471 = vadd.f32 0.0, %v3470
        %v3472 = vpop.f32.mrb[0].mxu0
        %v3473 = vadd.f32 0.0, %v3472
        %3474 = vmatprep.mubr.bf16.mxu0 %v2920
        %3475 = vmatmul.mubr.bf16.gmra.mrb[0].mxu0 %v2908
        %v3476 = vpop.f32.mrb[0].mxu0
        %v3477 = vadd.f32 0.0, %v3476
        %v3478 = vpop.f32.mrb[0].mxu0
        %v3479 = vadd.f32 0.0, %v3478
        %v3480 = vpop.f32.mrb[0].mxu0
        %v3481 = vadd.f32 0.0, %v3480
        %v3482 = vpop.f32.mrb[0].mxu0
        %v3483 = vadd.f32 0.0, %v3482
        %3484 = vmatprep.mubr.bf16.mxu0 %v2951
        %3485 = vmatmul.mubr.bf16.gmra.mrb[0].mxu0 %v2939
        %v3486 = vpop.f32.mrb[0].mxu0
        %v3487 = vadd.f32 0.0, %v3486
        %v3488 = vpop.f32.mrb[0].mxu0
        %v3489 = vadd.f32 0.0, %v3488
        %v3490 = vpop.f32.mrb[0].mxu0
        %v3491 = vadd.f32 0.0, %v3490
        %v3492 = vpop.f32.mrb[0].mxu0
        %v3493 = vadd.f32 0.0, %v3492
        %3494 = vmatprep.mubr.bf16.mxu0 %v2982
        %3495 = vmatmul.mubr.bf16.gmra.mrb[0].mxu0 %v2970
        %v3496 = vpop.f32.mrb[0].mxu0
        %v3497 = vadd.f32 0.0, %v3496
        %v3498 = vpop.f32.mrb[0].mxu0
        %v3499 = vadd.f32 0.0, %v3498
        %v3500 = vpop.f32.mrb[0].mxu0
        %v3501 = vadd.f32 0.0, %v3500
        %v3502 = vpop.f32.mrb[0].mxu0
        %v3503 = vadd.f32 0.0, %v3502
        %3504 = vmatprep.mubr.bf16.mxu0 %v3013
        %3505 = vmatmul.mubr.bf16.gmra.mrb[0].mxu0 %v3001
        %v3506 = vpop.f32.mrb[0].mxu0
        %v3507 = vadd.f32 0.0, %v3506
        %v3508 = vpop.f32.mrb[0].mxu0
        %v3509 = vadd.f32 0.0, %v3508
        %v3510 = vpop.f32.mrb[0].mxu0
        %v3511 = vadd.f32 0.0, %v3510
        %v3512 = vpop.f32.mrb[0].mxu0
        %v3513 = vadd.f32 0.0, %v3512
        %3514 = vmatprep.mubr.bf16.mxu0 %v3044
        %3515 = vmatmul.mubr.bf16.gmra.mrb[0].mxu0 %v3032
        %v3516 = vpop.f32.mrb[0].mxu0
        %v3517 = vadd.f32 0.0, %v3516
        %v3518 = vpop.f32.mrb[0].mxu0
        %v3519 = vadd.f32 0.0, %v3518
        %v3520 = vpop.f32.mrb[0].mxu0
        %v3521 = vadd.f32 0.0, %v3520
        %v3522 = vpop.f32.mrb[0].mxu0
        %v3523 = vadd.f32 0.0, %v3522
        %3524 = vmatprep.mubr.bf16.mxu0 %v3075
        %3525 = vmatmul.mubr.bf16.gmra.mrb[0].mxu0 %v3063
        %v3526 = vpop.f32.mrb[0].mxu0
        %v3527 = vadd.f32 0.0, %v3526
        %v3528 = vpop.f32.mrb[0].mxu0
        %v3529 = vadd.f32 0.0, %v3528
        %v3530 = vpop.f32.mrb[0].mxu0
        %v3531 = vadd.f32 0.0, %v3530
        %v3532 = vpop.f32.mrb[0].mxu0
        %v3533 = vadd.f32 0.0, %v3532
        %3534 = vmatprep.mubr.bf16.mxu0 %v3106
        %3535 = vmatmul.mubr.bf16.gmra.mrb[0].mxu0 %v3094
        %v3536 = vpop.f32.mrb[0].mxu0
        %v3537 = vadd.f32 0.0, %v3536
        %v3538 = vpop.f32.mrb[0].mxu0
        %v3539 = vadd.f32 0.0, %v3538
        %v3540 = vpop.f32.mrb[0].mxu0
        %v3541 = vadd.f32 0.0, %v3540
        %v3542 = vpop.f32.mrb[0].mxu0
        %v3543 = vadd.f32 0.0, %v3542
        %3544 = vdwg.mxu0
        %3545 = vmatprep.subr.bf16.mxu0 %v3369
        %3546 = vmatpush1.bf16.msra.mxu0 %v3368
        %3547 = vmatprep.subr.bf16.mxu0 %v3371
        %3548 = vmatpush1.bf16.msra.mxu0 %v3370
        %3549 = vmatprep.subr.bf16.mxu0 %v3373
        %3550 = vmatpush1.bf16.msra.mxu0 %v3372
        %3551 = vmatprep.subr.bf16.mxu0 %v3375
        %3552 = vmatpush1.bf16.msra.mxu0 %v3374
        %3553 = vmatprep.subr.bf16.mxu0 %v3377
        %3554 = vmatpush1.bf16.msra.mxu0 %v3376
        %3555 = vmatprep.subr.bf16.mxu0 %v3379
        %3556 = vmatpush1.bf16.msra.mxu0 %v3378
        %3557 = vmatprep.subr.bf16.mxu0 %v3381
        %3558 = vmatpush1.bf16.msra.mxu0 %v3380
        %3559 = vmatprep.subr.bf16.mxu0 %v3383
        %3560 = vmatpush1.bf16.msra.mxu0 %v3382
        %3561 = vmatprep.subr.bf16.mxu0 0
        %3562 = vmatpush1.bf16.msra.mxu0 0
        %3563 = vmatprep.subr.bf16.mxu0 0
        %3564 = vmatpush1.bf16.msra.mxu0 0
        %3565 = vmatprep.subr.bf16.mxu0 0
        %3566 = vmatpush1.bf16.msra.mxu0 0
        %3567 = vmatprep.subr.bf16.mxu0 0
        %3568 = vmatpush1.bf16.msra.mxu0 0
        %3569 = vmatprep.subr.bf16.mxu0 0
        %3570 = vmatpush1.bf16.msra.mxu0 0
        %3571 = vmatprep.subr.bf16.mxu0 0
        %3572 = vmatpush1.bf16.msra.mxu0 0
        %3573 = vmatprep.subr.bf16.mxu0 0
        %3574 = vmatpush1.bf16.msra.mxu0 0
        %3575 = vmatprep.subr.bf16.mxu0 0
        %3576 = vmatpush1.bf16.msra.mxu0 0
        %3577 = vmatprep.mubr.bf16.mxu0 0
        %3578 = vmatmul.mubr.bf16.gmra.mrb[0].mxu0 %v2901
        %v3579 = vpop.f32.mrb[0].mxu0
        %v3580 = vadd.f32 %v3467, %v3579
        %v3581 = vpop.f32.mrb[0].mxu0
        %v3582 = vadd.f32 %v3469, %v3581
        %v3583 = vpop.f32.mrb[0].mxu0
        %v3584 = vadd.f32 %v3471, %v3583
        %v3585 = vpop.f32.mrb[0].mxu0
        %v3586 = vadd.f32 %v3473, %v3585
        %3587 = vmatprep.mubr.bf16.mxu0 0
        %3588 = vmatmul.mubr.bf16.gmra.mrb[0].mxu0 %v2932
        %v3589 = vpop.f32.mrb[0].mxu0
        %v3590 = vadd.f32 %v3477, %v3589
        %v3591 = vpop.f32.mrb[0].mxu0
        %v3592 = vadd.f32 %v3479, %v3591
        %v3593 = vpop.f32.mrb[0].mxu0
        %v3594 = vadd.f32 %v3481, %v3593
        %v3595 = vpop.f32.mrb[0].mxu0
        %v3596 = vadd.f32 %v3483, %v3595
        %3597 = vmatprep.mubr.bf16.mxu0 0
        %3598 = vmatmul.mubr.bf16.gmra.mrb[0].mxu0 %v2963
        %v3599 = vpop.f32.mrb[0].mxu0
        %v3600 = vadd.f32 %v3487, %v3599
        %v3601 = vpop.f32.mrb[0].mxu0
        %v3602 = vadd.f32 %v3489, %v3601
        %v3603 = vpop.f32.mrb[0].mxu0
        %v3604 = vadd.f32 %v3491, %v3603
        %v3605 = vpop.f32.mrb[0].mxu0
        %v3606 = vadd.f32 %v3493, %v3605
        %3607 = vmatprep.mubr.bf16.mxu0 0
        %3608 = vmatmul.mubr.bf16.gmra.mrb[0].mxu0 %v2994
        %v3609 = vpop.f32.mrb[0].mxu0
        %v3610 = vadd.f32 %v3497, %v3609
        %v3611 = vpop.f32.mrb[0].mxu0
        %v3612 = vadd.f32 %v3499, %v3611
        %v3613 = vpop.f32.mrb[0].mxu0
        %v3614 = vadd.f32 %v3501, %v3613
        %v3615 = vpop.f32.mrb[0].mxu0
        %v3616 = vadd.f32 %v3503, %v3615
        %3617 = vmatprep.mubr.bf16.mxu0 0
        %3618 = vmatmul.mubr.bf16.gmra.mrb[0].mxu0 %v3025
        %v3619 = vpop.f32.mrb[0].mxu0
        %v3620 = vadd.f32 %v3507, %v3619
        %v3621 = vpop.f32.mrb[0].mxu0
        %v3622 = vadd.f32 %v3509, %v3621
        %v3623 = vpop.f32.mrb[0].mxu0
        %v3624 = vadd.f32 %v3511, %v3623
        %v3625 = vpop.f32.mrb[0].mxu0
        %v3626 = vadd.f32 %v3513, %v3625
        %3627 = vmatprep.mubr.bf16.mxu0 0
        %3628 = vmatmul.mubr.bf16.gmra.mrb[0].mxu0 %v3056
        %v3629 = vpop.f32.mrb[0].mxu0
        %v3630 = vadd.f32 %v3517, %v3629
        %v3631 = vpop.f32.mrb[0].mxu0
        %v3632 = vadd.f32 %v3519, %v3631
        %v3633 = vpop.f32.mrb[0].mxu0
        %v3634 = vadd.f32 %v3521, %v3633
        %v3635 = vpop.f32.mrb[0].mxu0
        %v3636 = vadd.f32 %v3523, %v3635
        %3637 = vmatprep.mubr.bf16.mxu0 0
        %3638 = vmatmul.mubr.bf16.gmra.mrb[0].mxu0 %v3087
        %v3639 = vpop.f32.mrb[0].mxu0
        %v3640 = vadd.f32 %v3527, %v3639
        %v3641 = vpop.f32.mrb[0].mxu0
        %v3642 = vadd.f32 %v3529, %v3641
        %v3643 = vpop.f32.mrb[0].mxu0
        %v3644 = vadd.f32 %v3531, %v3643
        %v3645 = vpop.f32.mrb[0].mxu0
        %v3646 = vadd.f32 %v3533, %v3645
        %3647 = vmatprep.mubr.bf16.mxu0 0
        %3648 = vmatmul.mubr.bf16.gmra.mrb[0].mxu0 %v3118
        %v3649 = vpop.f32.mrb[0].mxu0
        %v3650 = vadd.f32 %v3537, %v3649
        %v3651 = vpop.f32.mrb[0].mxu0
        %v3652 = vadd.f32 %v3539, %v3651
        %v3653 = vpop.f32.mrb[0].mxu0
        %v3654 = vadd.f32 %v3541, %v3653
        %v3655 = vpop.f32.mrb[0].mxu0
        %v3656 = vadd.f32 %v3543, %v3655
        %3657 = vdwg.mxu0
        %v3658 = vadd.f32 %v2672, %v3580
        %v3659 = vadd.f32 %v2674, %v3582
        %v3660 = vadd.f32 %v2676, %v3584
        %v3661 = vadd.f32 %v2678, %v3586
        %v3662 = vadd.f32 %v2682, %v3590
        %v3663 = vadd.f32 %v2684, %v3592
        %v3664 = vadd.f32 %v2686, %v3594
        %v3665 = vadd.f32 %v2688, %v3596
        %v3666 = vadd.f32 %v2692, %v3600
        %v3667 = vadd.f32 %v2694, %v3602
        %v3668 = vadd.f32 %v2696, %v3604
        %v3669 = vadd.f32 %v2698, %v3606
        %v3670 = vadd.f32 %v2702, %v3610
        %v3671 = vadd.f32 %v2704, %v3612
        %v3672 = vadd.f32 %v2706, %v3614
        %v3673 = vadd.f32 %v2708, %v3616
        %v3674 = vadd.f32 %v2712, %v3620
        %v3675 = vadd.f32 %v2714, %v3622
        %v3676 = vadd.f32 %v2716, %v3624
        %v3677 = vadd.f32 %v2718, %v3626
        %v3678 = vadd.f32 %v2722, %v3630
        %v3679 = vadd.f32 %v2724, %v3632
        %v3680 = vadd.f32 %v2726, %v3634
        %v3681 = vadd.f32 %v2728, %v3636
        %v3682 = vadd.f32 %v2732, %v3640
        %v3683 = vadd.f32 %v2734, %v3642
        %v3684 = vadd.f32 %v2736, %v3644
        %v3685 = vadd.f32 %v2738, %v3646
        %v3686 = vadd.f32 %v2742, %v3650
        %v3687 = vadd.f32 %v2744, %v3652
        %v3688 = vadd.f32 %v2746, %v3654
        %v3689 = vadd.f32 %v2748, %v3656
        %v3690 = vadd.f32 %v3658, %v928
        %v3691 = vadd.f32 %v3659, %v932
        %v3692 = vadd.f32 %v3660, %v928
        %v3693 = vadd.f32 %v3661, %v932
        %v3694 = vadd.f32 %v3662, %v928
        %v3695 = vadd.f32 %v3663, %v932
        %v3696 = vadd.f32 %v3664, %v928
        %v3697 = vadd.f32 %v3665, %v932
        %v3698 = vadd.f32 %v3666, %v928
        %v3699 = vadd.f32 %v3667, %v932
        %v3700 = vadd.f32 %v3668, %v928
        %v3701 = vadd.f32 %v3669, %v932
        %v3702 = vadd.f32 %v3670, %v928
        %v3703 = vadd.f32 %v3671, %v932
        %v3704 = vadd.f32 %v3672, %v928
        %v3705 = vadd.f32 %v3673, %v932
        %v3706 = vadd.f32 %v3674, %v928
        %v3707 = vadd.f32 %v3675, %v932
        %v3708 = vadd.f32 %v3676, %v928
        %v3709 = vadd.f32 %v3677, %v932
        %v3710 = vadd.f32 %v3678, %v928
        %v3711 = vadd.f32 %v3679, %v932
        %v3712 = vadd.f32 %v3680, %v928
        %v3713 = vadd.f32 %v3681, %v932
        %v3714 = vadd.f32 %v3682, %v928
        %v3715 = vadd.f32 %v3683, %v932
        %v3716 = vadd.f32 %v3684, %v928
        %v3717 = vadd.f32 %v3685, %v932
        %v3718 = vadd.f32 %v3686, %v928
        %v3719 = vadd.f32 %v3687, %v932
        %v3720 = vadd.f32 %v3688, %v928
        %v3721 = vadd.f32 %v3689, %v932
        %v3722 = vmax.f32 %v3690, 0.0
        %v3723 = vmax.f32 %v3691, 0.0
        %v3724 = vmax.f32 %v3692, 0.0
        %v3725 = vmax.f32 %v3693, 0.0
        %v3726 = vmax.f32 %v3694, 0.0
        %v3727 = vmax.f32 %v3695, 0.0
        %v3728 = vmax.f32 %v3696, 0.0
        %v3729 = vmax.f32 %v3697, 0.0
        %v3730 = vmax.f32 %v3698, 0.0
        %v3731 = vmax.f32 %v3699, 0.0
        %v3732 = vmax.f32 %v3700, 0.0
        %v3733 = vmax.f32 %v3701, 0.0
        %v3734 = vmax.f32 %v3702, 0.0
        %v3735 = vmax.f32 %v3703, 0.0
        %v3736 = vmax.f32 %v3704, 0.0
        %v3737 = vmax.f32 %v3705, 0.0
        %v3738 = vmax.f32 %v3706, 0.0
        %v3739 = vmax.f32 %v3707, 0.0
        %v3740 = vmax.f32 %v3708, 0.0
        %v3741 = vmax.f32 %v3709, 0.0
        %v3742 = vmax.f32 %v3710, 0.0
        %v3743 = vmax.f32 %v3711, 0.0
        %v3744 = vmax.f32 %v3712, 0.0
        %v3745 = vmax.f32 %v3713, 0.0
        %v3746 = vmax.f32 %v3714, 0.0
        %v3747 = vmax.f32 %v3715, 0.0
        %v3748 = vmax.f32 %v3716, 0.0
        %v3749 = vmax.f32 %v3717, 0.0
        %v3750 = vmax.f32 %v3718, 0.0
        %v3751 = vmax.f32 %v3719, 0.0
        %v3752 = vmax.f32 %v3720, 0.0
        %v3753 = vmax.f32 %v3721, 0.0
        %v3754 = vpack.c.bf16 %v3724, %v3722
        %v3755 = vpack.c.bf16 %v3725, %v3723
        %v3756 = vpack.c.bf16 %v3728, %v3726
        %v3757 = vpack.c.bf16 %v3729, %v3727
        %v3758 = vpack.c.bf16 %v3732, %v3730
        %v3759 = vpack.c.bf16 %v3733, %v3731
        %v3760 = vpack.c.bf16 %v3736, %v3734
        %v3761 = vpack.c.bf16 %v3737, %v3735
        %v3762 = vpack.c.bf16 %v3740, %v3738
        %v3763 = vpack.c.bf16 %v3741, %v3739
        %v3764 = vpack.c.bf16 %v3744, %v3742
        %v3765 = vpack.c.bf16 %v3745, %v3743
        %v3766 = vpack.c.bf16 %v3748, %v3746
        %v3767 = vpack.c.bf16 %v3749, %v3747
        %v3768 = vpack.c.bf16 %v3752, %v3750
        %v3769 = vpack.c.bf16 %v3753, %v3751
        %s3770 = scalar_lea.vmem [#allocation3], 48
        %3771 = vst [vmem:[%s3770 + $0x10] sm:$0xff] %v3754
        %3772 = vst [vmem:[%s3770 + $0x18] sm:$0xff] %v3755
        %3773 = vst [vmem:[%s3770 + $0x40] sm:$0xff] %v3756
        %3774 = vst [vmem:[%s3770 + $0x48] sm:$0xff] %v3757
        %3775 = vst [vmem:[%s3770 + $0x70] sm:$0xff] %v3758
        %3776 = vst [vmem:[%s3770 + $0x78] sm:$0xff] %v3759
        %3777 = vst [vmem:[%s3770 + $0xa0] sm:$0xff] %v3760
        %3778 = vst [vmem:[%s3770 + $0xa8] sm:$0xff] %v3761
        %3779 = vst [vmem:[%s3770 + $0xd0] sm:$0xff] %v3762
        %3780 = vst [vmem:[%s3770 + $0xd8] sm:$0xff] %v3763
        %3781 = vst [vmem:[%s3770 + $0x100] sm:$0xff] %v3764
        %3782 = vst [vmem:[%s3770 + $0x108] sm:$0xff] %v3765
        %3783 = vst [vmem:[%s3770 + $0x130] sm:$0xff] %v3766
        %3784 = vst [vmem:[%s3770 + $0x138] sm:$0xff] %v3767
        %3785 = vst [vmem:[%s3770 + $0x160] sm:$0xff] %v3768
        %3786 = vst [vmem:[%s3770 + $0x168] sm:$0xff] %v3769
        %s3787 = scalar_lea.vmem [#allocation2], 192
        %v3788 = vld [vmem:[%s3787] sm:$0x80]
        %v3789 = vld [vmem:[%s3787 + $0x8] sm:$0xff]
        %v3790 = vld [vmem:[%s3787 + $0x18] sm:$0x80]
        %v3791 = vld [vmem:[%s3787 + $0x20] sm:$0xff]
        %v3792 = vld [vmem:[%s3787 + $0x30] sm:$0x80]
        %v3793 = vld [vmem:[%s3787 + $0x38] sm:$0xff]
        %v3794 = vld [vmem:[%s3787 + $0x48] sm:$0x80]
        %v3795 = vld [vmem:[%s3787 + $0x50] sm:$0xff]
        %v3796 = vld [vmem:[%s3787 + $0x60] sm:$0x80]
        %v3797 = vld [vmem:[%s3787 + $0x68] sm:$0xff]
        %v3798 = vld [vmem:[%s3787 + $0x78] sm:$0x80]
        %v3799 = vld [vmem:[%s3787 + $0x80] sm:$0xff]
        %v3800 = vld [vmem:[%s3787 + $0x90] sm:$0x80]
        %v3801 = vld [vmem:[%s3787 + $0x98] sm:$0xff]
        %v3802 = vld [vmem:[%s3787 + $0xa8] sm:$0x80]
        %v3803 = vld [vmem:[%s3787 + $0xb0] sm:$0xff]
        %v3804 = vld [vmem:[%s3787 + $0x10] sm:$0x1]
        %v3805 = vld [vmem:[%s3787 + $0x28] sm:$0x1]
        %v3806 = vld [vmem:[%s3787 + $0x40] sm:$0x1]
        %v3807 = vld [vmem:[%s3787 + $0x58] sm:$0x1]
        %v3808 = vld [vmem:[%s3787 + $0x70] sm:$0x1]
        %v3809 = vld [vmem:[%s3787 + $0x88] sm:$0x1]
        %v3810 = vld [vmem:[%s3787 + $0xa0] sm:$0x1]
        %v3811 = vld [vmem:[%s3787 + $0xb8] sm:$0x1]
        %v3813 = vshll.u32 %v3789, 16
        %v3815 = vrot.slane %v3813, 1
        %v3816 = vshrl.u32 %v3789, 16
        %v3818 = vor.u32 %v3816, %v3815
        %v3820 = vshll.u32 %v3791, 16
        %v3822 = vrot.slane %v3820, 1
        %v3823 = vshrl.u32 %v3791, 16
        %v3825 = vor.u32 %v3823, %v3822
        %v3827 = vshll.u32 %v3793, 16
        %v3829 = vrot.slane %v3827, 1
        %v3830 = vshrl.u32 %v3793, 16
        %v3832 = vor.u32 %v3830, %v3829
        %v3834 = vshll.u32 %v3795, 16
        %v3836 = vrot.slane %v3834, 1
        %v3837 = vshrl.u32 %v3795, 16
        %v3839 = vor.u32 %v3837, %v3836
        %v3841 = vshll.u32 %v3797, 16
        %v3843 = vrot.slane %v3841, 1
        %v3844 = vshrl.u32 %v3797, 16
        %v3846 = vor.u32 %v3844, %v3843
        %v3848 = vshll.u32 %v3799, 16
        %v3850 = vrot.slane %v3848, 1
        %v3851 = vshrl.u32 %v3799, 16
        %v3853 = vor.u32 %v3851, %v3850
        %v3855 = vshll.u32 %v3801, 16
        %v3857 = vrot.slane %v3855, 1
        %v3858 = vshrl.u32 %v3801, 16
        %v3860 = vor.u32 %v3858, %v3857
        %v3862 = vshll.u32 %v3803, 16
        %v3864 = vrot.slane %v3862, 1
        %v3865 = vshrl.u32 %v3803, 16
        %v3867 = vor.u32 %v3865, %v3864
        %v3884 = vrot.slane %v3789, 1
        %v3885 = vrot.slane %v3804, 1
        %v3886 = vsel %vm1031, %v3884, %v3885
        %v3887 = vrot.slane %v3791, 1
        %v3888 = vrot.slane %v3805, 1
        %v3889 = vsel %vm1031, %v3887, %v3888
        %v3890 = vrot.slane %v3793, 1
        %v3891 = vrot.slane %v3806, 1
        %v3892 = vsel %vm1031, %v3890, %v3891
        %v3893 = vrot.slane %v3795, 1
        %v3894 = vrot.slane %v3807, 1
        %v3895 = vsel %vm1031, %v3893, %v3894
        %v3896 = vrot.slane %v3797, 1
        %v3897 = vrot.slane %v3808, 1
        %v3898 = vsel %vm1031, %v3896, %v3897
        %v3899 = vrot.slane %v3799, 1
        %v3900 = vrot.slane %v3809, 1
        %v3901 = vsel %vm1031, %v3899, %v3900
        %v3902 = vrot.slane %v3801, 1
        %v3903 = vrot.slane %v3810, 1
        %v3904 = vsel %vm1031, %v3902, %v3903
        %v3905 = vrot.slane %v3803, 1
        %v3906 = vrot.slane %v3811, 1
        %v3907 = vsel %vm1031, %v3905, %v3906
        %v3909 = vshrl.u32 %v3788, 16
        %v3911 = vrot.slane %v3909, 7
        %v3912 = vrot.slane %v3816, 7
        %v3913 = vor.u32 %v3912, %v3813
        %v3914 = vsel %vm1056, %v3911, %v3913
        %v3916 = vshrl.u32 %v3815, 16
        %v3918 = vrot.slane %v3916, 7
        %v3920 = vshrl.u32 %v3818, 16
        %v3922 = vrot.slane %v3920, 7
        %v3923 = vshll.u32 %v3818, 16
        %v3925 = vor.u32 %v3922, %v3923
        %v3926 = vsel %vm1056, %v3918, %v3925
        %v3928 = vshrl.u32 %v3884, 16
        %v3930 = vrot.slane %v3928, 7
        %v3932 = vshrl.u32 %v3886, 16
        %v3934 = vrot.slane %v3932, 7
        %v3935 = vshll.u32 %v3886, 16
        %v3937 = vor.u32 %v3934, %v3935
        %v3938 = vsel %vm1056, %v3930, %v3937
        %v3940 = vshrl.u32 %v3790, 16
        %v3942 = vrot.slane %v3940, 7
        %v3943 = vrot.slane %v3823, 7
        %v3944 = vor.u32 %v3943, %v3820
        %v3945 = vsel %vm1056, %v3942, %v3944
        %v3947 = vshrl.u32 %v3822, 16
        %v3949 = vrot.slane %v3947, 7
        %v3951 = vshrl.u32 %v3825, 16
        %v3953 = vrot.slane %v3951, 7
        %v3954 = vshll.u32 %v3825, 16
        %v3956 = vor.u32 %v3953, %v3954
        %v3957 = vsel %vm1056, %v3949, %v3956
        %v3959 = vshrl.u32 %v3887, 16
        %v3961 = vrot.slane %v3959, 7
        %v3963 = vshrl.u32 %v3889, 16
        %v3965 = vrot.slane %v3963, 7
        %v3966 = vshll.u32 %v3889, 16
        %v3968 = vor.u32 %v3965, %v3966
        %v3969 = vsel %vm1056, %v3961, %v3968
        %v3971 = vshrl.u32 %v3792, 16
        %v3973 = vrot.slane %v3971, 7
        %v3974 = vrot.slane %v3830, 7
        %v3975 = vor.u32 %v3974, %v3827
        %v3976 = vsel %vm1056, %v3973, %v3975
        %v3978 = vshrl.u32 %v3829, 16
        %v3980 = vrot.slane %v3978, 7
        %v3982 = vshrl.u32 %v3832, 16
        %v3984 = vrot.slane %v3982, 7
        %v3985 = vshll.u32 %v3832, 16
        %v3987 = vor.u32 %v3984, %v3985
        %v3988 = vsel %vm1056, %v3980, %v3987
        %v3990 = vshrl.u32 %v3890, 16
        %v3992 = vrot.slane %v3990, 7
        %v3994 = vshrl.u32 %v3892, 16
        %v3996 = vrot.slane %v3994, 7
        %v3997 = vshll.u32 %v3892, 16
        %v3999 = vor.u32 %v3996, %v3997
        %v4000 = vsel %vm1056, %v3992, %v3999
        %v4002 = vshrl.u32 %v3794, 16
        %v4004 = vrot.slane %v4002, 7
        %v4005 = vrot.slane %v3837, 7
        %v4006 = vor.u32 %v4005, %v3834
        %v4007 = vsel %vm1056, %v4004, %v4006
        %v4009 = vshrl.u32 %v3836, 16
        %v4011 = vrot.slane %v4009, 7
        %v4013 = vshrl.u32 %v3839, 16
        %v4015 = vrot.slane %v4013, 7
        %v4016 = vshll.u32 %v3839, 16
        %v4018 = vor.u32 %v4015, %v4016
        %v4019 = vsel %vm1056, %v4011, %v4018
        %v4021 = vshrl.u32 %v3893, 16
        %v4023 = vrot.slane %v4021, 7
        %v4025 = vshrl.u32 %v3895, 16
        %v4027 = vrot.slane %v4025, 7
        %v4028 = vshll.u32 %v3895, 16
        %v4030 = vor.u32 %v4027, %v4028
        %v4031 = vsel %vm1056, %v4023, %v4030
        %v4033 = vshrl.u32 %v3796, 16
        %v4035 = vrot.slane %v4033, 7
        %v4036 = vrot.slane %v3844, 7
        %v4037 = vor.u32 %v4036, %v3841
        %v4038 = vsel %vm1056, %v4035, %v4037
        %v4040 = vshrl.u32 %v3843, 16
        %v4042 = vrot.slane %v4040, 7
        %v4044 = vshrl.u32 %v3846, 16
        %v4046 = vrot.slane %v4044, 7
        %v4047 = vshll.u32 %v3846, 16
        %v4049 = vor.u32 %v4046, %v4047
        %v4050 = vsel %vm1056, %v4042, %v4049
        %v4052 = vshrl.u32 %v3896, 16
        %v4054 = vrot.slane %v4052, 7
        %v4056 = vshrl.u32 %v3898, 16
        %v4058 = vrot.slane %v4056, 7
        %v4059 = vshll.u32 %v3898, 16
        %v4061 = vor.u32 %v4058, %v4059
        %v4062 = vsel %vm1056, %v4054, %v4061
        %v4064 = vshrl.u32 %v3798, 16
        %v4066 = vrot.slane %v4064, 7
        %v4067 = vrot.slane %v3851, 7
        %v4068 = vor.u32 %v4067, %v3848
        %v4069 = vsel %vm1056, %v4066, %v4068
        %v4071 = vshrl.u32 %v3850, 16
        %v4073 = vrot.slane %v4071, 7
        %v4075 = vshrl.u32 %v3853, 16
        %v4077 = vrot.slane %v4075, 7
        %v4078 = vshll.u32 %v3853, 16
        %v4080 = vor.u32 %v4077, %v4078
        %v4081 = vsel %vm1056, %v4073, %v4080
        %v4083 = vshrl.u32 %v3899, 16
        %v4085 = vrot.slane %v4083, 7
        %v4087 = vshrl.u32 %v3901, 16
        %v4089 = vrot.slane %v4087, 7
        %v4090 = vshll.u32 %v3901, 16
        %v4092 = vor.u32 %v4089, %v4090
        %v4093 = vsel %vm1056, %v4085, %v4092
        %v4095 = vshrl.u32 %v3800, 16
        %v4097 = vrot.slane %v4095, 7
        %v4098 = vrot.slane %v3858, 7
        %v4099 = vor.u32 %v4098, %v3855
        %v4100 = vsel %vm1056, %v4097, %v4099
        %v4102 = vshrl.u32 %v3857, 16
        %v4104 = vrot.slane %v4102, 7
        %v4106 = vshrl.u32 %v3860, 16
        %v4108 = vrot.slane %v4106, 7
        %v4109 = vshll.u32 %v3860, 16
        %v4111 = vor.u32 %v4108, %v4109
        %v4112 = vsel %vm1056, %v4104, %v4111
        %v4114 = vshrl.u32 %v3902, 16
        %v4116 = vrot.slane %v4114, 7
        %v4118 = vshrl.u32 %v3904, 16
        %v4120 = vrot.slane %v4118, 7
        %v4121 = vshll.u32 %v3904, 16
        %v4123 = vor.u32 %v4120, %v4121
        %v4124 = vsel %vm1056, %v4116, %v4123
        %v4126 = vshrl.u32 %v3802, 16
        %v4128 = vrot.slane %v4126, 7
        %v4129 = vrot.slane %v3865, 7
        %v4130 = vor.u32 %v4129, %v3862
        %v4131 = vsel %vm1056, %v4128, %v4130
        %v4133 = vshrl.u32 %v3864, 16
        %v4135 = vrot.slane %v4133, 7
        %v4137 = vshrl.u32 %v3867, 16
        %v4139 = vrot.slane %v4137, 7
        %v4140 = vshll.u32 %v3867, 16
        %v4142 = vor.u32 %v4139, %v4140
        %v4143 = vsel %vm1056, %v4135, %v4142
        %v4145 = vshrl.u32 %v3905, 16
        %v4147 = vrot.slane %v4145, 7
        %v4149 = vshrl.u32 %v3907, 16
        %v4151 = vrot.slane %v4149, 7
        %v4152 = vshll.u32 %v3907, 16
        %v4154 = vor.u32 %v4151, %v4152
        %v4155 = vsel %vm1056, %v4147, %v4154
        %v4180 = vld [vmem:[#allocation9] sm:$0xff]
        %v4181 = vld [vmem:[#allocation9 + $0x8] sm:$0xff]
        %v4182 = vld [vmem:[#allocation9 + $0x10] sm:$0xff]
        %v4183 = vld [vmem:[#allocation9 + $0x18] sm:$0xff]
        %v4184 = vld [vmem:[#allocation9 + $0x20] sm:$0xff]
        %v4185 = vld [vmem:[#allocation9 + $0x28] sm:$0xff]
        %v4186 = vld [vmem:[#allocation9 + $0x30] sm:$0xff]
        %v4187 = vld [vmem:[#allocation9 + $0x38] sm:$0xff]
        %v4188 = vld [vmem:[#allocation9 + $0x40] sm:$0xff]
        %v4189 = vld [vmem:[#allocation9 + $0x48] sm:$0xff]
        %v4190 = vld [vmem:[#allocation9 + $0x50] sm:$0xff]
        %v4191 = vld [vmem:[#allocation9 + $0x58] sm:$0xff]
        %v4192 = vld [vmem:[#allocation9 + $0x60] sm:$0xff]
        %v4193 = vld [vmem:[#allocation9 + $0x68] sm:$0xff]
        %v4194 = vld [vmem:[#allocation9 + $0x70] sm:$0xff]
        %v4195 = vld [vmem:[#allocation9 + $0x78] sm:$0xff]
        %v4196 = vld [vmem:[#allocation9 + $0x80] sm:$0xff]
        %v4197 = vld [vmem:[#allocation9 + $0x88] sm:$0xff]
        %v4198 = vld [vmem:[#allocation9 + $0x90] sm:$0xff]
        %v4199 = vld [vmem:[#allocation9 + $0x98] sm:$0xff]
        %v4200 = vld [vmem:[#allocation9 + $0xa0] sm:$0xff]
        %v4201 = vld [vmem:[#allocation9 + $0xa8] sm:$0xff]
        %v4202 = vld [vmem:[#allocation9 + $0xb0] sm:$0xff]
        %v4203 = vld [vmem:[#allocation9 + $0xb8] sm:$0xff]
        %v4204 = vld [vmem:[#allocation9 + $0xc0] sm:$0xff]
        %v4205 = vld [vmem:[#allocation9 + $0xc8] sm:$0xff]
        %v4206 = vld [vmem:[#allocation9 + $0xd0] sm:$0xff]
        %v4207 = vld [vmem:[#allocation9 + $0xd8] sm:$0xff]
        %v4208 = vld [vmem:[#allocation9 + $0xe0] sm:$0xff]
        %v4209 = vld [vmem:[#allocation9 + $0xe8] sm:$0xff]
        %v4210 = vld [vmem:[#allocation9 + $0xf0] sm:$0xff]
        %v4211 = vld [vmem:[#allocation9 + $0xf8] sm:$0xff]
        %v4212 = vld [vmem:[#allocation9 + $0x100] sm:$0xff]
        %v4213 = vld [vmem:[#allocation9 + $0x108] sm:$0xff]
        %v4214 = vld [vmem:[#allocation9 + $0x110] sm:$0xff]
        %v4215 = vld [vmem:[#allocation9 + $0x118] sm:$0xff]
        %v4216 = vld [vmem:[#allocation9 + $0x120] sm:$0xff]
        %v4217 = vld [vmem:[#allocation9 + $0x128] sm:$0xff]
        %v4218 = vld [vmem:[#allocation9 + $0x130] sm:$0xff]
        %v4219 = vld [vmem:[#allocation9 + $0x138] sm:$0xff]
        %v4220 = vld [vmem:[#allocation9 + $0x140] sm:$0xff]
        %v4221 = vld [vmem:[#allocation9 + $0x148] sm:$0xff]
        %v4222 = vld [vmem:[#allocation9 + $0x150] sm:$0xff]
        %v4223 = vld [vmem:[#allocation9 + $0x158] sm:$0xff]
        %v4224 = vld [vmem:[#allocation9 + $0x160] sm:$0xff]
        %v4225 = vld [vmem:[#allocation9 + $0x168] sm:$0xff]
        %v4226 = vld [vmem:[#allocation9 + $0x170] sm:$0xff]
        %v4227 = vld [vmem:[#allocation9 + $0x178] sm:$0xff]
        %v4228 = vld [vmem:[%s914] sm:$0x80]
        %v4229 = vld [vmem:[%s914 + $0x8] sm:$0xff]
        %v4230 = vld [vmem:[%s914 + $0x18] sm:$0x80]
        %v4231 = vld [vmem:[%s914 + $0x20] sm:$0xff]
        %v4232 = vld [vmem:[%s914 + $0x30] sm:$0x80]
        %v4233 = vld [vmem:[%s914 + $0x38] sm:$0xff]
        %v4234 = vld [vmem:[%s914 + $0x48] sm:$0x80]
        %v4235 = vld [vmem:[%s914 + $0x50] sm:$0xff]
        %v4236 = vld [vmem:[%s914 + $0x60] sm:$0x80]
        %v4237 = vld [vmem:[%s914 + $0x68] sm:$0xff]
        %v4238 = vld [vmem:[%s914 + $0x78] sm:$0x80]
        %v4239 = vld [vmem:[%s914 + $0x80] sm:$0xff]
        %v4240 = vld [vmem:[%s914 + $0x90] sm:$0x80]
        %v4241 = vld [vmem:[%s914 + $0x98] sm:$0xff]
        %v4242 = vld [vmem:[%s914 + $0xa8] sm:$0x80]
        %v4243 = vld [vmem:[%s914 + $0xb0] sm:$0xff]
        %v4244 = vld [vmem:[%s914 + $0x10] sm:$0x1]
        %v4245 = vld [vmem:[%s914 + $0x28] sm:$0x1]
        %v4246 = vld [vmem:[%s914 + $0x40] sm:$0x1]
        %v4247 = vld [vmem:[%s914 + $0x58] sm:$0x1]
        %v4248 = vld [vmem:[%s914 + $0x70] sm:$0x1]
        %v4249 = vld [vmem:[%s914 + $0x88] sm:$0x1]
        %v4250 = vld [vmem:[%s914 + $0xa0] sm:$0x1]
        %v4251 = vld [vmem:[%s914 + $0xb8] sm:$0x1]
        %v4253 = vshll.u32 %v4229, 16
        %v4255 = vrot.slane %v4253, 1
        %v4256 = vshrl.u32 %v4229, 16
        %v4258 = vor.u32 %v4256, %v4255
        %v4260 = vshll.u32 %v4231, 16
        %v4262 = vrot.slane %v4260, 1
        %v4263 = vshrl.u32 %v4231, 16
        %v4265 = vor.u32 %v4263, %v4262
        %v4267 = vshll.u32 %v4233, 16
        %v4269 = vrot.slane %v4267, 1
        %v4270 = vshrl.u32 %v4233, 16
        %v4272 = vor.u32 %v4270, %v4269
        %v4274 = vshll.u32 %v4235, 16
        %v4276 = vrot.slane %v4274, 1
        %v4277 = vshrl.u32 %v4235, 16
        %v4279 = vor.u32 %v4277, %v4276
        %v4281 = vshll.u32 %v4237, 16
        %v4283 = vrot.slane %v4281, 1
        %v4284 = vshrl.u32 %v4237, 16
        %v4286 = vor.u32 %v4284, %v4283
        %v4288 = vshll.u32 %v4239, 16
        %v4290 = vrot.slane %v4288, 1
        %v4291 = vshrl.u32 %v4239, 16
        %v4293 = vor.u32 %v4291, %v4290
        %v4295 = vshll.u32 %v4241, 16
        %v4297 = vrot.slane %v4295, 1
        %v4298 = vshrl.u32 %v4241, 16
        %v4300 = vor.u32 %v4298, %v4297
        %v4302 = vshll.u32 %v4243, 16
        %v4304 = vrot.slane %v4302, 1
        %v4305 = vshrl.u32 %v4243, 16
        %v4307 = vor.u32 %v4305, %v4304
        %v4324 = vrot.slane %v4229, 1
        %v4325 = vrot.slane %v4244, 1
        %v4326 = vsel %vm1031, %v4324, %v4325
        %v4327 = vrot.slane %v4231, 1
        %v4328 = vrot.slane %v4245, 1
        %v4329 = vsel %vm1031, %v4327, %v4328
        %v4330 = vrot.slane %v4233, 1
        %v4331 = vrot.slane %v4246, 1
        %v4332 = vsel %vm1031, %v4330, %v4331
        %v4333 = vrot.slane %v4235, 1
        %v4334 = vrot.slane %v4247, 1
        %v4335 = vsel %vm1031, %v4333, %v4334
        %v4336 = vrot.slane %v4237, 1
        %v4337 = vrot.slane %v4248, 1
        %v4338 = vsel %vm1031, %v4336, %v4337
        %v4339 = vrot.slane %v4239, 1
        %v4340 = vrot.slane %v4249, 1
        %v4341 = vsel %vm1031, %v4339, %v4340
        %v4342 = vrot.slane %v4241, 1
        %v4343 = vrot.slane %v4250, 1
        %v4344 = vsel %vm1031, %v4342, %v4343
        %v4345 = vrot.slane %v4243, 1
        %v4346 = vrot.slane %v4251, 1
        %v4347 = vsel %vm1031, %v4345, %v4346
        %v4349 = vshrl.u32 %v4228, 16
        %v4351 = vrot.slane %v4349, 7
        %v4352 = vrot.slane %v4256, 7
        %v4353 = vor.u32 %v4352, %v4253
        %v4354 = vsel %vm1056, %v4351, %v4353
        %v4356 = vshrl.u32 %v4255, 16
        %v4358 = vrot.slane %v4356, 7
        %v4360 = vshrl.u32 %v4258, 16
        %v4362 = vrot.slane %v4360, 7
        %v4363 = vshll.u32 %v4258, 16
        %v4365 = vor.u32 %v4362, %v4363
        %v4366 = vsel %vm1056, %v4358, %v4365
        %v4368 = vshrl.u32 %v4324, 16
        %v4370 = vrot.slane %v4368, 7
        %v4372 = vshrl.u32 %v4326, 16
        %v4374 = vrot.slane %v4372, 7
        %v4375 = vshll.u32 %v4326, 16
        %v4377 = vor.u32 %v4374, %v4375
        %v4378 = vsel %vm1056, %v4370, %v4377
        %v4380 = vshrl.u32 %v4230, 16
        %v4382 = vrot.slane %v4380, 7
        %v4383 = vrot.slane %v4263, 7
        %v4384 = vor.u32 %v4383, %v4260
        %v4385 = vsel %vm1056, %v4382, %v4384
        %v4387 = vshrl.u32 %v4262, 16
        %v4389 = vrot.slane %v4387, 7
        %v4391 = vshrl.u32 %v4265, 16
        %v4393 = vrot.slane %v4391, 7
        %v4394 = vshll.u32 %v4265, 16
        %v4396 = vor.u32 %v4393, %v4394
        %v4397 = vsel %vm1056, %v4389, %v4396
        %v4399 = vshrl.u32 %v4327, 16
        %v4401 = vrot.slane %v4399, 7
        %v4403 = vshrl.u32 %v4329, 16
        %v4405 = vrot.slane %v4403, 7
        %v4406 = vshll.u32 %v4329, 16
        %v4408 = vor.u32 %v4405, %v4406
        %v4409 = vsel %vm1056, %v4401, %v4408
        %v4411 = vshrl.u32 %v4232, 16
        %v4413 = vrot.slane %v4411, 7
        %v4414 = vrot.slane %v4270, 7
        %v4415 = vor.u32 %v4414, %v4267
        %v4416 = vsel %vm1056, %v4413, %v4415
        %v4418 = vshrl.u32 %v4269, 16
        %v4420 = vrot.slane %v4418, 7
        %v4422 = vshrl.u32 %v4272, 16
        %v4424 = vrot.slane %v4422, 7
        %v4425 = vshll.u32 %v4272, 16
        %v4427 = vor.u32 %v4424, %v4425
        %v4428 = vsel %vm1056, %v4420, %v4427
        %v4430 = vshrl.u32 %v4330, 16
        %v4432 = vrot.slane %v4430, 7
        %v4434 = vshrl.u32 %v4332, 16
        %v4436 = vrot.slane %v4434, 7
        %v4437 = vshll.u32 %v4332, 16
        %v4439 = vor.u32 %v4436, %v4437
        %v4440 = vsel %vm1056, %v4432, %v4439
        %v4442 = vshrl.u32 %v4234, 16
        %v4444 = vrot.slane %v4442, 7
        %v4445 = vrot.slane %v4277, 7
        %v4446 = vor.u32 %v4445, %v4274
        %v4447 = vsel %vm1056, %v4444, %v4446
        %v4449 = vshrl.u32 %v4276, 16
        %v4451 = vrot.slane %v4449, 7
        %v4453 = vshrl.u32 %v4279, 16
        %v4455 = vrot.slane %v4453, 7
        %v4456 = vshll.u32 %v4279, 16
        %v4458 = vor.u32 %v4455, %v4456
        %v4459 = vsel %vm1056, %v4451, %v4458
        %v4461 = vshrl.u32 %v4333, 16
        %v4463 = vrot.slane %v4461, 7
        %v4465 = vshrl.u32 %v4335, 16
        %v4467 = vrot.slane %v4465, 7
        %v4468 = vshll.u32 %v4335, 16
        %v4470 = vor.u32 %v4467, %v4468
        %v4471 = vsel %vm1056, %v4463, %v4470
        %v4473 = vshrl.u32 %v4236, 16
        %v4475 = vrot.slane %v4473, 7
        %v4476 = vrot.slane %v4284, 7
        %v4477 = vor.u32 %v4476, %v4281
        %v4478 = vsel %vm1056, %v4475, %v4477
        %v4480 = vshrl.u32 %v4283, 16
        %v4482 = vrot.slane %v4480, 7
        %v4484 = vshrl.u32 %v4286, 16
        %v4486 = vrot.slane %v4484, 7
        %v4487 = vshll.u32 %v4286, 16
        %v4489 = vor.u32 %v4486, %v4487
        %v4490 = vsel %vm1056, %v4482, %v4489
        %v4492 = vshrl.u32 %v4336, 16
        %v4494 = vrot.slane %v4492, 7
        %v4496 = vshrl.u32 %v4338, 16
        %v4498 = vrot.slane %v4496, 7
        %v4499 = vshll.u32 %v4338, 16
        %v4501 = vor.u32 %v4498, %v4499
        %v4502 = vsel %vm1056, %v4494, %v4501
        %v4504 = vshrl.u32 %v4238, 16
        %v4506 = vrot.slane %v4504, 7
        %v4507 = vrot.slane %v4291, 7
        %v4508 = vor.u32 %v4507, %v4288
        %v4509 = vsel %vm1056, %v4506, %v4508
        %v4511 = vshrl.u32 %v4290, 16
        %v4513 = vrot.slane %v4511, 7
        %v4515 = vshrl.u32 %v4293, 16
        %v4517 = vrot.slane %v4515, 7
        %v4518 = vshll.u32 %v4293, 16
        %v4520 = vor.u32 %v4517, %v4518
        %v4521 = vsel %vm1056, %v4513, %v4520
        %v4523 = vshrl.u32 %v4339, 16
        %v4525 = vrot.slane %v4523, 7
        %v4527 = vshrl.u32 %v4341, 16
        %v4529 = vrot.slane %v4527, 7
        %v4530 = vshll.u32 %v4341, 16
        %v4532 = vor.u32 %v4529, %v4530
        %v4533 = vsel %vm1056, %v4525, %v4532
        %v4535 = vshrl.u32 %v4240, 16
        %v4537 = vrot.slane %v4535, 7
        %v4538 = vrot.slane %v4298, 7
        %v4539 = vor.u32 %v4538, %v4295
        %v4540 = vsel %vm1056, %v4537, %v4539
        %v4542 = vshrl.u32 %v4297, 16
        %v4544 = vrot.slane %v4542, 7
        %v4546 = vshrl.u32 %v4300, 16
        %v4548 = vrot.slane %v4546, 7
        %v4549 = vshll.u32 %v4300, 16
        %v4551 = vor.u32 %v4548, %v4549
        %v4552 = vsel %vm1056, %v4544, %v4551
        %v4554 = vshrl.u32 %v4342, 16
        %v4556 = vrot.slane %v4554, 7
        %v4558 = vshrl.u32 %v4344, 16
        %v4560 = vrot.slane %v4558, 7
        %v4561 = vshll.u32 %v4344, 16
        %v4563 = vor.u32 %v4560, %v4561
        %v4564 = vsel %vm1056, %v4556, %v4563
        %v4566 = vshrl.u32 %v4242, 16
        %v4568 = vrot.slane %v4566, 7
        %v4569 = vrot.slane %v4305, 7
        %v4570 = vor.u32 %v4569, %v4302
        %v4571 = vsel %vm1056, %v4568, %v4570
        %v4573 = vshrl.u32 %v4304, 16
        %v4575 = vrot.slane %v4573, 7
        %v4577 = vshrl.u32 %v4307, 16
        %v4579 = vrot.slane %v4577, 7
        %v4580 = vshll.u32 %v4307, 16
        %v4582 = vor.u32 %v4579, %v4580
        %v4583 = vsel %vm1056, %v4575, %v4582
        %v4585 = vshrl.u32 %v4345, 16
        %v4587 = vrot.slane %v4585, 7
        %v4589 = vshrl.u32 %v4347, 16
        %v4591 = vrot.slane %v4589, 7
        %v4592 = vshll.u32 %v4347, 16
        %v4594 = vor.u32 %v4591, %v4592
        %v4595 = vsel %vm1056, %v4587, %v4594
        %v4620 = vld [vmem:[%s1769] sm:$0xff]
        %v4621 = vld [vmem:[%s1769 + $0x8] sm:$0xff]
        %v4622 = vld [vmem:[%s1769 + $0x10] sm:$0xff]
        %v4623 = vld [vmem:[%s1769 + $0x18] sm:$0xff]
        %v4624 = vld [vmem:[%s1769 + $0x20] sm:$0xff]
        %v4625 = vld [vmem:[%s1769 + $0x28] sm:$0xff]
        %v4626 = vld [vmem:[%s1769 + $0x30] sm:$0xff]
        %v4627 = vld [vmem:[%s1769 + $0x38] sm:$0xff]
        %v4628 = vld [vmem:[%s1769 + $0x40] sm:$0xff]
        %v4629 = vld [vmem:[%s1769 + $0x48] sm:$0xff]
        %v4630 = vld [vmem:[%s1769 + $0x50] sm:$0xff]
        %v4631 = vld [vmem:[%s1769 + $0x58] sm:$0xff]
        %v4632 = vld [vmem:[%s1769 + $0x60] sm:$0xff]
        %v4633 = vld [vmem:[%s1769 + $0x68] sm:$0xff]
        %v4634 = vld [vmem:[%s1769 + $0x70] sm:$0xff]
        %v4635 = vld [vmem:[%s1769 + $0x78] sm:$0xff]
        %v4636 = vld [vmem:[%s1769 + $0x80] sm:$0xff]
        %v4637 = vld [vmem:[%s1769 + $0x88] sm:$0xff]
        %v4638 = vld [vmem:[%s1769 + $0x90] sm:$0xff]
        %v4639 = vld [vmem:[%s1769 + $0x98] sm:$0xff]
        %v4640 = vld [vmem:[%s1769 + $0xa0] sm:$0xff]
        %v4641 = vld [vmem:[%s1769 + $0xa8] sm:$0xff]
        %v4642 = vld [vmem:[%s1769 + $0xb0] sm:$0xff]
        %v4643 = vld [vmem:[%s1769 + $0xb8] sm:$0xff]
        %v4644 = vld [vmem:[%s1769 + $0xc0] sm:$0xff]
        %v4645 = vld [vmem:[%s1769 + $0xc8] sm:$0xff]
        %v4646 = vld [vmem:[%s1769 + $0xd0] sm:$0xff]
        %v4647 = vld [vmem:[%s1769 + $0xd8] sm:$0xff]
        %v4648 = vld [vmem:[%s1769 + $0xe0] sm:$0xff]
        %v4649 = vld [vmem:[%s1769 + $0xe8] sm:$0xff]
        %v4650 = vld [vmem:[%s1769 + $0xf0] sm:$0xff]
        %v4651 = vld [vmem:[%s1769 + $0xf8] sm:$0xff]
        %v4652 = vld [vmem:[%s1769 + $0x100] sm:$0xff]
        %v4653 = vld [vmem:[%s1769 + $0x108] sm:$0xff]
        %v4654 = vld [vmem:[%s1769 + $0x110] sm:$0xff]
        %v4655 = vld [vmem:[%s1769 + $0x118] sm:$0xff]
        %v4656 = vld [vmem:[%s1769 + $0x120] sm:$0xff]
        %v4657 = vld [vmem:[%s1769 + $0x128] sm:$0xff]
        %v4658 = vld [vmem:[%s1769 + $0x130] sm:$0xff]
        %v4659 = vld [vmem:[%s1769 + $0x138] sm:$0xff]
        %v4660 = vld [vmem:[%s1769 + $0x140] sm:$0xff]
        %v4661 = vld [vmem:[%s1769 + $0x148] sm:$0xff]
        %v4662 = vld [vmem:[%s1769 + $0x150] sm:$0xff]
        %v4663 = vld [vmem:[%s1769 + $0x158] sm:$0xff]
        %v4664 = vld [vmem:[%s1769 + $0x160] sm:$0xff]
        %v4665 = vld [vmem:[%s1769 + $0x168] sm:$0xff]
        %v4666 = vld [vmem:[%s1769 + $0x170] sm:$0xff]
        %v4667 = vld [vmem:[%s1769 + $0x178] sm:$0xff]
        %v4716 = vunpack.c.l.b16 %v4620
        %v4717 = vunpack.c.h.b16 %v4620
        %v4718 = vunpack.c.l.b16 %v4621
        %v4719 = vunpack.c.h.b16 %v4621
        %v4720 = vunpack.c.l.b16 %v4622
        %v4721 = vunpack.c.h.b16 %v4622
        %v4722 = vunpack.c.l.b16 %v4623
        %v4723 = vunpack.c.h.b16 %v4623
        %v4724 = vunpack.c.l.b16 %v4624
        %v4725 = vunpack.c.h.b16 %v4624
        %v4726 = vunpack.c.l.b16 %v4625
        %v4727 = vunpack.c.h.b16 %v4625
        %v4728 = vunpack.c.l.b16 %v4626
        %v4729 = vunpack.c.h.b16 %v4626
        %v4730 = vunpack.c.l.b16 %v4627
        %v4731 = vunpack.c.h.b16 %v4627
        %v4732 = vunpack.c.l.b16 %v4628
        %v4733 = vunpack.c.h.b16 %v4628
        %v4734 = vunpack.c.l.b16 %v4629
        %v4735 = vunpack.c.h.b16 %v4629
        %v4736 = vunpack.c.l.b16 %v4630
        %v4737 = vunpack.c.h.b16 %v4630
        %v4738 = vunpack.c.l.b16 %v4631
        %v4739 = vunpack.c.h.b16 %v4631
        %v4740 = vunpack.c.l.b16 %v4632
        %v4741 = vunpack.c.h.b16 %v4632
        %v4742 = vunpack.c.l.b16 %v4633
        %v4743 = vunpack.c.h.b16 %v4633
        %v4744 = vunpack.c.l.b16 %v4634
        %v4745 = vunpack.c.h.b16 %v4634
        %v4746 = vunpack.c.l.b16 %v4635
        %v4747 = vunpack.c.h.b16 %v4635
        %v4748 = vunpack.c.l.b16 %v4636
        %v4749 = vunpack.c.h.b16 %v4636
        %v4750 = vunpack.c.l.b16 %v4637
        %v4751 = vunpack.c.h.b16 %v4637
        %v4752 = vunpack.c.l.b16 %v4638
        %v4753 = vunpack.c.h.b16 %v4638
        %v4754 = vunpack.c.l.b16 %v4639
        %v4755 = vunpack.c.h.b16 %v4639
        %v4756 = vunpack.c.l.b16 %v4640
        %v4757 = vunpack.c.h.b16 %v4640
        %v4758 = vunpack.c.l.b16 %v4641
        %v4759 = vunpack.c.h.b16 %v4641
        %v4760 = vunpack.c.l.b16 %v4642
        %v4761 = vunpack.c.h.b16 %v4642
        %v4762 = vunpack.c.l.b16 %v4643
        %v4763 = vunpack.c.h.b16 %v4643
        %v4764 = vunpack.c.l.b16 %v4644
        %v4765 = vunpack.c.h.b16 %v4644
        %v4766 = vunpack.c.l.b16 %v4645
        %v4767 = vunpack.c.h.b16 %v4645
        %v4768 = vunpack.c.l.b16 %v4646
        %v4769 = vunpack.c.h.b16 %v4646
        %v4770 = vunpack.c.l.b16 %v4647
        %v4771 = vunpack.c.h.b16 %v4647
        %v4772 = vunpack.c.l.b16 %v4648
        %v4773 = vunpack.c.h.b16 %v4648
        %v4774 = vunpack.c.l.b16 %v4649
        %v4775 = vunpack.c.h.b16 %v4649
        %v4776 = vunpack.c.l.b16 %v4650
        %v4777 = vunpack.c.h.b16 %v4650
        %v4778 = vunpack.c.l.b16 %v4651
        %v4779 = vunpack.c.h.b16 %v4651
        %v4780 = vunpack.c.l.b16 %v4652
        %v4781 = vunpack.c.h.b16 %v4652
        %v4782 = vunpack.c.l.b16 %v4653
        %v4783 = vunpack.c.h.b16 %v4653
        %v4784 = vunpack.c.l.b16 %v4654
        %v4785 = vunpack.c.h.b16 %v4654
        %v4786 = vunpack.c.l.b16 %v4655
        %v4787 = vunpack.c.h.b16 %v4655
        %v4788 = vunpack.c.l.b16 %v4656
        %v4789 = vunpack.c.h.b16 %v4656
        %v4790 = vunpack.c.l.b16 %v4657
        %v4791 = vunpack.c.h.b16 %v4657
        %v4792 = vunpack.c.l.b16 %v4658
        %v4793 = vunpack.c.h.b16 %v4658
        %v4794 = vunpack.c.l.b16 %v4659
        %v4795 = vunpack.c.h.b16 %v4659
        %v4796 = vunpack.c.l.b16 %v4660
        %v4797 = vunpack.c.h.b16 %v4660
        %v4798 = vunpack.c.l.b16 %v4661
        %v4799 = vunpack.c.h.b16 %v4661
        %v4800 = vunpack.c.l.b16 %v4662
        %v4801 = vunpack.c.h.b16 %v4662
        %v4802 = vunpack.c.l.b16 %v4663
        %v4803 = vunpack.c.h.b16 %v4663
        %v4804 = vunpack.c.l.b16 %v4664
        %v4805 = vunpack.c.h.b16 %v4664
        %v4806 = vunpack.c.l.b16 %v4665
        %v4807 = vunpack.c.h.b16 %v4665
        %v4808 = vunpack.c.l.b16 %v4666
        %v4809 = vunpack.c.h.b16 %v4666
        %v4810 = vunpack.c.l.b16 %v4667
        %v4811 = vunpack.c.h.b16 %v4667
        %v4812 = vpack.c.b16 %v4718, %v4716
        %v4813 = vpack.c.b16 %v4719, %v4717
        %v4814 = vpack.c.b16 %v4722, %v4720
        %v4815 = vpack.c.b16 %v4723, %v4721
        %v4816 = vpack.c.b16 %v4726, %v4724
        %v4817 = vpack.c.b16 %v4727, %v4725
        %v4818 = vpack.c.b16 %v4730, %v4728
        %v4819 = vpack.c.b16 %v4731, %v4729
        %v4820 = vpack.c.b16 %v4734, %v4732
        %v4821 = vpack.c.b16 %v4735, %v4733
        %v4822 = vpack.c.b16 %v4738, %v4736
        %v4823 = vpack.c.b16 %v4739, %v4737
        %v4824 = vpack.c.b16 %v4742, %v4740
        %v4825 = vpack.c.b16 %v4743, %v4741
        %v4826 = vpack.c.b16 %v4746, %v4744
        %v4827 = vpack.c.b16 %v4747, %v4745
        %v4828 = vpack.c.b16 %v4750, %v4748
        %v4829 = vpack.c.b16 %v4751, %v4749
        %v4830 = vpack.c.b16 %v4754, %v4752
        %v4831 = vpack.c.b16 %v4755, %v4753
        %v4832 = vpack.c.b16 %v4758, %v4756
        %v4833 = vpack.c.b16 %v4759, %v4757
        %v4834 = vpack.c.b16 %v4762, %v4760
        %v4835 = vpack.c.b16 %v4763, %v4761
        %v4836 = vpack.c.b16 %v4766, %v4764
        %v4837 = vpack.c.b16 %v4767, %v4765
        %v4838 = vpack.c.b16 %v4770, %v4768
        %v4839 = vpack.c.b16 %v4771, %v4769
        %v4840 = vpack.c.b16 %v4774, %v4772
        %v4841 = vpack.c.b16 %v4775, %v4773
        %v4842 = vpack.c.b16 %v4778, %v4776
        %v4843 = vpack.c.b16 %v4779, %v4777
        %v4844 = vpack.c.b16 %v4782, %v4780
        %v4845 = vpack.c.b16 %v4783, %v4781
        %v4846 = vpack.c.b16 %v4786, %v4784
        %v4847 = vpack.c.b16 %v4787, %v4785
        %v4848 = vpack.c.b16 %v4790, %v4788
        %v4849 = vpack.c.b16 %v4791, %v4789
        %v4850 = vpack.c.b16 %v4794, %v4792
        %v4851 = vpack.c.b16 %v4795, %v4793
        %v4852 = vpack.c.b16 %v4798, %v4796
        %v4853 = vpack.c.b16 %v4799, %v4797
        %v4854 = vpack.c.b16 %v4802, %v4800
        %v4855 = vpack.c.b16 %v4803, %v4801
        %v4856 = vpack.c.b16 %v4806, %v4804
        %v4857 = vpack.c.b16 %v4807, %v4805
        %v4858 = vpack.c.b16 %v4810, %v4808
        %v4859 = vpack.c.b16 %v4811, %v4809
        %4908 = vmatprep.subr.bf16.mxu0 %v4813
        %4909 = vmatpush1.bf16.msra.mxu0 %v4812
        %4910 = vmatprep.subr.bf16.mxu0 %v4815
        %4911 = vmatpush1.bf16.msra.mxu0 %v4814
        %4912 = vmatprep.subr.bf16.mxu0 %v4817
        %4913 = vmatpush1.bf16.msra.mxu0 %v4816
        %4914 = vmatprep.subr.bf16.mxu0 %v4819
        %4915 = vmatpush1.bf16.msra.mxu0 %v4818
        %4916 = vmatprep.subr.bf16.mxu0 %v4821
        %4917 = vmatpush1.bf16.msra.mxu0 %v4820
        %4918 = vmatprep.subr.bf16.mxu0 %v4823
        %4919 = vmatpush1.bf16.msra.mxu0 %v4822
        %4920 = vmatprep.subr.bf16.mxu0 %v4825
        %4921 = vmatpush1.bf16.msra.mxu0 %v4824
        %4922 = vmatprep.subr.bf16.mxu0 %v4827
        %4923 = vmatpush1.bf16.msra.mxu0 %v4826
        %4924 = vmatprep.subr.bf16.mxu0 %v4829
        %4925 = vmatpush1.bf16.msra.mxu0 %v4828
        %4926 = vmatprep.subr.bf16.mxu0 %v4831
        %4927 = vmatpush1.bf16.msra.mxu0 %v4830
        %4928 = vmatprep.subr.bf16.mxu0 %v4833
        %4929 = vmatpush1.bf16.msra.mxu0 %v4832
        %4930 = vmatprep.subr.bf16.mxu0 %v4835
        %4931 = vmatpush1.bf16.msra.mxu0 %v4834
        %4932 = vmatprep.subr.bf16.mxu0 %v4837
        %4933 = vmatpush1.bf16.msra.mxu0 %v4836
        %4934 = vmatprep.subr.bf16.mxu0 %v4839
        %4935 = vmatpush1.bf16.msra.mxu0 %v4838
        %4936 = vmatprep.subr.bf16.mxu0 %v4841
        %4937 = vmatpush1.bf16.msra.mxu0 %v4840
        %4938 = vmatprep.subr.bf16.mxu0 %v4843
        %4939 = vmatpush1.bf16.msra.mxu0 %v4842
        %4940 = vmatprep.mubr.bf16.mxu0 %v4366
        %4941 = vmatmul.mubr.bf16.gmra.mrb[0].mxu0 %v4354
        %v4942 = vpop.f32.mrb[0].mxu0
        %v4943 = vadd.f32 0.0, %v4942
        %v4944 = vpop.f32.mrb[0].mxu0
        %v4945 = vadd.f32 0.0, %v4944
        %v4946 = vpop.f32.mrb[0].mxu0
        %v4947 = vadd.f32 0.0, %v4946
        %v4948 = vpop.f32.mrb[0].mxu0
        %v4949 = vadd.f32 0.0, %v4948
        %4950 = vmatprep.mubr.bf16.mxu0 %v4397
        %4951 = vmatmul.mubr.bf16.gmra.mrb[0].mxu0 %v4385
        %v4952 = vpop.f32.mrb[0].mxu0
        %v4953 = vadd.f32 0.0, %v4952
        %v4954 = vpop.f32.mrb[0].mxu0
        %v4955 = vadd.f32 0.0, %v4954
        %v4956 = vpop.f32.mrb[0].mxu0
        %v4957 = vadd.f32 0.0, %v4956
        %v4958 = vpop.f32.mrb[0].mxu0
        %v4959 = vadd.f32 0.0, %v4958
        %4960 = vmatprep.mubr.bf16.mxu0 %v4428
        %4961 = vmatmul.mubr.bf16.gmra.mrb[0].mxu0 %v4416
        %v4962 = vpop.f32.mrb[0].mxu0
        %v4963 = vadd.f32 0.0, %v4962
        %v4964 = vpop.f32.mrb[0].mxu0
        %v4965 = vadd.f32 0.0, %v4964
        %v4966 = vpop.f32.mrb[0].mxu0
        %v4967 = vadd.f32 0.0, %v4966
        %v4968 = vpop.f32.mrb[0].mxu0
        %v4969 = vadd.f32 0.0, %v4968
        %4970 = vmatprep.mubr.bf16.mxu0 %v4459
        %4971 = vmatmul.mubr.bf16.gmra.mrb[0].mxu0 %v4447
        %v4972 = vpop.f32.mrb[0].mxu0
        %v4973 = vadd.f32 0.0, %v4972
        %v4974 = vpop.f32.mrb[0].mxu0
        %v4975 = vadd.f32 0.0, %v4974
        %v4976 = vpop.f32.mrb[0].mxu0
        %v4977 = vadd.f32 0.0, %v4976
        %v4978 = vpop.f32.mrb[0].mxu0
        %v4979 = vadd.f32 0.0, %v4978
        %4980 = vmatprep.mubr.bf16.mxu0 %v4490
        %4981 = vmatmul.mubr.bf16.gmra.mrb[0].mxu0 %v4478
        %v4982 = vpop.f32.mrb[0].mxu0
        %v4983 = vadd.f32 0.0, %v4982
        %v4984 = vpop.f32.mrb[0].mxu0
        %v4985 = vadd.f32 0.0, %v4984
        %v4986 = vpop.f32.mrb[0].mxu0
        %v4987 = vadd.f32 0.0, %v4986
        %v4988 = vpop.f32.mrb[0].mxu0
        %v4989 = vadd.f32 0.0, %v4988
        %4990 = vmatprep.mubr.bf16.mxu0 %v4521
        %4991 = vmatmul.mubr.bf16.gmra.mrb[0].mxu0 %v4509
        %v4992 = vpop.f32.mrb[0].mxu0
        %v4993 = vadd.f32 0.0, %v4992
        %v4994 = vpop.f32.mrb[0].mxu0
        %v4995 = vadd.f32 0.0, %v4994
        %v4996 = vpop.f32.mrb[0].mxu0
        %v4997 = vadd.f32 0.0, %v4996
        %v4998 = vpop.f32.mrb[0].mxu0
        %v4999 = vadd.f32 0.0, %v4998
        %5000 = vmatprep.mubr.bf16.mxu0 %v4552
        %5001 = vmatmul.mubr.bf16.gmra.mrb[0].mxu0 %v4540
        %v5002 = vpop.f32.mrb[0].mxu0
        %v5003 = vadd.f32 0.0, %v5002
        %v5004 = vpop.f32.mrb[0].mxu0
        %v5005 = vadd.f32 0.0, %v5004
        %v5006 = vpop.f32.mrb[0].mxu0
        %v5007 = vadd.f32 0.0, %v5006
        %v5008 = vpop.f32.mrb[0].mxu0
        %v5009 = vadd.f32 0.0, %v5008
        %5010 = vmatprep.mubr.bf16.mxu0 %v4583
        %5011 = vmatmul.mubr.bf16.gmra.mrb[0].mxu0 %v4571
        %v5012 = vpop.f32.mrb[0].mxu0
        %v5013 = vadd.f32 0.0, %v5012
        %v5014 = vpop.f32.mrb[0].mxu0
        %v5015 = vadd.f32 0.0, %v5014
        %v5016 = vpop.f32.mrb[0].mxu0
        %v5017 = vadd.f32 0.0, %v5016
        %v5018 = vpop.f32.mrb[0].mxu0
        %v5019 = vadd.f32 0.0, %v5018
        %5020 = vdwg.mxu0
        %5021 = vmatprep.subr.bf16.mxu0 %v4845
        %5022 = vmatpush1.bf16.msra.mxu0 %v4844
        %5023 = vmatprep.subr.bf16.mxu0 %v4847
        %5024 = vmatpush1.bf16.msra.mxu0 %v4846
        %5025 = vmatprep.subr.bf16.mxu0 %v4849
        %5026 = vmatpush1.bf16.msra.mxu0 %v4848
        %5027 = vmatprep.subr.bf16.mxu0 %v4851
        %5028 = vmatpush1.bf16.msra.mxu0 %v4850
        %5029 = vmatprep.subr.bf16.mxu0 %v4853
        %5030 = vmatpush1.bf16.msra.mxu0 %v4852
        %5031 = vmatprep.subr.bf16.mxu0 %v4855
        %5032 = vmatpush1.bf16.msra.mxu0 %v4854
        %5033 = vmatprep.subr.bf16.mxu0 %v4857
        %5034 = vmatpush1.bf16.msra.mxu0 %v4856
        %5035 = vmatprep.subr.bf16.mxu0 %v4859
        %5036 = vmatpush1.bf16.msra.mxu0 %v4858
        %5037 = vmatprep.subr.bf16.mxu0 0
        %5038 = vmatpush1.bf16.msra.mxu0 0
        %5039 = vmatprep.subr.bf16.mxu0 0
        %5040 = vmatpush1.bf16.msra.mxu0 0
        %5041 = vmatprep.subr.bf16.mxu0 0
        %5042 = vmatpush1.bf16.msra.mxu0 0
        %5043 = vmatprep.subr.bf16.mxu0 0
        %5044 = vmatpush1.bf16.msra.mxu0 0
        %5045 = vmatprep.subr.bf16.mxu0 0
        %5046 = vmatpush1.bf16.msra.mxu0 0
        %5047 = vmatprep.subr.bf16.mxu0 0
        %5048 = vmatpush1.bf16.msra.mxu0 0
        %5049 = vmatprep.subr.bf16.mxu0 0
        %5050 = vmatpush1.bf16.msra.mxu0 0
        %5051 = vmatprep.subr.bf16.mxu0 0
        %5052 = vmatpush1.bf16.msra.mxu0 0
        %5053 = vmatprep.mubr.bf16.mxu0 0
        %5054 = vmatmul.mubr.bf16.gmra.mrb[0].mxu0 %v4378
        %v5055 = vpop.f32.mrb[0].mxu0
        %v5056 = vadd.f32 %v4943, %v5055
        %v5057 = vpop.f32.mrb[0].mxu0
        %v5058 = vadd.f32 %v4945, %v5057
        %v5059 = vpop.f32.mrb[0].mxu0
        %v5060 = vadd.f32 %v4947, %v5059
        %v5061 = vpop.f32.mrb[0].mxu0
        %v5062 = vadd.f32 %v4949, %v5061
        %5063 = vmatprep.mubr.bf16.mxu0 0
        %5064 = vmatmul.mubr.bf16.gmra.mrb[0].mxu0 %v4409
        %v5065 = vpop.f32.mrb[0].mxu0
        %v5066 = vadd.f32 %v4953, %v5065
        %v5067 = vpop.f32.mrb[0].mxu0
        %v5068 = vadd.f32 %v4955, %v5067
        %v5069 = vpop.f32.mrb[0].mxu0
        %v5070 = vadd.f32 %v4957, %v5069
        %v5071 = vpop.f32.mrb[0].mxu0
        %v5072 = vadd.f32 %v4959, %v5071
        %5073 = vmatprep.mubr.bf16.mxu0 0
        %5074 = vmatmul.mubr.bf16.gmra.mrb[0].mxu0 %v4440
        %v5075 = vpop.f32.mrb[0].mxu0
        %v5076 = vadd.f32 %v4963, %v5075
        %v5077 = vpop.f32.mrb[0].mxu0
        %v5078 = vadd.f32 %v4965, %v5077
        %v5079 = vpop.f32.mrb[0].mxu0
        %v5080 = vadd.f32 %v4967, %v5079
        %v5081 = vpop.f32.mrb[0].mxu0
        %v5082 = vadd.f32 %v4969, %v5081
        %5083 = vmatprep.mubr.bf16.mxu0 0
        %5084 = vmatmul.mubr.bf16.gmra.mrb[0].mxu0 %v4471
        %v5085 = vpop.f32.mrb[0].mxu0
        %v5086 = vadd.f32 %v4973, %v5085
        %v5087 = vpop.f32.mrb[0].mxu0
        %v5088 = vadd.f32 %v4975, %v5087
        %v5089 = vpop.f32.mrb[0].mxu0
        %v5090 = vadd.f32 %v4977, %v5089
        %v5091 = vpop.f32.mrb[0].mxu0
        %v5092 = vadd.f32 %v4979, %v5091
        %5093 = vmatprep.mubr.bf16.mxu0 0
        %5094 = vmatmul.mubr.bf16.gmra.mrb[0].mxu0 %v4502
        %v5095 = vpop.f32.mrb[0].mxu0
        %v5096 = vadd.f32 %v4983, %v5095
        %v5097 = vpop.f32.mrb[0].mxu0
        %v5098 = vadd.f32 %v4985, %v5097
        %v5099 = vpop.f32.mrb[0].mxu0
        %v5100 = vadd.f32 %v4987, %v5099
        %v5101 = vpop.f32.mrb[0].mxu0
        %v5102 = vadd.f32 %v4989, %v5101
        %5103 = vmatprep.mubr.bf16.mxu0 0
        %5104 = vmatmul.mubr.bf16.gmra.mrb[0].mxu0 %v4533
        %v5105 = vpop.f32.mrb[0].mxu0
        %v5106 = vadd.f32 %v4993, %v5105
        %v5107 = vpop.f32.mrb[0].mxu0
        %v5108 = vadd.f32 %v4995, %v5107
        %v5109 = vpop.f32.mrb[0].mxu0
        %v5110 = vadd.f32 %v4997, %v5109
        %v5111 = vpop.f32.mrb[0].mxu0
        %v5112 = vadd.f32 %v4999, %v5111
        %5113 = vmatprep.mubr.bf16.mxu0 0
        %5114 = vmatmul.mubr.bf16.gmra.mrb[0].mxu0 %v4564
        %v5115 = vpop.f32.mrb[0].mxu0
        %v5116 = vadd.f32 %v5003, %v5115
        %v5117 = vpop.f32.mrb[0].mxu0
        %v5118 = vadd.f32 %v5005, %v5117
        %v5119 = vpop.f32.mrb[0].mxu0
        %v5120 = vadd.f32 %v5007, %v5119
        %v5121 = vpop.f32.mrb[0].mxu0
        %v5122 = vadd.f32 %v5009, %v5121
        %5123 = vmatprep.mubr.bf16.mxu0 0
        %5124 = vmatmul.mubr.bf16.gmra.mrb[0].mxu0 %v4595
        %v5125 = vpop.f32.mrb[0].mxu0
        %v5126 = vadd.f32 %v5013, %v5125
        %v5127 = vpop.f32.mrb[0].mxu0
        %v5128 = vadd.f32 %v5015, %v5127
        %v5129 = vpop.f32.mrb[0].mxu0
        %v5130 = vadd.f32 %v5017, %v5129
        %v5131 = vpop.f32.mrb[0].mxu0
        %v5132 = vadd.f32 %v5019, %v5131
        %5133 = vdwg.mxu0
        %v5182 = vunpack.c.l.b16 %v4180
        %v5183 = vunpack.c.h.b16 %v4180
        %v5184 = vunpack.c.l.b16 %v4181
        %v5185 = vunpack.c.h.b16 %v4181
        %v5186 = vunpack.c.l.b16 %v4182
        %v5187 = vunpack.c.h.b16 %v4182
        %v5188 = vunpack.c.l.b16 %v4183
        %v5189 = vunpack.c.h.b16 %v4183
        %v5190 = vunpack.c.l.b16 %v4184
        %v5191 = vunpack.c.h.b16 %v4184
        %v5192 = vunpack.c.l.b16 %v4185
        %v5193 = vunpack.c.h.b16 %v4185
        %v5194 = vunpack.c.l.b16 %v4186
        %v5195 = vunpack.c.h.b16 %v4186
        %v5196 = vunpack.c.l.b16 %v4187
        %v5197 = vunpack.c.h.b16 %v4187
        %v5198 = vunpack.c.l.b16 %v4188
        %v5199 = vunpack.c.h.b16 %v4188
        %v5200 = vunpack.c.l.b16 %v4189
        %v5201 = vunpack.c.h.b16 %v4189
        %v5202 = vunpack.c.l.b16 %v4190
        %v5203 = vunpack.c.h.b16 %v4190
        %v5204 = vunpack.c.l.b16 %v4191
        %v5205 = vunpack.c.h.b16 %v4191
        %v5206 = vunpack.c.l.b16 %v4192
        %v5207 = vunpack.c.h.b16 %v4192
        %v5208 = vunpack.c.l.b16 %v4193
        %v5209 = vunpack.c.h.b16 %v4193
        %v5210 = vunpack.c.l.b16 %v4194
        %v5211 = vunpack.c.h.b16 %v4194
        %v5212 = vunpack.c.l.b16 %v4195
        %v5213 = vunpack.c.h.b16 %v4195
        %v5214 = vunpack.c.l.b16 %v4196
        %v5215 = vunpack.c.h.b16 %v4196
        %v5216 = vunpack.c.l.b16 %v4197
        %v5217 = vunpack.c.h.b16 %v4197
        %v5218 = vunpack.c.l.b16 %v4198
        %v5219 = vunpack.c.h.b16 %v4198
        %v5220 = vunpack.c.l.b16 %v4199
        %v5221 = vunpack.c.h.b16 %v4199
        %v5222 = vunpack.c.l.b16 %v4200
        %v5223 = vunpack.c.h.b16 %v4200
        %v5224 = vunpack.c.l.b16 %v4201
        %v5225 = vunpack.c.h.b16 %v4201
        %v5226 = vunpack.c.l.b16 %v4202
        %v5227 = vunpack.c.h.b16 %v4202
        %v5228 = vunpack.c.l.b16 %v4203
        %v5229 = vunpack.c.h.b16 %v4203
        %v5230 = vunpack.c.l.b16 %v4204
        %v5231 = vunpack.c.h.b16 %v4204
        %v5232 = vunpack.c.l.b16 %v4205
        %v5233 = vunpack.c.h.b16 %v4205
        %v5234 = vunpack.c.l.b16 %v4206
        %v5235 = vunpack.c.h.b16 %v4206
        %v5236 = vunpack.c.l.b16 %v4207
        %v5237 = vunpack.c.h.b16 %v4207
        %v5238 = vunpack.c.l.b16 %v4208
        %v5239 = vunpack.c.h.b16 %v4208
        %v5240 = vunpack.c.l.b16 %v4209
        %v5241 = vunpack.c.h.b16 %v4209
        %v5242 = vunpack.c.l.b16 %v4210
        %v5243 = vunpack.c.h.b16 %v4210
        %v5244 = vunpack.c.l.b16 %v4211
        %v5245 = vunpack.c.h.b16 %v4211
        %v5246 = vunpack.c.l.b16 %v4212
        %v5247 = vunpack.c.h.b16 %v4212
        %v5248 = vunpack.c.l.b16 %v4213
        %v5249 = vunpack.c.h.b16 %v4213
        %v5250 = vunpack.c.l.b16 %v4214
        %v5251 = vunpack.c.h.b16 %v4214
        %v5252 = vunpack.c.l.b16 %v4215
        %v5253 = vunpack.c.h.b16 %v4215
        %v5254 = vunpack.c.l.b16 %v4216
        %v5255 = vunpack.c.h.b16 %v4216
        %v5256 = vunpack.c.l.b16 %v4217
        %v5257 = vunpack.c.h.b16 %v4217
        %v5258 = vunpack.c.l.b16 %v4218
        %v5259 = vunpack.c.h.b16 %v4218
        %v5260 = vunpack.c.l.b16 %v4219
        %v5261 = vunpack.c.h.b16 %v4219
        %v5262 = vunpack.c.l.b16 %v4220
        %v5263 = vunpack.c.h.b16 %v4220
        %v5264 = vunpack.c.l.b16 %v4221
        %v5265 = vunpack.c.h.b16 %v4221
        %v5266 = vunpack.c.l.b16 %v4222
        %v5267 = vunpack.c.h.b16 %v4222
        %v5268 = vunpack.c.l.b16 %v4223
        %v5269 = vunpack.c.h.b16 %v4223
        %v5270 = vunpack.c.l.b16 %v4224
        %v5271 = vunpack.c.h.b16 %v4224
        %v5272 = vunpack.c.l.b16 %v4225
        %v5273 = vunpack.c.h.b16 %v4225
        %v5274 = vunpack.c.l.b16 %v4226
        %v5275 = vunpack.c.h.b16 %v4226
        %v5276 = vunpack.c.l.b16 %v4227
        %v5277 = vunpack.c.h.b16 %v4227
        %v5278 = vpack.c.b16 %v5184, %v5182
        %v5279 = vpack.c.b16 %v5185, %v5183
        %v5280 = vpack.c.b16 %v5188, %v5186
        %v5281 = vpack.c.b16 %v5189, %v5187
        %v5282 = vpack.c.b16 %v5192, %v5190
        %v5283 = vpack.c.b16 %v5193, %v5191
        %v5284 = vpack.c.b16 %v5196, %v5194
        %v5285 = vpack.c.b16 %v5197, %v5195
        %v5286 = vpack.c.b16 %v5200, %v5198
        %v5287 = vpack.c.b16 %v5201, %v5199
        %v5288 = vpack.c.b16 %v5204, %v5202
        %v5289 = vpack.c.b16 %v5205, %v5203
        %v5290 = vpack.c.b16 %v5208, %v5206
        %v5291 = vpack.c.b16 %v5209, %v5207
        %v5292 = vpack.c.b16 %v5212, %v5210
        %v5293 = vpack.c.b16 %v5213, %v5211
        %v5294 = vpack.c.b16 %v5216, %v5214
        %v5295 = vpack.c.b16 %v5217, %v5215
        %v5296 = vpack.c.b16 %v5220, %v5218
        %v5297 = vpack.c.b16 %v5221, %v5219
        %v5298 = vpack.c.b16 %v5224, %v5222
        %v5299 = vpack.c.b16 %v5225, %v5223
        %v5300 = vpack.c.b16 %v5228, %v5226
        %v5301 = vpack.c.b16 %v5229, %v5227
        %v5302 = vpack.c.b16 %v5232, %v5230
        %v5303 = vpack.c.b16 %v5233, %v5231
        %v5304 = vpack.c.b16 %v5236, %v5234
        %v5305 = vpack.c.b16 %v5237, %v5235
        %v5306 = vpack.c.b16 %v5240, %v5238
        %v5307 = vpack.c.b16 %v5241, %v5239
        %v5308 = vpack.c.b16 %v5244, %v5242
        %v5309 = vpack.c.b16 %v5245, %v5243
        %v5310 = vpack.c.b16 %v5248, %v5246
        %v5311 = vpack.c.b16 %v5249, %v5247
        %v5312 = vpack.c.b16 %v5252, %v5250
        %v5313 = vpack.c.b16 %v5253, %v5251
        %v5314 = vpack.c.b16 %v5256, %v5254
        %v5315 = vpack.c.b16 %v5257, %v5255
        %v5316 = vpack.c.b16 %v5260, %v5258
        %v5317 = vpack.c.b16 %v5261, %v5259
        %v5318 = vpack.c.b16 %v5264, %v5262
        %v5319 = vpack.c.b16 %v5265, %v5263
        %v5320 = vpack.c.b16 %v5268, %v5266
        %v5321 = vpack.c.b16 %v5269, %v5267
        %v5322 = vpack.c.b16 %v5272, %v5270
        %v5323 = vpack.c.b16 %v5273, %v5271
        %v5324 = vpack.c.b16 %v5276, %v5274
        %v5325 = vpack.c.b16 %v5277, %v5275
        %5374 = vmatprep.subr.bf16.mxu0 %v5279
        %5375 = vmatpush1.bf16.msra.mxu0 %v5278
        %5376 = vmatprep.subr.bf16.mxu0 %v5281
        %5377 = vmatpush1.bf16.msra.mxu0 %v5280
        %5378 = vmatprep.subr.bf16.mxu0 %v5283
        %5379 = vmatpush1.bf16.msra.mxu0 %v5282
        %5380 = vmatprep.subr.bf16.mxu0 %v5285
        %5381 = vmatpush1.bf16.msra.mxu0 %v5284
        %5382 = vmatprep.subr.bf16.mxu0 %v5287
        %5383 = vmatpush1.bf16.msra.mxu0 %v5286
        %5384 = vmatprep.subr.bf16.mxu0 %v5289
        %5385 = vmatpush1.bf16.msra.mxu0 %v5288
        %5386 = vmatprep.subr.bf16.mxu0 %v5291
        %5387 = vmatpush1.bf16.msra.mxu0 %v5290
        %5388 = vmatprep.subr.bf16.mxu0 %v5293
        %5389 = vmatpush1.bf16.msra.mxu0 %v5292
        %5390 = vmatprep.subr.bf16.mxu0 %v5295
        %5391 = vmatpush1.bf16.msra.mxu0 %v5294
        %5392 = vmatprep.subr.bf16.mxu0 %v5297
        %5393 = vmatpush1.bf16.msra.mxu0 %v5296
        %5394 = vmatprep.subr.bf16.mxu0 %v5299
        %5395 = vmatpush1.bf16.msra.mxu0 %v5298
        %5396 = vmatprep.subr.bf16.mxu0 %v5301
        %5397 = vmatpush1.bf16.msra.mxu0 %v5300
        %5398 = vmatprep.subr.bf16.mxu0 %v5303
        %5399 = vmatpush1.bf16.msra.mxu0 %v5302
        %5400 = vmatprep.subr.bf16.mxu0 %v5305
        %5401 = vmatpush1.bf16.msra.mxu0 %v5304
        %5402 = vmatprep.subr.bf16.mxu0 %v5307
        %5403 = vmatpush1.bf16.msra.mxu0 %v5306
        %5404 = vmatprep.subr.bf16.mxu0 %v5309
        %5405 = vmatpush1.bf16.msra.mxu0 %v5308
        %5406 = vmatprep.mubr.bf16.mxu0 %v3926
        %5407 = vmatmul.mubr.bf16.gmra.mrb[0].mxu0 %v3914
        %v5408 = vpop.f32.mrb[0].mxu0
        %v5409 = vadd.f32 %v5056, %v5408
        %v5410 = vpop.f32.mrb[0].mxu0
        %v5411 = vadd.f32 %v5058, %v5410
        %v5412 = vpop.f32.mrb[0].mxu0
        %v5413 = vadd.f32 %v5060, %v5412
        %v5414 = vpop.f32.mrb[0].mxu0
        %v5415 = vadd.f32 %v5062, %v5414
        %5416 = vmatprep.mubr.bf16.mxu0 %v3957
        %5417 = vmatmul.mubr.bf16.gmra.mrb[0].mxu0 %v3945
        %v5418 = vpop.f32.mrb[0].mxu0
        %v5419 = vadd.f32 %v5066, %v5418
        %v5420 = vpop.f32.mrb[0].mxu0
        %v5421 = vadd.f32 %v5068, %v5420
        %v5422 = vpop.f32.mrb[0].mxu0
        %v5423 = vadd.f32 %v5070, %v5422
        %v5424 = vpop.f32.mrb[0].mxu0
        %v5425 = vadd.f32 %v5072, %v5424
        %5426 = vmatprep.mubr.bf16.mxu0 %v3988
        %5427 = vmatmul.mubr.bf16.gmra.mrb[0].mxu0 %v3976
        %v5428 = vpop.f32.mrb[0].mxu0
        %v5429 = vadd.f32 %v5076, %v5428
        %v5430 = vpop.f32.mrb[0].mxu0
        %v5431 = vadd.f32 %v5078, %v5430
        %v5432 = vpop.f32.mrb[0].mxu0
        %v5433 = vadd.f32 %v5080, %v5432
        %v5434 = vpop.f32.mrb[0].mxu0
        %v5435 = vadd.f32 %v5082, %v5434
        %5436 = vmatprep.mubr.bf16.mxu0 %v4019
        %5437 = vmatmul.mubr.bf16.gmra.mrb[0].mxu0 %v4007
        %v5438 = vpop.f32.mrb[0].mxu0
        %v5439 = vadd.f32 %v5086, %v5438
        %v5440 = vpop.f32.mrb[0].mxu0
        %v5441 = vadd.f32 %v5088, %v5440
        %v5442 = vpop.f32.mrb[0].mxu0
        %v5443 = vadd.f32 %v5090, %v5442
        %v5444 = vpop.f32.mrb[0].mxu0
        %v5445 = vadd.f32 %v5092, %v5444
        %5446 = vmatprep.mubr.bf16.mxu0 %v4050
        %5447 = vmatmul.mubr.bf16.gmra.mrb[0].mxu0 %v4038
        %v5448 = vpop.f32.mrb[0].mxu0
        %v5449 = vadd.f32 %v5096, %v5448
        %v5450 = vpop.f32.mrb[0].mxu0
        %v5451 = vadd.f32 %v5098, %v5450
        %v5452 = vpop.f32.mrb[0].mxu0
        %v5453 = vadd.f32 %v5100, %v5452
        %v5454 = vpop.f32.mrb[0].mxu0
        %v5455 = vadd.f32 %v5102, %v5454
        %5456 = vmatprep.mubr.bf16.mxu0 %v4081
        %5457 = vmatmul.mubr.bf16.gmra.mrb[0].mxu0 %v4069
        %v5458 = vpop.f32.mrb[0].mxu0
        %v5459 = vadd.f32 %v5106, %v5458
        %v5460 = vpop.f32.mrb[0].mxu0
        %v5461 = vadd.f32 %v5108, %v5460
        %v5462 = vpop.f32.mrb[0].mxu0
        %v5463 = vadd.f32 %v5110, %v5462
        %v5464 = vpop.f32.mrb[0].mxu0
        %v5465 = vadd.f32 %v5112, %v5464
        %5466 = vmatprep.mubr.bf16.mxu0 %v4112
        %5467 = vmatmul.mubr.bf16.gmra.mrb[0].mxu0 %v4100
        %v5468 = vpop.f32.mrb[0].mxu0
        %v5469 = vadd.f32 %v5116, %v5468
        %v5470 = vpop.f32.mrb[0].mxu0
        %v5471 = vadd.f32 %v5118, %v5470
        %v5472 = vpop.f32.mrb[0].mxu0
        %v5473 = vadd.f32 %v5120, %v5472
        %v5474 = vpop.f32.mrb[0].mxu0
        %v5475 = vadd.f32 %v5122, %v5474
        %5476 = vmatprep.mubr.bf16.mxu0 %v4143
        %5477 = vmatmul.mubr.bf16.gmra.mrb[0].mxu0 %v4131
        %v5478 = vpop.f32.mrb[0].mxu0
        %v5479 = vadd.f32 %v5126, %v5478
        %v5480 = vpop.f32.mrb[0].mxu0
        %v5481 = vadd.f32 %v5128, %v5480
        %v5482 = vpop.f32.mrb[0].mxu0
        %v5483 = vadd.f32 %v5130, %v5482
        %v5484 = vpop.f32.mrb[0].mxu0
        %v5485 = vadd.f32 %v5132, %v5484
        %5486 = vdwg.mxu0
        %5487 = vmatprep.subr.bf16.mxu0 %v5311
        %5488 = vmatpush1.bf16.msra.mxu0 %v5310
        %5489 = vmatprep.subr.bf16.mxu0 %v5313
        %5490 = vmatpush1.bf16.msra.mxu0 %v5312
        %5491 = vmatprep.subr.bf16.mxu0 %v5315
        %5492 = vmatpush1.bf16.msra.mxu0 %v5314
        %5493 = vmatprep.subr.bf16.mxu0 %v5317
        %5494 = vmatpush1.bf16.msra.mxu0 %v5316
        %5495 = vmatprep.subr.bf16.mxu0 %v5319
        %5496 = vmatpush1.bf16.msra.mxu0 %v5318
        %5497 = vmatprep.subr.bf16.mxu0 %v5321
        %5498 = vmatpush1.bf16.msra.mxu0 %v5320
        %5499 = vmatprep.subr.bf16.mxu0 %v5323
        %5500 = vmatpush1.bf16.msra.mxu0 %v5322
        %5501 = vmatprep.subr.bf16.mxu0 %v5325
        %5502 = vmatpush1.bf16.msra.mxu0 %v5324
        %5503 = vmatprep.subr.bf16.mxu0 0
        %5504 = vmatpush1.bf16.msra.mxu0 0
        %5505 = vmatprep.subr.bf16.mxu0 0
        %5506 = vmatpush1.bf16.msra.mxu0 0
        %5507 = vmatprep.subr.bf16.mxu0 0
        %5508 = vmatpush1.bf16.msra.mxu0 0
        %5509 = vmatprep.subr.bf16.mxu0 0
        %5510 = vmatpush1.bf16.msra.mxu0 0
        %5511 = vmatprep.subr.bf16.mxu0 0
        %5512 = vmatpush1.bf16.msra.mxu0 0
        %5513 = vmatprep.subr.bf16.mxu0 0
        %5514 = vmatpush1.bf16.msra.mxu0 0
        %5515 = vmatprep.subr.bf16.mxu0 0
        %5516 = vmatpush1.bf16.msra.mxu0 0
        %5517 = vmatprep.subr.bf16.mxu0 0
        %5518 = vmatpush1.bf16.msra.mxu0 0
        %5519 = vmatprep.mubr.bf16.mxu0 0
        %5520 = vmatmul.mubr.bf16.gmra.mrb[0].mxu0 %v3938
        %v5521 = vpop.f32.mrb[0].mxu0
        %v5522 = vadd.f32 %v5409, %v5521
        %v5523 = vpop.f32.mrb[0].mxu0
        %v5524 = vadd.f32 %v5411, %v5523
        %v5525 = vpop.f32.mrb[0].mxu0
        %v5526 = vadd.f32 %v5413, %v5525
        %v5527 = vpop.f32.mrb[0].mxu0
        %v5528 = vadd.f32 %v5415, %v5527
        %5529 = vmatprep.mubr.bf16.mxu0 0
        %5530 = vmatmul.mubr.bf16.gmra.mrb[0].mxu0 %v3969
        %v5531 = vpop.f32.mrb[0].mxu0
        %v5532 = vadd.f32 %v5419, %v5531
        %v5533 = vpop.f32.mrb[0].mxu0
        %v5534 = vadd.f32 %v5421, %v5533
        %v5535 = vpop.f32.mrb[0].mxu0
        %v5536 = vadd.f32 %v5423, %v5535
        %v5537 = vpop.f32.mrb[0].mxu0
        %v5538 = vadd.f32 %v5425, %v5537
        %5539 = vmatprep.mubr.bf16.mxu0 0
        %5540 = vmatmul.mubr.bf16.gmra.mrb[0].mxu0 %v4000
        %v5541 = vpop.f32.mrb[0].mxu0
        %v5542 = vadd.f32 %v5429, %v5541
        %v5543 = vpop.f32.mrb[0].mxu0
        %v5544 = vadd.f32 %v5431, %v5543
        %v5545 = vpop.f32.mrb[0].mxu0
        %v5546 = vadd.f32 %v5433, %v5545
        %v5547 = vpop.f32.mrb[0].mxu0
        %v5548 = vadd.f32 %v5435, %v5547
        %5549 = vmatprep.mubr.bf16.mxu0 0
        %5550 = vmatmul.mubr.bf16.gmra.mrb[0].mxu0 %v4031
        %v5551 = vpop.f32.mrb[0].mxu0
        %v5552 = vadd.f32 %v5439, %v5551
        %v5553 = vpop.f32.mrb[0].mxu0
        %v5554 = vadd.f32 %v5441, %v5553
        %v5555 = vpop.f32.mrb[0].mxu0
        %v5556 = vadd.f32 %v5443, %v5555
        %v5557 = vpop.f32.mrb[0].mxu0
        %v5558 = vadd.f32 %v5445, %v5557
        %5559 = vmatprep.mubr.bf16.mxu0 0
        %5560 = vmatmul.mubr.bf16.gmra.mrb[0].mxu0 %v4062
        %v5561 = vpop.f32.mrb[0].mxu0
        %v5562 = vadd.f32 %v5449, %v5561
        %v5563 = vpop.f32.mrb[0].mxu0
        %v5564 = vadd.f32 %v5451, %v5563
        %v5565 = vpop.f32.mrb[0].mxu0
        %v5566 = vadd.f32 %v5453, %v5565
        %v5567 = vpop.f32.mrb[0].mxu0
        %v5568 = vadd.f32 %v5455, %v5567
        %5569 = vmatprep.mubr.bf16.mxu0 0
        %5570 = vmatmul.mubr.bf16.gmra.mrb[0].mxu0 %v4093
        %v5571 = vpop.f32.mrb[0].mxu0
        %v5572 = vadd.f32 %v5459, %v5571
        %v5573 = vpop.f32.mrb[0].mxu0
        %v5574 = vadd.f32 %v5461, %v5573
        %v5575 = vpop.f32.mrb[0].mxu0
        %v5576 = vadd.f32 %v5463, %v5575
        %v5577 = vpop.f32.mrb[0].mxu0
        %v5578 = vadd.f32 %v5465, %v5577
        %5579 = vmatprep.mubr.bf16.mxu0 0
        %5580 = vmatmul.mubr.bf16.gmra.mrb[0].mxu0 %v4124
        %v5581 = vpop.f32.mrb[0].mxu0
        %v5582 = vadd.f32 %v5469, %v5581
        %v5583 = vpop.f32.mrb[0].mxu0
        %v5584 = vadd.f32 %v5471, %v5583
        %v5585 = vpop.f32.mrb[0].mxu0
        %v5586 = vadd.f32 %v5473, %v5585
        %v5587 = vpop.f32.mrb[0].mxu0
        %v5588 = vadd.f32 %v5475, %v5587
        %5589 = vmatprep.mubr.bf16.mxu0 0
        %5590 = vmatmul.mubr.bf16.gmra.mrb[0].mxu0 %v4155
        %v5591 = vpop.f32.mrb[0].mxu0
        %v5592 = vadd.f32 %v5479, %v5591
        %v5593 = vpop.f32.mrb[0].mxu0
        %v5594 = vadd.f32 %v5481, %v5593
        %v5595 = vpop.f32.mrb[0].mxu0
        %v5596 = vadd.f32 %v5483, %v5595
        %v5597 = vpop.f32.mrb[0].mxu0
        %v5598 = vadd.f32 %v5485, %v5597
        %5599 = vdwg.mxu0
        %s5600 = scalar_lea.vmem [#allocation2], 240
        %v5601 = vld [vmem:[%s5600] sm:$0x80]
        %v5602 = vld [vmem:[%s5600 + $0x8] sm:$0xff]
        %v5603 = vld [vmem:[%s5600 + $0x18] sm:$0x80]
        %v5604 = vld [vmem:[%s5600 + $0x20] sm:$0xff]
        %v5605 = vld [vmem:[%s5600 + $0x30] sm:$0x80]
        %v5606 = vld [vmem:[%s5600 + $0x38] sm:$0xff]
        %v5607 = vld [vmem:[%s5600 + $0x48] sm:$0x80]
        %v5608 = vld [vmem:[%s5600 + $0x50] sm:$0xff]
        %v5609 = vld [vmem:[%s5600 + $0x60] sm:$0x80]
        %v5610 = vld [vmem:[%s5600 + $0x68] sm:$0xff]
        %v5611 = vld [vmem:[%s5600 + $0x78] sm:$0x80]
        %v5612 = vld [vmem:[%s5600 + $0x80] sm:$0xff]
        %v5613 = vld [vmem:[%s5600 + $0x90] sm:$0x80]
        %v5614 = vld [vmem:[%s5600 + $0x98] sm:$0xff]
        %v5615 = vld [vmem:[%s5600 + $0xa8] sm:$0x80]
        %v5616 = vld [vmem:[%s5600 + $0xb0] sm:$0xff]
        %v5617 = vld [vmem:[%s5600 + $0x10] sm:$0x1]
        %v5618 = vld [vmem:[%s5600 + $0x28] sm:$0x1]
        %v5619 = vld [vmem:[%s5600 + $0x40] sm:$0x1]
        %v5620 = vld [vmem:[%s5600 + $0x58] sm:$0x1]
        %v5621 = vld [vmem:[%s5600 + $0x70] sm:$0x1]
        %v5622 = vld [vmem:[%s5600 + $0x88] sm:$0x1]
        %v5623 = vld [vmem:[%s5600 + $0xa0] sm:$0x1]
        %v5624 = vld [vmem:[%s5600 + $0xb8] sm:$0x1]
        %v5626 = vshll.u32 %v5602, 16
        %v5628 = vrot.slane %v5626, 1
        %v5629 = vshrl.u32 %v5602, 16
        %v5631 = vor.u32 %v5629, %v5628
        %v5633 = vshll.u32 %v5604, 16
        %v5635 = vrot.slane %v5633, 1
        %v5636 = vshrl.u32 %v5604, 16
        %v5638 = vor.u32 %v5636, %v5635
        %v5640 = vshll.u32 %v5606, 16
        %v5642 = vrot.slane %v5640, 1
        %v5643 = vshrl.u32 %v5606, 16
        %v5645 = vor.u32 %v5643, %v5642
        %v5647 = vshll.u32 %v5608, 16
        %v5649 = vrot.slane %v5647, 1
        %v5650 = vshrl.u32 %v5608, 16
        %v5652 = vor.u32 %v5650, %v5649
        %v5654 = vshll.u32 %v5610, 16
        %v5656 = vrot.slane %v5654, 1
        %v5657 = vshrl.u32 %v5610, 16
        %v5659 = vor.u32 %v5657, %v5656
        %v5661 = vshll.u32 %v5612, 16
        %v5663 = vrot.slane %v5661, 1
        %v5664 = vshrl.u32 %v5612, 16
        %v5666 = vor.u32 %v5664, %v5663
        %v5668 = vshll.u32 %v5614, 16
        %v5670 = vrot.slane %v5668, 1
        %v5671 = vshrl.u32 %v5614, 16
        %v5673 = vor.u32 %v5671, %v5670
        %v5675 = vshll.u32 %v5616, 16
        %v5677 = vrot.slane %v5675, 1
        %v5678 = vshrl.u32 %v5616, 16
        %v5680 = vor.u32 %v5678, %v5677
        %v5697 = vrot.slane %v5602, 1
        %v5698 = vrot.slane %v5617, 1
        %v5699 = vsel %vm1031, %v5697, %v5698
        %v5700 = vrot.slane %v5604, 1
        %v5701 = vrot.slane %v5618, 1
        %v5702 = vsel %vm1031, %v5700, %v5701
        %v5703 = vrot.slane %v5606, 1
        %v5704 = vrot.slane %v5619, 1
        %v5705 = vsel %vm1031, %v5703, %v5704
        %v5706 = vrot.slane %v5608, 1
        %v5707 = vrot.slane %v5620, 1
        %v5708 = vsel %vm1031, %v5706, %v5707
        %v5709 = vrot.slane %v5610, 1
        %v5710 = vrot.slane %v5621, 1
        %v5711 = vsel %vm1031, %v5709, %v5710
        %v5712 = vrot.slane %v5612, 1
        %v5713 = vrot.slane %v5622, 1
        %v5714 = vsel %vm1031, %v5712, %v5713
        %v5715 = vrot.slane %v5614, 1
        %v5716 = vrot.slane %v5623, 1
        %v5717 = vsel %vm1031, %v5715, %v5716
        %v5718 = vrot.slane %v5616, 1
        %v5719 = vrot.slane %v5624, 1
        %v5720 = vsel %vm1031, %v5718, %v5719
        %v5722 = vshrl.u32 %v5601, 16
        %v5724 = vrot.slane %v5722, 7
        %v5725 = vrot.slane %v5629, 7
        %v5726 = vor.u32 %v5725, %v5626
        %v5727 = vsel %vm1056, %v5724, %v5726
        %v5729 = vshrl.u32 %v5628, 16
        %v5731 = vrot.slane %v5729, 7
        %v5733 = vshrl.u32 %v5631, 16
        %v5735 = vrot.slane %v5733, 7
        %v5736 = vshll.u32 %v5631, 16
        %v5738 = vor.u32 %v5735, %v5736
        %v5739 = vsel %vm1056, %v5731, %v5738
        %v5741 = vshrl.u32 %v5697, 16
        %v5743 = vrot.slane %v5741, 7
        %v5745 = vshrl.u32 %v5699, 16
        %v5747 = vrot.slane %v5745, 7
        %v5748 = vshll.u32 %v5699, 16
        %v5750 = vor.u32 %v5747, %v5748
        %v5751 = vsel %vm1056, %v5743, %v5750
        %v5753 = vshrl.u32 %v5603, 16
        %v5755 = vrot.slane %v5753, 7
        %v5756 = vrot.slane %v5636, 7
        %v5757 = vor.u32 %v5756, %v5633
        %v5758 = vsel %vm1056, %v5755, %v5757
        %v5760 = vshrl.u32 %v5635, 16
        %v5762 = vrot.slane %v5760, 7
        %v5764 = vshrl.u32 %v5638, 16
        %v5766 = vrot.slane %v5764, 7
        %v5767 = vshll.u32 %v5638, 16
        %v5769 = vor.u32 %v5766, %v5767
        %v5770 = vsel %vm1056, %v5762, %v5769
        %v5772 = vshrl.u32 %v5700, 16
        %v5774 = vrot.slane %v5772, 7
        %v5776 = vshrl.u32 %v5702, 16
        %v5778 = vrot.slane %v5776, 7
        %v5779 = vshll.u32 %v5702, 16
        %v5781 = vor.u32 %v5778, %v5779
        %v5782 = vsel %vm1056, %v5774, %v5781
        %v5784 = vshrl.u32 %v5605, 16
        %v5786 = vrot.slane %v5784, 7
        %v5787 = vrot.slane %v5643, 7
        %v5788 = vor.u32 %v5787, %v5640
        %v5789 = vsel %vm1056, %v5786, %v5788
        %v5791 = vshrl.u32 %v5642, 16
        %v5793 = vrot.slane %v5791, 7
        %v5795 = vshrl.u32 %v5645, 16
        %v5797 = vrot.slane %v5795, 7
        %v5798 = vshll.u32 %v5645, 16
        %v5800 = vor.u32 %v5797, %v5798
        %v5801 = vsel %vm1056, %v5793, %v5800
        %v5803 = vshrl.u32 %v5703, 16
        %v5805 = vrot.slane %v5803, 7
        %v5807 = vshrl.u32 %v5705, 16
        %v5809 = vrot.slane %v5807, 7
        %v5810 = vshll.u32 %v5705, 16
        %v5812 = vor.u32 %v5809, %v5810
        %v5813 = vsel %vm1056, %v5805, %v5812
        %v5815 = vshrl.u32 %v5607, 16
        %v5817 = vrot.slane %v5815, 7
        %v5818 = vrot.slane %v5650, 7
        %v5819 = vor.u32 %v5818, %v5647
        %v5820 = vsel %vm1056, %v5817, %v5819
        %v5822 = vshrl.u32 %v5649, 16
        %v5824 = vrot.slane %v5822, 7
        %v5826 = vshrl.u32 %v5652, 16
        %v5828 = vrot.slane %v5826, 7
        %v5829 = vshll.u32 %v5652, 16
        %v5831 = vor.u32 %v5828, %v5829
        %v5832 = vsel %vm1056, %v5824, %v5831
        %v5834 = vshrl.u32 %v5706, 16
        %v5836 = vrot.slane %v5834, 7
        %v5838 = vshrl.u32 %v5708, 16
        %v5840 = vrot.slane %v5838, 7
        %v5841 = vshll.u32 %v5708, 16
        %v5843 = vor.u32 %v5840, %v5841
        %v5844 = vsel %vm1056, %v5836, %v5843
        %v5846 = vshrl.u32 %v5609, 16
        %v5848 = vrot.slane %v5846, 7
        %v5849 = vrot.slane %v5657, 7
        %v5850 = vor.u32 %v5849, %v5654
        %v5851 = vsel %vm1056, %v5848, %v5850
        %v5853 = vshrl.u32 %v5656, 16
        %v5855 = vrot.slane %v5853, 7
        %v5857 = vshrl.u32 %v5659, 16
        %v5859 = vrot.slane %v5857, 7
        %v5860 = vshll.u32 %v5659, 16
        %v5862 = vor.u32 %v5859, %v5860
        %v5863 = vsel %vm1056, %v5855, %v5862
        %v5865 = vshrl.u32 %v5709, 16
        %v5867 = vrot.slane %v5865, 7
        %v5869 = vshrl.u32 %v5711, 16
        %v5871 = vrot.slane %v5869, 7
        %v5872 = vshll.u32 %v5711, 16
        %v5874 = vor.u32 %v5871, %v5872
        %v5875 = vsel %vm1056, %v5867, %v5874
        %v5877 = vshrl.u32 %v5611, 16
        %v5879 = vrot.slane %v5877, 7
        %v5880 = vrot.slane %v5664, 7
        %v5881 = vor.u32 %v5880, %v5661
        %v5882 = vsel %vm1056, %v5879, %v5881
        %v5884 = vshrl.u32 %v5663, 16
        %v5886 = vrot.slane %v5884, 7
        %v5888 = vshrl.u32 %v5666, 16
        %v5890 = vrot.slane %v5888, 7
        %v5891 = vshll.u32 %v5666, 16
        %v5893 = vor.u32 %v5890, %v5891
        %v5894 = vsel %vm1056, %v5886, %v5893
        %v5896 = vshrl.u32 %v5712, 16
        %v5898 = vrot.slane %v5896, 7
        %v5900 = vshrl.u32 %v5714, 16
        %v5902 = vrot.slane %v5900, 7
        %v5903 = vshll.u32 %v5714, 16
        %v5905 = vor.u32 %v5902, %v5903
        %v5906 = vsel %vm1056, %v5898, %v5905
        %v5908 = vshrl.u32 %v5613, 16
        %v5910 = vrot.slane %v5908, 7
        %v5911 = vrot.slane %v5671, 7
        %v5912 = vor.u32 %v5911, %v5668
        %v5913 = vsel %vm1056, %v5910, %v5912
        %v5915 = vshrl.u32 %v5670, 16
        %v5917 = vrot.slane %v5915, 7
        %v5919 = vshrl.u32 %v5673, 16
        %v5921 = vrot.slane %v5919, 7
        %v5922 = vshll.u32 %v5673, 16
        %v5924 = vor.u32 %v5921, %v5922
        %v5925 = vsel %vm1056, %v5917, %v5924
        %v5927 = vshrl.u32 %v5715, 16
        %v5929 = vrot.slane %v5927, 7
        %v5931 = vshrl.u32 %v5717, 16
        %v5933 = vrot.slane %v5931, 7
        %v5934 = vshll.u32 %v5717, 16
        %v5936 = vor.u32 %v5933, %v5934
        %v5937 = vsel %vm1056, %v5929, %v5936
        %v5939 = vshrl.u32 %v5615, 16
        %v5941 = vrot.slane %v5939, 7
        %v5942 = vrot.slane %v5678, 7
        %v5943 = vor.u32 %v5942, %v5675
        %v5944 = vsel %vm1056, %v5941, %v5943
        %v5946 = vshrl.u32 %v5677, 16
        %v5948 = vrot.slane %v5946, 7
        %v5950 = vshrl.u32 %v5680, 16
        %v5952 = vrot.slane %v5950, 7
        %v5953 = vshll.u32 %v5680, 16
        %v5955 = vor.u32 %v5952, %v5953
        %v5956 = vsel %vm1056, %v5948, %v5955
        %v5958 = vshrl.u32 %v5718, 16
        %v5960 = vrot.slane %v5958, 7
        %v5962 = vshrl.u32 %v5720, 16
        %v5964 = vrot.slane %v5962, 7
        %v5965 = vshll.u32 %v5720, 16
        %v5967 = vor.u32 %v5964, %v5965
        %v5968 = vsel %vm1056, %v5960, %v5967
        %v5993 = vld [vmem:[%s3143] sm:$0xff]
        %v5994 = vld [vmem:[%s3143 + $0x8] sm:$0xff]
        %v5995 = vld [vmem:[%s3143 + $0x10] sm:$0xff]
        %v5996 = vld [vmem:[%s3143 + $0x18] sm:$0xff]
        %v5997 = vld [vmem:[%s3143 + $0x20] sm:$0xff]
        %v5998 = vld [vmem:[%s3143 + $0x28] sm:$0xff]
        %v5999 = vld [vmem:[%s3143 + $0x30] sm:$0xff]
        %v6000 = vld [vmem:[%s3143 + $0x38] sm:$0xff]
        %v6001 = vld [vmem:[%s3143 + $0x40] sm:$0xff]
        %v6002 = vld [vmem:[%s3143 + $0x48] sm:$0xff]
        %v6003 = vld [vmem:[%s3143 + $0x50] sm:$0xff]
        %v6004 = vld [vmem:[%s3143 + $0x58] sm:$0xff]
        %v6005 = vld [vmem:[%s3143 + $0x60] sm:$0xff]
        %v6006 = vld [vmem:[%s3143 + $0x68] sm:$0xff]
        %v6007 = vld [vmem:[%s3143 + $0x70] sm:$0xff]
        %v6008 = vld [vmem:[%s3143 + $0x78] sm:$0xff]
        %v6009 = vld [vmem:[%s3143 + $0x80] sm:$0xff]
        %v6010 = vld [vmem:[%s3143 + $0x88] sm:$0xff]
        %v6011 = vld [vmem:[%s3143 + $0x90] sm:$0xff]
        %v6012 = vld [vmem:[%s3143 + $0x98] sm:$0xff]
        %v6013 = vld [vmem:[%s3143 + $0xa0] sm:$0xff]
        %v6014 = vld [vmem:[%s3143 + $0xa8] sm:$0xff]
        %v6015 = vld [vmem:[%s3143 + $0xb0] sm:$0xff]
        %v6016 = vld [vmem:[%s3143 + $0xb8] sm:$0xff]
        %v6017 = vld [vmem:[%s3143 + $0xc0] sm:$0xff]
        %v6018 = vld [vmem:[%s3143 + $0xc8] sm:$0xff]
        %v6019 = vld [vmem:[%s3143 + $0xd0] sm:$0xff]
        %v6020 = vld [vmem:[%s3143 + $0xd8] sm:$0xff]
        %v6021 = vld [vmem:[%s3143 + $0xe0] sm:$0xff]
        %v6022 = vld [vmem:[%s3143 + $0xe8] sm:$0xff]
        %v6023 = vld [vmem:[%s3143 + $0xf0] sm:$0xff]
        %v6024 = vld [vmem:[%s3143 + $0xf8] sm:$0xff]
        %v6025 = vld [vmem:[%s3143 + $0x100] sm:$0xff]
        %v6026 = vld [vmem:[%s3143 + $0x108] sm:$0xff]
        %v6027 = vld [vmem:[%s3143 + $0x110] sm:$0xff]
        %v6028 = vld [vmem:[%s3143 + $0x118] sm:$0xff]
        %v6029 = vld [vmem:[%s3143 + $0x120] sm:$0xff]
        %v6030 = vld [vmem:[%s3143 + $0x128] sm:$0xff]
        %v6031 = vld [vmem:[%s3143 + $0x130] sm:$0xff]
        %v6032 = vld [vmem:[%s3143 + $0x138] sm:$0xff]
        %v6033 = vld [vmem:[%s3143 + $0x140] sm:$0xff]
        %v6034 = vld [vmem:[%s3143 + $0x148] sm:$0xff]
        %v6035 = vld [vmem:[%s3143 + $0x150] sm:$0xff]
        %v6036 = vld [vmem:[%s3143 + $0x158] sm:$0xff]
        %v6037 = vld [vmem:[%s3143 + $0x160] sm:$0xff]
        %v6038 = vld [vmem:[%s3143 + $0x168] sm:$0xff]
        %v6039 = vld [vmem:[%s3143 + $0x170] sm:$0xff]
        %v6040 = vld [vmem:[%s3143 + $0x178] sm:$0xff]
        %v6089 = vunpack.c.l.b16 %v5993
        %v6090 = vunpack.c.h.b16 %v5993
        %v6091 = vunpack.c.l.b16 %v5994
        %v6092 = vunpack.c.h.b16 %v5994
        %v6093 = vunpack.c.l.b16 %v5995
        %v6094 = vunpack.c.h.b16 %v5995
        %v6095 = vunpack.c.l.b16 %v5996
        %v6096 = vunpack.c.h.b16 %v5996
        %v6097 = vunpack.c.l.b16 %v5997
        %v6098 = vunpack.c.h.b16 %v5997
        %v6099 = vunpack.c.l.b16 %v5998
        %v6100 = vunpack.c.h.b16 %v5998
        %v6101 = vunpack.c.l.b16 %v5999
        %v6102 = vunpack.c.h.b16 %v5999
        %v6103 = vunpack.c.l.b16 %v6000
        %v6104 = vunpack.c.h.b16 %v6000
        %v6105 = vunpack.c.l.b16 %v6001
        %v6106 = vunpack.c.h.b16 %v6001
        %v6107 = vunpack.c.l.b16 %v6002
        %v6108 = vunpack.c.h.b16 %v6002
        %v6109 = vunpack.c.l.b16 %v6003
        %v6110 = vunpack.c.h.b16 %v6003
        %v6111 = vunpack.c.l.b16 %v6004
        %v6112 = vunpack.c.h.b16 %v6004
        %v6113 = vunpack.c.l.b16 %v6005
        %v6114 = vunpack.c.h.b16 %v6005
        %v6115 = vunpack.c.l.b16 %v6006
        %v6116 = vunpack.c.h.b16 %v6006
        %v6117 = vunpack.c.l.b16 %v6007
        %v6118 = vunpack.c.h.b16 %v6007
        %v6119 = vunpack.c.l.b16 %v6008
        %v6120 = vunpack.c.h.b16 %v6008
        %v6121 = vunpack.c.l.b16 %v6009
        %v6122 = vunpack.c.h.b16 %v6009
        %v6123 = vunpack.c.l.b16 %v6010
        %v6124 = vunpack.c.h.b16 %v6010
        %v6125 = vunpack.c.l.b16 %v6011
        %v6126 = vunpack.c.h.b16 %v6011
        %v6127 = vunpack.c.l.b16 %v6012
        %v6128 = vunpack.c.h.b16 %v6012
        %v6129 = vunpack.c.l.b16 %v6013
        %v6130 = vunpack.c.h.b16 %v6013
        %v6131 = vunpack.c.l.b16 %v6014
        %v6132 = vunpack.c.h.b16 %v6014
        %v6133 = vunpack.c.l.b16 %v6015
        %v6134 = vunpack.c.h.b16 %v6015
        %v6135 = vunpack.c.l.b16 %v6016
        %v6136 = vunpack.c.h.b16 %v6016
        %v6137 = vunpack.c.l.b16 %v6017
        %v6138 = vunpack.c.h.b16 %v6017
        %v6139 = vunpack.c.l.b16 %v6018
        %v6140 = vunpack.c.h.b16 %v6018
        %v6141 = vunpack.c.l.b16 %v6019
        %v6142 = vunpack.c.h.b16 %v6019
        %v6143 = vunpack.c.l.b16 %v6020
        %v6144 = vunpack.c.h.b16 %v6020
        %v6145 = vunpack.c.l.b16 %v6021
        %v6146 = vunpack.c.h.b16 %v6021
        %v6147 = vunpack.c.l.b16 %v6022
        %v6148 = vunpack.c.h.b16 %v6022
        %v6149 = vunpack.c.l.b16 %v6023
        %v6150 = vunpack.c.h.b16 %v6023
        %v6151 = vunpack.c.l.b16 %v6024
        %v6152 = vunpack.c.h.b16 %v6024
        %v6153 = vunpack.c.l.b16 %v6025
        %v6154 = vunpack.c.h.b16 %v6025
        %v6155 = vunpack.c.l.b16 %v6026
        %v6156 = vunpack.c.h.b16 %v6026
        %v6157 = vunpack.c.l.b16 %v6027
        %v6158 = vunpack.c.h.b16 %v6027
        %v6159 = vunpack.c.l.b16 %v6028
        %v6160 = vunpack.c.h.b16 %v6028
        %v6161 = vunpack.c.l.b16 %v6029
        %v6162 = vunpack.c.h.b16 %v6029
        %v6163 = vunpack.c.l.b16 %v6030
        %v6164 = vunpack.c.h.b16 %v6030
        %v6165 = vunpack.c.l.b16 %v6031
        %v6166 = vunpack.c.h.b16 %v6031
        %v6167 = vunpack.c.l.b16 %v6032
        %v6168 = vunpack.c.h.b16 %v6032
        %v6169 = vunpack.c.l.b16 %v6033
        %v6170 = vunpack.c.h.b16 %v6033
        %v6171 = vunpack.c.l.b16 %v6034
        %v6172 = vunpack.c.h.b16 %v6034
        %v6173 = vunpack.c.l.b16 %v6035
        %v6174 = vunpack.c.h.b16 %v6035
        %v6175 = vunpack.c.l.b16 %v6036
        %v6176 = vunpack.c.h.b16 %v6036
        %v6177 = vunpack.c.l.b16 %v6037
        %v6178 = vunpack.c.h.b16 %v6037
        %v6179 = vunpack.c.l.b16 %v6038
        %v6180 = vunpack.c.h.b16 %v6038
        %v6181 = vunpack.c.l.b16 %v6039
        %v6182 = vunpack.c.h.b16 %v6039
        %v6183 = vunpack.c.l.b16 %v6040
        %v6184 = vunpack.c.h.b16 %v6040
        %v6185 = vpack.c.b16 %v6091, %v6089
        %v6186 = vpack.c.b16 %v6092, %v6090
        %v6187 = vpack.c.b16 %v6095, %v6093
        %v6188 = vpack.c.b16 %v6096, %v6094
        %v6189 = vpack.c.b16 %v6099, %v6097
        %v6190 = vpack.c.b16 %v6100, %v6098
        %v6191 = vpack.c.b16 %v6103, %v6101
        %v6192 = vpack.c.b16 %v6104, %v6102
        %v6193 = vpack.c.b16 %v6107, %v6105
        %v6194 = vpack.c.b16 %v6108, %v6106
        %v6195 = vpack.c.b16 %v6111, %v6109
        %v6196 = vpack.c.b16 %v6112, %v6110
        %v6197 = vpack.c.b16 %v6115, %v6113
        %v6198 = vpack.c.b16 %v6116, %v6114
        %v6199 = vpack.c.b16 %v6119, %v6117
        %v6200 = vpack.c.b16 %v6120, %v6118
        %v6201 = vpack.c.b16 %v6123, %v6121
        %v6202 = vpack.c.b16 %v6124, %v6122
        %v6203 = vpack.c.b16 %v6127, %v6125
        %v6204 = vpack.c.b16 %v6128, %v6126
        %v6205 = vpack.c.b16 %v6131, %v6129
        %v6206 = vpack.c.b16 %v6132, %v6130
        %v6207 = vpack.c.b16 %v6135, %v6133
        %v6208 = vpack.c.b16 %v6136, %v6134
        %v6209 = vpack.c.b16 %v6139, %v6137
        %v6210 = vpack.c.b16 %v6140, %v6138
        %v6211 = vpack.c.b16 %v6143, %v6141
        %v6212 = vpack.c.b16 %v6144, %v6142
        %v6213 = vpack.c.b16 %v6147, %v6145
        %v6214 = vpack.c.b16 %v6148, %v6146
        %v6215 = vpack.c.b16 %v6151, %v6149
        %v6216 = vpack.c.b16 %v6152, %v6150
        %v6217 = vpack.c.b16 %v6155, %v6153
        %v6218 = vpack.c.b16 %v6156, %v6154
        %v6219 = vpack.c.b16 %v6159, %v6157
        %v6220 = vpack.c.b16 %v6160, %v6158
        %v6221 = vpack.c.b16 %v6163, %v6161
        %v6222 = vpack.c.b16 %v6164, %v6162
        %v6223 = vpack.c.b16 %v6167, %v6165
        %v6224 = vpack.c.b16 %v6168, %v6166
        %v6225 = vpack.c.b16 %v6171, %v6169
        %v6226 = vpack.c.b16 %v6172, %v6170
        %v6227 = vpack.c.b16 %v6175, %v6173
        %v6228 = vpack.c.b16 %v6176, %v6174
        %v6229 = vpack.c.b16 %v6179, %v6177
        %v6230 = vpack.c.b16 %v6180, %v6178
        %v6231 = vpack.c.b16 %v6183, %v6181
        %v6232 = vpack.c.b16 %v6184, %v6182
        %6281 = vmatprep.subr.bf16.mxu0 %v6186
        %6282 = vmatpush1.bf16.msra.mxu0 %v6185
        %6283 = vmatprep.subr.bf16.mxu0 %v6188
        %6284 = vmatpush1.bf16.msra.mxu0 %v6187
        %6285 = vmatprep.subr.bf16.mxu0 %v6190
        %6286 = vmatpush1.bf16.msra.mxu0 %v6189
        %6287 = vmatprep.subr.bf16.mxu0 %v6192
        %6288 = vmatpush1.bf16.msra.mxu0 %v6191
        %6289 = vmatprep.subr.bf16.mxu0 %v6194
        %6290 = vmatpush1.bf16.msra.mxu0 %v6193
        %6291 = vmatprep.subr.bf16.mxu0 %v6196
        %6292 = vmatpush1.bf16.msra.mxu0 %v6195
        %6293 = vmatprep.subr.bf16.mxu0 %v6198
        %6294 = vmatpush1.bf16.msra.mxu0 %v6197
        %6295 = vmatprep.subr.bf16.mxu0 %v6200
        %6296 = vmatpush1.bf16.msra.mxu0 %v6199
        %6297 = vmatprep.subr.bf16.mxu0 %v6202
        %6298 = vmatpush1.bf16.msra.mxu0 %v6201
        %6299 = vmatprep.subr.bf16.mxu0 %v6204
        %6300 = vmatpush1.bf16.msra.mxu0 %v6203
        %6301 = vmatprep.subr.bf16.mxu0 %v6206
        %6302 = vmatpush1.bf16.msra.mxu0 %v6205
        %6303 = vmatprep.subr.bf16.mxu0 %v6208
        %6304 = vmatpush1.bf16.msra.mxu0 %v6207
        %6305 = vmatprep.subr.bf16.mxu0 %v6210
        %6306 = vmatpush1.bf16.msra.mxu0 %v6209
        %6307 = vmatprep.subr.bf16.mxu0 %v6212
        %6308 = vmatpush1.bf16.msra.mxu0 %v6211
        %6309 = vmatprep.subr.bf16.mxu0 %v6214
        %6310 = vmatpush1.bf16.msra.mxu0 %v6213
        %6311 = vmatprep.subr.bf16.mxu0 %v6216
        %6312 = vmatpush1.bf16.msra.mxu0 %v6215
        %6313 = vmatprep.mubr.bf16.mxu0 %v5739
        %6314 = vmatmul.mubr.bf16.gmra.mrb[0].mxu0 %v5727
        %v6315 = vpop.f32.mrb[0].mxu0
        %v6316 = vadd.f32 0.0, %v6315
        %v6317 = vpop.f32.mrb[0].mxu0
        %v6318 = vadd.f32 0.0, %v6317
        %v6319 = vpop.f32.mrb[0].mxu0
        %v6320 = vadd.f32 0.0, %v6319
        %v6321 = vpop.f32.mrb[0].mxu0
        %v6322 = vadd.f32 0.0, %v6321
        %6323 = vmatprep.mubr.bf16.mxu0 %v5770
        %6324 = vmatmul.mubr.bf16.gmra.mrb[0].mxu0 %v5758
        %v6325 = vpop.f32.mrb[0].mxu0
        %v6326 = vadd.f32 0.0, %v6325
        %v6327 = vpop.f32.mrb[0].mxu0
        %v6328 = vadd.f32 0.0, %v6327
        %v6329 = vpop.f32.mrb[0].mxu0
        %v6330 = vadd.f32 0.0, %v6329
        %v6331 = vpop.f32.mrb[0].mxu0
        %v6332 = vadd.f32 0.0, %v6331
        %6333 = vmatprep.mubr.bf16.mxu0 %v5801
        %6334 = vmatmul.mubr.bf16.gmra.mrb[0].mxu0 %v5789
        %v6335 = vpop.f32.mrb[0].mxu0
        %v6336 = vadd.f32 0.0, %v6335
        %v6337 = vpop.f32.mrb[0].mxu0
        %v6338 = vadd.f32 0.0, %v6337
        %v6339 = vpop.f32.mrb[0].mxu0
        %v6340 = vadd.f32 0.0, %v6339
        %v6341 = vpop.f32.mrb[0].mxu0
        %v6342 = vadd.f32 0.0, %v6341
        %6343 = vmatprep.mubr.bf16.mxu0 %v5832
        %6344 = vmatmul.mubr.bf16.gmra.mrb[0].mxu0 %v5820
        %v6345 = vpop.f32.mrb[0].mxu0
        %v6346 = vadd.f32 0.0, %v6345
        %v6347 = vpop.f32.mrb[0].mxu0
        %v6348 = vadd.f32 0.0, %v6347
        %v6349 = vpop.f32.mrb[0].mxu0
        %v6350 = vadd.f32 0.0, %v6349
        %v6351 = vpop.f32.mrb[0].mxu0
        %v6352 = vadd.f32 0.0, %v6351
        %6353 = vmatprep.mubr.bf16.mxu0 %v5863
        %6354 = vmatmul.mubr.bf16.gmra.mrb[0].mxu0 %v5851
        %v6355 = vpop.f32.mrb[0].mxu0
        %v6356 = vadd.f32 0.0, %v6355
        %v6357 = vpop.f32.mrb[0].mxu0
        %v6358 = vadd.f32 0.0, %v6357
        %v6359 = vpop.f32.mrb[0].mxu0
        %v6360 = vadd.f32 0.0, %v6359
        %v6361 = vpop.f32.mrb[0].mxu0
        %v6362 = vadd.f32 0.0, %v6361
        %6363 = vmatprep.mubr.bf16.mxu0 %v5894
        %6364 = vmatmul.mubr.bf16.gmra.mrb[0].mxu0 %v5882
        %v6365 = vpop.f32.mrb[0].mxu0
        %v6366 = vadd.f32 0.0, %v6365
        %v6367 = vpop.f32.mrb[0].mxu0
        %v6368 = vadd.f32 0.0, %v6367
        %v6369 = vpop.f32.mrb[0].mxu0
        %v6370 = vadd.f32 0.0, %v6369
        %v6371 = vpop.f32.mrb[0].mxu0
        %v6372 = vadd.f32 0.0, %v6371
        %6373 = vmatprep.mubr.bf16.mxu0 %v5925
        %6374 = vmatmul.mubr.bf16.gmra.mrb[0].mxu0 %v5913
        %v6375 = vpop.f32.mrb[0].mxu0
        %v6376 = vadd.f32 0.0, %v6375
        %v6377 = vpop.f32.mrb[0].mxu0
        %v6378 = vadd.f32 0.0, %v6377
        %v6379 = vpop.f32.mrb[0].mxu0
        %v6380 = vadd.f32 0.0, %v6379
        %v6381 = vpop.f32.mrb[0].mxu0
        %v6382 = vadd.f32 0.0, %v6381
        %6383 = vmatprep.mubr.bf16.mxu0 %v5956
        %6384 = vmatmul.mubr.bf16.gmra.mrb[0].mxu0 %v5944
        %v6385 = vpop.f32.mrb[0].mxu0
        %v6386 = vadd.f32 0.0, %v6385
        %v6387 = vpop.f32.mrb[0].mxu0
        %v6388 = vadd.f32 0.0, %v6387
        %v6389 = vpop.f32.mrb[0].mxu0
        %v6390 = vadd.f32 0.0, %v6389
        %v6391 = vpop.f32.mrb[0].mxu0
        %v6392 = vadd.f32 0.0, %v6391
        %6393 = vdwg.mxu0
        %6394 = vmatprep.subr.bf16.mxu0 %v6218
        %6395 = vmatpush1.bf16.msra.mxu0 %v6217
        %6396 = vmatprep.subr.bf16.mxu0 %v6220
        %6397 = vmatpush1.bf16.msra.mxu0 %v6219
        %6398 = vmatprep.subr.bf16.mxu0 %v6222
        %6399 = vmatpush1.bf16.msra.mxu0 %v6221
        %6400 = vmatprep.subr.bf16.mxu0 %v6224
        %6401 = vmatpush1.bf16.msra.mxu0 %v6223
        %6402 = vmatprep.subr.bf16.mxu0 %v6226
        %6403 = vmatpush1.bf16.msra.mxu0 %v6225
        %6404 = vmatprep.subr.bf16.mxu0 %v6228
        %6405 = vmatpush1.bf16.msra.mxu0 %v6227
        %6406 = vmatprep.subr.bf16.mxu0 %v6230
        %6407 = vmatpush1.bf16.msra.mxu0 %v6229
        %6408 = vmatprep.subr.bf16.mxu0 %v6232
        %6409 = vmatpush1.bf16.msra.mxu0 %v6231
        %6410 = vmatprep.subr.bf16.mxu0 0
        %6411 = vmatpush1.bf16.msra.mxu0 0
        %6412 = vmatprep.subr.bf16.mxu0 0
        %6413 = vmatpush1.bf16.msra.mxu0 0
        %6414 = vmatprep.subr.bf16.mxu0 0
        %6415 = vmatpush1.bf16.msra.mxu0 0
        %6416 = vmatprep.subr.bf16.mxu0 0
        %6417 = vmatpush1.bf16.msra.mxu0 0
        %6418 = vmatprep.subr.bf16.mxu0 0
        %6419 = vmatpush1.bf16.msra.mxu0 0
        %6420 = vmatprep.subr.bf16.mxu0 0
        %6421 = vmatpush1.bf16.msra.mxu0 0
        %6422 = vmatprep.subr.bf16.mxu0 0
        %6423 = vmatpush1.bf16.msra.mxu0 0
        %6424 = vmatprep.subr.bf16.mxu0 0
        %6425 = vmatpush1.bf16.msra.mxu0 0
        %6426 = vmatprep.mubr.bf16.mxu0 0
        %6427 = vmatmul.mubr.bf16.gmra.mrb[0].mxu0 %v5751
        %v6428 = vpop.f32.mrb[0].mxu0
        %v6429 = vadd.f32 %v6316, %v6428
        %v6430 = vpop.f32.mrb[0].mxu0
        %v6431 = vadd.f32 %v6318, %v6430
        %v6432 = vpop.f32.mrb[0].mxu0
        %v6433 = vadd.f32 %v6320, %v6432
        %v6434 = vpop.f32.mrb[0].mxu0
        %v6435 = vadd.f32 %v6322, %v6434
        %6436 = vmatprep.mubr.bf16.mxu0 0
        %6437 = vmatmul.mubr.bf16.gmra.mrb[0].mxu0 %v5782
        %v6438 = vpop.f32.mrb[0].mxu0
        %v6439 = vadd.f32 %v6326, %v6438
        %v6440 = vpop.f32.mrb[0].mxu0
        %v6441 = vadd.f32 %v6328, %v6440
        %v6442 = vpop.f32.mrb[0].mxu0
        %v6443 = vadd.f32 %v6330, %v6442
        %v6444 = vpop.f32.mrb[0].mxu0
        %v6445 = vadd.f32 %v6332, %v6444
        %6446 = vmatprep.mubr.bf16.mxu0 0
        %6447 = vmatmul.mubr.bf16.gmra.mrb[0].mxu0 %v5813
        %v6448 = vpop.f32.mrb[0].mxu0
        %v6449 = vadd.f32 %v6336, %v6448
        %v6450 = vpop.f32.mrb[0].mxu0
        %v6451 = vadd.f32 %v6338, %v6450
        %v6452 = vpop.f32.mrb[0].mxu0
        %v6453 = vadd.f32 %v6340, %v6452
        %v6454 = vpop.f32.mrb[0].mxu0
        %v6455 = vadd.f32 %v6342, %v6454
        %6456 = vmatprep.mubr.bf16.mxu0 0
        %6457 = vmatmul.mubr.bf16.gmra.mrb[0].mxu0 %v5844
        %v6458 = vpop.f32.mrb[0].mxu0
        %v6459 = vadd.f32 %v6346, %v6458
        %v6460 = vpop.f32.mrb[0].mxu0
        %v6461 = vadd.f32 %v6348, %v6460
        %v6462 = vpop.f32.mrb[0].mxu0
        %v6463 = vadd.f32 %v6350, %v6462
        %v6464 = vpop.f32.mrb[0].mxu0
        %v6465 = vadd.f32 %v6352, %v6464
        %6466 = vmatprep.mubr.bf16.mxu0 0
        %6467 = vmatmul.mubr.bf16.gmra.mrb[0].mxu0 %v5875
        %v6468 = vpop.f32.mrb[0].mxu0
        %v6469 = vadd.f32 %v6356, %v6468
        %v6470 = vpop.f32.mrb[0].mxu0
        %v6471 = vadd.f32 %v6358, %v6470
        %v6472 = vpop.f32.mrb[0].mxu0
        %v6473 = vadd.f32 %v6360, %v6472
        %v6474 = vpop.f32.mrb[0].mxu0
        %v6475 = vadd.f32 %v6362, %v6474
        %6476 = vmatprep.mubr.bf16.mxu0 0
        %6477 = vmatmul.mubr.bf16.gmra.mrb[0].mxu0 %v5906
        %v6478 = vpop.f32.mrb[0].mxu0
        %v6479 = vadd.f32 %v6366, %v6478
        %v6480 = vpop.f32.mrb[0].mxu0
        %v6481 = vadd.f32 %v6368, %v6480
        %v6482 = vpop.f32.mrb[0].mxu0
        %v6483 = vadd.f32 %v6370, %v6482
        %v6484 = vpop.f32.mrb[0].mxu0
        %v6485 = vadd.f32 %v6372, %v6484
        %6486 = vmatprep.mubr.bf16.mxu0 0
        %6487 = vmatmul.mubr.bf16.gmra.mrb[0].mxu0 %v5937
        %v6488 = vpop.f32.mrb[0].mxu0
        %v6489 = vadd.f32 %v6376, %v6488
        %v6490 = vpop.f32.mrb[0].mxu0
        %v6491 = vadd.f32 %v6378, %v6490
        %v6492 = vpop.f32.mrb[0].mxu0
        %v6493 = vadd.f32 %v6380, %v6492
        %v6494 = vpop.f32.mrb[0].mxu0
        %v6495 = vadd.f32 %v6382, %v6494
        %6496 = vmatprep.mubr.bf16.mxu0 0
        %6497 = vmatmul.mubr.bf16.gmra.mrb[0].mxu0 %v5968
        %v6498 = vpop.f32.mrb[0].mxu0
        %v6499 = vadd.f32 %v6386, %v6498
        %v6500 = vpop.f32.mrb[0].mxu0
        %v6501 = vadd.f32 %v6388, %v6500
        %v6502 = vpop.f32.mrb[0].mxu0
        %v6503 = vadd.f32 %v6390, %v6502
        %v6504 = vpop.f32.mrb[0].mxu0
        %v6505 = vadd.f32 %v6392, %v6504
        %6506 = vdwg.mxu0
        %v6507 = vadd.f32 %v5522, %v6429
        %v6508 = vadd.f32 %v5524, %v6431
        %v6509 = vadd.f32 %v5526, %v6433
        %v6510 = vadd.f32 %v5528, %v6435
        %v6511 = vadd.f32 %v5532, %v6439
        %v6512 = vadd.f32 %v5534, %v6441
        %v6513 = vadd.f32 %v5536, %v6443
        %v6514 = vadd.f32 %v5538, %v6445
        %v6515 = vadd.f32 %v5542, %v6449
        %v6516 = vadd.f32 %v5544, %v6451
        %v6517 = vadd.f32 %v5546, %v6453
        %v6518 = vadd.f32 %v5548, %v6455
        %v6519 = vadd.f32 %v5552, %v6459
        %v6520 = vadd.f32 %v5554, %v6461
        %v6521 = vadd.f32 %v5556, %v6463
        %v6522 = vadd.f32 %v5558, %v6465
        %v6523 = vadd.f32 %v5562, %v6469
        %v6524 = vadd.f32 %v5564, %v6471
        %v6525 = vadd.f32 %v5566, %v6473
        %v6526 = vadd.f32 %v5568, %v6475
        %v6527 = vadd.f32 %v5572, %v6479
        %v6528 = vadd.f32 %v5574, %v6481
        %v6529 = vadd.f32 %v5576, %v6483
        %v6530 = vadd.f32 %v5578, %v6485
        %v6531 = vadd.f32 %v5582, %v6489
        %v6532 = vadd.f32 %v5584, %v6491
        %v6533 = vadd.f32 %v5586, %v6493
        %v6534 = vadd.f32 %v5588, %v6495
        %v6535 = vadd.f32 %v5592, %v6499
        %v6536 = vadd.f32 %v5594, %v6501
        %v6537 = vadd.f32 %v5596, %v6503
        %v6538 = vadd.f32 %v5598, %v6505
        %v6539 = vadd.f32 %v6507, %v928
        %v6540 = vadd.f32 %v6508, %v932
        %v6541 = vadd.f32 %v6509, %v928
        %v6542 = vadd.f32 %v6510, %v932
        %v6543 = vadd.f32 %v6511, %v928
        %v6544 = vadd.f32 %v6512, %v932
        %v6545 = vadd.f32 %v6513, %v928
        %v6546 = vadd.f32 %v6514, %v932
        %v6547 = vadd.f32 %v6515, %v928
        %v6548 = vadd.f32 %v6516, %v932
        %v6549 = vadd.f32 %v6517, %v928
        %v6550 = vadd.f32 %v6518, %v932
        %v6551 = vadd.f32 %v6519, %v928
        %v6552 = vadd.f32 %v6520, %v932
        %v6553 = vadd.f32 %v6521, %v928
        %v6554 = vadd.f32 %v6522, %v932
        %v6555 = vadd.f32 %v6523, %v928
        %v6556 = vadd.f32 %v6524, %v932
        %v6557 = vadd.f32 %v6525, %v928
        %v6558 = vadd.f32 %v6526, %v932
        %v6559 = vadd.f32 %v6527, %v928
        %v6560 = vadd.f32 %v6528, %v932
        %v6561 = vadd.f32 %v6529, %v928
        %v6562 = vadd.f32 %v6530, %v932
        %v6563 = vadd.f32 %v6531, %v928
        %v6564 = vadd.f32 %v6532, %v932
        %v6565 = vadd.f32 %v6533, %v928
        %v6566 = vadd.f32 %v6534, %v932
        %v6567 = vadd.f32 %v6535, %v928
        %v6568 = vadd.f32 %v6536, %v932
        %v6569 = vadd.f32 %v6537, %v928
        %v6570 = vadd.f32 %v6538, %v932
        %v6571 = vmax.f32 %v6539, 0.0
        %v6572 = vmax.f32 %v6540, 0.0
        %v6573 = vmax.f32 %v6541, 0.0
        %v6574 = vmax.f32 %v6542, 0.0
        %v6575 = vmax.f32 %v6543, 0.0
        %v6576 = vmax.f32 %v6544, 0.0
        %v6577 = vmax.f32 %v6545, 0.0
        %v6578 = vmax.f32 %v6546, 0.0
        %v6579 = vmax.f32 %v6547, 0.0
        %v6580 = vmax.f32 %v6548, 0.0
        %v6581 = vmax.f32 %v6549, 0.0
        %v6582 = vmax.f32 %v6550, 0.0
        %v6583 = vmax.f32 %v6551, 0.0
        %v6584 = vmax.f32 %v6552, 0.0
        %v6585 = vmax.f32 %v6553, 0.0
        %v6586 = vmax.f32 %v6554, 0.0
        %v6587 = vmax.f32 %v6555, 0.0
        %v6588 = vmax.f32 %v6556, 0.0
        %v6589 = vmax.f32 %v6557, 0.0
        %v6590 = vmax.f32 %v6558, 0.0
        %v6591 = vmax.f32 %v6559, 0.0
        %v6592 = vmax.f32 %v6560, 0.0
        %v6593 = vmax.f32 %v6561, 0.0
        %v6594 = vmax.f32 %v6562, 0.0
        %v6595 = vmax.f32 %v6563, 0.0
        %v6596 = vmax.f32 %v6564, 0.0
        %v6597 = vmax.f32 %v6565, 0.0
        %v6598 = vmax.f32 %v6566, 0.0
        %v6599 = vmax.f32 %v6567, 0.0
        %v6600 = vmax.f32 %v6568, 0.0
        %v6601 = vmax.f32 %v6569, 0.0
        %v6602 = vmax.f32 %v6570, 0.0
        %v6603 = vpack.c.bf16 %v6573, %v6571
        %v6604 = vpack.c.bf16 %v6574, %v6572
        %v6605 = vpack.c.bf16 %v6577, %v6575
        %v6606 = vpack.c.bf16 %v6578, %v6576
        %v6607 = vpack.c.bf16 %v6581, %v6579
        %v6608 = vpack.c.bf16 %v6582, %v6580
        %v6609 = vpack.c.bf16 %v6585, %v6583
        %v6610 = vpack.c.bf16 %v6586, %v6584
        %v6611 = vpack.c.bf16 %v6589, %v6587
        %v6612 = vpack.c.bf16 %v6590, %v6588
        %v6613 = vpack.c.bf16 %v6593, %v6591
        %v6614 = vpack.c.bf16 %v6594, %v6592
        %v6615 = vpack.c.bf16 %v6597, %v6595
        %v6616 = vpack.c.bf16 %v6598, %v6596
        %v6617 = vpack.c.bf16 %v6601, %v6599
        %v6618 = vpack.c.bf16 %v6602, %v6600
        %s6619 = scalar_lea.vmem [#allocation3], 432
        %6620 = vst [vmem:[%s6619 + $0x10] sm:$0xff] %v6603
        %6621 = vst [vmem:[%s6619 + $0x18] sm:$0xff] %v6604
        %6622 = vst [vmem:[%s6619 + $0x40] sm:$0xff] %v6605
        %6623 = vst [vmem:[%s6619 + $0x48] sm:$0xff] %v6606
        %6624 = vst [vmem:[%s6619 + $0x70] sm:$0xff] %v6607
        %6625 = vst [vmem:[%s6619 + $0x78] sm:$0xff] %v6608
        %6626 = vst [vmem:[%s6619 + $0xa0] sm:$0xff] %v6609
        %6627 = vst [vmem:[%s6619 + $0xa8] sm:$0xff] %v6610
        %6628 = vst [vmem:[%s6619 + $0xd0] sm:$0xff] %v6611
        %6629 = vst [vmem:[%s6619 + $0xd8] sm:$0xff] %v6612
        %6630 = vst [vmem:[%s6619 + $0x100] sm:$0xff] %v6613
        %6631 = vst [vmem:[%s6619 + $0x108] sm:$0xff] %v6614
        %6632 = vst [vmem:[%s6619 + $0x130] sm:$0xff] %v6615
        %6633 = vst [vmem:[%s6619 + $0x138] sm:$0xff] %v6616
        %6634 = vst [vmem:[%s6619 + $0x160] sm:$0xff] %v6617
        %6635 = vst [vmem:[%s6619 + $0x168] sm:$0xff] %v6618
        %v6636 = vld [vmem:[%s6] sm:$0x1]
        %v6638 = vlaneseq
        %v6639 = vshrl.u32 %v6638, 7
        %v6640 = vsub.s32 0, %v6639
        %v6641 = vrot.slane %v6636, %v6640
        %v6643 = vld [vmem:[#allocation3] sm:$0x80]
        %v6644 = vld [vmem:[#allocation3 + $0x8] sm:$0x80]
        %v6645 = vld [vmem:[#allocation3 + $0x10] sm:$0xff]
        %v6646 = vld [vmem:[#allocation3 + $0x18] sm:$0xff]
        %v6647 = vld [vmem:[#allocation3 + $0x30] sm:$0x80]
        %v6648 = vld [vmem:[#allocation3 + $0x38] sm:$0x80]
        %v6649 = vld [vmem:[#allocation3 + $0x40] sm:$0xff]
        %v6650 = vld [vmem:[#allocation3 + $0x48] sm:$0xff]
        %v6651 = vld [vmem:[#allocation3 + $0x60] sm:$0x80]
        %v6652 = vld [vmem:[#allocation3 + $0x68] sm:$0x80]
        %v6653 = vld [vmem:[#allocation3 + $0x70] sm:$0xff]
        %v6654 = vld [vmem:[#allocation3 + $0x78] sm:$0xff]
        %v6655 = vld [vmem:[#allocation3 + $0x90] sm:$0x80]
        %v6656 = vld [vmem:[#allocation3 + $0x98] sm:$0x80]
        %v6657 = vld [vmem:[#allocation3 + $0xa0] sm:$0xff]
        %v6658 = vld [vmem:[#allocation3 + $0xa8] sm:$0xff]
        %v6659 = vld [vmem:[#allocation3 + $0xc0] sm:$0x80]
        %v6660 = vld [vmem:[#allocation3 + $0xc8] sm:$0x80]
        %v6661 = vld [vmem:[#allocation3 + $0xd0] sm:$0xff]
        %v6662 = vld [vmem:[#allocation3 + $0xd8] sm:$0xff]
        %v6663 = vld [vmem:[#allocation3 + $0xf0] sm:$0x80]
        %v6664 = vld [vmem:[#allocation3 + $0xf8] sm:$0x80]
        %v6665 = vld [vmem:[#allocation3 + $0x100] sm:$0xff]
        %v6666 = vld [vmem:[#allocation3 + $0x108] sm:$0xff]
        %v6667 = vld [vmem:[#allocation3 + $0x120] sm:$0x80]
        %v6668 = vld [vmem:[#allocation3 + $0x128] sm:$0x80]
        %v6669 = vld [vmem:[#allocation3 + $0x130] sm:$0xff]
        %v6670 = vld [vmem:[#allocation3 + $0x138] sm:$0xff]
        %v6671 = vld [vmem:[#allocation3 + $0x150] sm:$0x80]
        %v6672 = vld [vmem:[#allocation3 + $0x158] sm:$0x80]
        %v6673 = vld [vmem:[#allocation3 + $0x160] sm:$0xff]
        %v6674 = vld [vmem:[#allocation3 + $0x168] sm:$0xff]
        %v6675 = vld [vmem:[#allocation3 + $0x180] sm:$0x80]
        %v6676 = vld [vmem:[#allocation3 + $0x188] sm:$0x80]
        %v6677 = vld [vmem:[#allocation3 + $0x190] sm:$0xff]
        %v6678 = vld [vmem:[#allocation3 + $0x198] sm:$0xff]
        %v6679 = vld [vmem:[#allocation3 + $0x1b0] sm:$0x80]
        %v6680 = vld [vmem:[#allocation3 + $0x1b8] sm:$0x80]
        %v6681 = vld [vmem:[#allocation3 + $0x1c0] sm:$0xff]
        %v6682 = vld [vmem:[#allocation3 + $0x1c8] sm:$0xff]
        %v6683 = vld [vmem:[#allocation3 + $0x1e0] sm:$0x80]
        %v6684 = vld [vmem:[#allocation3 + $0x1e8] sm:$0x80]
        %v6685 = vld [vmem:[#allocation3 + $0x1f0] sm:$0xff]
        %v6686 = vld [vmem:[#allocation3 + $0x1f8] sm:$0xff]
        %v6687 = vld [vmem:[#allocation3 + $0x210] sm:$0x80]
        %v6688 = vld [vmem:[#allocation3 + $0x218] sm:$0x80]
        %v6689 = vld [vmem:[#allocation3 + $0x220] sm:$0xff]
        %v6690 = vld [vmem:[#allocation3 + $0x228] sm:$0xff]
        %v6691 = vld [vmem:[#allocation3 + $0x240] sm:$0x80]
        %v6692 = vld [vmem:[#allocation3 + $0x248] sm:$0x80]
        %v6693 = vld [vmem:[#allocation3 + $0x250] sm:$0xff]
        %v6694 = vld [vmem:[#allocation3 + $0x258] sm:$0xff]
        %v6695 = vld [vmem:[#allocation3 + $0x270] sm:$0x80]
        %v6696 = vld [vmem:[#allocation3 + $0x278] sm:$0x80]
        %v6697 = vld [vmem:[#allocation3 + $0x280] sm:$0xff]
        %v6698 = vld [vmem:[#allocation3 + $0x288] sm:$0xff]
        %v6699 = vld [vmem:[#allocation3 + $0x2a0] sm:$0x80]
        %v6700 = vld [vmem:[#allocation3 + $0x2a8] sm:$0x80]
        %v6701 = vld [vmem:[#allocation3 + $0x2b0] sm:$0xff]
        %v6702 = vld [vmem:[#allocation3 + $0x2b8] sm:$0xff]
        %v6703 = vld [vmem:[#allocation3 + $0x2d0] sm:$0x80]
        %v6704 = vld [vmem:[#allocation3 + $0x2d8] sm:$0x80]
        %v6705 = vld [vmem:[#allocation3 + $0x2e0] sm:$0xff]
        %v6706 = vld [vmem:[#allocation3 + $0x2e8] sm:$0xff]
        %v6707 = vld [vmem:[#allocation3 + $0x20] sm:$0x1]
        %v6708 = vld [vmem:[#allocation3 + $0x28] sm:$0x1]
        %v6709 = vld [vmem:[#allocation3 + $0x50] sm:$0x1]
        %v6710 = vld [vmem:[#allocation3 + $0x58] sm:$0x1]
        %v6711 = vld [vmem:[#allocation3 + $0x80] sm:$0x1]
        %v6712 = vld [vmem:[#allocation3 + $0x88] sm:$0x1]
        %v6713 = vld [vmem:[#allocation3 + $0xb0] sm:$0x1]
        %v6714 = vld [vmem:[#allocation3 + $0xb8] sm:$0x1]
        %v6715 = vld [vmem:[#allocation3 + $0xe0] sm:$0x1]
        %v6716 = vld [vmem:[#allocation3 + $0xe8] sm:$0x1]
        %v6717 = vld [vmem:[#allocation3 + $0x110] sm:$0x1]
        %v6718 = vld [vmem:[#allocation3 + $0x118] sm:$0x1]
        %v6719 = vld [vmem:[#allocation3 + $0x140] sm:$0x1]
        %v6720 = vld [vmem:[#allocation3 + $0x148] sm:$0x1]
        %v6721 = vld [vmem:[#allocation3 + $0x170] sm:$0x1]
        %v6722 = vld [vmem:[#allocation3 + $0x178] sm:$0x1]
        %v6723 = vld [vmem:[#allocation3 + $0x1a0] sm:$0x1]
        %v6724 = vld [vmem:[#allocation3 + $0x1a8] sm:$0x1]
        %v6725 = vld [vmem:[#allocation3 + $0x1d0] sm:$0x1]
        %v6726 = vld [vmem:[#allocation3 + $0x1d8] sm:$0x1]
        %v6727 = vld [vmem:[#allocation3 + $0x200] sm:$0x1]
        %v6728 = vld [vmem:[#allocation3 + $0x208] sm:$0x1]
        %v6729 = vld [vmem:[#allocation3 + $0x230] sm:$0x1]
        %v6730 = vld [vmem:[#allocation3 + $0x238] sm:$0x1]
        %v6731 = vld [vmem:[#allocation3 + $0x260] sm:$0x1]
        %v6732 = vld [vmem:[#allocation3 + $0x268] sm:$0x1]
        %v6733 = vld [vmem:[#allocation3 + $0x290] sm:$0x1]
        %v6734 = vld [vmem:[#allocation3 + $0x298] sm:$0x1]
        %v6735 = vld [vmem:[#allocation3 + $0x2c0] sm:$0x1]
        %v6736 = vld [vmem:[#allocation3 + $0x2c8] sm:$0x1]
        %v6737 = vld [vmem:[#allocation3 + $0x2f0] sm:$0x1]
        %v6738 = vld [vmem:[#allocation3 + $0x2f8] sm:$0x1]
        %v6740 = vshll.u32 %v6645, 16
        %v6742 = vrot.slane %v6740, 1
        %v6744 = vshll.u32 %v6646, 16
        %v6746 = vrot.slane %v6744, 1
        %v6747 = vshrl.u32 %v6645, 16
        %v6749 = vor.u32 %v6747, %v6742
        %v6750 = vshrl.u32 %v6646, 16
        %v6752 = vor.u32 %v6750, %v6746
        %v6754 = vshll.u32 %v6649, 16
        %v6756 = vrot.slane %v6754, 1
        %v6758 = vshll.u32 %v6650, 16
        %v6760 = vrot.slane %v6758, 1
        %v6761 = vshrl.u32 %v6649, 16
        %v6763 = vor.u32 %v6761, %v6756
        %v6764 = vshrl.u32 %v6650, 16
        %v6766 = vor.u32 %v6764, %v6760
        %v6768 = vshll.u32 %v6653, 16
        %v6770 = vrot.slane %v6768, 1
        %v6772 = vshll.u32 %v6654, 16
        %v6774 = vrot.slane %v6772, 1
        %v6775 = vshrl.u32 %v6653, 16
        %v6777 = vor.u32 %v6775, %v6770
        %v6778 = vshrl.u32 %v6654, 16
        %v6780 = vor.u32 %v6778, %v6774
        %v6782 = vshll.u32 %v6657, 16
        %v6784 = vrot.slane %v6782, 1
        %v6786 = vshll.u32 %v6658, 16
        %v6788 = vrot.slane %v6786, 1
        %v6789 = vshrl.u32 %v6657, 16
        %v6791 = vor.u32 %v6789, %v6784
        %v6792 = vshrl.u32 %v6658, 16
        %v6794 = vor.u32 %v6792, %v6788
        %v6796 = vshll.u32 %v6661, 16
        %v6798 = vrot.slane %v6796, 1
        %v6800 = vshll.u32 %v6662, 16
        %v6802 = vrot.slane %v6800, 1
        %v6803 = vshrl.u32 %v6661, 16
        %v6805 = vor.u32 %v6803, %v6798
        %v6806 = vshrl.u32 %v6662, 16
        %v6808 = vor.u32 %v6806, %v6802
        %v6810 = vshll.u32 %v6665, 16
        %v6812 = vrot.slane %v6810, 1
        %v6814 = vshll.u32 %v6666, 16
        %v6816 = vrot.slane %v6814, 1
        %v6817 = vshrl.u32 %v6665, 16
        %v6819 = vor.u32 %v6817, %v6812
        %v6820 = vshrl.u32 %v6666, 16
        %v6822 = vor.u32 %v6820, %v6816
        %v6824 = vshll.u32 %v6669, 16
        %v6826 = vrot.slane %v6824, 1
        %v6828 = vshll.u32 %v6670, 16
        %v6830 = vrot.slane %v6828, 1
        %v6831 = vshrl.u32 %v6669, 16
        %v6833 = vor.u32 %v6831, %v6826
        %v6834 = vshrl.u32 %v6670, 16
        %v6836 = vor.u32 %v6834, %v6830
        %v6838 = vshll.u32 %v6673, 16
        %v6840 = vrot.slane %v6838, 1
        %v6842 = vshll.u32 %v6674, 16
        %v6844 = vrot.slane %v6842, 1
        %v6845 = vshrl.u32 %v6673, 16
        %v6847 = vor.u32 %v6845, %v6840
        %v6848 = vshrl.u32 %v6674, 16
        %v6850 = vor.u32 %v6848, %v6844
        %v6852 = vshll.u32 %v6677, 16
        %v6854 = vrot.slane %v6852, 1
        %v6856 = vshll.u32 %v6678, 16
        %v6858 = vrot.slane %v6856, 1
        %v6859 = vshrl.u32 %v6677, 16
        %v6861 = vor.u32 %v6859, %v6854
        %v6862 = vshrl.u32 %v6678, 16
        %v6864 = vor.u32 %v6862, %v6858
        %v6866 = vshll.u32 %v6681, 16
        %v6868 = vrot.slane %v6866, 1
        %v6870 = vshll.u32 %v6682, 16
        %v6872 = vrot.slane %v6870, 1
        %v6873 = vshrl.u32 %v6681, 16
        %v6875 = vor.u32 %v6873, %v6868
        %v6876 = vshrl.u32 %v6682, 16
        %v6878 = vor.u32 %v6876, %v6872
        %v6880 = vshll.u32 %v6685, 16
        %v6882 = vrot.slane %v6880, 1
        %v6884 = vshll.u32 %v6686, 16
        %v6886 = vrot.slane %v6884, 1
        %v6887 = vshrl.u32 %v6685, 16
        %v6889 = vor.u32 %v6887, %v6882
        %v6890 = vshrl.u32 %v6686, 16
        %v6892 = vor.u32 %v6890, %v6886
        %v6894 = vshll.u32 %v6689, 16
        %v6896 = vrot.slane %v6894, 1
        %v6898 = vshll.u32 %v6690, 16
        %v6900 = vrot.slane %v6898, 1
        %v6901 = vshrl.u32 %v6689, 16
        %v6903 = vor.u32 %v6901, %v6896
        %v6904 = vshrl.u32 %v6690, 16
        %v6906 = vor.u32 %v6904, %v6900
        %v6908 = vshll.u32 %v6693, 16
        %v6910 = vrot.slane %v6908, 1
        %v6912 = vshll.u32 %v6694, 16
        %v6914 = vrot.slane %v6912, 1
        %v6915 = vshrl.u32 %v6693, 16
        %v6917 = vor.u32 %v6915, %v6910
        %v6918 = vshrl.u32 %v6694, 16
        %v6920 = vor.u32 %v6918, %v6914
        %v6922 = vshll.u32 %v6697, 16
        %v6924 = vrot.slane %v6922, 1
        %v6926 = vshll.u32 %v6698, 16
        %v6928 = vrot.slane %v6926, 1
        %v6929 = vshrl.u32 %v6697, 16
        %v6931 = vor.u32 %v6929, %v6924
        %v6932 = vshrl.u32 %v6698, 16
        %v6934 = vor.u32 %v6932, %v6928
        %v6936 = vshll.u32 %v6701, 16
        %v6938 = vrot.slane %v6936, 1
        %v6940 = vshll.u32 %v6702, 16
        %v6942 = vrot.slane %v6940, 1
        %v6943 = vshrl.u32 %v6701, 16
        %v6945 = vor.u32 %v6943, %v6938
        %v6946 = vshrl.u32 %v6702, 16
        %v6948 = vor.u32 %v6946, %v6942
        %v6950 = vshll.u32 %v6705, 16
        %v6952 = vrot.slane %v6950, 1
        %v6954 = vshll.u32 %v6706, 16
        %v6956 = vrot.slane %v6954, 1
        %v6957 = vshrl.u32 %v6705, 16
        %v6959 = vor.u32 %v6957, %v6952
        %v6960 = vshrl.u32 %v6706, 16
        %v6962 = vor.u32 %v6960, %v6956
        %v7027 = vrot.slane %v6645, 1
        %v7028 = vrot.slane %v6646, 1
        %v7029 = vrot.slane %v6707, 1
        %v7030 = vsel %vm1031, %v7027, %v7029
        %v7031 = vrot.slane %v6708, 1
        %v7032 = vsel %vm1031, %v7028, %v7031
        %v7033 = vrot.slane %v6649, 1
        %v7034 = vrot.slane %v6650, 1
        %v7035 = vrot.slane %v6709, 1
        %v7036 = vsel %vm1031, %v7033, %v7035
        %v7037 = vrot.slane %v6710, 1
        %v7038 = vsel %vm1031, %v7034, %v7037
        %v7039 = vrot.slane %v6653, 1
        %v7040 = vrot.slane %v6654, 1
        %v7041 = vrot.slane %v6711, 1
        %v7042 = vsel %vm1031, %v7039, %v7041
        %v7043 = vrot.slane %v6712, 1
        %v7044 = vsel %vm1031, %v7040, %v7043
        %v7045 = vrot.slane %v6657, 1
        %v7046 = vrot.slane %v6658, 1
        %v7047 = vrot.slane %v6713, 1
        %v7048 = vsel %vm1031, %v7045, %v7047
        %v7049 = vrot.slane %v6714, 1
        %v7050 = vsel %vm1031, %v7046, %v7049
        %v7051 = vrot.slane %v6661, 1
        %v7052 = vrot.slane %v6662, 1
        %v7053 = vrot.slane %v6715, 1
        %v7054 = vsel %vm1031, %v7051, %v7053
        %v7055 = vrot.slane %v6716, 1
        %v7056 = vsel %vm1031, %v7052, %v7055
        %v7057 = vrot.slane %v6665, 1
        %v7058 = vrot.slane %v6666, 1
        %v7059 = vrot.slane %v6717, 1
        %v7060 = vsel %vm1031, %v7057, %v7059
        %v7061 = vrot.slane %v6718, 1
        %v7062 = vsel %vm1031, %v7058, %v7061
        %v7063 = vrot.slane %v6669, 1
        %v7064 = vrot.slane %v6670, 1
        %v7065 = vrot.slane %v6719, 1
        %v7066 = vsel %vm1031, %v7063, %v7065
        %v7067 = vrot.slane %v6720, 1
        %v7068 = vsel %vm1031, %v7064, %v7067
        %v7069 = vrot.slane %v6673, 1
        %v7070 = vrot.slane %v6674, 1
        %v7071 = vrot.slane %v6721, 1
        %v7072 = vsel %vm1031, %v7069, %v7071
        %v7073 = vrot.slane %v6722, 1
        %v7074 = vsel %vm1031, %v7070, %v7073
        %v7075 = vrot.slane %v6677, 1
        %v7076 = vrot.slane %v6678, 1
        %v7077 = vrot.slane %v6723, 1
        %v7078 = vsel %vm1031, %v7075, %v7077
        %v7079 = vrot.slane %v6724, 1
        %v7080 = vsel %vm1031, %v7076, %v7079
        %v7081 = vrot.slane %v6681, 1
        %v7082 = vrot.slane %v6682, 1
        %v7083 = vrot.slane %v6725, 1
        %v7084 = vsel %vm1031, %v7081, %v7083
        %v7085 = vrot.slane %v6726, 1
        %v7086 = vsel %vm1031, %v7082, %v7085
        %v7087 = vrot.slane %v6685, 1
        %v7088 = vrot.slane %v6686, 1
        %v7089 = vrot.slane %v6727, 1
        %v7090 = vsel %vm1031, %v7087, %v7089
        %v7091 = vrot.slane %v6728, 1
        %v7092 = vsel %vm1031, %v7088, %v7091
        %v7093 = vrot.slane %v6689, 1
        %v7094 = vrot.slane %v6690, 1
        %v7095 = vrot.slane %v6729, 1
        %v7096 = vsel %vm1031, %v7093, %v7095
        %v7097 = vrot.slane %v6730, 1
        %v7098 = vsel %vm1031, %v7094, %v7097
        %v7099 = vrot.slane %v6693, 1
        %v7100 = vrot.slane %v6694, 1
        %v7101 = vrot.slane %v6731, 1
        %v7102 = vsel %vm1031, %v7099, %v7101
        %v7103 = vrot.slane %v6732, 1
        %v7104 = vsel %vm1031, %v7100, %v7103
        %v7105 = vrot.slane %v6697, 1
        %v7106 = vrot.slane %v6698, 1
        %v7107 = vrot.slane %v6733, 1
        %v7108 = vsel %vm1031, %v7105, %v7107
        %v7109 = vrot.slane %v6734, 1
        %v7110 = vsel %vm1031, %v7106, %v7109
        %v7111 = vrot.slane %v6701, 1
        %v7112 = vrot.slane %v6702, 1
        %v7113 = vrot.slane %v6735, 1
        %v7114 = vsel %vm1031, %v7111, %v7113
        %v7115 = vrot.slane %v6736, 1
        %v7116 = vsel %vm1031, %v7112, %v7115
        %v7117 = vrot.slane %v6705, 1
        %v7118 = vrot.slane %v6706, 1
        %v7119 = vrot.slane %v6737, 1
        %v7120 = vsel %vm1031, %v7117, %v7119
        %v7121 = vrot.slane %v6738, 1
        %v7122 = vsel %vm1031, %v7118, %v7121
        %v7124 = vshrl.u32 %v6643, 16
        %v7126 = vrot.slane %v7124, 7
        %v7127 = vrot.slane %v6747, 7
        %v7128 = vor.u32 %v7127, %v6740
        %v7129 = vsel %vm1056, %v7126, %v7128
        %v7131 = vshrl.u32 %v6644, 16
        %v7133 = vrot.slane %v7131, 7
        %v7134 = vrot.slane %v6750, 7
        %v7135 = vor.u32 %v7134, %v6744
        %v7136 = vsel %vm1056, %v7133, %v7135
        %v7138 = vshrl.u32 %v6742, 16
        %v7140 = vrot.slane %v7138, 7
        %v7142 = vshrl.u32 %v6749, 16
        %v7144 = vrot.slane %v7142, 7
        %v7145 = vshll.u32 %v6749, 16
        %v7147 = vor.u32 %v7144, %v7145
        %v7148 = vsel %vm1056, %v7140, %v7147
        %v7150 = vshrl.u32 %v6746, 16
        %v7152 = vrot.slane %v7150, 7
        %v7154 = vshrl.u32 %v6752, 16
        %v7156 = vrot.slane %v7154, 7
        %v7157 = vshll.u32 %v6752, 16
        %v7159 = vor.u32 %v7156, %v7157
        %v7160 = vsel %vm1056, %v7152, %v7159
        %v7162 = vshrl.u32 %v7027, 16
        %v7164 = vrot.slane %v7162, 7
        %v7166 = vshrl.u32 %v7030, 16
        %v7168 = vrot.slane %v7166, 7
        %v7169 = vshll.u32 %v7030, 16
        %v7171 = vor.u32 %v7168, %v7169
        %v7172 = vsel %vm1056, %v7164, %v7171
        %v7174 = vshrl.u32 %v7028, 16
        %v7176 = vrot.slane %v7174, 7
        %v7178 = vshrl.u32 %v7032, 16
        %v7180 = vrot.slane %v7178, 7
        %v7181 = vshll.u32 %v7032, 16
        %v7183 = vor.u32 %v7180, %v7181
        %v7184 = vsel %vm1056, %v7176, %v7183
        %v7186 = vshrl.u32 %v6647, 16
        %v7188 = vrot.slane %v7186, 7
        %v7189 = vrot.slane %v6761, 7
        %v7190 = vor.u32 %v7189, %v6754
        %v7191 = vsel %vm1056, %v7188, %v7190
        %v7193 = vshrl.u32 %v6648, 16
        %v7195 = vrot.slane %v7193, 7
        %v7196 = vrot.slane %v6764, 7
        %v7197 = vor.u32 %v7196, %v6758
        %v7198 = vsel %vm1056, %v7195, %v7197
        %v7200 = vshrl.u32 %v6756, 16
        %v7202 = vrot.slane %v7200, 7
        %v7204 = vshrl.u32 %v6763, 16
        %v7206 = vrot.slane %v7204, 7
        %v7207 = vshll.u32 %v6763, 16
        %v7209 = vor.u32 %v7206, %v7207
        %v7210 = vsel %vm1056, %v7202, %v7209
        %v7212 = vshrl.u32 %v6760, 16
        %v7214 = vrot.slane %v7212, 7
        %v7216 = vshrl.u32 %v6766, 16
        %v7218 = vrot.slane %v7216, 7
        %v7219 = vshll.u32 %v6766, 16
        %v7221 = vor.u32 %v7218, %v7219
        %v7222 = vsel %vm1056, %v7214, %v7221
        %v7224 = vshrl.u32 %v7033, 16
        %v7226 = vrot.slane %v7224, 7
        %v7228 = vshrl.u32 %v7036, 16
        %v7230 = vrot.slane %v7228, 7
        %v7231 = vshll.u32 %v7036, 16
        %v7233 = vor.u32 %v7230, %v7231
        %v7234 = vsel %vm1056, %v7226, %v7233
        %v7236 = vshrl.u32 %v7034, 16
        %v7238 = vrot.slane %v7236, 7
        %v7240 = vshrl.u32 %v7038, 16
        %v7242 = vrot.slane %v7240, 7
        %v7243 = vshll.u32 %v7038, 16
        %v7245 = vor.u32 %v7242, %v7243
        %v7246 = vsel %vm1056, %v7238, %v7245
        %v7248 = vshrl.u32 %v6651, 16
        %v7250 = vrot.slane %v7248, 7
        %v7251 = vrot.slane %v6775, 7
        %v7252 = vor.u32 %v7251, %v6768
        %v7253 = vsel %vm1056, %v7250, %v7252
        %v7255 = vshrl.u32 %v6652, 16
        %v7257 = vrot.slane %v7255, 7
        %v7258 = vrot.slane %v6778, 7
        %v7259 = vor.u32 %v7258, %v6772
        %v7260 = vsel %vm1056, %v7257, %v7259
        %v7262 = vshrl.u32 %v6770, 16
        %v7264 = vrot.slane %v7262, 7
        %v7266 = vshrl.u32 %v6777, 16
        %v7268 = vrot.slane %v7266, 7
        %v7269 = vshll.u32 %v6777, 16
        %v7271 = vor.u32 %v7268, %v7269
        %v7272 = vsel %vm1056, %v7264, %v7271
        %v7274 = vshrl.u32 %v6774, 16
        %v7276 = vrot.slane %v7274, 7
        %v7278 = vshrl.u32 %v6780, 16
        %v7280 = vrot.slane %v7278, 7
        %v7281 = vshll.u32 %v6780, 16
        %v7283 = vor.u32 %v7280, %v7281
        %v7284 = vsel %vm1056, %v7276, %v7283
        %v7286 = vshrl.u32 %v7039, 16
        %v7288 = vrot.slane %v7286, 7
        %v7290 = vshrl.u32 %v7042, 16
        %v7292 = vrot.slane %v7290, 7
        %v7293 = vshll.u32 %v7042, 16
        %v7295 = vor.u32 %v7292, %v7293
        %v7296 = vsel %vm1056, %v7288, %v7295
        %v7298 = vshrl.u32 %v7040, 16
        %v7300 = vrot.slane %v7298, 7
        %v7302 = vshrl.u32 %v7044, 16
        %v7304 = vrot.slane %v7302, 7
        %v7305 = vshll.u32 %v7044, 16
        %v7307 = vor.u32 %v7304, %v7305
        %v7308 = vsel %vm1056, %v7300, %v7307
        %v7310 = vshrl.u32 %v6655, 16
        %v7312 = vrot.slane %v7310, 7
        %v7313 = vrot.slane %v6789, 7
        %v7314 = vor.u32 %v7313, %v6782
        %v7315 = vsel %vm1056, %v7312, %v7314
        %v7317 = vshrl.u32 %v6656, 16
        %v7319 = vrot.slane %v7317, 7
        %v7320 = vrot.slane %v6792, 7
        %v7321 = vor.u32 %v7320, %v6786
        %v7322 = vsel %vm1056, %v7319, %v7321
        %v7324 = vshrl.u32 %v6784, 16
        %v7326 = vrot.slane %v7324, 7
        %v7328 = vshrl.u32 %v6791, 16
        %v7330 = vrot.slane %v7328, 7
        %v7331 = vshll.u32 %v6791, 16
        %v7333 = vor.u32 %v7330, %v7331
        %v7334 = vsel %vm1056, %v7326, %v7333
        %v7336 = vshrl.u32 %v6788, 16
        %v7338 = vrot.slane %v7336, 7
        %v7340 = vshrl.u32 %v6794, 16
        %v7342 = vrot.slane %v7340, 7
        %v7343 = vshll.u32 %v6794, 16
        %v7345 = vor.u32 %v7342, %v7343
        %v7346 = vsel %vm1056, %v7338, %v7345
        %v7348 = vshrl.u32 %v7045, 16
        %v7350 = vrot.slane %v7348, 7
        %v7352 = vshrl.u32 %v7048, 16
        %v7354 = vrot.slane %v7352, 7
        %v7355 = vshll.u32 %v7048, 16
        %v7357 = vor.u32 %v7354, %v7355
        %v7358 = vsel %vm1056, %v7350, %v7357
        %v7360 = vshrl.u32 %v7046, 16
        %v7362 = vrot.slane %v7360, 7
        %v7364 = vshrl.u32 %v7050, 16
        %v7366 = vrot.slane %v7364, 7
        %v7367 = vshll.u32 %v7050, 16
        %v7369 = vor.u32 %v7366, %v7367
        %v7370 = vsel %vm1056, %v7362, %v7369
        %v7372 = vshrl.u32 %v6659, 16
        %v7374 = vrot.slane %v7372, 7
        %v7375 = vrot.slane %v6803, 7
        %v7376 = vor.u32 %v7375, %v6796
        %v7377 = vsel %vm1056, %v7374, %v7376
        %v7379 = vshrl.u32 %v6660, 16
        %v7381 = vrot.slane %v7379, 7
        %v7382 = vrot.slane %v6806, 7
        %v7383 = vor.u32 %v7382, %v6800
        %v7384 = vsel %vm1056, %v7381, %v7383
        %v7386 = vshrl.u32 %v6798, 16
        %v7388 = vrot.slane %v7386, 7
        %v7390 = vshrl.u32 %v6805, 16
        %v7392 = vrot.slane %v7390, 7
        %v7393 = vshll.u32 %v6805, 16
        %v7395 = vor.u32 %v7392, %v7393
        %v7396 = vsel %vm1056, %v7388, %v7395
        %v7398 = vshrl.u32 %v6802, 16
        %v7400 = vrot.slane %v7398, 7
        %v7402 = vshrl.u32 %v6808, 16
        %v7404 = vrot.slane %v7402, 7
        %v7405 = vshll.u32 %v6808, 16
        %v7407 = vor.u32 %v7404, %v7405
        %v7408 = vsel %vm1056, %v7400, %v7407
        %v7410 = vshrl.u32 %v7051, 16
        %v7412 = vrot.slane %v7410, 7
        %v7414 = vshrl.u32 %v7054, 16
        %v7416 = vrot.slane %v7414, 7
        %v7417 = vshll.u32 %v7054, 16
        %v7419 = vor.u32 %v7416, %v7417
        %v7420 = vsel %vm1056, %v7412, %v7419
        %v7422 = vshrl.u32 %v7052, 16
        %v7424 = vrot.slane %v7422, 7
        %v7426 = vshrl.u32 %v7056, 16
        %v7428 = vrot.slane %v7426, 7
        %v7429 = vshll.u32 %v7056, 16
        %v7431 = vor.u32 %v7428, %v7429
        %v7432 = vsel %vm1056, %v7424, %v7431
        %v7434 = vshrl.u32 %v6663, 16
        %v7436 = vrot.slane %v7434, 7
        %v7437 = vrot.slane %v6817, 7
        %v7438 = vor.u32 %v7437, %v6810
        %v7439 = vsel %vm1056, %v7436, %v7438
        %v7441 = vshrl.u32 %v6664, 16
        %v7443 = vrot.slane %v7441, 7
        %v7444 = vrot.slane %v6820, 7
        %v7445 = vor.u32 %v7444, %v6814
        %v7446 = vsel %vm1056, %v7443, %v7445
        %v7448 = vshrl.u32 %v6812, 16
        %v7450 = vrot.slane %v7448, 7
        %v7452 = vshrl.u32 %v6819, 16
        %v7454 = vrot.slane %v7452, 7
        %v7455 = vshll.u32 %v6819, 16
        %v7457 = vor.u32 %v7454, %v7455
        %v7458 = vsel %vm1056, %v7450, %v7457
        %v7460 = vshrl.u32 %v6816, 16
        %v7462 = vrot.slane %v7460, 7
        %v7464 = vshrl.u32 %v6822, 16
        %v7466 = vrot.slane %v7464, 7
        %v7467 = vshll.u32 %v6822, 16
        %v7469 = vor.u32 %v7466, %v7467
        %v7470 = vsel %vm1056, %v7462, %v7469
        %v7472 = vshrl.u32 %v7057, 16
        %v7474 = vrot.slane %v7472, 7
        %v7476 = vshrl.u32 %v7060, 16
        %v7478 = vrot.slane %v7476, 7
        %v7479 = vshll.u32 %v7060, 16
        %v7481 = vor.u32 %v7478, %v7479
        %v7482 = vsel %vm1056, %v7474, %v7481
        %v7484 = vshrl.u32 %v7058, 16
        %v7486 = vrot.slane %v7484, 7
        %v7488 = vshrl.u32 %v7062, 16
        %v7490 = vrot.slane %v7488, 7
        %v7491 = vshll.u32 %v7062, 16
        %v7493 = vor.u32 %v7490, %v7491
        %v7494 = vsel %vm1056, %v7486, %v7493
        %v7496 = vshrl.u32 %v6667, 16
        %v7498 = vrot.slane %v7496, 7
        %v7499 = vrot.slane %v6831, 7
        %v7500 = vor.u32 %v7499, %v6824
        %v7501 = vsel %vm1056, %v7498, %v7500
        %v7503 = vshrl.u32 %v6668, 16
        %v7505 = vrot.slane %v7503, 7
        %v7506 = vrot.slane %v6834, 7
        %v7507 = vor.u32 %v7506, %v6828
        %v7508 = vsel %vm1056, %v7505, %v7507
        %v7510 = vshrl.u32 %v6826, 16
        %v7512 = vrot.slane %v7510, 7
        %v7514 = vshrl.u32 %v6833, 16
        %v7516 = vrot.slane %v7514, 7
        %v7517 = vshll.u32 %v6833, 16
        %v7519 = vor.u32 %v7516, %v7517
        %v7520 = vsel %vm1056, %v7512, %v7519
        %v7522 = vshrl.u32 %v6830, 16
        %v7524 = vrot.slane %v7522, 7
        %v7526 = vshrl.u32 %v6836, 16
        %v7528 = vrot.slane %v7526, 7
        %v7529 = vshll.u32 %v6836, 16
        %v7531 = vor.u32 %v7528, %v7529
        %v7532 = vsel %vm1056, %v7524, %v7531
        %v7534 = vshrl.u32 %v7063, 16
        %v7536 = vrot.slane %v7534, 7
        %v7538 = vshrl.u32 %v7066, 16
        %v7540 = vrot.slane %v7538, 7
        %v7541 = vshll.u32 %v7066, 16
        %v7543 = vor.u32 %v7540, %v7541
        %v7544 = vsel %vm1056, %v7536, %v7543
        %v7546 = vshrl.u32 %v7064, 16
        %v7548 = vrot.slane %v7546, 7
        %v7550 = vshrl.u32 %v7068, 16
        %v7552 = vrot.slane %v7550, 7
        %v7553 = vshll.u32 %v7068, 16
        %v7555 = vor.u32 %v7552, %v7553
        %v7556 = vsel %vm1056, %v7548, %v7555
        %v7558 = vshrl.u32 %v6671, 16
        %v7560 = vrot.slane %v7558, 7
        %v7561 = vrot.slane %v6845, 7
        %v7562 = vor.u32 %v7561, %v6838
        %v7563 = vsel %vm1056, %v7560, %v7562
        %v7565 = vshrl.u32 %v6672, 16
        %v7567 = vrot.slane %v7565, 7
        %v7568 = vrot.slane %v6848, 7
        %v7569 = vor.u32 %v7568, %v6842
        %v7570 = vsel %vm1056, %v7567, %v7569
        %v7572 = vshrl.u32 %v6840, 16
        %v7574 = vrot.slane %v7572, 7
        %v7576 = vshrl.u32 %v6847, 16
        %v7578 = vrot.slane %v7576, 7
        %v7579 = vshll.u32 %v6847, 16
        %v7581 = vor.u32 %v7578, %v7579
        %v7582 = vsel %vm1056, %v7574, %v7581
        %v7584 = vshrl.u32 %v6844, 16
        %v7586 = vrot.slane %v7584, 7
        %v7588 = vshrl.u32 %v6850, 16
        %v7590 = vrot.slane %v7588, 7
        %v7591 = vshll.u32 %v6850, 16
        %v7593 = vor.u32 %v7590, %v7591
        %v7594 = vsel %vm1056, %v7586, %v7593
        %v7596 = vshrl.u32 %v7069, 16
        %v7598 = vrot.slane %v7596, 7
        %v7600 = vshrl.u32 %v7072, 16
        %v7602 = vrot.slane %v7600, 7
        %v7603 = vshll.u32 %v7072, 16
        %v7605 = vor.u32 %v7602, %v7603
        %v7606 = vsel %vm1056, %v7598, %v7605
        %v7608 = vshrl.u32 %v7070, 16
        %v7610 = vrot.slane %v7608, 7
        %v7612 = vshrl.u32 %v7074, 16
        %v7614 = vrot.slane %v7612, 7
        %v7615 = vshll.u32 %v7074, 16
        %v7617 = vor.u32 %v7614, %v7615
        %v7618 = vsel %vm1056, %v7610, %v7617
        %v7620 = vshrl.u32 %v6675, 16
        %v7622 = vrot.slane %v7620, 7
        %v7623 = vrot.slane %v6859, 7
        %v7624 = vor.u32 %v7623, %v6852
        %v7625 = vsel %vm1056, %v7622, %v7624
        %v7627 = vshrl.u32 %v6676, 16
        %v7629 = vrot.slane %v7627, 7
        %v7630 = vrot.slane %v6862, 7
        %v7631 = vor.u32 %v7630, %v6856
        %v7632 = vsel %vm1056, %v7629, %v7631
        %v7634 = vshrl.u32 %v6854, 16
        %v7636 = vrot.slane %v7634, 7
        %v7638 = vshrl.u32 %v6861, 16
        %v7640 = vrot.slane %v7638, 7
        %v7641 = vshll.u32 %v6861, 16
        %v7643 = vor.u32 %v7640, %v7641
        %v7644 = vsel %vm1056, %v7636, %v7643
        %v7646 = vshrl.u32 %v6858, 16
        %v7648 = vrot.slane %v7646, 7
        %v7650 = vshrl.u32 %v6864, 16
        %v7652 = vrot.slane %v7650, 7
        %v7653 = vshll.u32 %v6864, 16
        %v7655 = vor.u32 %v7652, %v7653
        %v7656 = vsel %vm1056, %v7648, %v7655
        %v7658 = vshrl.u32 %v7075, 16
        %v7660 = vrot.slane %v7658, 7
        %v7662 = vshrl.u32 %v7078, 16
        %v7664 = vrot.slane %v7662, 7
        %v7665 = vshll.u32 %v7078, 16
        %v7667 = vor.u32 %v7664, %v7665
        %v7668 = vsel %vm1056, %v7660, %v7667
        %v7670 = vshrl.u32 %v7076, 16
        %v7672 = vrot.slane %v7670, 7
        %v7674 = vshrl.u32 %v7080, 16
        %v7676 = vrot.slane %v7674, 7
        %v7677 = vshll.u32 %v7080, 16
        %v7679 = vor.u32 %v7676, %v7677
        %v7680 = vsel %vm1056, %v7672, %v7679
        %v7682 = vshrl.u32 %v6679, 16
        %v7684 = vrot.slane %v7682, 7
        %v7685 = vrot.slane %v6873, 7
        %v7686 = vor.u32 %v7685, %v6866
        %v7687 = vsel %vm1056, %v7684, %v7686
        %v7689 = vshrl.u32 %v6680, 16
        %v7691 = vrot.slane %v7689, 7
        %v7692 = vrot.slane %v6876, 7
        %v7693 = vor.u32 %v7692, %v6870
        %v7694 = vsel %vm1056, %v7691, %v7693
        %v7696 = vshrl.u32 %v6868, 16
        %v7698 = vrot.slane %v7696, 7
        %v7700 = vshrl.u32 %v6875, 16
        %v7702 = vrot.slane %v7700, 7
        %v7703 = vshll.u32 %v6875, 16
        %v7705 = vor.u32 %v7702, %v7703
        %v7706 = vsel %vm1056, %v7698, %v7705
        %v7708 = vshrl.u32 %v6872, 16
        %v7710 = vrot.slane %v7708, 7
        %v7712 = vshrl.u32 %v6878, 16
        %v7714 = vrot.slane %v7712, 7
        %v7715 = vshll.u32 %v6878, 16
        %v7717 = vor.u32 %v7714, %v7715
        %v7718 = vsel %vm1056, %v7710, %v7717
        %v7720 = vshrl.u32 %v7081, 16
        %v7722 = vrot.slane %v7720, 7
        %v7724 = vshrl.u32 %v7084, 16
        %v7726 = vrot.slane %v7724, 7
        %v7727 = vshll.u32 %v7084, 16
        %v7729 = vor.u32 %v7726, %v7727
        %v7730 = vsel %vm1056, %v7722, %v7729
        %v7732 = vshrl.u32 %v7082, 16
        %v7734 = vrot.slane %v7732, 7
        %v7736 = vshrl.u32 %v7086, 16
        %v7738 = vrot.slane %v7736, 7
        %v7739 = vshll.u32 %v7086, 16
        %v7741 = vor.u32 %v7738, %v7739
        %v7742 = vsel %vm1056, %v7734, %v7741
        %v7744 = vshrl.u32 %v6683, 16
        %v7746 = vrot.slane %v7744, 7
        %v7747 = vrot.slane %v6887, 7
        %v7748 = vor.u32 %v7747, %v6880
        %v7749 = vsel %vm1056, %v7746, %v7748
        %v7751 = vshrl.u32 %v6684, 16
        %v7753 = vrot.slane %v7751, 7
        %v7754 = vrot.slane %v6890, 7
        %v7755 = vor.u32 %v7754, %v6884
        %v7756 = vsel %vm1056, %v7753, %v7755
        %v7758 = vshrl.u32 %v6882, 16
        %v7760 = vrot.slane %v7758, 7
        %v7762 = vshrl.u32 %v6889, 16
        %v7764 = vrot.slane %v7762, 7
        %v7765 = vshll.u32 %v6889, 16
        %v7767 = vor.u32 %v7764, %v7765
        %v7768 = vsel %vm1056, %v7760, %v7767
        %v7770 = vshrl.u32 %v6886, 16
        %v7772 = vrot.slane %v7770, 7
        %v7774 = vshrl.u32 %v6892, 16
        %v7776 = vrot.slane %v7774, 7
        %v7777 = vshll.u32 %v6892, 16
        %v7779 = vor.u32 %v7776, %v7777
        %v7780 = vsel %vm1056, %v7772, %v7779
        %v7782 = vshrl.u32 %v7087, 16
        %v7784 = vrot.slane %v7782, 7
        %v7786 = vshrl.u32 %v7090, 16
        %v7788 = vrot.slane %v7786, 7
        %v7789 = vshll.u32 %v7090, 16
        %v7791 = vor.u32 %v7788, %v7789
        %v7792 = vsel %vm1056, %v7784, %v7791
        %v7794 = vshrl.u32 %v7088, 16
        %v7796 = vrot.slane %v7794, 7
        %v7798 = vshrl.u32 %v7092, 16
        %v7800 = vrot.slane %v7798, 7
        %v7801 = vshll.u32 %v7092, 16
        %v7803 = vor.u32 %v7800, %v7801
        %v7804 = vsel %vm1056, %v7796, %v7803
        %v7806 = vshrl.u32 %v6687, 16
        %v7808 = vrot.slane %v7806, 7
        %v7809 = vrot.slane %v6901, 7
        %v7810 = vor.u32 %v7809, %v6894
        %v7811 = vsel %vm1056, %v7808, %v7810
        %v7813 = vshrl.u32 %v6688, 16
        %v7815 = vrot.slane %v7813, 7
        %v7816 = vrot.slane %v6904, 7
        %v7817 = vor.u32 %v7816, %v6898
        %v7818 = vsel %vm1056, %v7815, %v7817
        %v7820 = vshrl.u32 %v6896, 16
        %v7822 = vrot.slane %v7820, 7
        %v7824 = vshrl.u32 %v6903, 16
        %v7826 = vrot.slane %v7824, 7
        %v7827 = vshll.u32 %v6903, 16
        %v7829 = vor.u32 %v7826, %v7827
        %v7830 = vsel %vm1056, %v7822, %v7829
        %v7832 = vshrl.u32 %v6900, 16
        %v7834 = vrot.slane %v7832, 7
        %v7836 = vshrl.u32 %v6906, 16
        %v7838 = vrot.slane %v7836, 7
        %v7839 = vshll.u32 %v6906, 16
        %v7841 = vor.u32 %v7838, %v7839
        %v7842 = vsel %vm1056, %v7834, %v7841
        %v7844 = vshrl.u32 %v7093, 16
        %v7846 = vrot.slane %v7844, 7
        %v7848 = vshrl.u32 %v7096, 16
        %v7850 = vrot.slane %v7848, 7
        %v7851 = vshll.u32 %v7096, 16
        %v7853 = vor.u32 %v7850, %v7851
        %v7854 = vsel %vm1056, %v7846, %v7853
        %v7856 = vshrl.u32 %v7094, 16
        %v7858 = vrot.slane %v7856, 7
        %v7860 = vshrl.u32 %v7098, 16
        %v7862 = vrot.slane %v7860, 7
        %v7863 = vshll.u32 %v7098, 16
        %v7865 = vor.u32 %v7862, %v7863
        %v7866 = vsel %vm1056, %v7858, %v7865
        %v7868 = vshrl.u32 %v6691, 16
        %v7870 = vrot.slane %v7868, 7
        %v7871 = vrot.slane %v6915, 7
        %v7872 = vor.u32 %v7871, %v6908
        %v7873 = vsel %vm1056, %v7870, %v7872
        %v7875 = vshrl.u32 %v6692, 16
        %v7877 = vrot.slane %v7875, 7
        %v7878 = vrot.slane %v6918, 7
        %v7879 = vor.u32 %v7878, %v6912
        %v7880 = vsel %vm1056, %v7877, %v7879
        %v7882 = vshrl.u32 %v6910, 16
        %v7884 = vrot.slane %v7882, 7
        %v7886 = vshrl.u32 %v6917, 16
        %v7888 = vrot.slane %v7886, 7
        %v7889 = vshll.u32 %v6917, 16
        %v7891 = vor.u32 %v7888, %v7889
        %v7892 = vsel %vm1056, %v7884, %v7891
        %v7894 = vshrl.u32 %v6914, 16
        %v7896 = vrot.slane %v7894, 7
        %v7898 = vshrl.u32 %v6920, 16
        %v7900 = vrot.slane %v7898, 7
        %v7901 = vshll.u32 %v6920, 16
        %v7903 = vor.u32 %v7900, %v7901
        %v7904 = vsel %vm1056, %v7896, %v7903
        %v7906 = vshrl.u32 %v7099, 16
        %v7908 = vrot.slane %v7906, 7
        %v7910 = vshrl.u32 %v7102, 16
        %v7912 = vrot.slane %v7910, 7
        %v7913 = vshll.u32 %v7102, 16
        %v7915 = vor.u32 %v7912, %v7913
        %v7916 = vsel %vm1056, %v7908, %v7915
        %v7918 = vshrl.u32 %v7100, 16
        %v7920 = vrot.slane %v7918, 7
        %v7922 = vshrl.u32 %v7104, 16
        %v7924 = vrot.slane %v7922, 7
        %v7925 = vshll.u32 %v7104, 16
        %v7927 = vor.u32 %v7924, %v7925
        %v7928 = vsel %vm1056, %v7920, %v7927
        %v7930 = vshrl.u32 %v6695, 16
        %v7932 = vrot.slane %v7930, 7
        %v7933 = vrot.slane %v6929, 7
        %v7934 = vor.u32 %v7933, %v6922
        %v7935 = vsel %vm1056, %v7932, %v7934
        %v7937 = vshrl.u32 %v6696, 16
        %v7939 = vrot.slane %v7937, 7
        %v7940 = vrot.slane %v6932, 7
        %v7941 = vor.u32 %v7940, %v6926
        %v7942 = vsel %vm1056, %v7939, %v7941
        %v7944 = vshrl.u32 %v6924, 16
        %v7946 = vrot.slane %v7944, 7
        %v7948 = vshrl.u32 %v6931, 16
        %v7950 = vrot.slane %v7948, 7
        %v7951 = vshll.u32 %v6931, 16
        %v7953 = vor.u32 %v7950, %v7951
        %v7954 = vsel %vm1056, %v7946, %v7953
        %v7956 = vshrl.u32 %v6928, 16
        %v7958 = vrot.slane %v7956, 7
        %v7960 = vshrl.u32 %v6934, 16
        %v7962 = vrot.slane %v7960, 7
        %v7963 = vshll.u32 %v6934, 16
        %v7965 = vor.u32 %v7962, %v7963
        %v7966 = vsel %vm1056, %v7958, %v7965
        %v7968 = vshrl.u32 %v7105, 16
        %v7970 = vrot.slane %v7968, 7
        %v7972 = vshrl.u32 %v7108, 16
        %v7974 = vrot.slane %v7972, 7
        %v7975 = vshll.u32 %v7108, 16
        %v7977 = vor.u32 %v7974, %v7975
        %v7978 = vsel %vm1056, %v7970, %v7977
        %v7980 = vshrl.u32 %v7106, 16
        %v7982 = vrot.slane %v7980, 7
        %v7984 = vshrl.u32 %v7110, 16
        %v7986 = vrot.slane %v7984, 7
        %v7987 = vshll.u32 %v7110, 16
        %v7989 = vor.u32 %v7986, %v7987
        %v7990 = vsel %vm1056, %v7982, %v7989
        %v7992 = vshrl.u32 %v6699, 16
        %v7994 = vrot.slane %v7992, 7
        %v7995 = vrot.slane %v6943, 7
        %v7996 = vor.u32 %v7995, %v6936
        %v7997 = vsel %vm1056, %v7994, %v7996
        %v7999 = vshrl.u32 %v6700, 16
        %v8001 = vrot.slane %v7999, 7
        %v8002 = vrot.slane %v6946, 7
        %v8003 = vor.u32 %v8002, %v6940
        %v8004 = vsel %vm1056, %v8001, %v8003
        %v8006 = vshrl.u32 %v6938, 16
        %v8008 = vrot.slane %v8006, 7
        %v8010 = vshrl.u32 %v6945, 16
        %v8012 = vrot.slane %v8010, 7
        %v8013 = vshll.u32 %v6945, 16
        %v8015 = vor.u32 %v8012, %v8013
        %v8016 = vsel %vm1056, %v8008, %v8015
        %v8018 = vshrl.u32 %v6942, 16
        %v8020 = vrot.slane %v8018, 7
        %v8022 = vshrl.u32 %v6948, 16
        %v8024 = vrot.slane %v8022, 7
        %v8025 = vshll.u32 %v6948, 16
        %v8027 = vor.u32 %v8024, %v8025
        %v8028 = vsel %vm1056, %v8020, %v8027
        %v8030 = vshrl.u32 %v7111, 16
        %v8032 = vrot.slane %v8030, 7
        %v8034 = vshrl.u32 %v7114, 16
        %v8036 = vrot.slane %v8034, 7
        %v8037 = vshll.u32 %v7114, 16
        %v8039 = vor.u32 %v8036, %v8037
        %v8040 = vsel %vm1056, %v8032, %v8039
        %v8042 = vshrl.u32 %v7112, 16
        %v8044 = vrot.slane %v8042, 7
        %v8046 = vshrl.u32 %v7116, 16
        %v8048 = vrot.slane %v8046, 7
        %v8049 = vshll.u32 %v7116, 16
        %v8051 = vor.u32 %v8048, %v8049
        %v8052 = vsel %vm1056, %v8044, %v8051
        %v8054 = vshrl.u32 %v6703, 16
        %v8056 = vrot.slane %v8054, 7
        %v8057 = vrot.slane %v6957, 7
        %v8058 = vor.u32 %v8057, %v6950
        %v8059 = vsel %vm1056, %v8056, %v8058
        %v8061 = vshrl.u32 %v6704, 16
        %v8063 = vrot.slane %v8061, 7
        %v8064 = vrot.slane %v6960, 7
        %v8065 = vor.u32 %v8064, %v6954
        %v8066 = vsel %vm1056, %v8063, %v8065
        %v8068 = vshrl.u32 %v6952, 16
        %v8070 = vrot.slane %v8068, 7
        %v8072 = vshrl.u32 %v6959, 16
        %v8074 = vrot.slane %v8072, 7
        %v8075 = vshll.u32 %v6959, 16
        %v8077 = vor.u32 %v8074, %v8075
        %v8078 = vsel %vm1056, %v8070, %v8077
        %v8080 = vshrl.u32 %v6956, 16
        %v8082 = vrot.slane %v8080, 7
        %v8084 = vshrl.u32 %v6962, 16
        %v8086 = vrot.slane %v8084, 7
        %v8087 = vshll.u32 %v6962, 16
        %v8089 = vor.u32 %v8086, %v8087
        %v8090 = vsel %vm1056, %v8082, %v8089
        %v8092 = vshrl.u32 %v7117, 16
        %v8094 = vrot.slane %v8092, 7
        %v8096 = vshrl.u32 %v7120, 16
        %v8098 = vrot.slane %v8096, 7
        %v8099 = vshll.u32 %v7120, 16
        %v8101 = vor.u32 %v8098, %v8099
        %v8102 = vsel %vm1056, %v8094, %v8101
        %v8104 = vshrl.u32 %v7118, 16
        %v8106 = vrot.slane %v8104, 7
        %v8108 = vshrl.u32 %v7122, 16
        %v8110 = vrot.slane %v8108, 7
        %v8111 = vshll.u32 %v7122, 16
        %v8113 = vor.u32 %v8110, %v8111
        %v8114 = vsel %vm1056, %v8106, %v8113
        %v8211 = vld [vmem:[#allocation10] sm:$0xf]
        %v8212 = vld [vmem:[#allocation10 + $0x4] sm:$0xf]
        %v8213 = vld [vmem:[#allocation10 + $0x8] sm:$0xf]
        %v8214 = vld [vmem:[#allocation10 + $0xc] sm:$0xf]
        %v8215 = vld [vmem:[#allocation10 + $0x10] sm:$0xf]
        %v8216 = vld [vmem:[#allocation10 + $0x14] sm:$0xf]
        %v8217 = vld [vmem:[#allocation10 + $0x18] sm:$0xf]
        %v8218 = vld [vmem:[#allocation10 + $0x1c] sm:$0xf]
        %v8219 = vld [vmem:[#allocation10 + $0x20] sm:$0xf]
        %v8220 = vld [vmem:[#allocation10 + $0x24] sm:$0xf]
        %v8221 = vld [vmem:[#allocation10 + $0x28] sm:$0xf]
        %v8222 = vld [vmem:[#allocation10 + $0x2c] sm:$0xf]
        %v8223 = vld [vmem:[#allocation10 + $0x30] sm:$0xf]
        %v8224 = vld [vmem:[#allocation10 + $0x34] sm:$0xf]
        %v8225 = vld [vmem:[#allocation10 + $0x38] sm:$0xf]
        %v8226 = vld [vmem:[#allocation10 + $0x3c] sm:$0xf]
        %v8227 = vld [vmem:[#allocation10 + $0x40] sm:$0xf]
        %v8228 = vld [vmem:[#allocation10 + $0x44] sm:$0xf]
        %v8229 = vld [vmem:[#allocation10 + $0x48] sm:$0xf]
        %v8230 = vld [vmem:[#allocation10 + $0x4c] sm:$0xf]
        %v8231 = vld [vmem:[#allocation10 + $0x50] sm:$0xf]
        %v8232 = vld [vmem:[#allocation10 + $0x54] sm:$0xf]
        %v8233 = vld [vmem:[#allocation10 + $0x58] sm:$0xf]
        %v8234 = vld [vmem:[#allocation10 + $0x5c] sm:$0xf]
        %v8235 = vld [vmem:[#allocation10 + $0x60] sm:$0xf]
        %v8236 = vld [vmem:[#allocation10 + $0x64] sm:$0xf]
        %v8237 = vld [vmem:[#allocation10 + $0x68] sm:$0xf]
        %v8238 = vld [vmem:[#allocation10 + $0x6c] sm:$0xf]
        %v8239 = vld [vmem:[#allocation10 + $0x70] sm:$0xf]
        %v8240 = vld [vmem:[#allocation10 + $0x74] sm:$0xf]
        %v8241 = vld [vmem:[#allocation10 + $0x78] sm:$0xf]
        %v8242 = vld [vmem:[#allocation10 + $0x7c] sm:$0xf]
        %v8243 = vld [vmem:[#allocation10 + $0x80] sm:$0xf]
        %v8244 = vld [vmem:[#allocation10 + $0x84] sm:$0xf]
        %v8245 = vld [vmem:[#allocation10 + $0x88] sm:$0xf]
        %v8246 = vld [vmem:[#allocation10 + $0x8c] sm:$0xf]
        %v8247 = vld [vmem:[#allocation10 + $0x90] sm:$0xf]
        %v8248 = vld [vmem:[#allocation10 + $0x94] sm:$0xf]
        %v8249 = vld [vmem:[#allocation10 + $0x98] sm:$0xf]
        %v8250 = vld [vmem:[#allocation10 + $0x9c] sm:$0xf]
        %v8251 = vld [vmem:[#allocation10 + $0xa0] sm:$0xf]
        %v8252 = vld [vmem:[#allocation10 + $0xa4] sm:$0xf]
        %v8253 = vld [vmem:[#allocation10 + $0xa8] sm:$0xf]
        %v8254 = vld [vmem:[#allocation10 + $0xac] sm:$0xf]
        %v8255 = vld [vmem:[#allocation10 + $0xb0] sm:$0xf]
        %v8256 = vld [vmem:[#allocation10 + $0xb4] sm:$0xf]
        %v8257 = vld [vmem:[#allocation10 + $0xb8] sm:$0xf]
        %v8258 = vld [vmem:[#allocation10 + $0xbc] sm:$0xf]
        %v8259 = vld [vmem:[#allocation10 + $0xc0] sm:$0xf]
        %v8260 = vld [vmem:[#allocation10 + $0xc4] sm:$0xf]
        %v8261 = vld [vmem:[#allocation10 + $0xc8] sm:$0xf]
        %v8262 = vld [vmem:[#allocation10 + $0xcc] sm:$0xf]
        %v8263 = vld [vmem:[#allocation10 + $0xd0] sm:$0xf]
        %v8264 = vld [vmem:[#allocation10 + $0xd4] sm:$0xf]
        %v8265 = vld [vmem:[#allocation10 + $0xd8] sm:$0xf]
        %v8266 = vld [vmem:[#allocation10 + $0xdc] sm:$0xf]
        %v8267 = vld [vmem:[#allocation10 + $0xe0] sm:$0xf]
        %v8268 = vld [vmem:[#allocation10 + $0xe4] sm:$0xf]
        %v8269 = vld [vmem:[#allocation10 + $0xe8] sm:$0xf]
        %v8270 = vld [vmem:[#allocation10 + $0xec] sm:$0xf]
        %v8271 = vld [vmem:[#allocation10 + $0xf0] sm:$0xf]
        %v8272 = vld [vmem:[#allocation10 + $0xf4] sm:$0xf]
        %v8273 = vld [vmem:[#allocation10 + $0xf8] sm:$0xf]
        %v8274 = vld [vmem:[#allocation10 + $0xfc] sm:$0xf]
        %v8275 = vld [vmem:[#allocation10 + $0x100] sm:$0xf]
        %v8276 = vld [vmem:[#allocation10 + $0x104] sm:$0xf]
        %v8277 = vld [vmem:[#allocation10 + $0x108] sm:$0xf]
        %v8278 = vld [vmem:[#allocation10 + $0x10c] sm:$0xf]
        %v8279 = vld [vmem:[#allocation10 + $0x110] sm:$0xf]
        %v8280 = vld [vmem:[#allocation10 + $0x114] sm:$0xf]
        %v8281 = vld [vmem:[#allocation10 + $0x118] sm:$0xf]
        %v8282 = vld [vmem:[#allocation10 + $0x11c] sm:$0xf]
        %v8283 = vld [vmem:[#allocation10 + $0x120] sm:$0xf]
        %v8284 = vld [vmem:[#allocation10 + $0x124] sm:$0xf]
        %v8285 = vld [vmem:[#allocation10 + $0x128] sm:$0xf]
        %v8286 = vld [vmem:[#allocation10 + $0x12c] sm:$0xf]
        %v8287 = vld [vmem:[#allocation10 + $0x130] sm:$0xf]
        %v8288 = vld [vmem:[#allocation10 + $0x134] sm:$0xf]
        %v8289 = vld [vmem:[#allocation10 + $0x138] sm:$0xf]
        %v8290 = vld [vmem:[#allocation10 + $0x13c] sm:$0xf]
        %v8291 = vld [vmem:[#allocation10 + $0x140] sm:$0xf]
        %v8292 = vld [vmem:[#allocation10 + $0x144] sm:$0xf]
        %v8293 = vld [vmem:[#allocation10 + $0x148] sm:$0xf]
        %v8294 = vld [vmem:[#allocation10 + $0x14c] sm:$0xf]
        %v8295 = vld [vmem:[#allocation10 + $0x150] sm:$0xf]
        %v8296 = vld [vmem:[#allocation10 + $0x154] sm:$0xf]
        %v8297 = vld [vmem:[#allocation10 + $0x158] sm:$0xf]
        %v8298 = vld [vmem:[#allocation10 + $0x15c] sm:$0xf]
        %v8299 = vld [vmem:[#allocation10 + $0x160] sm:$0xf]
        %v8300 = vld [vmem:[#allocation10 + $0x164] sm:$0xf]
        %v8301 = vld [vmem:[#allocation10 + $0x168] sm:$0xf]
        %v8302 = vld [vmem:[#allocation10 + $0x16c] sm:$0xf]
        %v8303 = vld [vmem:[#allocation10 + $0x170] sm:$0xf]
        %v8304 = vld [vmem:[#allocation10 + $0x174] sm:$0xf]
        %v8305 = vld [vmem:[#allocation10 + $0x178] sm:$0xf]
        %v8306 = vld [vmem:[#allocation10 + $0x17c] sm:$0xf]
        %v8307 = vld [vmem:[%s3770] sm:$0x80]
        %v8308 = vld [vmem:[%s3770 + $0x8] sm:$0x80]
        %v8309 = vld [vmem:[%s3770 + $0x10] sm:$0xff]
        %v8310 = vld [vmem:[%s3770 + $0x18] sm:$0xff]
        %v8311 = vld [vmem:[%s3770 + $0x30] sm:$0x80]
        %v8312 = vld [vmem:[%s3770 + $0x38] sm:$0x80]
        %v8313 = vld [vmem:[%s3770 + $0x40] sm:$0xff]
        %v8314 = vld [vmem:[%s3770 + $0x48] sm:$0xff]
        %v8315 = vld [vmem:[%s3770 + $0x60] sm:$0x80]
        %v8316 = vld [vmem:[%s3770 + $0x68] sm:$0x80]
        %v8317 = vld [vmem:[%s3770 + $0x70] sm:$0xff]
        %v8318 = vld [vmem:[%s3770 + $0x78] sm:$0xff]
        %v8319 = vld [vmem:[%s3770 + $0x90] sm:$0x80]
        %v8320 = vld [vmem:[%s3770 + $0x98] sm:$0x80]
        %v8321 = vld [vmem:[%s3770 + $0xa0] sm:$0xff]
        %v8322 = vld [vmem:[%s3770 + $0xa8] sm:$0xff]
        %v8323 = vld [vmem:[%s3770 + $0xc0] sm:$0x80]
        %v8324 = vld [vmem:[%s3770 + $0xc8] sm:$0x80]
        %v8325 = vld [vmem:[%s3770 + $0xd0] sm:$0xff]
        %v8326 = vld [vmem:[%s3770 + $0xd8] sm:$0xff]
        %v8327 = vld [vmem:[%s3770 + $0xf0] sm:$0x80]
        %v8328 = vld [vmem:[%s3770 + $0xf8] sm:$0x80]
        %v8329 = vld [vmem:[%s3770 + $0x100] sm:$0xff]
        %v8330 = vld [vmem:[%s3770 + $0x108] sm:$0xff]
        %v8331 = vld [vmem:[%s3770 + $0x120] sm:$0x80]
        %v8332 = vld [vmem:[%s3770 + $0x128] sm:$0x80]
        %v8333 = vld [vmem:[%s3770 + $0x130] sm:$0xff]
        %v8334 = vld [vmem:[%s3770 + $0x138] sm:$0xff]
        %v8335 = vld [vmem:[%s3770 + $0x150] sm:$0x80]
        %v8336 = vld [vmem:[%s3770 + $0x158] sm:$0x80]
        %v8337 = vld [vmem:[%s3770 + $0x160] sm:$0xff]
        %v8338 = vld [vmem:[%s3770 + $0x168] sm:$0xff]
        %v8339 = vld [vmem:[%s3770 + $0x180] sm:$0x80]
        %v8340 = vld [vmem:[%s3770 + $0x188] sm:$0x80]
        %v8341 = vld [vmem:[%s3770 + $0x190] sm:$0xff]
        %v8342 = vld [vmem:[%s3770 + $0x198] sm:$0xff]
        %v8343 = vld [vmem:[%s3770 + $0x1b0] sm:$0x80]
        %v8344 = vld [vmem:[%s3770 + $0x1b8] sm:$0x80]
        %v8345 = vld [vmem:[%s3770 + $0x1c0] sm:$0xff]
        %v8346 = vld [vmem:[%s3770 + $0x1c8] sm:$0xff]
        %v8347 = vld [vmem:[%s3770 + $0x1e0] sm:$0x80]
        %v8348 = vld [vmem:[%s3770 + $0x1e8] sm:$0x80]
        %v8349 = vld [vmem:[%s3770 + $0x1f0] sm:$0xff]
        %v8350 = vld [vmem:[%s3770 + $0x1f8] sm:$0xff]
        %v8351 = vld [vmem:[%s3770 + $0x210] sm:$0x80]
        %v8352 = vld [vmem:[%s3770 + $0x218] sm:$0x80]
        %v8353 = vld [vmem:[%s3770 + $0x220] sm:$0xff]
        %v8354 = vld [vmem:[%s3770 + $0x228] sm:$0xff]
        %v8355 = vld [vmem:[%s3770 + $0x240] sm:$0x80]
        %v8356 = vld [vmem:[%s3770 + $0x248] sm:$0x80]
        %v8357 = vld [vmem:[%s3770 + $0x250] sm:$0xff]
        %v8358 = vld [vmem:[%s3770 + $0x258] sm:$0xff]
        %v8359 = vld [vmem:[%s3770 + $0x270] sm:$0x80]
        %v8360 = vld [vmem:[%s3770 + $0x278] sm:$0x80]
        %v8361 = vld [vmem:[%s3770 + $0x280] sm:$0xff]
        %v8362 = vld [vmem:[%s3770 + $0x288] sm:$0xff]
        %v8363 = vld [vmem:[%s3770 + $0x2a0] sm:$0x80]
        %v8364 = vld [vmem:[%s3770 + $0x2a8] sm:$0x80]
        %v8365 = vld [vmem:[%s3770 + $0x2b0] sm:$0xff]
        %v8366 = vld [vmem:[%s3770 + $0x2b8] sm:$0xff]
        %v8367 = vld [vmem:[%s3770 + $0x2d0] sm:$0x80]
        %v8368 = vld [vmem:[%s3770 + $0x2d8] sm:$0x80]
        %v8369 = vld [vmem:[%s3770 + $0x2e0] sm:$0xff]
        %v8370 = vld [vmem:[%s3770 + $0x2e8] sm:$0xff]
        %v8371 = vld [vmem:[%s3770 + $0x20] sm:$0x1]
        %v8372 = vld [vmem:[%s3770 + $0x28] sm:$0x1]
        %v8373 = vld [vmem:[%s3770 + $0x50] sm:$0x1]
        %v8374 = vld [vmem:[%s3770 + $0x58] sm:$0x1]
        %v8375 = vld [vmem:[%s3770 + $0x80] sm:$0x1]
        %v8376 = vld [vmem:[%s3770 + $0x88] sm:$0x1]
        %v8377 = vld [vmem:[%s3770 + $0xb0] sm:$0x1]
        %v8378 = vld [vmem:[%s3770 + $0xb8] sm:$0x1]
        %v8379 = vld [vmem:[%s3770 + $0xe0] sm:$0x1]
        %v8380 = vld [vmem:[%s3770 + $0xe8] sm:$0x1]
        %v8381 = vld [vmem:[%s3770 + $0x110] sm:$0x1]
        %v8382 = vld [vmem:[%s3770 + $0x118] sm:$0x1]
        %v8383 = vld [vmem:[%s3770 + $0x140] sm:$0x1]
        %v8384 = vld [vmem:[%s3770 + $0x148] sm:$0x1]
        %v8385 = vld [vmem:[%s3770 + $0x170] sm:$0x1]
        %v8386 = vld [vmem:[%s3770 + $0x178] sm:$0x1]
        %v8387 = vld [vmem:[%s3770 + $0x1a0] sm:$0x1]
        %v8388 = vld [vmem:[%s3770 + $0x1a8] sm:$0x1]
        %v8389 = vld [vmem:[%s3770 + $0x1d0] sm:$0x1]
        %v8390 = vld [vmem:[%s3770 + $0x1d8] sm:$0x1]
        %v8391 = vld [vmem:[%s3770 + $0x200] sm:$0x1]
        %v8392 = vld [vmem:[%s3770 + $0x208] sm:$0x1]
        %v8393 = vld [vmem:[%s3770 + $0x230] sm:$0x1]
        %v8394 = vld [vmem:[%s3770 + $0x238] sm:$0x1]
        %v8395 = vld [vmem:[%s3770 + $0x260] sm:$0x1]
        %v8396 = vld [vmem:[%s3770 + $0x268] sm:$0x1]
        %v8397 = vld [vmem:[%s3770 + $0x290] sm:$0x1]
        %v8398 = vld [vmem:[%s3770 + $0x298] sm:$0x1]
        %v8399 = vld [vmem:[%s3770 + $0x2c0] sm:$0x1]
        %v8400 = vld [vmem:[%s3770 + $0x2c8] sm:$0x1]
        %v8401 = vld [vmem:[%s3770 + $0x2f0] sm:$0x1]
        %v8402 = vld [vmem:[%s3770 + $0x2f8] sm:$0x1]
        %v8404 = vshll.u32 %v8309, 16
        %v8406 = vrot.slane %v8404, 1
        %v8408 = vshll.u32 %v8310, 16
        %v8410 = vrot.slane %v8408, 1
        %v8411 = vshrl.u32 %v8309, 16
        %v8413 = vor.u32 %v8411, %v8406
        %v8414 = vshrl.u32 %v8310, 16
        %v8416 = vor.u32 %v8414, %v8410
        %v8418 = vshll.u32 %v8313, 16
        %v8420 = vrot.slane %v8418, 1
        %v8422 = vshll.u32 %v8314, 16
        %v8424 = vrot.slane %v8422, 1
        %v8425 = vshrl.u32 %v8313, 16
        %v8427 = vor.u32 %v8425, %v8420
        %v8428 = vshrl.u32 %v8314, 16
        %v8430 = vor.u32 %v8428, %v8424
        %v8432 = vshll.u32 %v8317, 16
        %v8434 = vrot.slane %v8432, 1
        %v8436 = vshll.u32 %v8318, 16
        %v8438 = vrot.slane %v8436, 1
        %v8439 = vshrl.u32 %v8317, 16
        %v8441 = vor.u32 %v8439, %v8434
        %v8442 = vshrl.u32 %v8318, 16
        %v8444 = vor.u32 %v8442, %v8438
        %v8446 = vshll.u32 %v8321, 16
        %v8448 = vrot.slane %v8446, 1
        %v8450 = vshll.u32 %v8322, 16
        %v8452 = vrot.slane %v8450, 1
        %v8453 = vshrl.u32 %v8321, 16
        %v8455 = vor.u32 %v8453, %v8448
        %v8456 = vshrl.u32 %v8322, 16
        %v8458 = vor.u32 %v8456, %v8452
        %v8460 = vshll.u32 %v8325, 16
        %v8462 = vrot.slane %v8460, 1
        %v8464 = vshll.u32 %v8326, 16
        %v8466 = vrot.slane %v8464, 1
        %v8467 = vshrl.u32 %v8325, 16
        %v8469 = vor.u32 %v8467, %v8462
        %v8470 = vshrl.u32 %v8326, 16
        %v8472 = vor.u32 %v8470, %v8466
        %v8474 = vshll.u32 %v8329, 16
        %v8476 = vrot.slane %v8474, 1
        %v8478 = vshll.u32 %v8330, 16
        %v8480 = vrot.slane %v8478, 1
        %v8481 = vshrl.u32 %v8329, 16
        %v8483 = vor.u32 %v8481, %v8476
        %v8484 = vshrl.u32 %v8330, 16
        %v8486 = vor.u32 %v8484, %v8480
        %v8488 = vshll.u32 %v8333, 16
        %v8490 = vrot.slane %v8488, 1
        %v8492 = vshll.u32 %v8334, 16
        %v8494 = vrot.slane %v8492, 1
        %v8495 = vshrl.u32 %v8333, 16
        %v8497 = vor.u32 %v8495, %v8490
        %v8498 = vshrl.u32 %v8334, 16
        %v8500 = vor.u32 %v8498, %v8494
        %v8502 = vshll.u32 %v8337, 16
        %v8504 = vrot.slane %v8502, 1
        %v8506 = vshll.u32 %v8338, 16
        %v8508 = vrot.slane %v8506, 1
        %v8509 = vshrl.u32 %v8337, 16
        %v8511 = vor.u32 %v8509, %v8504
        %v8512 = vshrl.u32 %v8338, 16
        %v8514 = vor.u32 %v8512, %v8508
        %v8516 = vshll.u32 %v8341, 16
        %v8518 = vrot.slane %v8516, 1
        %v8520 = vshll.u32 %v8342, 16
        %v8522 = vrot.slane %v8520, 1
        %v8523 = vshrl.u32 %v8341, 16
        %v8525 = vor.u32 %v8523, %v8518
        %v8526 = vshrl.u32 %v8342, 16
        %v8528 = vor.u32 %v8526, %v8522
        %v8530 = vshll.u32 %v8345, 16
        %v8532 = vrot.slane %v8530, 1
        %v8534 = vshll.u32 %v8346, 16
        %v8536 = vrot.slane %v8534, 1
        %v8537 = vshrl.u32 %v8345, 16
        %v8539 = vor.u32 %v8537, %v8532
        %v8540 = vshrl.u32 %v8346, 16
        %v8542 = vor.u32 %v8540, %v8536
        %v8544 = vshll.u32 %v8349, 16
        %v8546 = vrot.slane %v8544, 1
        %v8548 = vshll.u32 %v8350, 16
        %v8550 = vrot.slane %v8548, 1
        %v8551 = vshrl.u32 %v8349, 16
        %v8553 = vor.u32 %v8551, %v8546
        %v8554 = vshrl.u32 %v8350, 16
        %v8556 = vor.u32 %v8554, %v8550
        %v8558 = vshll.u32 %v8353, 16
        %v8560 = vrot.slane %v8558, 1
        %v8562 = vshll.u32 %v8354, 16
        %v8564 = vrot.slane %v8562, 1
        %v8565 = vshrl.u32 %v8353, 16
        %v8567 = vor.u32 %v8565, %v8560
        %v8568 = vshrl.u32 %v8354, 16
        %v8570 = vor.u32 %v8568, %v8564
        %v8572 = vshll.u32 %v8357, 16
        %v8574 = vrot.slane %v8572, 1
        %v8576 = vshll.u32 %v8358, 16
        %v8578 = vrot.slane %v8576, 1
        %v8579 = vshrl.u32 %v8357, 16
        %v8581 = vor.u32 %v8579, %v8574
        %v8582 = vshrl.u32 %v8358, 16
        %v8584 = vor.u32 %v8582, %v8578
        %v8586 = vshll.u32 %v8361, 16
        %v8588 = vrot.slane %v8586, 1
        %v8590 = vshll.u32 %v8362, 16
        %v8592 = vrot.slane %v8590, 1
        %v8593 = vshrl.u32 %v8361, 16
        %v8595 = vor.u32 %v8593, %v8588
        %v8596 = vshrl.u32 %v8362, 16
        %v8598 = vor.u32 %v8596, %v8592
        %v8600 = vshll.u32 %v8365, 16
        %v8602 = vrot.slane %v8600, 1
        %v8604 = vshll.u32 %v8366, 16
        %v8606 = vrot.slane %v8604, 1
        %v8607 = vshrl.u32 %v8365, 16
        %v8609 = vor.u32 %v8607, %v8602
        %v8610 = vshrl.u32 %v8366, 16
        %v8612 = vor.u32 %v8610, %v8606
        %v8614 = vshll.u32 %v8369, 16
        %v8616 = vrot.slane %v8614, 1
        %v8618 = vshll.u32 %v8370, 16
        %v8620 = vrot.slane %v8618, 1
        %v8621 = vshrl.u32 %v8369, 16
        %v8623 = vor.u32 %v8621, %v8616
        %v8624 = vshrl.u32 %v8370, 16
        %v8626 = vor.u32 %v8624, %v8620
        %v8691 = vrot.slane %v8309, 1
        %v8692 = vrot.slane %v8310, 1
        %v8693 = vrot.slane %v8371, 1
        %v8694 = vsel %vm1031, %v8691, %v8693
        %v8695 = vrot.slane %v8372, 1
        %v8696 = vsel %vm1031, %v8692, %v8695
        %v8697 = vrot.slane %v8313, 1
        %v8698 = vrot.slane %v8314, 1
        %v8699 = vrot.slane %v8373, 1
        %v8700 = vsel %vm1031, %v8697, %v8699
        %v8701 = vrot.slane %v8374, 1
        %v8702 = vsel %vm1031, %v8698, %v8701
        %v8703 = vrot.slane %v8317, 1
        %v8704 = vrot.slane %v8318, 1
        %v8705 = vrot.slane %v8375, 1
        %v8706 = vsel %vm1031, %v8703, %v8705
        %v8707 = vrot.slane %v8376, 1
        %v8708 = vsel %vm1031, %v8704, %v8707
        %v8709 = vrot.slane %v8321, 1
        %v8710 = vrot.slane %v8322, 1
        %v8711 = vrot.slane %v8377, 1
        %v8712 = vsel %vm1031, %v8709, %v8711
        %v8713 = vrot.slane %v8378, 1
        %v8714 = vsel %vm1031, %v8710, %v8713
        %v8715 = vrot.slane %v8325, 1
        %v8716 = vrot.slane %v8326, 1
        %v8717 = vrot.slane %v8379, 1
        %v8718 = vsel %vm1031, %v8715, %v8717
        %v8719 = vrot.slane %v8380, 1
        %v8720 = vsel %vm1031, %v8716, %v8719
        %v8721 = vrot.slane %v8329, 1
        %v8722 = vrot.slane %v8330, 1
        %v8723 = vrot.slane %v8381, 1
        %v8724 = vsel %vm1031, %v8721, %v8723
        %v8725 = vrot.slane %v8382, 1
        %v8726 = vsel %vm1031, %v8722, %v8725
        %v8727 = vrot.slane %v8333, 1
        %v8728 = vrot.slane %v8334, 1
        %v8729 = vrot.slane %v8383, 1
        %v8730 = vsel %vm1031, %v8727, %v8729
        %v8731 = vrot.slane %v8384, 1
        %v8732 = vsel %vm1031, %v8728, %v8731
        %v8733 = vrot.slane %v8337, 1
        %v8734 = vrot.slane %v8338, 1
        %v8735 = vrot.slane %v8385, 1
        %v8736 = vsel %vm1031, %v8733, %v8735
        %v8737 = vrot.slane %v8386, 1
        %v8738 = vsel %vm1031, %v8734, %v8737
        %v8739 = vrot.slane %v8341, 1
        %v8740 = vrot.slane %v8342, 1
        %v8741 = vrot.slane %v8387, 1
        %v8742 = vsel %vm1031, %v8739, %v8741
        %v8743 = vrot.slane %v8388, 1
        %v8744 = vsel %vm1031, %v8740, %v8743
        %v8745 = vrot.slane %v8345, 1
        %v8746 = vrot.slane %v8346, 1
        %v8747 = vrot.slane %v8389, 1
        %v8748 = vsel %vm1031, %v8745, %v8747
        %v8749 = vrot.slane %v8390, 1
        %v8750 = vsel %vm1031, %v8746, %v8749
        %v8751 = vrot.slane %v8349, 1
        %v8752 = vrot.slane %v8350, 1
        %v8753 = vrot.slane %v8391, 1
        %v8754 = vsel %vm1031, %v8751, %v8753
        %v8755 = vrot.slane %v8392, 1
        %v8756 = vsel %vm1031, %v8752, %v8755
        %v8757 = vrot.slane %v8353, 1
        %v8758 = vrot.slane %v8354, 1
        %v8759 = vrot.slane %v8393, 1
        %v8760 = vsel %vm1031, %v8757, %v8759
        %v8761 = vrot.slane %v8394, 1
        %v8762 = vsel %vm1031, %v8758, %v8761
        %v8763 = vrot.slane %v8357, 1
        %v8764 = vrot.slane %v8358, 1
        %v8765 = vrot.slane %v8395, 1
        %v8766 = vsel %vm1031, %v8763, %v8765
        %v8767 = vrot.slane %v8396, 1
        %v8768 = vsel %vm1031, %v8764, %v8767
        %v8769 = vrot.slane %v8361, 1
        %v8770 = vrot.slane %v8362, 1
        %v8771 = vrot.slane %v8397, 1
        %v8772 = vsel %vm1031, %v8769, %v8771
        %v8773 = vrot.slane %v8398, 1
        %v8774 = vsel %vm1031, %v8770, %v8773
        %v8775 = vrot.slane %v8365, 1
        %v8776 = vrot.slane %v8366, 1
        %v8777 = vrot.slane %v8399, 1
        %v8778 = vsel %vm1031, %v8775, %v8777
        %v8779 = vrot.slane %v8400, 1
        %v8780 = vsel %vm1031, %v8776, %v8779
        %v8781 = vrot.slane %v8369, 1
        %v8782 = vrot.slane %v8370, 1
        %v8783 = vrot.slane %v8401, 1
        %v8784 = vsel %vm1031, %v8781, %v8783
        %v8785 = vrot.slane %v8402, 1
        %v8786 = vsel %vm1031, %v8782, %v8785
        %v8788 = vshrl.u32 %v8307, 16
        %v8790 = vrot.slane %v8788, 7
        %v8791 = vrot.slane %v8411, 7
        %v8792 = vor.u32 %v8791, %v8404
        %v8793 = vsel %vm1056, %v8790, %v8792
        %v8795 = vshrl.u32 %v8308, 16
        %v8797 = vrot.slane %v8795, 7
        %v8798 = vrot.slane %v8414, 7
        %v8799 = vor.u32 %v8798, %v8408
        %v8800 = vsel %vm1056, %v8797, %v8799
        %v8802 = vshrl.u32 %v8406, 16
        %v8804 = vrot.slane %v8802, 7
        %v8806 = vshrl.u32 %v8413, 16
        %v8808 = vrot.slane %v8806, 7
        %v8809 = vshll.u32 %v8413, 16
        %v8811 = vor.u32 %v8808, %v8809
        %v8812 = vsel %vm1056, %v8804, %v8811
        %v8814 = vshrl.u32 %v8410, 16
        %v8816 = vrot.slane %v8814, 7
        %v8818 = vshrl.u32 %v8416, 16
        %v8820 = vrot.slane %v8818, 7
        %v8821 = vshll.u32 %v8416, 16
        %v8823 = vor.u32 %v8820, %v8821
        %v8824 = vsel %vm1056, %v8816, %v8823
        %v8826 = vshrl.u32 %v8691, 16
        %v8828 = vrot.slane %v8826, 7
        %v8830 = vshrl.u32 %v8694, 16
        %v8832 = vrot.slane %v8830, 7
        %v8833 = vshll.u32 %v8694, 16
        %v8835 = vor.u32 %v8832, %v8833
        %v8836 = vsel %vm1056, %v8828, %v8835
        %v8838 = vshrl.u32 %v8692, 16
        %v8840 = vrot.slane %v8838, 7
        %v8842 = vshrl.u32 %v8696, 16
        %v8844 = vrot.slane %v8842, 7
        %v8845 = vshll.u32 %v8696, 16
        %v8847 = vor.u32 %v8844, %v8845
        %v8848 = vsel %vm1056, %v8840, %v8847
        %v8850 = vshrl.u32 %v8311, 16
        %v8852 = vrot.slane %v8850, 7
        %v8853 = vrot.slane %v8425, 7
        %v8854 = vor.u32 %v8853, %v8418
        %v8855 = vsel %vm1056, %v8852, %v8854
        %v8857 = vshrl.u32 %v8312, 16
        %v8859 = vrot.slane %v8857, 7
        %v8860 = vrot.slane %v8428, 7
        %v8861 = vor.u32 %v8860, %v8422
        %v8862 = vsel %vm1056, %v8859, %v8861
        %v8864 = vshrl.u32 %v8420, 16
        %v8866 = vrot.slane %v8864, 7
        %v8868 = vshrl.u32 %v8427, 16
        %v8870 = vrot.slane %v8868, 7
        %v8871 = vshll.u32 %v8427, 16
        %v8873 = vor.u32 %v8870, %v8871
        %v8874 = vsel %vm1056, %v8866, %v8873
        %v8876 = vshrl.u32 %v8424, 16
        %v8878 = vrot.slane %v8876, 7
        %v8880 = vshrl.u32 %v8430, 16
        %v8882 = vrot.slane %v8880, 7
        %v8883 = vshll.u32 %v8430, 16
        %v8885 = vor.u32 %v8882, %v8883
        %v8886 = vsel %vm1056, %v8878, %v8885
        %v8888 = vshrl.u32 %v8697, 16
        %v8890 = vrot.slane %v8888, 7
        %v8892 = vshrl.u32 %v8700, 16
        %v8894 = vrot.slane %v8892, 7
        %v8895 = vshll.u32 %v8700, 16
        %v8897 = vor.u32 %v8894, %v8895
        %v8898 = vsel %vm1056, %v8890, %v8897
        %v8900 = vshrl.u32 %v8698, 16
        %v8902 = vrot.slane %v8900, 7
        %v8904 = vshrl.u32 %v8702, 16
        %v8906 = vrot.slane %v8904, 7
        %v8907 = vshll.u32 %v8702, 16
        %v8909 = vor.u32 %v8906, %v8907
        %v8910 = vsel %vm1056, %v8902, %v8909
        %v8912 = vshrl.u32 %v8315, 16
        %v8914 = vrot.slane %v8912, 7
        %v8915 = vrot.slane %v8439, 7
        %v8916 = vor.u32 %v8915, %v8432
        %v8917 = vsel %vm1056, %v8914, %v8916
        %v8919 = vshrl.u32 %v8316, 16
        %v8921 = vrot.slane %v8919, 7
        %v8922 = vrot.slane %v8442, 7
        %v8923 = vor.u32 %v8922, %v8436
        %v8924 = vsel %vm1056, %v8921, %v8923
        %v8926 = vshrl.u32 %v8434, 16
        %v8928 = vrot.slane %v8926, 7
        %v8930 = vshrl.u32 %v8441, 16
        %v8932 = vrot.slane %v8930, 7
        %v8933 = vshll.u32 %v8441, 16
        %v8935 = vor.u32 %v8932, %v8933
        %v8936 = vsel %vm1056, %v8928, %v8935
        %v8938 = vshrl.u32 %v8438, 16
        %v8940 = vrot.slane %v8938, 7
        %v8942 = vshrl.u32 %v8444, 16
        %v8944 = vrot.slane %v8942, 7
        %v8945 = vshll.u32 %v8444, 16
        %v8947 = vor.u32 %v8944, %v8945
        %v8948 = vsel %vm1056, %v8940, %v8947
        %v8950 = vshrl.u32 %v8703, 16
        %v8952 = vrot.slane %v8950, 7
        %v8954 = vshrl.u32 %v8706, 16
        %v8956 = vrot.slane %v8954, 7
        %v8957 = vshll.u32 %v8706, 16
        %v8959 = vor.u32 %v8956, %v8957
        %v8960 = vsel %vm1056, %v8952, %v8959
        %v8962 = vshrl.u32 %v8704, 16
        %v8964 = vrot.slane %v8962, 7
        %v8966 = vshrl.u32 %v8708, 16
        %v8968 = vrot.slane %v8966, 7
        %v8969 = vshll.u32 %v8708, 16
        %v8971 = vor.u32 %v8968, %v8969
        %v8972 = vsel %vm1056, %v8964, %v8971
        %v8974 = vshrl.u32 %v8319, 16
        %v8976 = vrot.slane %v8974, 7
        %v8977 = vrot.slane %v8453, 7
        %v8978 = vor.u32 %v8977, %v8446
        %v8979 = vsel %vm1056, %v8976, %v8978
        %v8981 = vshrl.u32 %v8320, 16
        %v8983 = vrot.slane %v8981, 7
        %v8984 = vrot.slane %v8456, 7
        %v8985 = vor.u32 %v8984, %v8450
        %v8986 = vsel %vm1056, %v8983, %v8985
        %v8988 = vshrl.u32 %v8448, 16
        %v8990 = vrot.slane %v8988, 7
        %v8992 = vshrl.u32 %v8455, 16
        %v8994 = vrot.slane %v8992, 7
        %v8995 = vshll.u32 %v8455, 16
        %v8997 = vor.u32 %v8994, %v8995
        %v8998 = vsel %vm1056, %v8990, %v8997
        %v9000 = vshrl.u32 %v8452, 16
        %v9002 = vrot.slane %v9000, 7
        %v9004 = vshrl.u32 %v8458, 16
        %v9006 = vrot.slane %v9004, 7
        %v9007 = vshll.u32 %v8458, 16
        %v9009 = vor.u32 %v9006, %v9007
        %v9010 = vsel %vm1056, %v9002, %v9009
        %v9012 = vshrl.u32 %v8709, 16
        %v9014 = vrot.slane %v9012, 7
        %v9016 = vshrl.u32 %v8712, 16
        %v9018 = vrot.slane %v9016, 7
        %v9019 = vshll.u32 %v8712, 16
        %v9021 = vor.u32 %v9018, %v9019
        %v9022 = vsel %vm1056, %v9014, %v9021
        %v9024 = vshrl.u32 %v8710, 16
        %v9026 = vrot.slane %v9024, 7
        %v9028 = vshrl.u32 %v8714, 16
        %v9030 = vrot.slane %v9028, 7
        %v9031 = vshll.u32 %v8714, 16
        %v9033 = vor.u32 %v9030, %v9031
        %v9034 = vsel %vm1056, %v9026, %v9033
        %v9036 = vshrl.u32 %v8323, 16
        %v9038 = vrot.slane %v9036, 7
        %v9039 = vrot.slane %v8467, 7
        %v9040 = vor.u32 %v9039, %v8460
        %v9041 = vsel %vm1056, %v9038, %v9040
        %v9043 = vshrl.u32 %v8324, 16
        %v9045 = vrot.slane %v9043, 7
        %v9046 = vrot.slane %v8470, 7
        %v9047 = vor.u32 %v9046, %v8464
        %v9048 = vsel %vm1056, %v9045, %v9047
        %v9050 = vshrl.u32 %v8462, 16
        %v9052 = vrot.slane %v9050, 7
        %v9054 = vshrl.u32 %v8469, 16
        %v9056 = vrot.slane %v9054, 7
        %v9057 = vshll.u32 %v8469, 16
        %v9059 = vor.u32 %v9056, %v9057
        %v9060 = vsel %vm1056, %v9052, %v9059
        %v9062 = vshrl.u32 %v8466, 16
        %v9064 = vrot.slane %v9062, 7
        %v9066 = vshrl.u32 %v8472, 16
        %v9068 = vrot.slane %v9066, 7
        %v9069 = vshll.u32 %v8472, 16
        %v9071 = vor.u32 %v9068, %v9069
        %v9072 = vsel %vm1056, %v9064, %v9071
        %v9074 = vshrl.u32 %v8715, 16
        %v9076 = vrot.slane %v9074, 7
        %v9078 = vshrl.u32 %v8718, 16
        %v9080 = vrot.slane %v9078, 7
        %v9081 = vshll.u32 %v8718, 16
        %v9083 = vor.u32 %v9080, %v9081
        %v9084 = vsel %vm1056, %v9076, %v9083
        %v9086 = vshrl.u32 %v8716, 16
        %v9088 = vrot.slane %v9086, 7
        %v9090 = vshrl.u32 %v8720, 16
        %v9092 = vrot.slane %v9090, 7
        %v9093 = vshll.u32 %v8720, 16
        %v9095 = vor.u32 %v9092, %v9093
        %v9096 = vsel %vm1056, %v9088, %v9095
        %v9098 = vshrl.u32 %v8327, 16
        %v9100 = vrot.slane %v9098, 7
        %v9101 = vrot.slane %v8481, 7
        %v9102 = vor.u32 %v9101, %v8474
        %v9103 = vsel %vm1056, %v9100, %v9102
        %v9105 = vshrl.u32 %v8328, 16
        %v9107 = vrot.slane %v9105, 7
        %v9108 = vrot.slane %v8484, 7
        %v9109 = vor.u32 %v9108, %v8478
        %v9110 = vsel %vm1056, %v9107, %v9109
        %v9112 = vshrl.u32 %v8476, 16
        %v9114 = vrot.slane %v9112, 7
        %v9116 = vshrl.u32 %v8483, 16
        %v9118 = vrot.slane %v9116, 7
        %v9119 = vshll.u32 %v8483, 16
        %v9121 = vor.u32 %v9118, %v9119
        %v9122 = vsel %vm1056, %v9114, %v9121
        %v9124 = vshrl.u32 %v8480, 16
        %v9126 = vrot.slane %v9124, 7
        %v9128 = vshrl.u32 %v8486, 16
        %v9130 = vrot.slane %v9128, 7
        %v9131 = vshll.u32 %v8486, 16
        %v9133 = vor.u32 %v9130, %v9131
        %v9134 = vsel %vm1056, %v9126, %v9133
        %v9136 = vshrl.u32 %v8721, 16
        %v9138 = vrot.slane %v9136, 7
        %v9140 = vshrl.u32 %v8724, 16
        %v9142 = vrot.slane %v9140, 7
        %v9143 = vshll.u32 %v8724, 16
        %v9145 = vor.u32 %v9142, %v9143
        %v9146 = vsel %vm1056, %v9138, %v9145
        %v9148 = vshrl.u32 %v8722, 16
        %v9150 = vrot.slane %v9148, 7
        %v9152 = vshrl.u32 %v8726, 16
        %v9154 = vrot.slane %v9152, 7
        %v9155 = vshll.u32 %v8726, 16
        %v9157 = vor.u32 %v9154, %v9155
        %v9158 = vsel %vm1056, %v9150, %v9157
        %v9160 = vshrl.u32 %v8331, 16
        %v9162 = vrot.slane %v9160, 7
        %v9163 = vrot.slane %v8495, 7
        %v9164 = vor.u32 %v9163, %v8488
        %v9165 = vsel %vm1056, %v9162, %v9164
        %v9167 = vshrl.u32 %v8332, 16
        %v9169 = vrot.slane %v9167, 7
        %v9170 = vrot.slane %v8498, 7
        %v9171 = vor.u32 %v9170, %v8492
        %v9172 = vsel %vm1056, %v9169, %v9171
        %v9174 = vshrl.u32 %v8490, 16
        %v9176 = vrot.slane %v9174, 7
        %v9178 = vshrl.u32 %v8497, 16
        %v9180 = vrot.slane %v9178, 7
        %v9181 = vshll.u32 %v8497, 16
        %v9183 = vor.u32 %v9180, %v9181
        %v9184 = vsel %vm1056, %v9176, %v9183
        %v9186 = vshrl.u32 %v8494, 16
        %v9188 = vrot.slane %v9186, 7
        %v9190 = vshrl.u32 %v8500, 16
        %v9192 = vrot.slane %v9190, 7
        %v9193 = vshll.u32 %v8500, 16
        %v9195 = vor.u32 %v9192, %v9193
        %v9196 = vsel %vm1056, %v9188, %v9195
        %v9198 = vshrl.u32 %v8727, 16
        %v9200 = vrot.slane %v9198, 7
        %v9202 = vshrl.u32 %v8730, 16
        %v9204 = vrot.slane %v9202, 7
        %v9205 = vshll.u32 %v8730, 16
        %v9207 = vor.u32 %v9204, %v9205
        %v9208 = vsel %vm1056, %v9200, %v9207
        %v9210 = vshrl.u32 %v8728, 16
        %v9212 = vrot.slane %v9210, 7
        %v9214 = vshrl.u32 %v8732, 16
        %v9216 = vrot.slane %v9214, 7
        %v9217 = vshll.u32 %v8732, 16
        %v9219 = vor.u32 %v9216, %v9217
        %v9220 = vsel %vm1056, %v9212, %v9219
        %v9222 = vshrl.u32 %v8335, 16
        %v9224 = vrot.slane %v9222, 7
        %v9225 = vrot.slane %v8509, 7
        %v9226 = vor.u32 %v9225, %v8502
        %v9227 = vsel %vm1056, %v9224, %v9226
        %v9229 = vshrl.u32 %v8336, 16
        %v9231 = vrot.slane %v9229, 7
        %v9232 = vrot.slane %v8512, 7
        %v9233 = vor.u32 %v9232, %v8506
        %v9234 = vsel %vm1056, %v9231, %v9233
        %v9236 = vshrl.u32 %v8504, 16
        %v9238 = vrot.slane %v9236, 7
        %v9240 = vshrl.u32 %v8511, 16
        %v9242 = vrot.slane %v9240, 7
        %v9243 = vshll.u32 %v8511, 16
        %v9245 = vor.u32 %v9242, %v9243
        %v9246 = vsel %vm1056, %v9238, %v9245
        %v9248 = vshrl.u32 %v8508, 16
        %v9250 = vrot.slane %v9248, 7
        %v9252 = vshrl.u32 %v8514, 16
        %v9254 = vrot.slane %v9252, 7
        %v9255 = vshll.u32 %v8514, 16
        %v9257 = vor.u32 %v9254, %v9255
        %v9258 = vsel %vm1056, %v9250, %v9257
        %v9260 = vshrl.u32 %v8733, 16
        %v9262 = vrot.slane %v9260, 7
        %v9264 = vshrl.u32 %v8736, 16
        %v9266 = vrot.slane %v9264, 7
        %v9267 = vshll.u32 %v8736, 16
        %v9269 = vor.u32 %v9266, %v9267
        %v9270 = vsel %vm1056, %v9262, %v9269
        %v9272 = vshrl.u32 %v8734, 16
        %v9274 = vrot.slane %v9272, 7
        %v9276 = vshrl.u32 %v8738, 16
        %v9278 = vrot.slane %v9276, 7
        %v9279 = vshll.u32 %v8738, 16
        %v9281 = vor.u32 %v9278, %v9279
        %v9282 = vsel %vm1056, %v9274, %v9281
        %v9284 = vshrl.u32 %v8339, 16
        %v9286 = vrot.slane %v9284, 7
        %v9287 = vrot.slane %v8523, 7
        %v9288 = vor.u32 %v9287, %v8516
        %v9289 = vsel %vm1056, %v9286, %v9288
        %v9291 = vshrl.u32 %v8340, 16
        %v9293 = vrot.slane %v9291, 7
        %v9294 = vrot.slane %v8526, 7
        %v9295 = vor.u32 %v9294, %v8520
        %v9296 = vsel %vm1056, %v9293, %v9295
        %v9298 = vshrl.u32 %v8518, 16
        %v9300 = vrot.slane %v9298, 7
        %v9302 = vshrl.u32 %v8525, 16
        %v9304 = vrot.slane %v9302, 7
        %v9305 = vshll.u32 %v8525, 16
        %v9307 = vor.u32 %v9304, %v9305
        %v9308 = vsel %vm1056, %v9300, %v9307
        %v9310 = vshrl.u32 %v8522, 16
        %v9312 = vrot.slane %v9310, 7
        %v9314 = vshrl.u32 %v8528, 16
        %v9316 = vrot.slane %v9314, 7
        %v9317 = vshll.u32 %v8528, 16
        %v9319 = vor.u32 %v9316, %v9317
        %v9320 = vsel %vm1056, %v9312, %v9319
        %v9322 = vshrl.u32 %v8739, 16
        %v9324 = vrot.slane %v9322, 7
        %v9326 = vshrl.u32 %v8742, 16
        %v9328 = vrot.slane %v9326, 7
        %v9329 = vshll.u32 %v8742, 16
        %v9331 = vor.u32 %v9328, %v9329
        %v9332 = vsel %vm1056, %v9324, %v9331
        %v9334 = vshrl.u32 %v8740, 16
        %v9336 = vrot.slane %v9334, 7
        %v9338 = vshrl.u32 %v8744, 16
        %v9340 = vrot.slane %v9338, 7
        %v9341 = vshll.u32 %v8744, 16
        %v9343 = vor.u32 %v9340, %v9341
        %v9344 = vsel %vm1056, %v9336, %v9343
        %v9346 = vshrl.u32 %v8343, 16
        %v9348 = vrot.slane %v9346, 7
        %v9349 = vrot.slane %v8537, 7
        %v9350 = vor.u32 %v9349, %v8530
        %v9351 = vsel %vm1056, %v9348, %v9350
        %v9353 = vshrl.u32 %v8344, 16
        %v9355 = vrot.slane %v9353, 7
        %v9356 = vrot.slane %v8540, 7
        %v9357 = vor.u32 %v9356, %v8534
        %v9358 = vsel %vm1056, %v9355, %v9357
        %v9360 = vshrl.u32 %v8532, 16
        %v9362 = vrot.slane %v9360, 7
        %v9364 = vshrl.u32 %v8539, 16
        %v9366 = vrot.slane %v9364, 7
        %v9367 = vshll.u32 %v8539, 16
        %v9369 = vor.u32 %v9366, %v9367
        %v9370 = vsel %vm1056, %v9362, %v9369
        %v9372 = vshrl.u32 %v8536, 16
        %v9374 = vrot.slane %v9372, 7
        %v9376 = vshrl.u32 %v8542, 16
        %v9378 = vrot.slane %v9376, 7
        %v9379 = vshll.u32 %v8542, 16
        %v9381 = vor.u32 %v9378, %v9379
        %v9382 = vsel %vm1056, %v9374, %v9381
        %v9384 = vshrl.u32 %v8745, 16
        %v9386 = vrot.slane %v9384, 7
        %v9388 = vshrl.u32 %v8748, 16
        %v9390 = vrot.slane %v9388, 7
        %v9391 = vshll.u32 %v8748, 16
        %v9393 = vor.u32 %v9390, %v9391
        %v9394 = vsel %vm1056, %v9386, %v9393
        %v9396 = vshrl.u32 %v8746, 16
        %v9398 = vrot.slane %v9396, 7
        %v9400 = vshrl.u32 %v8750, 16
        %v9402 = vrot.slane %v9400, 7
        %v9403 = vshll.u32 %v8750, 16
        %v9405 = vor.u32 %v9402, %v9403
        %v9406 = vsel %vm1056, %v9398, %v9405
        %v9408 = vshrl.u32 %v8347, 16
        %v9410 = vrot.slane %v9408, 7
        %v9411 = vrot.slane %v8551, 7
        %v9412 = vor.u32 %v9411, %v8544
        %v9413 = vsel %vm1056, %v9410, %v9412
        %v9415 = vshrl.u32 %v8348, 16
        %v9417 = vrot.slane %v9415, 7
        %v9418 = vrot.slane %v8554, 7
        %v9419 = vor.u32 %v9418, %v8548
        %v9420 = vsel %vm1056, %v9417, %v9419
        %v9422 = vshrl.u32 %v8546, 16
        %v9424 = vrot.slane %v9422, 7
        %v9426 = vshrl.u32 %v8553, 16
        %v9428 = vrot.slane %v9426, 7
        %v9429 = vshll.u32 %v8553, 16
        %v9431 = vor.u32 %v9428, %v9429
        %v9432 = vsel %vm1056, %v9424, %v9431
        %v9434 = vshrl.u32 %v8550, 16
        %v9436 = vrot.slane %v9434, 7
        %v9438 = vshrl.u32 %v8556, 16
        %v9440 = vrot.slane %v9438, 7
        %v9441 = vshll.u32 %v8556, 16
        %v9443 = vor.u32 %v9440, %v9441
        %v9444 = vsel %vm1056, %v9436, %v9443
        %v9446 = vshrl.u32 %v8751, 16
        %v9448 = vrot.slane %v9446, 7
        %v9450 = vshrl.u32 %v8754, 16
        %v9452 = vrot.slane %v9450, 7
        %v9453 = vshll.u32 %v8754, 16
        %v9455 = vor.u32 %v9452, %v9453
        %v9456 = vsel %vm1056, %v9448, %v9455
        %v9458 = vshrl.u32 %v8752, 16
        %v9460 = vrot.slane %v9458, 7
        %v9462 = vshrl.u32 %v8756, 16
        %v9464 = vrot.slane %v9462, 7
        %v9465 = vshll.u32 %v8756, 16
        %v9467 = vor.u32 %v9464, %v9465
        %v9468 = vsel %vm1056, %v9460, %v9467
        %v9470 = vshrl.u32 %v8351, 16
        %v9472 = vrot.slane %v9470, 7
        %v9473 = vrot.slane %v8565, 7
        %v9474 = vor.u32 %v9473, %v8558
        %v9475 = vsel %vm1056, %v9472, %v9474
        %v9477 = vshrl.u32 %v8352, 16
        %v9479 = vrot.slane %v9477, 7
        %v9480 = vrot.slane %v8568, 7
        %v9481 = vor.u32 %v9480, %v8562
        %v9482 = vsel %vm1056, %v9479, %v9481
        %v9484 = vshrl.u32 %v8560, 16
        %v9486 = vrot.slane %v9484, 7
        %v9488 = vshrl.u32 %v8567, 16
        %v9490 = vrot.slane %v9488, 7
        %v9491 = vshll.u32 %v8567, 16
        %v9493 = vor.u32 %v9490, %v9491
        %v9494 = vsel %vm1056, %v9486, %v9493
        %v9496 = vshrl.u32 %v8564, 16
        %v9498 = vrot.slane %v9496, 7
        %v9500 = vshrl.u32 %v8570, 16
        %v9502 = vrot.slane %v9500, 7
        %v9503 = vshll.u32 %v8570, 16
        %v9505 = vor.u32 %v9502, %v9503
        %v9506 = vsel %vm1056, %v9498, %v9505
        %v9508 = vshrl.u32 %v8757, 16
        %v9510 = vrot.slane %v9508, 7
        %v9512 = vshrl.u32 %v8760, 16
        %v9514 = vrot.slane %v9512, 7
        %v9515 = vshll.u32 %v8760, 16
        %v9517 = vor.u32 %v9514, %v9515
        %v9518 = vsel %vm1056, %v9510, %v9517
        %v9520 = vshrl.u32 %v8758, 16
        %v9522 = vrot.slane %v9520, 7
        %v9524 = vshrl.u32 %v8762, 16
        %v9526 = vrot.slane %v9524, 7
        %v9527 = vshll.u32 %v8762, 16
        %v9529 = vor.u32 %v9526, %v9527
        %v9530 = vsel %vm1056, %v9522, %v9529
        %v9532 = vshrl.u32 %v8355, 16
        %v9534 = vrot.slane %v9532, 7
        %v9535 = vrot.slane %v8579, 7
        %v9536 = vor.u32 %v9535, %v8572
        %v9537 = vsel %vm1056, %v9534, %v9536
        %v9539 = vshrl.u32 %v8356, 16
        %v9541 = vrot.slane %v9539, 7
        %v9542 = vrot.slane %v8582, 7
        %v9543 = vor.u32 %v9542, %v8576
        %v9544 = vsel %vm1056, %v9541, %v9543
        %v9546 = vshrl.u32 %v8574, 16
        %v9548 = vrot.slane %v9546, 7
        %v9550 = vshrl.u32 %v8581, 16
        %v9552 = vrot.slane %v9550, 7
        %v9553 = vshll.u32 %v8581, 16
        %v9555 = vor.u32 %v9552, %v9553
        %v9556 = vsel %vm1056, %v9548, %v9555
        %v9558 = vshrl.u32 %v8578, 16
        %v9560 = vrot.slane %v9558, 7
        %v9562 = vshrl.u32 %v8584, 16
        %v9564 = vrot.slane %v9562, 7
        %v9565 = vshll.u32 %v8584, 16
        %v9567 = vor.u32 %v9564, %v9565
        %v9568 = vsel %vm1056, %v9560, %v9567
        %v9570 = vshrl.u32 %v8763, 16
        %v9572 = vrot.slane %v9570, 7
        %v9574 = vshrl.u32 %v8766, 16
        %v9576 = vrot.slane %v9574, 7
        %v9577 = vshll.u32 %v8766, 16
        %v9579 = vor.u32 %v9576, %v9577
        %v9580 = vsel %vm1056, %v9572, %v9579
        %v9582 = vshrl.u32 %v8764, 16
        %v9584 = vrot.slane %v9582, 7
        %v9586 = vshrl.u32 %v8768, 16
        %v9588 = vrot.slane %v9586, 7
        %v9589 = vshll.u32 %v8768, 16
        %v9591 = vor.u32 %v9588, %v9589
        %v9592 = vsel %vm1056, %v9584, %v9591
        %v9594 = vshrl.u32 %v8359, 16
        %v9596 = vrot.slane %v9594, 7
        %v9597 = vrot.slane %v8593, 7
        %v9598 = vor.u32 %v9597, %v8586
        %v9599 = vsel %vm1056, %v9596, %v9598
        %v9601 = vshrl.u32 %v8360, 16
        %v9603 = vrot.slane %v9601, 7
        %v9604 = vrot.slane %v8596, 7
        %v9605 = vor.u32 %v9604, %v8590
        %v9606 = vsel %vm1056, %v9603, %v9605
        %v9608 = vshrl.u32 %v8588, 16
        %v9610 = vrot.slane %v9608, 7
        %v9612 = vshrl.u32 %v8595, 16
        %v9614 = vrot.slane %v9612, 7
        %v9615 = vshll.u32 %v8595, 16
        %v9617 = vor.u32 %v9614, %v9615
        %v9618 = vsel %vm1056, %v9610, %v9617
        %v9620 = vshrl.u32 %v8592, 16
        %v9622 = vrot.slane %v9620, 7
        %v9624 = vshrl.u32 %v8598, 16
        %v9626 = vrot.slane %v9624, 7
        %v9627 = vshll.u32 %v8598, 16
        %v9629 = vor.u32 %v9626, %v9627
        %v9630 = vsel %vm1056, %v9622, %v9629
        %v9632 = vshrl.u32 %v8769, 16
        %v9634 = vrot.slane %v9632, 7
        %v9636 = vshrl.u32 %v8772, 16
        %v9638 = vrot.slane %v9636, 7
        %v9639 = vshll.u32 %v8772, 16
        %v9641 = vor.u32 %v9638, %v9639
        %v9642 = vsel %vm1056, %v9634, %v9641
        %v9644 = vshrl.u32 %v8770, 16
        %v9646 = vrot.slane %v9644, 7
        %v9648 = vshrl.u32 %v8774, 16
        %v9650 = vrot.slane %v9648, 7
        %v9651 = vshll.u32 %v8774, 16
        %v9653 = vor.u32 %v9650, %v9651
        %v9654 = vsel %vm1056, %v9646, %v9653
        %v9656 = vshrl.u32 %v8363, 16
        %v9658 = vrot.slane %v9656, 7
        %v9659 = vrot.slane %v8607, 7
        %v9660 = vor.u32 %v9659, %v8600
        %v9661 = vsel %vm1056, %v9658, %v9660
        %v9663 = vshrl.u32 %v8364, 16
        %v9665 = vrot.slane %v9663, 7
        %v9666 = vrot.slane %v8610, 7
        %v9667 = vor.u32 %v9666, %v8604
        %v9668 = vsel %vm1056, %v9665, %v9667
        %v9670 = vshrl.u32 %v8602, 16
        %v9672 = vrot.slane %v9670, 7
        %v9674 = vshrl.u32 %v8609, 16
        %v9676 = vrot.slane %v9674, 7
        %v9677 = vshll.u32 %v8609, 16
        %v9679 = vor.u32 %v9676, %v9677
        %v9680 = vsel %vm1056, %v9672, %v9679
        %v9682 = vshrl.u32 %v8606, 16
        %v9684 = vrot.slane %v9682, 7
        %v9686 = vshrl.u32 %v8612, 16
        %v9688 = vrot.slane %v9686, 7
        %v9689 = vshll.u32 %v8612, 16
        %v9691 = vor.u32 %v9688, %v9689
        %v9692 = vsel %vm1056, %v9684, %v9691
        %v9694 = vshrl.u32 %v8775, 16
        %v9696 = vrot.slane %v9694, 7
        %v9698 = vshrl.u32 %v8778, 16
        %v9700 = vrot.slane %v9698, 7
        %v9701 = vshll.u32 %v8778, 16
        %v9703 = vor.u32 %v9700, %v9701
        %v9704 = vsel %vm1056, %v9696, %v9703
        %v9706 = vshrl.u32 %v8776, 16
        %v9708 = vrot.slane %v9706, 7
        %v9710 = vshrl.u32 %v8780, 16
        %v9712 = vrot.slane %v9710, 7
        %v9713 = vshll.u32 %v8780, 16
        %v9715 = vor.u32 %v9712, %v9713
        %v9716 = vsel %vm1056, %v9708, %v9715
        %v9718 = vshrl.u32 %v8367, 16
        %v9720 = vrot.slane %v9718, 7
        %v9721 = vrot.slane %v8621, 7
        %v9722 = vor.u32 %v9721, %v8614
        %v9723 = vsel %vm1056, %v9720, %v9722
        %v9725 = vshrl.u32 %v8368, 16
        %v9727 = vrot.slane %v9725, 7
        %v9728 = vrot.slane %v8624, 7
        %v9729 = vor.u32 %v9728, %v8618
        %v9730 = vsel %vm1056, %v9727, %v9729
        %v9732 = vshrl.u32 %v8616, 16
        %v9734 = vrot.slane %v9732, 7
        %v9736 = vshrl.u32 %v8623, 16
        %v9738 = vrot.slane %v9736, 7
        %v9739 = vshll.u32 %v8623, 16
        %v9741 = vor.u32 %v9738, %v9739
        %v9742 = vsel %vm1056, %v9734, %v9741
        %v9744 = vshrl.u32 %v8620, 16
        %v9746 = vrot.slane %v9744, 7
        %v9748 = vshrl.u32 %v8626, 16
        %v9750 = vrot.slane %v9748, 7
        %v9751 = vshll.u32 %v8626, 16
        %v9753 = vor.u32 %v9750, %v9751
        %v9754 = vsel %vm1056, %v9746, %v9753
        %v9756 = vshrl.u32 %v8781, 16
        %v9758 = vrot.slane %v9756, 7
        %v9760 = vshrl.u32 %v8784, 16
        %v9762 = vrot.slane %v9760, 7
        %v9763 = vshll.u32 %v8784, 16
        %v9765 = vor.u32 %v9762, %v9763
        %v9766 = vsel %vm1056, %v9758, %v9765
        %v9768 = vshrl.u32 %v8782, 16
        %v9770 = vrot.slane %v9768, 7
        %v9772 = vshrl.u32 %v8786, 16
        %v9774 = vrot.slane %v9772, 7
        %v9775 = vshll.u32 %v8786, 16
        %v9777 = vor.u32 %v9774, %v9775
        %v9778 = vsel %vm1056, %v9770, %v9777
        %s9875 = scalar_lea.vmem [#allocation10], 384
        %v9876 = vld [vmem:[%s9875] sm:$0xf]
        %v9877 = vld [vmem:[%s9875 + $0x4] sm:$0xf]
        %v9878 = vld [vmem:[%s9875 + $0x8] sm:$0xf]
        %v9879 = vld [vmem:[%s9875 + $0xc] sm:$0xf]
        %v9880 = vld [vmem:[%s9875 + $0x10] sm:$0xf]
        %v9881 = vld [vmem:[%s9875 + $0x14] sm:$0xf]
        %v9882 = vld [vmem:[%s9875 + $0x18] sm:$0xf]
        %v9883 = vld [vmem:[%s9875 + $0x1c] sm:$0xf]
        %v9884 = vld [vmem:[%s9875 + $0x20] sm:$0xf]
        %v9885 = vld [vmem:[%s9875 + $0x24] sm:$0xf]
        %v9886 = vld [vmem:[%s9875 + $0x28] sm:$0xf]
        %v9887 = vld [vmem:[%s9875 + $0x2c] sm:$0xf]
        %v9888 = vld [vmem:[%s9875 + $0x30] sm:$0xf]
        %v9889 = vld [vmem:[%s9875 + $0x34] sm:$0xf]
        %v9890 = vld [vmem:[%s9875 + $0x38] sm:$0xf]
        %v9891 = vld [vmem:[%s9875 + $0x3c] sm:$0xf]
        %v9892 = vld [vmem:[%s9875 + $0x40] sm:$0xf]
        %v9893 = vld [vmem:[%s9875 + $0x44] sm:$0xf]
        %v9894 = vld [vmem:[%s9875 + $0x48] sm:$0xf]
        %v9895 = vld [vmem:[%s9875 + $0x4c] sm:$0xf]
        %v9896 = vld [vmem:[%s9875 + $0x50] sm:$0xf]
        %v9897 = vld [vmem:[%s9875 + $0x54] sm:$0xf]
        %v9898 = vld [vmem:[%s9875 + $0x58] sm:$0xf]
        %v9899 = vld [vmem:[%s9875 + $0x5c] sm:$0xf]
        %v9900 = vld [vmem:[%s9875 + $0x60] sm:$0xf]
        %v9901 = vld [vmem:[%s9875 + $0x64] sm:$0xf]
        %v9902 = vld [vmem:[%s9875 + $0x68] sm:$0xf]
        %v9903 = vld [vmem:[%s9875 + $0x6c] sm:$0xf]
        %v9904 = vld [vmem:[%s9875 + $0x70] sm:$0xf]
        %v9905 = vld [vmem:[%s9875 + $0x74] sm:$0xf]
        %v9906 = vld [vmem:[%s9875 + $0x78] sm:$0xf]
        %v9907 = vld [vmem:[%s9875 + $0x7c] sm:$0xf]
        %v9908 = vld [vmem:[%s9875 + $0x80] sm:$0xf]
        %v9909 = vld [vmem:[%s9875 + $0x84] sm:$0xf]
        %v9910 = vld [vmem:[%s9875 + $0x88] sm:$0xf]
        %v9911 = vld [vmem:[%s9875 + $0x8c] sm:$0xf]
        %v9912 = vld [vmem:[%s9875 + $0x90] sm:$0xf]
        %v9913 = vld [vmem:[%s9875 + $0x94] sm:$0xf]
        %v9914 = vld [vmem:[%s9875 + $0x98] sm:$0xf]
        %v9915 = vld [vmem:[%s9875 + $0x9c] sm:$0xf]
        %v9916 = vld [vmem:[%s9875 + $0xa0] sm:$0xf]
        %v9917 = vld [vmem:[%s9875 + $0xa4] sm:$0xf]
        %v9918 = vld [vmem:[%s9875 + $0xa8] sm:$0xf]
        %v9919 = vld [vmem:[%s9875 + $0xac] sm:$0xf]
        %v9920 = vld [vmem:[%s9875 + $0xb0] sm:$0xf]
        %v9921 = vld [vmem:[%s9875 + $0xb4] sm:$0xf]
        %v9922 = vld [vmem:[%s9875 + $0xb8] sm:$0xf]
        %v9923 = vld [vmem:[%s9875 + $0xbc] sm:$0xf]
        %v9924 = vld [vmem:[%s9875 + $0xc0] sm:$0xf]
        %v9925 = vld [vmem:[%s9875 + $0xc4] sm:$0xf]
        %v9926 = vld [vmem:[%s9875 + $0xc8] sm:$0xf]
        %v9927 = vld [vmem:[%s9875 + $0xcc] sm:$0xf]
        %v9928 = vld [vmem:[%s9875 + $0xd0] sm:$0xf]
        %v9929 = vld [vmem:[%s9875 + $0xd4] sm:$0xf]
        %v9930 = vld [vmem:[%s9875 + $0xd8] sm:$0xf]
        %v9931 = vld [vmem:[%s9875 + $0xdc] sm:$0xf]
        %v9932 = vld [vmem:[%s9875 + $0xe0] sm:$0xf]
        %v9933 = vld [vmem:[%s9875 + $0xe4] sm:$0xf]
        %v9934 = vld [vmem:[%s9875 + $0xe8] sm:$0xf]
        %v9935 = vld [vmem:[%s9875 + $0xec] sm:$0xf]
        %v9936 = vld [vmem:[%s9875 + $0xf0] sm:$0xf]
        %v9937 = vld [vmem:[%s9875 + $0xf4] sm:$0xf]
        %v9938 = vld [vmem:[%s9875 + $0xf8] sm:$0xf]
        %v9939 = vld [vmem:[%s9875 + $0xfc] sm:$0xf]
        %v9940 = vld [vmem:[%s9875 + $0x100] sm:$0xf]
        %v9941 = vld [vmem:[%s9875 + $0x104] sm:$0xf]
        %v9942 = vld [vmem:[%s9875 + $0x108] sm:$0xf]
        %v9943 = vld [vmem:[%s9875 + $0x10c] sm:$0xf]
        %v9944 = vld [vmem:[%s9875 + $0x110] sm:$0xf]
        %v9945 = vld [vmem:[%s9875 + $0x114] sm:$0xf]
        %v9946 = vld [vmem:[%s9875 + $0x118] sm:$0xf]
        %v9947 = vld [vmem:[%s9875 + $0x11c] sm:$0xf]
        %v9948 = vld [vmem:[%s9875 + $0x120] sm:$0xf]
        %v9949 = vld [vmem:[%s9875 + $0x124] sm:$0xf]
        %v9950 = vld [vmem:[%s9875 + $0x128] sm:$0xf]
        %v9951 = vld [vmem:[%s9875 + $0x12c] sm:$0xf]
        %v9952 = vld [vmem:[%s9875 + $0x130] sm:$0xf]
        %v9953 = vld [vmem:[%s9875 + $0x134] sm:$0xf]
        %v9954 = vld [vmem:[%s9875 + $0x138] sm:$0xf]
        %v9955 = vld [vmem:[%s9875 + $0x13c] sm:$0xf]
        %v9956 = vld [vmem:[%s9875 + $0x140] sm:$0xf]
        %v9957 = vld [vmem:[%s9875 + $0x144] sm:$0xf]
        %v9958 = vld [vmem:[%s9875 + $0x148] sm:$0xf]
        %v9959 = vld [vmem:[%s9875 + $0x14c] sm:$0xf]
        %v9960 = vld [vmem:[%s9875 + $0x150] sm:$0xf]
        %v9961 = vld [vmem:[%s9875 + $0x154] sm:$0xf]
        %v9962 = vld [vmem:[%s9875 + $0x158] sm:$0xf]
        %v9963 = vld [vmem:[%s9875 + $0x15c] sm:$0xf]
        %v9964 = vld [vmem:[%s9875 + $0x160] sm:$0xf]
        %v9965 = vld [vmem:[%s9875 + $0x164] sm:$0xf]
        %v9966 = vld [vmem:[%s9875 + $0x168] sm:$0xf]
        %v9967 = vld [vmem:[%s9875 + $0x16c] sm:$0xf]
        %v9968 = vld [vmem:[%s9875 + $0x170] sm:$0xf]
        %v9969 = vld [vmem:[%s9875 + $0x174] sm:$0xf]
        %v9970 = vld [vmem:[%s9875 + $0x178] sm:$0xf]
        %v9971 = vld [vmem:[%s9875 + $0x17c] sm:$0xf]
        %v10068 = vunpack.c.l.b16 %v9876
        %v10069 = vunpack.c.l.b16 %v9877
        %v10070 = vunpack.c.l.b16 %v9878
        %v10071 = vunpack.c.l.b16 %v9879
        %v10072 = vunpack.c.l.b16 %v9880
        %v10073 = vunpack.c.l.b16 %v9881
        %v10074 = vunpack.c.l.b16 %v9882
        %v10075 = vunpack.c.l.b16 %v9883
        %v10076 = vunpack.c.l.b16 %v9884
        %v10077 = vunpack.c.l.b16 %v9885
        %v10078 = vunpack.c.l.b16 %v9886
        %v10079 = vunpack.c.l.b16 %v9887
        %v10080 = vunpack.c.l.b16 %v9888
        %v10081 = vunpack.c.l.b16 %v9889
        %v10082 = vunpack.c.l.b16 %v9890
        %v10083 = vunpack.c.l.b16 %v9891
        %v10084 = vunpack.c.l.b16 %v9892
        %v10085 = vunpack.c.l.b16 %v9893
        %v10086 = vunpack.c.l.b16 %v9894
        %v10087 = vunpack.c.l.b16 %v9895
        %v10088 = vunpack.c.l.b16 %v9896
        %v10089 = vunpack.c.l.b16 %v9897
        %v10090 = vunpack.c.l.b16 %v9898
        %v10091 = vunpack.c.l.b16 %v9899
        %v10092 = vunpack.c.l.b16 %v9900
        %v10093 = vunpack.c.l.b16 %v9901
        %v10094 = vunpack.c.l.b16 %v9902
        %v10095 = vunpack.c.l.b16 %v9903
        %v10096 = vunpack.c.l.b16 %v9904
        %v10097 = vunpack.c.l.b16 %v9905
        %v10098 = vunpack.c.l.b16 %v9906
        %v10099 = vunpack.c.l.b16 %v9907
        %v10100 = vunpack.c.l.b16 %v9908
        %v10101 = vunpack.c.l.b16 %v9909
        %v10102 = vunpack.c.l.b16 %v9910
        %v10103 = vunpack.c.l.b16 %v9911
        %v10104 = vunpack.c.l.b16 %v9912
        %v10105 = vunpack.c.l.b16 %v9913
        %v10106 = vunpack.c.l.b16 %v9914
        %v10107 = vunpack.c.l.b16 %v9915
        %v10108 = vunpack.c.l.b16 %v9916
        %v10109 = vunpack.c.l.b16 %v9917
        %v10110 = vunpack.c.l.b16 %v9918
        %v10111 = vunpack.c.l.b16 %v9919
        %v10112 = vunpack.c.l.b16 %v9920
        %v10113 = vunpack.c.l.b16 %v9921
        %v10114 = vunpack.c.l.b16 %v9922
        %v10115 = vunpack.c.l.b16 %v9923
        %v10116 = vunpack.c.l.b16 %v9924
        %v10117 = vunpack.c.l.b16 %v9925
        %v10118 = vunpack.c.l.b16 %v9926
        %v10119 = vunpack.c.l.b16 %v9927
        %v10120 = vunpack.c.l.b16 %v9928
        %v10121 = vunpack.c.l.b16 %v9929
        %v10122 = vunpack.c.l.b16 %v9930
        %v10123 = vunpack.c.l.b16 %v9931
        %v10124 = vunpack.c.l.b16 %v9932
        %v10125 = vunpack.c.l.b16 %v9933
        %v10126 = vunpack.c.l.b16 %v9934
        %v10127 = vunpack.c.l.b16 %v9935
        %v10128 = vunpack.c.l.b16 %v9936
        %v10129 = vunpack.c.l.b16 %v9937
        %v10130 = vunpack.c.l.b16 %v9938
        %v10131 = vunpack.c.l.b16 %v9939
        %v10132 = vunpack.c.l.b16 %v9940
        %v10133 = vunpack.c.l.b16 %v9941
        %v10134 = vunpack.c.l.b16 %v9942
        %v10135 = vunpack.c.l.b16 %v9943
        %v10136 = vunpack.c.l.b16 %v9944
        %v10137 = vunpack.c.l.b16 %v9945
        %v10138 = vunpack.c.l.b16 %v9946
        %v10139 = vunpack.c.l.b16 %v9947
        %v10140 = vunpack.c.l.b16 %v9948
        %v10141 = vunpack.c.l.b16 %v9949
        %v10142 = vunpack.c.l.b16 %v9950
        %v10143 = vunpack.c.l.b16 %v9951
        %v10144 = vunpack.c.l.b16 %v9952
        %v10145 = vunpack.c.l.b16 %v9953
        %v10146 = vunpack.c.l.b16 %v9954
        %v10147 = vunpack.c.l.b16 %v9955
        %v10148 = vunpack.c.l.b16 %v9956
        %v10149 = vunpack.c.l.b16 %v9957
        %v10150 = vunpack.c.l.b16 %v9958
        %v10151 = vunpack.c.l.b16 %v9959
        %v10152 = vunpack.c.l.b16 %v9960
        %v10153 = vunpack.c.l.b16 %v9961
        %v10154 = vunpack.c.l.b16 %v9962
        %v10155 = vunpack.c.l.b16 %v9963
        %v10156 = vunpack.c.l.b16 %v9964
        %v10157 = vunpack.c.l.b16 %v9965
        %v10158 = vunpack.c.l.b16 %v9966
        %v10159 = vunpack.c.l.b16 %v9967
        %v10160 = vunpack.c.l.b16 %v9968
        %v10161 = vunpack.c.l.b16 %v9969
        %v10162 = vunpack.c.l.b16 %v9970
        %v10163 = vunpack.c.l.b16 %v9971
        %v10164 = vpack.c.b16 %v10069, %v10068
        %v10165 = vpack.c.b16 %v10071, %v10070
        %v10166 = vpack.c.b16 %v10073, %v10072
        %v10167 = vpack.c.b16 %v10075, %v10074
        %v10168 = vpack.c.b16 %v10077, %v10076
        %v10169 = vpack.c.b16 %v10079, %v10078
        %v10170 = vpack.c.b16 %v10081, %v10080
        %v10171 = vpack.c.b16 %v10083, %v10082
        %v10172 = vpack.c.b16 %v10085, %v10084
        %v10173 = vpack.c.b16 %v10087, %v10086
        %v10174 = vpack.c.b16 %v10089, %v10088
        %v10175 = vpack.c.b16 %v10091, %v10090
        %v10176 = vpack.c.b16 %v10093, %v10092
        %v10177 = vpack.c.b16 %v10095, %v10094
        %v10178 = vpack.c.b16 %v10097, %v10096
        %v10179 = vpack.c.b16 %v10099, %v10098
        %v10180 = vpack.c.b16 %v10101, %v10100
        %v10181 = vpack.c.b16 %v10103, %v10102
        %v10182 = vpack.c.b16 %v10105, %v10104
        %v10183 = vpack.c.b16 %v10107, %v10106
        %v10184 = vpack.c.b16 %v10109, %v10108
        %v10185 = vpack.c.b16 %v10111, %v10110
        %v10186 = vpack.c.b16 %v10113, %v10112
        %v10187 = vpack.c.b16 %v10115, %v10114
        %v10188 = vpack.c.b16 %v10117, %v10116
        %v10189 = vpack.c.b16 %v10119, %v10118
        %v10190 = vpack.c.b16 %v10121, %v10120
        %v10191 = vpack.c.b16 %v10123, %v10122
        %v10192 = vpack.c.b16 %v10125, %v10124
        %v10193 = vpack.c.b16 %v10127, %v10126
        %v10194 = vpack.c.b16 %v10129, %v10128
        %v10195 = vpack.c.b16 %v10131, %v10130
        %v10196 = vpack.c.b16 %v10133, %v10132
        %v10197 = vpack.c.b16 %v10135, %v10134
        %v10198 = vpack.c.b16 %v10137, %v10136
        %v10199 = vpack.c.b16 %v10139, %v10138
        %v10200 = vpack.c.b16 %v10141, %v10140
        %v10201 = vpack.c.b16 %v10143, %v10142
        %v10202 = vpack.c.b16 %v10145, %v10144
        %v10203 = vpack.c.b16 %v10147, %v10146
        %v10204 = vpack.c.b16 %v10149, %v10148
        %v10205 = vpack.c.b16 %v10151, %v10150
        %v10206 = vpack.c.b16 %v10153, %v10152
        %v10207 = vpack.c.b16 %v10155, %v10154
        %v10208 = vpack.c.b16 %v10157, %v10156
        %v10209 = vpack.c.b16 %v10159, %v10158
        %v10210 = vpack.c.b16 %v10161, %v10160
        %v10211 = vpack.c.b16 %v10163, %v10162
        %10260 = vmatprep.subr.bf16.mxu0 0
        %10261 = vmatpush1.bf16.msra.mxu0 %v10164
        %10262 = vmatprep.subr.bf16.mxu0 0
        %10263 = vmatpush1.bf16.msra.mxu0 %v10165
        %10264 = vmatprep.subr.bf16.mxu0 0
        %10265 = vmatpush1.bf16.msra.mxu0 %v10166
        %10266 = vmatprep.subr.bf16.mxu0 0
        %10267 = vmatpush1.bf16.msra.mxu0 %v10167
        %10268 = vmatprep.subr.bf16.mxu0 0
        %10269 = vmatpush1.bf16.msra.mxu0 %v10168
        %10270 = vmatprep.subr.bf16.mxu0 0
        %10271 = vmatpush1.bf16.msra.mxu0 %v10169
        %10272 = vmatprep.subr.bf16.mxu0 0
        %10273 = vmatpush1.bf16.msra.mxu0 %v10170
        %10274 = vmatprep.subr.bf16.mxu0 0
        %10275 = vmatpush1.bf16.msra.mxu0 %v10171
        %10276 = vmatprep.subr.bf16.mxu0 0
        %10277 = vmatpush1.bf16.msra.mxu0 %v10172
        %10278 = vmatprep.subr.bf16.mxu0 0
        %10279 = vmatpush1.bf16.msra.mxu0 %v10173
        %10280 = vmatprep.subr.bf16.mxu0 0
        %10281 = vmatpush1.bf16.msra.mxu0 %v10174
        %10282 = vmatprep.subr.bf16.mxu0 0
        %10283 = vmatpush1.bf16.msra.mxu0 %v10175
        %10284 = vmatprep.subr.bf16.mxu0 0
        %10285 = vmatpush1.bf16.msra.mxu0 %v10176
        %10286 = vmatprep.subr.bf16.mxu0 0
        %10287 = vmatpush1.bf16.msra.mxu0 %v10177
        %10288 = vmatprep.subr.bf16.mxu0 0
        %10289 = vmatpush1.bf16.msra.mxu0 %v10178
        %10290 = vmatprep.subr.bf16.mxu0 0
        %10291 = vmatpush1.bf16.msra.mxu0 %v10179
        %10292 = vmatprep.mubr.bf16.mxu0 %v8800
        %10293 = vmatmul.mubr.bf16.gmra.mrb[0].mxu0 %v8793
        %v10294 = vpop.f32.mrb[0].mxu0
        %v10295 = vadd.f32 0.0, %v10294
        %v10296 = vpop.f32.mrb[0].mxu0
        %v10297 = vpop.f32.mrb[0].mxu0
        %v10298 = vadd.f32 0.0, %v10297
        %v10299 = vpop.f32.mrb[0].mxu0
        %10300 = vmatprep.mubr.bf16.mxu0 %v8862
        %10301 = vmatmul.mubr.bf16.gmra.mrb[0].mxu0 %v8855
        %v10302 = vpop.f32.mrb[0].mxu0
        %v10303 = vadd.f32 0.0, %v10302
        %v10304 = vpop.f32.mrb[0].mxu0
        %v10305 = vpop.f32.mrb[0].mxu0
        %v10306 = vadd.f32 0.0, %v10305
        %v10307 = vpop.f32.mrb[0].mxu0
        %10308 = vmatprep.mubr.bf16.mxu0 %v8924
        %10309 = vmatmul.mubr.bf16.gmra.mrb[0].mxu0 %v8917
        %v10310 = vpop.f32.mrb[0].mxu0
        %v10311 = vadd.f32 0.0, %v10310
        %v10312 = vpop.f32.mrb[0].mxu0
        %v10313 = vpop.f32.mrb[0].mxu0
        %v10314 = vadd.f32 0.0, %v10313
        %v10315 = vpop.f32.mrb[0].mxu0
        %10316 = vmatprep.mubr.bf16.mxu0 %v8986
        %10317 = vmatmul.mubr.bf16.gmra.mrb[0].mxu0 %v8979
        %v10318 = vpop.f32.mrb[0].mxu0
        %v10319 = vadd.f32 0.0, %v10318
        %v10320 = vpop.f32.mrb[0].mxu0
        %v10321 = vpop.f32.mrb[0].mxu0
        %v10322 = vadd.f32 0.0, %v10321
        %v10323 = vpop.f32.mrb[0].mxu0
        %10324 = vmatprep.mubr.bf16.mxu0 %v9048
        %10325 = vmatmul.mubr.bf16.gmra.mrb[0].mxu0 %v9041
        %v10326 = vpop.f32.mrb[0].mxu0
        %v10327 = vadd.f32 0.0, %v10326
        %v10328 = vpop.f32.mrb[0].mxu0
        %v10329 = vpop.f32.mrb[0].mxu0
        %v10330 = vadd.f32 0.0, %v10329
        %v10331 = vpop.f32.mrb[0].mxu0
        %10332 = vmatprep.mubr.bf16.mxu0 %v9110
        %10333 = vmatmul.mubr.bf16.gmra.mrb[0].mxu0 %v9103
        %v10334 = vpop.f32.mrb[0].mxu0
        %v10335 = vadd.f32 0.0, %v10334
        %v10336 = vpop.f32.mrb[0].mxu0
        %v10337 = vpop.f32.mrb[0].mxu0
        %v10338 = vadd.f32 0.0, %v10337
        %v10339 = vpop.f32.mrb[0].mxu0
        %10340 = vmatprep.mubr.bf16.mxu0 %v9172
        %10341 = vmatmul.mubr.bf16.gmra.mrb[0].mxu0 %v9165
        %v10342 = vpop.f32.mrb[0].mxu0
        %v10343 = vadd.f32 0.0, %v10342
        %v10344 = vpop.f32.mrb[0].mxu0
        %v10345 = vpop.f32.mrb[0].mxu0
        %v10346 = vadd.f32 0.0, %v10345
        %v10347 = vpop.f32.mrb[0].mxu0
        %10348 = vmatprep.mubr.bf16.mxu0 %v9234
        %10349 = vmatmul.mubr.bf16.gmra.mrb[0].mxu0 %v9227
        %v10350 = vpop.f32.mrb[0].mxu0
        %v10351 = vadd.f32 0.0, %v10350
        %v10352 = vpop.f32.mrb[0].mxu0
        %v10353 = vpop.f32.mrb[0].mxu0
        %v10354 = vadd.f32 0.0, %v10353
        %v10355 = vpop.f32.mrb[0].mxu0
        %10356 = vmatprep.mubr.bf16.mxu0 %v9296
        %10357 = vmatmul.mubr.bf16.gmra.mrb[0].mxu0 %v9289
        %v10358 = vpop.f32.mrb[0].mxu0
        %v10359 = vadd.f32 0.0, %v10358
        %v10360 = vpop.f32.mrb[0].mxu0
        %v10361 = vpop.f32.mrb[0].mxu0
        %v10362 = vadd.f32 0.0, %v10361
        %v10363 = vpop.f32.mrb[0].mxu0
        %10364 = vmatprep.mubr.bf16.mxu0 %v9358
        %10365 = vmatmul.mubr.bf16.gmra.mrb[0].mxu0 %v9351
        %v10366 = vpop.f32.mrb[0].mxu0
        %v10367 = vadd.f32 0.0, %v10366
        %v10368 = vpop.f32.mrb[0].mxu0
        %v10369 = vpop.f32.mrb[0].mxu0
        %v10370 = vadd.f32 0.0, %v10369
        %v10371 = vpop.f32.mrb[0].mxu0
        %10372 = vmatprep.mubr.bf16.mxu0 %v9420
        %10373 = vmatmul.mubr.bf16.gmra.mrb[0].mxu0 %v9413
        %v10374 = vpop.f32.mrb[0].mxu0
        %v10375 = vadd.f32 0.0, %v10374
        %v10376 = vpop.f32.mrb[0].mxu0
        %v10377 = vpop.f32.mrb[0].mxu0
        %v10378 = vadd.f32 0.0, %v10377
        %v10379 = vpop.f32.mrb[0].mxu0
        %10380 = vmatprep.mubr.bf16.mxu0 %v9482
        %10381 = vmatmul.mubr.bf16.gmra.mrb[0].mxu0 %v9475
        %v10382 = vpop.f32.mrb[0].mxu0
        %v10383 = vadd.f32 0.0, %v10382
        %v10384 = vpop.f32.mrb[0].mxu0
        %v10385 = vpop.f32.mrb[0].mxu0
        %v10386 = vadd.f32 0.0, %v10385
        %v10387 = vpop.f32.mrb[0].mxu0
        %10388 = vmatprep.mubr.bf16.mxu0 %v9544
        %10389 = vmatmul.mubr.bf16.gmra.mrb[0].mxu0 %v9537
        %v10390 = vpop.f32.mrb[0].mxu0
        %v10391 = vadd.f32 0.0, %v10390
        %v10392 = vpop.f32.mrb[0].mxu0
        %v10393 = vpop.f32.mrb[0].mxu0
        %v10394 = vadd.f32 0.0, %v10393
        %v10395 = vpop.f32.mrb[0].mxu0
        %10396 = vmatprep.mubr.bf16.mxu0 %v9606
        %10397 = vmatmul.mubr.bf16.gmra.mrb[0].mxu0 %v9599
        %v10398 = vpop.f32.mrb[0].mxu0
        %v10399 = vadd.f32 0.0, %v10398
        %v10400 = vpop.f32.mrb[0].mxu0
        %v10401 = vpop.f32.mrb[0].mxu0
        %v10402 = vadd.f32 0.0, %v10401
        %v10403 = vpop.f32.mrb[0].mxu0
        %10404 = vmatprep.mubr.bf16.mxu0 %v9668
        %10405 = vmatmul.mubr.bf16.gmra.mrb[0].mxu0 %v9661
        %v10406 = vpop.f32.mrb[0].mxu0
        %v10407 = vadd.f32 0.0, %v10406
        %v10408 = vpop.f32.mrb[0].mxu0
        %v10409 = vpop.f32.mrb[0].mxu0
        %v10410 = vadd.f32 0.0, %v10409
        %v10411 = vpop.f32.mrb[0].mxu0
        %10412 = vmatprep.mubr.bf16.mxu0 %v9730
        %10413 = vmatmul.mubr.bf16.gmra.mrb[0].mxu0 %v9723
        %v10414 = vpop.f32.mrb[0].mxu0
        %v10415 = vadd.f32 0.0, %v10414
        %v10416 = vpop.f32.mrb[0].mxu0
        %v10417 = vpop.f32.mrb[0].mxu0
        %v10418 = vadd.f32 0.0, %v10417
        %v10419 = vpop.f32.mrb[0].mxu0
        %10420 = vdwg.mxu0
        %10421 = vmatprep.subr.bf16.mxu0 0
        %10422 = vmatpush1.bf16.msra.mxu0 %v10180
        %10423 = vmatprep.subr.bf16.mxu0 0
        %10424 = vmatpush1.bf16.msra.mxu0 %v10181
        %10425 = vmatprep.subr.bf16.mxu0 0
        %10426 = vmatpush1.bf16.msra.mxu0 %v10182
        %10427 = vmatprep.subr.bf16.mxu0 0
        %10428 = vmatpush1.bf16.msra.mxu0 %v10183
        %10429 = vmatprep.subr.bf16.mxu0 0
        %10430 = vmatpush1.bf16.msra.mxu0 %v10184
        %10431 = vmatprep.subr.bf16.mxu0 0
        %10432 = vmatpush1.bf16.msra.mxu0 %v10185
        %10433 = vmatprep.subr.bf16.mxu0 0
        %10434 = vmatpush1.bf16.msra.mxu0 %v10186
        %10435 = vmatprep.subr.bf16.mxu0 0
        %10436 = vmatpush1.bf16.msra.mxu0 %v10187
        %10437 = vmatprep.subr.bf16.mxu0 0
        %10438 = vmatpush1.bf16.msra.mxu0 %v10188
        %10439 = vmatprep.subr.bf16.mxu0 0
        %10440 = vmatpush1.bf16.msra.mxu0 %v10189
        %10441 = vmatprep.subr.bf16.mxu0 0
        %10442 = vmatpush1.bf16.msra.mxu0 %v10190
        %10443 = vmatprep.subr.bf16.mxu0 0
        %10444 = vmatpush1.bf16.msra.mxu0 %v10191
        %10445 = vmatprep.subr.bf16.mxu0 0
        %10446 = vmatpush1.bf16.msra.mxu0 %v10192
        %10447 = vmatprep.subr.bf16.mxu0 0
        %10448 = vmatpush1.bf16.msra.mxu0 %v10193
        %10449 = vmatprep.subr.bf16.mxu0 0
        %10450 = vmatpush1.bf16.msra.mxu0 %v10194
        %10451 = vmatprep.subr.bf16.mxu0 0
        %10452 = vmatpush1.bf16.msra.mxu0 %v10195
        %10453 = vmatprep.mubr.bf16.mxu0 %v8824
        %10454 = vmatmul.mubr.bf16.gmra.mrb[0].mxu0 %v8812
        %v10455 = vpop.f32.mrb[0].mxu0
        %v10456 = vadd.f32 %v10295, %v10455
        %v10457 = vpop.f32.mrb[0].mxu0
        %v10458 = vpop.f32.mrb[0].mxu0
        %v10459 = vadd.f32 %v10298, %v10458
        %v10460 = vpop.f32.mrb[0].mxu0
        %10461 = vmatprep.mubr.bf16.mxu0 %v8886
        %10462 = vmatmul.mubr.bf16.gmra.mrb[0].mxu0 %v8874
        %v10463 = vpop.f32.mrb[0].mxu0
        %v10464 = vadd.f32 %v10303, %v10463
        %v10465 = vpop.f32.mrb[0].mxu0
        %v10466 = vpop.f32.mrb[0].mxu0
        %v10467 = vadd.f32 %v10306, %v10466
        %v10468 = vpop.f32.mrb[0].mxu0
        %10469 = vmatprep.mubr.bf16.mxu0 %v8948
        %10470 = vmatmul.mubr.bf16.gmra.mrb[0].mxu0 %v8936
        %v10471 = vpop.f32.mrb[0].mxu0
        %v10472 = vadd.f32 %v10311, %v10471
        %v10473 = vpop.f32.mrb[0].mxu0
        %v10474 = vpop.f32.mrb[0].mxu0
        %v10475 = vadd.f32 %v10314, %v10474
        %v10476 = vpop.f32.mrb[0].mxu0
        %10477 = vmatprep.mubr.bf16.mxu0 %v9010
        %10478 = vmatmul.mubr.bf16.gmra.mrb[0].mxu0 %v8998
        %v10479 = vpop.f32.mrb[0].mxu0
        %v10480 = vadd.f32 %v10319, %v10479
        %v10481 = vpop.f32.mrb[0].mxu0
        %v10482 = vpop.f32.mrb[0].mxu0
        %v10483 = vadd.f32 %v10322, %v10482
        %v10484 = vpop.f32.mrb[0].mxu0
        %10485 = vmatprep.mubr.bf16.mxu0 %v9072
        %10486 = vmatmul.mubr.bf16.gmra.mrb[0].mxu0 %v9060
        %v10487 = vpop.f32.mrb[0].mxu0
        %v10488 = vadd.f32 %v10327, %v10487
        %v10489 = vpop.f32.mrb[0].mxu0
        %v10490 = vpop.f32.mrb[0].mxu0
        %v10491 = vadd.f32 %v10330, %v10490
        %v10492 = vpop.f32.mrb[0].mxu0
        %10493 = vmatprep.mubr.bf16.mxu0 %v9134
        %10494 = vmatmul.mubr.bf16.gmra.mrb[0].mxu0 %v9122
        %v10495 = vpop.f32.mrb[0].mxu0
        %v10496 = vadd.f32 %v10335, %v10495
        %v10497 = vpop.f32.mrb[0].mxu0
        %v10498 = vpop.f32.mrb[0].mxu0
        %v10499 = vadd.f32 %v10338, %v10498
        %v10500 = vpop.f32.mrb[0].mxu0
        %10501 = vmatprep.mubr.bf16.mxu0 %v9196
        %10502 = vmatmul.mubr.bf16.gmra.mrb[0].mxu0 %v9184
        %v10503 = vpop.f32.mrb[0].mxu0
        %v10504 = vadd.f32 %v10343, %v10503
        %v10505 = vpop.f32.mrb[0].mxu0
        %v10506 = vpop.f32.mrb[0].mxu0
        %v10507 = vadd.f32 %v10346, %v10506
        %v10508 = vpop.f32.mrb[0].mxu0
        %10509 = vmatprep.mubr.bf16.mxu0 %v9258
        %10510 = vmatmul.mubr.bf16.gmra.mrb[0].mxu0 %v9246
        %v10511 = vpop.f32.mrb[0].mxu0
        %v10512 = vadd.f32 %v10351, %v10511
        %v10513 = vpop.f32.mrb[0].mxu0
        %v10514 = vpop.f32.mrb[0].mxu0
        %v10515 = vadd.f32 %v10354, %v10514
        %v10516 = vpop.f32.mrb[0].mxu0
        %10517 = vmatprep.mubr.bf16.mxu0 %v9320
        %10518 = vmatmul.mubr.bf16.gmra.mrb[0].mxu0 %v9308
        %v10519 = vpop.f32.mrb[0].mxu0
        %v10520 = vadd.f32 %v10359, %v10519
        %v10521 = vpop.f32.mrb[0].mxu0
        %v10522 = vpop.f32.mrb[0].mxu0
        %v10523 = vadd.f32 %v10362, %v10522
        %v10524 = vpop.f32.mrb[0].mxu0
        %10525 = vmatprep.mubr.bf16.mxu0 %v9382
        %10526 = vmatmul.mubr.bf16.gmra.mrb[0].mxu0 %v9370
        %v10527 = vpop.f32.mrb[0].mxu0
        %v10528 = vadd.f32 %v10367, %v10527
        %v10529 = vpop.f32.mrb[0].mxu0
        %v10530 = vpop.f32.mrb[0].mxu0
        %v10531 = vadd.f32 %v10370, %v10530
        %v10532 = vpop.f32.mrb[0].mxu0
        %10533 = vmatprep.mubr.bf16.mxu0 %v9444
        %10534 = vmatmul.mubr.bf16.gmra.mrb[0].mxu0 %v9432
        %v10535 = vpop.f32.mrb[0].mxu0
        %v10536 = vadd.f32 %v10375, %v10535
        %v10537 = vpop.f32.mrb[0].mxu0
        %v10538 = vpop.f32.mrb[0].mxu0
        %v10539 = vadd.f32 %v10378, %v10538
        %v10540 = vpop.f32.mrb[0].mxu0
        %10541 = vmatprep.mubr.bf16.mxu0 %v9506
        %10542 = vmatmul.mubr.bf16.gmra.mrb[0].mxu0 %v9494
        %v10543 = vpop.f32.mrb[0].mxu0
        %v10544 = vadd.f32 %v10383, %v10543
        %v10545 = vpop.f32.mrb[0].mxu0
        %v10546 = vpop.f32.mrb[0].mxu0
        %v10547 = vadd.f32 %v10386, %v10546
        %v10548 = vpop.f32.mrb[0].mxu0
        %10549 = vmatprep.mubr.bf16.mxu0 %v9568
        %10550 = vmatmul.mubr.bf16.gmra.mrb[0].mxu0 %v9556
        %v10551 = vpop.f32.mrb[0].mxu0
        %v10552 = vadd.f32 %v10391, %v10551
        %v10553 = vpop.f32.mrb[0].mxu0
        %v10554 = vpop.f32.mrb[0].mxu0
        %v10555 = vadd.f32 %v10394, %v10554
        %v10556 = vpop.f32.mrb[0].mxu0
        %10557 = vmatprep.mubr.bf16.mxu0 %v9630
        %10558 = vmatmul.mubr.bf16.gmra.mrb[0].mxu0 %v9618
        %v10559 = vpop.f32.mrb[0].mxu0
        %v10560 = vadd.f32 %v10399, %v10559
        %v10561 = vpop.f32.mrb[0].mxu0
        %v10562 = vpop.f32.mrb[0].mxu0
        %v10563 = vadd.f32 %v10402, %v10562
        %v10564 = vpop.f32.mrb[0].mxu0
        %10565 = vmatprep.mubr.bf16.mxu0 %v9692
        %10566 = vmatmul.mubr.bf16.gmra.mrb[0].mxu0 %v9680
        %v10567 = vpop.f32.mrb[0].mxu0
        %v10568 = vadd.f32 %v10407, %v10567
        %v10569 = vpop.f32.mrb[0].mxu0
        %v10570 = vpop.f32.mrb[0].mxu0
        %v10571 = vadd.f32 %v10410, %v10570
        %v10572 = vpop.f32.mrb[0].mxu0
        %10573 = vmatprep.mubr.bf16.mxu0 %v9754
        %10574 = vmatmul.mubr.bf16.gmra.mrb[0].mxu0 %v9742
        %v10575 = vpop.f32.mrb[0].mxu0
        %v10576 = vadd.f32 %v10415, %v10575
        %v10577 = vpop.f32.mrb[0].mxu0
        %v10578 = vpop.f32.mrb[0].mxu0
        %v10579 = vadd.f32 %v10418, %v10578
        %v10580 = vpop.f32.mrb[0].mxu0
        %10581 = vdwg.mxu0
        %10582 = vmatprep.subr.bf16.mxu0 0
        %10583 = vmatpush1.bf16.msra.mxu0 %v10196
        %10584 = vmatprep.subr.bf16.mxu0 0
        %10585 = vmatpush1.bf16.msra.mxu0 %v10197
        %10586 = vmatprep.subr.bf16.mxu0 0
        %10587 = vmatpush1.bf16.msra.mxu0 %v10198
        %10588 = vmatprep.subr.bf16.mxu0 0
        %10589 = vmatpush1.bf16.msra.mxu0 %v10199
        %10590 = vmatprep.subr.bf16.mxu0 0
        %10591 = vmatpush1.bf16.msra.mxu0 %v10200
        %10592 = vmatprep.subr.bf16.mxu0 0
        %10593 = vmatpush1.bf16.msra.mxu0 %v10201
        %10594 = vmatprep.subr.bf16.mxu0 0
        %10595 = vmatpush1.bf16.msra.mxu0 %v10202
        %10596 = vmatprep.subr.bf16.mxu0 0
        %10597 = vmatpush1.bf16.msra.mxu0 %v10203
        %10598 = vmatprep.subr.bf16.mxu0 0
        %10599 = vmatpush1.bf16.msra.mxu0 %v10204
        %10600 = vmatprep.subr.bf16.mxu0 0
        %10601 = vmatpush1.bf16.msra.mxu0 %v10205
        %10602 = vmatprep.subr.bf16.mxu0 0
        %10603 = vmatpush1.bf16.msra.mxu0 %v10206
        %10604 = vmatprep.subr.bf16.mxu0 0
        %10605 = vmatpush1.bf16.msra.mxu0 %v10207
        %10606 = vmatprep.subr.bf16.mxu0 0
        %10607 = vmatpush1.bf16.msra.mxu0 %v10208
        %10608 = vmatprep.subr.bf16.mxu0 0
        %10609 = vmatpush1.bf16.msra.mxu0 %v10209
        %10610 = vmatprep.subr.bf16.mxu0 0
        %10611 = vmatpush1.bf16.msra.mxu0 %v10210
        %10612 = vmatprep.subr.bf16.mxu0 0
        %10613 = vmatpush1.bf16.msra.mxu0 %v10211
        %10614 = vmatprep.mubr.bf16.mxu0 %v8848
        %10615 = vmatmul.mubr.bf16.gmra.mrb[0].mxu0 %v8836
        %v10616 = vpop.f32.mrb[0].mxu0
        %v10617 = vadd.f32 %v10456, %v10616
        %v10618 = vpop.f32.mrb[0].mxu0
        %v10619 = vpop.f32.mrb[0].mxu0
        %v10620 = vadd.f32 %v10459, %v10619
        %v10621 = vpop.f32.mrb[0].mxu0
        %10622 = vmatprep.mubr.bf16.mxu0 %v8910
        %10623 = vmatmul.mubr.bf16.gmra.mrb[0].mxu0 %v8898
        %v10624 = vpop.f32.mrb[0].mxu0
        %v10625 = vadd.f32 %v10464, %v10624
        %v10626 = vpop.f32.mrb[0].mxu0
        %v10627 = vpop.f32.mrb[0].mxu0
        %v10628 = vadd.f32 %v10467, %v10627
        %v10629 = vpop.f32.mrb[0].mxu0
        %10630 = vmatprep.mubr.bf16.mxu0 %v8972
        %10631 = vmatmul.mubr.bf16.gmra.mrb[0].mxu0 %v8960
        %v10632 = vpop.f32.mrb[0].mxu0
        %v10633 = vadd.f32 %v10472, %v10632
        %v10634 = vpop.f32.mrb[0].mxu0
        %v10635 = vpop.f32.mrb[0].mxu0
        %v10636 = vadd.f32 %v10475, %v10635
        %v10637 = vpop.f32.mrb[0].mxu0
        %10638 = vmatprep.mubr.bf16.mxu0 %v9034
        %10639 = vmatmul.mubr.bf16.gmra.mrb[0].mxu0 %v9022
        %v10640 = vpop.f32.mrb[0].mxu0
        %v10641 = vadd.f32 %v10480, %v10640
        %v10642 = vpop.f32.mrb[0].mxu0
        %v10643 = vpop.f32.mrb[0].mxu0
        %v10644 = vadd.f32 %v10483, %v10643
        %v10645 = vpop.f32.mrb[0].mxu0
        %10646 = vmatprep.mubr.bf16.mxu0 %v9096
        %10647 = vmatmul.mubr.bf16.gmra.mrb[0].mxu0 %v9084
        %v10648 = vpop.f32.mrb[0].mxu0
        %v10649 = vadd.f32 %v10488, %v10648
        %v10650 = vpop.f32.mrb[0].mxu0
        %v10651 = vpop.f32.mrb[0].mxu0
        %v10652 = vadd.f32 %v10491, %v10651
        %v10653 = vpop.f32.mrb[0].mxu0
        %10654 = vmatprep.mubr.bf16.mxu0 %v9158
        %10655 = vmatmul.mubr.bf16.gmra.mrb[0].mxu0 %v9146
        %v10656 = vpop.f32.mrb[0].mxu0
        %v10657 = vadd.f32 %v10496, %v10656
        %v10658 = vpop.f32.mrb[0].mxu0
        %v10659 = vpop.f32.mrb[0].mxu0
        %v10660 = vadd.f32 %v10499, %v10659
        %v10661 = vpop.f32.mrb[0].mxu0
        %10662 = vmatprep.mubr.bf16.mxu0 %v9220
        %10663 = vmatmul.mubr.bf16.gmra.mrb[0].mxu0 %v9208
        %v10664 = vpop.f32.mrb[0].mxu0
        %v10665 = vadd.f32 %v10504, %v10664
        %v10666 = vpop.f32.mrb[0].mxu0
        %v10667 = vpop.f32.mrb[0].mxu0
        %v10668 = vadd.f32 %v10507, %v10667
        %v10669 = vpop.f32.mrb[0].mxu0
        %10670 = vmatprep.mubr.bf16.mxu0 %v9282
        %10671 = vmatmul.mubr.bf16.gmra.mrb[0].mxu0 %v9270
        %v10672 = vpop.f32.mrb[0].mxu0
        %v10673 = vadd.f32 %v10512, %v10672
        %v10674 = vpop.f32.mrb[0].mxu0
        %v10675 = vpop.f32.mrb[0].mxu0
        %v10676 = vadd.f32 %v10515, %v10675
        %v10677 = vpop.f32.mrb[0].mxu0
        %10678 = vmatprep.mubr.bf16.mxu0 %v9344
        %10679 = vmatmul.mubr.bf16.gmra.mrb[0].mxu0 %v9332
        %v10680 = vpop.f32.mrb[0].mxu0
        %v10681 = vadd.f32 %v10520, %v10680
        %v10682 = vpop.f32.mrb[0].mxu0
        %v10683 = vpop.f32.mrb[0].mxu0
        %v10684 = vadd.f32 %v10523, %v10683
        %v10685 = vpop.f32.mrb[0].mxu0
        %10686 = vmatprep.mubr.bf16.mxu0 %v9406
        %10687 = vmatmul.mubr.bf16.gmra.mrb[0].mxu0 %v9394
        %v10688 = vpop.f32.mrb[0].mxu0
        %v10689 = vadd.f32 %v10528, %v10688
        %v10690 = vpop.f32.mrb[0].mxu0
        %v10691 = vpop.f32.mrb[0].mxu0
        %v10692 = vadd.f32 %v10531, %v10691
        %v10693 = vpop.f32.mrb[0].mxu0
        %10694 = vmatprep.mubr.bf16.mxu0 %v9468
        %10695 = vmatmul.mubr.bf16.gmra.mrb[0].mxu0 %v9456
        %v10696 = vpop.f32.mrb[0].mxu0
        %v10697 = vadd.f32 %v10536, %v10696
        %v10698 = vpop.f32.mrb[0].mxu0
        %v10699 = vpop.f32.mrb[0].mxu0
        %v10700 = vadd.f32 %v10539, %v10699
        %v10701 = vpop.f32.mrb[0].mxu0
        %10702 = vmatprep.mubr.bf16.mxu0 %v9530
        %10703 = vmatmul.mubr.bf16.gmra.mrb[0].mxu0 %v9518
        %v10704 = vpop.f32.mrb[0].mxu0
        %v10705 = vadd.f32 %v10544, %v10704
        %v10706 = vpop.f32.mrb[0].mxu0
        %v10707 = vpop.f32.mrb[0].mxu0
        %v10708 = vadd.f32 %v10547, %v10707
        %v10709 = vpop.f32.mrb[0].mxu0
        %10710 = vmatprep.mubr.bf16.mxu0 %v9592
        %10711 = vmatmul.mubr.bf16.gmra.mrb[0].mxu0 %v9580
        %v10712 = vpop.f32.mrb[0].mxu0
        %v10713 = vadd.f32 %v10552, %v10712
        %v10714 = vpop.f32.mrb[0].mxu0
        %v10715 = vpop.f32.mrb[0].mxu0
        %v10716 = vadd.f32 %v10555, %v10715
        %v10717 = vpop.f32.mrb[0].mxu0
        %10718 = vmatprep.mubr.bf16.mxu0 %v9654
        %10719 = vmatmul.mubr.bf16.gmra.mrb[0].mxu0 %v9642
        %v10720 = vpop.f32.mrb[0].mxu0
        %v10721 = vadd.f32 %v10560, %v10720
        %v10722 = vpop.f32.mrb[0].mxu0
        %v10723 = vpop.f32.mrb[0].mxu0
        %v10724 = vadd.f32 %v10563, %v10723
        %v10725 = vpop.f32.mrb[0].mxu0
        %10726 = vmatprep.mubr.bf16.mxu0 %v9716
        %10727 = vmatmul.mubr.bf16.gmra.mrb[0].mxu0 %v9704
        %v10728 = vpop.f32.mrb[0].mxu0
        %v10729 = vadd.f32 %v10568, %v10728
        %v10730 = vpop.f32.mrb[0].mxu0
        %v10731 = vpop.f32.mrb[0].mxu0
        %v10732 = vadd.f32 %v10571, %v10731
        %v10733 = vpop.f32.mrb[0].mxu0
        %10734 = vmatprep.mubr.bf16.mxu0 %v9778
        %10735 = vmatmul.mubr.bf16.gmra.mrb[0].mxu0 %v9766
        %v10736 = vpop.f32.mrb[0].mxu0
        %v10737 = vadd.f32 %v10576, %v10736
        %v10738 = vpop.f32.mrb[0].mxu0
        %v10739 = vpop.f32.mrb[0].mxu0
        %v10740 = vadd.f32 %v10579, %v10739
        %v10741 = vpop.f32.mrb[0].mxu0
        %10742 = vdwg.mxu0
        %v10839 = vunpack.c.l.b16 %v8211
        %v10840 = vunpack.c.l.b16 %v8212
        %v10841 = vunpack.c.l.b16 %v8213
        %v10842 = vunpack.c.l.b16 %v8214
        %v10843 = vunpack.c.l.b16 %v8215
        %v10844 = vunpack.c.l.b16 %v8216
        %v10845 = vunpack.c.l.b16 %v8217
        %v10846 = vunpack.c.l.b16 %v8218
        %v10847 = vunpack.c.l.b16 %v8219
        %v10848 = vunpack.c.l.b16 %v8220
        %v10849 = vunpack.c.l.b16 %v8221
        %v10850 = vunpack.c.l.b16 %v8222
        %v10851 = vunpack.c.l.b16 %v8223
        %v10852 = vunpack.c.l.b16 %v8224
        %v10853 = vunpack.c.l.b16 %v8225
        %v10854 = vunpack.c.l.b16 %v8226
        %v10855 = vunpack.c.l.b16 %v8227
        %v10856 = vunpack.c.l.b16 %v8228
        %v10857 = vunpack.c.l.b16 %v8229
        %v10858 = vunpack.c.l.b16 %v8230
        %v10859 = vunpack.c.l.b16 %v8231
        %v10860 = vunpack.c.l.b16 %v8232
        %v10861 = vunpack.c.l.b16 %v8233
        %v10862 = vunpack.c.l.b16 %v8234
        %v10863 = vunpack.c.l.b16 %v8235
        %v10864 = vunpack.c.l.b16 %v8236
        %v10865 = vunpack.c.l.b16 %v8237
        %v10866 = vunpack.c.l.b16 %v8238
        %v10867 = vunpack.c.l.b16 %v8239
        %v10868 = vunpack.c.l.b16 %v8240
        %v10869 = vunpack.c.l.b16 %v8241
        %v10870 = vunpack.c.l.b16 %v8242
        %v10871 = vunpack.c.l.b16 %v8243
        %v10872 = vunpack.c.l.b16 %v8244
        %v10873 = vunpack.c.l.b16 %v8245
        %v10874 = vunpack.c.l.b16 %v8246
        %v10875 = vunpack.c.l.b16 %v8247
        %v10876 = vunpack.c.l.b16 %v8248
        %v10877 = vunpack.c.l.b16 %v8249
        %v10878 = vunpack.c.l.b16 %v8250
        %v10879 = vunpack.c.l.b16 %v8251
        %v10880 = vunpack.c.l.b16 %v8252
        %v10881 = vunpack.c.l.b16 %v8253
        %v10882 = vunpack.c.l.b16 %v8254
        %v10883 = vunpack.c.l.b16 %v8255
        %v10884 = vunpack.c.l.b16 %v8256
        %v10885 = vunpack.c.l.b16 %v8257
        %v10886 = vunpack.c.l.b16 %v8258
        %v10887 = vunpack.c.l.b16 %v8259
        %v10888 = vunpack.c.l.b16 %v8260
        %v10889 = vunpack.c.l.b16 %v8261
        %v10890 = vunpack.c.l.b16 %v8262
        %v10891 = vunpack.c.l.b16 %v8263
        %v10892 = vunpack.c.l.b16 %v8264
        %v10893 = vunpack.c.l.b16 %v8265
        %v10894 = vunpack.c.l.b16 %v8266
        %v10895 = vunpack.c.l.b16 %v8267
        %v10896 = vunpack.c.l.b16 %v8268
        %v10897 = vunpack.c.l.b16 %v8269
        %v10898 = vunpack.c.l.b16 %v8270
        %v10899 = vunpack.c.l.b16 %v8271
        %v10900 = vunpack.c.l.b16 %v8272
        %v10901 = vunpack.c.l.b16 %v8273
        %v10902 = vunpack.c.l.b16 %v8274
        %v10903 = vunpack.c.l.b16 %v8275
        %v10904 = vunpack.c.l.b16 %v8276
        %v10905 = vunpack.c.l.b16 %v8277
        %v10906 = vunpack.c.l.b16 %v8278
        %v10907 = vunpack.c.l.b16 %v8279
        %v10908 = vunpack.c.l.b16 %v8280
        %v10909 = vunpack.c.l.b16 %v8281
        %v10910 = vunpack.c.l.b16 %v8282
        %v10911 = vunpack.c.l.b16 %v8283
        %v10912 = vunpack.c.l.b16 %v8284
        %v10913 = vunpack.c.l.b16 %v8285
        %v10914 = vunpack.c.l.b16 %v8286
        %v10915 = vunpack.c.l.b16 %v8287
        %v10916 = vunpack.c.l.b16 %v8288
        %v10917 = vunpack.c.l.b16 %v8289
        %v10918 = vunpack.c.l.b16 %v8290
        %v10919 = vunpack.c.l.b16 %v8291
        %v10920 = vunpack.c.l.b16 %v8292
        %v10921 = vunpack.c.l.b16 %v8293
        %v10922 = vunpack.c.l.b16 %v8294
        %v10923 = vunpack.c.l.b16 %v8295
        %v10924 = vunpack.c.l.b16 %v8296
        %v10925 = vunpack.c.l.b16 %v8297
        %v10926 = vunpack.c.l.b16 %v8298
        %v10927 = vunpack.c.l.b16 %v8299
        %v10928 = vunpack.c.l.b16 %v8300
        %v10929 = vunpack.c.l.b16 %v8301
        %v10930 = vunpack.c.l.b16 %v8302
        %v10931 = vunpack.c.l.b16 %v8303
        %v10932 = vunpack.c.l.b16 %v8304
        %v10933 = vunpack.c.l.b16 %v8305
        %v10934 = vunpack.c.l.b16 %v8306
        %v10935 = vpack.c.b16 %v10840, %v10839
        %v10936 = vpack.c.b16 %v10842, %v10841
        %v10937 = vpack.c.b16 %v10844, %v10843
        %v10938 = vpack.c.b16 %v10846, %v10845
        %v10939 = vpack.c.b16 %v10848, %v10847
        %v10940 = vpack.c.b16 %v10850, %v10849
        %v10941 = vpack.c.b16 %v10852, %v10851
        %v10942 = vpack.c.b16 %v10854, %v10853
        %v10943 = vpack.c.b16 %v10856, %v10855
        %v10944 = vpack.c.b16 %v10858, %v10857
        %v10945 = vpack.c.b16 %v10860, %v10859
        %v10946 = vpack.c.b16 %v10862, %v10861
        %v10947 = vpack.c.b16 %v10864, %v10863
        %v10948 = vpack.c.b16 %v10866, %v10865
        %v10949 = vpack.c.b16 %v10868, %v10867
        %v10950 = vpack.c.b16 %v10870, %v10869
        %v10951 = vpack.c.b16 %v10872, %v10871
        %v10952 = vpack.c.b16 %v10874, %v10873
        %v10953 = vpack.c.b16 %v10876, %v10875
        %v10954 = vpack.c.b16 %v10878, %v10877
        %v10955 = vpack.c.b16 %v10880, %v10879
        %v10956 = vpack.c.b16 %v10882, %v10881
        %v10957 = vpack.c.b16 %v10884, %v10883
        %v10958 = vpack.c.b16 %v10886, %v10885
        %v10959 = vpack.c.b16 %v10888, %v10887
        %v10960 = vpack.c.b16 %v10890, %v10889
        %v10961 = vpack.c.b16 %v10892, %v10891
        %v10962 = vpack.c.b16 %v10894, %v10893
        %v10963 = vpack.c.b16 %v10896, %v10895
        %v10964 = vpack.c.b16 %v10898, %v10897
        %v10965 = vpack.c.b16 %v10900, %v10899
        %v10966 = vpack.c.b16 %v10902, %v10901
        %v10967 = vpack.c.b16 %v10904, %v10903
        %v10968 = vpack.c.b16 %v10906, %v10905
        %v10969 = vpack.c.b16 %v10908, %v10907
        %v10970 = vpack.c.b16 %v10910, %v10909
        %v10971 = vpack.c.b16 %v10912, %v10911
        %v10972 = vpack.c.b16 %v10914, %v10913
        %v10973 = vpack.c.b16 %v10916, %v10915
        %v10974 = vpack.c.b16 %v10918, %v10917
        %v10975 = vpack.c.b16 %v10920, %v10919
        %v10976 = vpack.c.b16 %v10922, %v10921
        %v10977 = vpack.c.b16 %v10924, %v10923
        %v10978 = vpack.c.b16 %v10926, %v10925
        %v10979 = vpack.c.b16 %v10928, %v10927
        %v10980 = vpack.c.b16 %v10930, %v10929
        %v10981 = vpack.c.b16 %v10932, %v10931
        %v10982 = vpack.c.b16 %v10934, %v10933
        %11031 = vmatprep.subr.bf16.mxu0 0
        %11032 = vmatpush1.bf16.msra.mxu0 %v10935
        %11033 = vmatprep.subr.bf16.mxu0 0
        %11034 = vmatpush1.bf16.msra.mxu0 %v10936
        %11035 = vmatprep.subr.bf16.mxu0 0
        %11036 = vmatpush1.bf16.msra.mxu0 %v10937
        %11037 = vmatprep.subr.bf16.mxu0 0
        %11038 = vmatpush1.bf16.msra.mxu0 %v10938
        %11039 = vmatprep.subr.bf16.mxu0 0
        %11040 = vmatpush1.bf16.msra.mxu0 %v10939
        %11041 = vmatprep.subr.bf16.mxu0 0
        %11042 = vmatpush1.bf16.msra.mxu0 %v10940
        %11043 = vmatprep.subr.bf16.mxu0 0
        %11044 = vmatpush1.bf16.msra.mxu0 %v10941
        %11045 = vmatprep.subr.bf16.mxu0 0
        %11046 = vmatpush1.bf16.msra.mxu0 %v10942
        %11047 = vmatprep.subr.bf16.mxu0 0
        %11048 = vmatpush1.bf16.msra.mxu0 %v10943
        %11049 = vmatprep.subr.bf16.mxu0 0
        %11050 = vmatpush1.bf16.msra.mxu0 %v10944
        %11051 = vmatprep.subr.bf16.mxu0 0
        %11052 = vmatpush1.bf16.msra.mxu0 %v10945
        %11053 = vmatprep.subr.bf16.mxu0 0
        %11054 = vmatpush1.bf16.msra.mxu0 %v10946
        %11055 = vmatprep.subr.bf16.mxu0 0
        %11056 = vmatpush1.bf16.msra.mxu0 %v10947
        %11057 = vmatprep.subr.bf16.mxu0 0
        %11058 = vmatpush1.bf16.msra.mxu0 %v10948
        %11059 = vmatprep.subr.bf16.mxu0 0
        %11060 = vmatpush1.bf16.msra.mxu0 %v10949
        %11061 = vmatprep.subr.bf16.mxu0 0
        %11062 = vmatpush1.bf16.msra.mxu0 %v10950
        %11063 = vmatprep.mubr.bf16.mxu0 %v7136
        %11064 = vmatmul.mubr.bf16.gmra.mrb[0].mxu0 %v7129
        %v11065 = vpop.f32.mrb[0].mxu0
        %v11066 = vadd.f32 %v10617, %v11065
        %v11067 = vpop.f32.mrb[0].mxu0
        %v11068 = vpop.f32.mrb[0].mxu0
        %v11069 = vadd.f32 %v10620, %v11068
        %v11070 = vpop.f32.mrb[0].mxu0
        %11071 = vmatprep.mubr.bf16.mxu0 %v7198
        %11072 = vmatmul.mubr.bf16.gmra.mrb[0].mxu0 %v7191
        %v11073 = vpop.f32.mrb[0].mxu0
        %v11074 = vadd.f32 %v10625, %v11073
        %v11075 = vpop.f32.mrb[0].mxu0
        %v11076 = vpop.f32.mrb[0].mxu0
        %v11077 = vadd.f32 %v10628, %v11076
        %v11078 = vpop.f32.mrb[0].mxu0
        %11079 = vmatprep.mubr.bf16.mxu0 %v7260
        %11080 = vmatmul.mubr.bf16.gmra.mrb[0].mxu0 %v7253
        %v11081 = vpop.f32.mrb[0].mxu0
        %v11082 = vadd.f32 %v10633, %v11081
        %v11083 = vpop.f32.mrb[0].mxu0
        %v11084 = vpop.f32.mrb[0].mxu0
        %v11085 = vadd.f32 %v10636, %v11084
        %v11086 = vpop.f32.mrb[0].mxu0
        %11087 = vmatprep.mubr.bf16.mxu0 %v7322
        %11088 = vmatmul.mubr.bf16.gmra.mrb[0].mxu0 %v7315
        %v11089 = vpop.f32.mrb[0].mxu0
        %v11090 = vadd.f32 %v10641, %v11089
        %v11091 = vpop.f32.mrb[0].mxu0
        %v11092 = vpop.f32.mrb[0].mxu0
        %v11093 = vadd.f32 %v10644, %v11092
        %v11094 = vpop.f32.mrb[0].mxu0
        %11095 = vmatprep.mubr.bf16.mxu0 %v7384
        %11096 = vmatmul.mubr.bf16.gmra.mrb[0].mxu0 %v7377
        %v11097 = vpop.f32.mrb[0].mxu0
        %v11098 = vadd.f32 %v10649, %v11097
        %v11099 = vpop.f32.mrb[0].mxu0
        %v11100 = vpop.f32.mrb[0].mxu0
        %v11101 = vadd.f32 %v10652, %v11100
        %v11102 = vpop.f32.mrb[0].mxu0
        %11103 = vmatprep.mubr.bf16.mxu0 %v7446
        %11104 = vmatmul.mubr.bf16.gmra.mrb[0].mxu0 %v7439
        %v11105 = vpop.f32.mrb[0].mxu0
        %v11106 = vadd.f32 %v10657, %v11105
        %v11107 = vpop.f32.mrb[0].mxu0
        %v11108 = vpop.f32.mrb[0].mxu0
        %v11109 = vadd.f32 %v10660, %v11108
        %v11110 = vpop.f32.mrb[0].mxu0
        %11111 = vmatprep.mubr.bf16.mxu0 %v7508
        %11112 = vmatmul.mubr.bf16.gmra.mrb[0].mxu0 %v7501
        %v11113 = vpop.f32.mrb[0].mxu0
        %v11114 = vadd.f32 %v10665, %v11113
        %v11115 = vpop.f32.mrb[0].mxu0
        %v11116 = vpop.f32.mrb[0].mxu0
        %v11117 = vadd.f32 %v10668, %v11116
        %v11118 = vpop.f32.mrb[0].mxu0
        %11119 = vmatprep.mubr.bf16.mxu0 %v7570
        %11120 = vmatmul.mubr.bf16.gmra.mrb[0].mxu0 %v7563
        %v11121 = vpop.f32.mrb[0].mxu0
        %v11122 = vadd.f32 %v10673, %v11121
        %v11123 = vpop.f32.mrb[0].mxu0
        %v11124 = vpop.f32.mrb[0].mxu0
        %v11125 = vadd.f32 %v10676, %v11124
        %v11126 = vpop.f32.mrb[0].mxu0
        %11127 = vmatprep.mubr.bf16.mxu0 %v7632
        %11128 = vmatmul.mubr.bf16.gmra.mrb[0].mxu0 %v7625
        %v11129 = vpop.f32.mrb[0].mxu0
        %v11130 = vadd.f32 %v10681, %v11129
        %v11131 = vpop.f32.mrb[0].mxu0
        %v11132 = vpop.f32.mrb[0].mxu0
        %v11133 = vadd.f32 %v10684, %v11132
        %v11134 = vpop.f32.mrb[0].mxu0
        %11135 = vmatprep.mubr.bf16.mxu0 %v7694
        %11136 = vmatmul.mubr.bf16.gmra.mrb[0].mxu0 %v7687
        %v11137 = vpop.f32.mrb[0].mxu0
        %v11138 = vadd.f32 %v10689, %v11137
        %v11139 = vpop.f32.mrb[0].mxu0
        %v11140 = vpop.f32.mrb[0].mxu0
        %v11141 = vadd.f32 %v10692, %v11140
        %v11142 = vpop.f32.mrb[0].mxu0
        %11143 = vmatprep.mubr.bf16.mxu0 %v7756
        %11144 = vmatmul.mubr.bf16.gmra.mrb[0].mxu0 %v7749
        %v11145 = vpop.f32.mrb[0].mxu0
        %v11146 = vadd.f32 %v10697, %v11145
        %v11147 = vpop.f32.mrb[0].mxu0
        %v11148 = vpop.f32.mrb[0].mxu0
        %v11149 = vadd.f32 %v10700, %v11148
        %v11150 = vpop.f32.mrb[0].mxu0
        %11151 = vmatprep.mubr.bf16.mxu0 %v7818
        %11152 = vmatmul.mubr.bf16.gmra.mrb[0].mxu0 %v7811
        %v11153 = vpop.f32.mrb[0].mxu0
        %v11154 = vadd.f32 %v10705, %v11153
        %v11155 = vpop.f32.mrb[0].mxu0
        %v11156 = vpop.f32.mrb[0].mxu0
        %v11157 = vadd.f32 %v10708, %v11156
        %v11158 = vpop.f32.mrb[0].mxu0
        %11159 = vmatprep.mubr.bf16.mxu0 %v7880
        %11160 = vmatmul.mubr.bf16.gmra.mrb[0].mxu0 %v7873
        %v11161 = vpop.f32.mrb[0].mxu0
        %v11162 = vadd.f32 %v10713, %v11161
        %v11163 = vpop.f32.mrb[0].mxu0
        %v11164 = vpop.f32.mrb[0].mxu0
        %v11165 = vadd.f32 %v10716, %v11164
        %v11166 = vpop.f32.mrb[0].mxu0
        %11167 = vmatprep.mubr.bf16.mxu0 %v7942
        %11168 = vmatmul.mubr.bf16.gmra.mrb[0].mxu0 %v7935
        %v11169 = vpop.f32.mrb[0].mxu0
        %v11170 = vadd.f32 %v10721, %v11169
        %v11171 = vpop.f32.mrb[0].mxu0
        %v11172 = vpop.f32.mrb[0].mxu0
        %v11173 = vadd.f32 %v10724, %v11172
        %v11174 = vpop.f32.mrb[0].mxu0
        %11175 = vmatprep.mubr.bf16.mxu0 %v8004
        %11176 = vmatmul.mubr.bf16.gmra.mrb[0].mxu0 %v7997
        %v11177 = vpop.f32.mrb[0].mxu0
        %v11178 = vadd.f32 %v10729, %v11177
        %v11179 = vpop.f32.mrb[0].mxu0
        %v11180 = vpop.f32.mrb[0].mxu0
        %v11181 = vadd.f32 %v10732, %v11180
        %v11182 = vpop.f32.mrb[0].mxu0
        %11183 = vmatprep.mubr.bf16.mxu0 %v8066
        %11184 = vmatmul.mubr.bf16.gmra.mrb[0].mxu0 %v8059
        %v11185 = vpop.f32.mrb[0].mxu0
        %v11186 = vadd.f32 %v10737, %v11185
        %v11187 = vpop.f32.mrb[0].mxu0
        %v11188 = vpop.f32.mrb[0].mxu0
        %v11189 = vadd.f32 %v10740, %v11188
        %v11190 = vpop.f32.mrb[0].mxu0
        %11191 = vdwg.mxu0
        %11192 = vmatprep.subr.bf16.mxu0 0
        %11193 = vmatpush1.bf16.msra.mxu0 %v10951
        %11194 = vmatprep.subr.bf16.mxu0 0
        %11195 = vmatpush1.bf16.msra.mxu0 %v10952
        %11196 = vmatprep.subr.bf16.mxu0 0
        %11197 = vmatpush1.bf16.msra.mxu0 %v10953
        %11198 = vmatprep.subr.bf16.mxu0 0
        %11199 = vmatpush1.bf16.msra.mxu0 %v10954
        %11200 = vmatprep.subr.bf16.mxu0 0
        %11201 = vmatpush1.bf16.msra.mxu0 %v10955
        %11202 = vmatprep.subr.bf16.mxu0 0
        %11203 = vmatpush1.bf16.msra.mxu0 %v10956
        %11204 = vmatprep.subr.bf16.mxu0 0
        %11205 = vmatpush1.bf16.msra.mxu0 %v10957
        %11206 = vmatprep.subr.bf16.mxu0 0
        %11207 = vmatpush1.bf16.msra.mxu0 %v10958
        %11208 = vmatprep.subr.bf16.mxu0 0
        %11209 = vmatpush1.bf16.msra.mxu0 %v10959
        %11210 = vmatprep.subr.bf16.mxu0 0
        %11211 = vmatpush1.bf16.msra.mxu0 %v10960
        %11212 = vmatprep.subr.bf16.mxu0 0
        %11213 = vmatpush1.bf16.msra.mxu0 %v10961
        %11214 = vmatprep.subr.bf16.mxu0 0
        %11215 = vmatpush1.bf16.msra.mxu0 %v10962
        %11216 = vmatprep.subr.bf16.mxu0 0
        %11217 = vmatpush1.bf16.msra.mxu0 %v10963
        %11218 = vmatprep.subr.bf16.mxu0 0
        %11219 = vmatpush1.bf16.msra.mxu0 %v10964
        %11220 = vmatprep.subr.bf16.mxu0 0
        %11221 = vmatpush1.bf16.msra.mxu0 %v10965
        %11222 = vmatprep.subr.bf16.mxu0 0
        %11223 = vmatpush1.bf16.msra.mxu0 %v10966
        %11224 = vmatprep.mubr.bf16.mxu0 %v7160
        %11225 = vmatmul.mubr.bf16.gmra.mrb[0].mxu0 %v7148
        %v11226 = vpop.f32.mrb[0].mxu0
        %v11227 = vadd.f32 %v11066, %v11226
        %v11228 = vpop.f32.mrb[0].mxu0
        %v11229 = vpop.f32.mrb[0].mxu0
        %v11230 = vadd.f32 %v11069, %v11229
        %v11231 = vpop.f32.mrb[0].mxu0
        %11232 = vmatprep.mubr.bf16.mxu0 %v7222
        %11233 = vmatmul.mubr.bf16.gmra.mrb[0].mxu0 %v7210
        %v11234 = vpop.f32.mrb[0].mxu0
        %v11235 = vadd.f32 %v11074, %v11234
        %v11236 = vpop.f32.mrb[0].mxu0
        %v11237 = vpop.f32.mrb[0].mxu0
        %v11238 = vadd.f32 %v11077, %v11237
        %v11239 = vpop.f32.mrb[0].mxu0
        %11240 = vmatprep.mubr.bf16.mxu0 %v7284
        %11241 = vmatmul.mubr.bf16.gmra.mrb[0].mxu0 %v7272
        %v11242 = vpop.f32.mrb[0].mxu0
        %v11243 = vadd.f32 %v11082, %v11242
        %v11244 = vpop.f32.mrb[0].mxu0
        %v11245 = vpop.f32.mrb[0].mxu0
        %v11246 = vadd.f32 %v11085, %v11245
        %v11247 = vpop.f32.mrb[0].mxu0
        %11248 = vmatprep.mubr.bf16.mxu0 %v7346
        %11249 = vmatmul.mubr.bf16.gmra.mrb[0].mxu0 %v7334
        %v11250 = vpop.f32.mrb[0].mxu0
        %v11251 = vadd.f32 %v11090, %v11250
        %v11252 = vpop.f32.mrb[0].mxu0
        %v11253 = vpop.f32.mrb[0].mxu0
        %v11254 = vadd.f32 %v11093, %v11253
        %v11255 = vpop.f32.mrb[0].mxu0
        %11256 = vmatprep.mubr.bf16.mxu0 %v7408
        %11257 = vmatmul.mubr.bf16.gmra.mrb[0].mxu0 %v7396
        %v11258 = vpop.f32.mrb[0].mxu0
        %v11259 = vadd.f32 %v11098, %v11258
        %v11260 = vpop.f32.mrb[0].mxu0
        %v11261 = vpop.f32.mrb[0].mxu0
        %v11262 = vadd.f32 %v11101, %v11261
        %v11263 = vpop.f32.mrb[0].mxu0
        %11264 = vmatprep.mubr.bf16.mxu0 %v7470
        %11265 = vmatmul.mubr.bf16.gmra.mrb[0].mxu0 %v7458
        %v11266 = vpop.f32.mrb[0].mxu0
        %v11267 = vadd.f32 %v11106, %v11266
        %v11268 = vpop.f32.mrb[0].mxu0
        %v11269 = vpop.f32.mrb[0].mxu0
        %v11270 = vadd.f32 %v11109, %v11269
        %v11271 = vpop.f32.mrb[0].mxu0
        %11272 = vmatprep.mubr.bf16.mxu0 %v7532
        %11273 = vmatmul.mubr.bf16.gmra.mrb[0].mxu0 %v7520
        %v11274 = vpop.f32.mrb[0].mxu0
        %v11275 = vadd.f32 %v11114, %v11274
        %v11276 = vpop.f32.mrb[0].mxu0
        %v11277 = vpop.f32.mrb[0].mxu0
        %v11278 = vadd.f32 %v11117, %v11277
        %v11279 = vpop.f32.mrb[0].mxu0
        %11280 = vmatprep.mubr.bf16.mxu0 %v7594
        %11281 = vmatmul.mubr.bf16.gmra.mrb[0].mxu0 %v7582
        %v11282 = vpop.f32.mrb[0].mxu0
        %v11283 = vadd.f32 %v11122, %v11282
        %v11284 = vpop.f32.mrb[0].mxu0
        %v11285 = vpop.f32.mrb[0].mxu0
        %v11286 = vadd.f32 %v11125, %v11285
        %v11287 = vpop.f32.mrb[0].mxu0
        %11288 = vmatprep.mubr.bf16.mxu0 %v7656
        %11289 = vmatmul.mubr.bf16.gmra.mrb[0].mxu0 %v7644
        %v11290 = vpop.f32.mrb[0].mxu0
        %v11291 = vadd.f32 %v11130, %v11290
        %v11292 = vpop.f32.mrb[0].mxu0
        %v11293 = vpop.f32.mrb[0].mxu0
        %v11294 = vadd.f32 %v11133, %v11293
        %v11295 = vpop.f32.mrb[0].mxu0
        %11296 = vmatprep.mubr.bf16.mxu0 %v7718
        %11297 = vmatmul.mubr.bf16.gmra.mrb[0].mxu0 %v7706
        %v11298 = vpop.f32.mrb[0].mxu0
        %v11299 = vadd.f32 %v11138, %v11298
        %v11300 = vpop.f32.mrb[0].mxu0
        %v11301 = vpop.f32.mrb[0].mxu0
        %v11302 = vadd.f32 %v11141, %v11301
        %v11303 = vpop.f32.mrb[0].mxu0
        %11304 = vmatprep.mubr.bf16.mxu0 %v7780
        %11305 = vmatmul.mubr.bf16.gmra.mrb[0].mxu0 %v7768
        %v11306 = vpop.f32.mrb[0].mxu0
        %v11307 = vadd.f32 %v11146, %v11306
        %v11308 = vpop.f32.mrb[0].mxu0
        %v11309 = vpop.f32.mrb[0].mxu0
        %v11310 = vadd.f32 %v11149, %v11309
        %v11311 = vpop.f32.mrb[0].mxu0
        %11312 = vmatprep.mubr.bf16.mxu0 %v7842
        %11313 = vmatmul.mubr.bf16.gmra.mrb[0].mxu0 %v7830
        %v11314 = vpop.f32.mrb[0].mxu0
        %v11315 = vadd.f32 %v11154, %v11314
        %v11316 = vpop.f32.mrb[0].mxu0
        %v11317 = vpop.f32.mrb[0].mxu0
        %v11318 = vadd.f32 %v11157, %v11317
        %v11319 = vpop.f32.mrb[0].mxu0
        %11320 = vmatprep.mubr.bf16.mxu0 %v7904
        %11321 = vmatmul.mubr.bf16.gmra.mrb[0].mxu0 %v7892
        %v11322 = vpop.f32.mrb[0].mxu0
        %v11323 = vadd.f32 %v11162, %v11322
        %v11324 = vpop.f32.mrb[0].mxu0
        %v11325 = vpop.f32.mrb[0].mxu0
        %v11326 = vadd.f32 %v11165, %v11325
        %v11327 = vpop.f32.mrb[0].mxu0
        %11328 = vmatprep.mubr.bf16.mxu0 %v7966
        %11329 = vmatmul.mubr.bf16.gmra.mrb[0].mxu0 %v7954
        %v11330 = vpop.f32.mrb[0].mxu0
        %v11331 = vadd.f32 %v11170, %v11330
        %v11332 = vpop.f32.mrb[0].mxu0
        %v11333 = vpop.f32.mrb[0].mxu0
        %v11334 = vadd.f32 %v11173, %v11333
        %v11335 = vpop.f32.mrb[0].mxu0
        %11336 = vmatprep.mubr.bf16.mxu0 %v8028
        %11337 = vmatmul.mubr.bf16.gmra.mrb[0].mxu0 %v8016
        %v11338 = vpop.f32.mrb[0].mxu0
        %v11339 = vadd.f32 %v11178, %v11338
        %v11340 = vpop.f32.mrb[0].mxu0
        %v11341 = vpop.f32.mrb[0].mxu0
        %v11342 = vadd.f32 %v11181, %v11341
        %v11343 = vpop.f32.mrb[0].mxu0
        %11344 = vmatprep.mubr.bf16.mxu0 %v8090
        %11345 = vmatmul.mubr.bf16.gmra.mrb[0].mxu0 %v8078
        %v11346 = vpop.f32.mrb[0].mxu0
        %v11347 = vadd.f32 %v11186, %v11346
        %v11348 = vpop.f32.mrb[0].mxu0
        %v11349 = vpop.f32.mrb[0].mxu0
        %v11350 = vadd.f32 %v11189, %v11349
        %v11351 = vpop.f32.mrb[0].mxu0
        %11352 = vdwg.mxu0
        %11353 = vmatprep.subr.bf16.mxu0 0
        %11354 = vmatpush1.bf16.msra.mxu0 %v10967
        %11355 = vmatprep.subr.bf16.mxu0 0
        %11356 = vmatpush1.bf16.msra.mxu0 %v10968
        %11357 = vmatprep.subr.bf16.mxu0 0
        %11358 = vmatpush1.bf16.msra.mxu0 %v10969
        %11359 = vmatprep.subr.bf16.mxu0 0
        %11360 = vmatpush1.bf16.msra.mxu0 %v10970
        %11361 = vmatprep.subr.bf16.mxu0 0
        %11362 = vmatpush1.bf16.msra.mxu0 %v10971
        %11363 = vmatprep.subr.bf16.mxu0 0
        %11364 = vmatpush1.bf16.msra.mxu0 %v10972
        %11365 = vmatprep.subr.bf16.mxu0 0
        %11366 = vmatpush1.bf16.msra.mxu0 %v10973
        %11367 = vmatprep.subr.bf16.mxu0 0
        %11368 = vmatpush1.bf16.msra.mxu0 %v10974
        %11369 = vmatprep.subr.bf16.mxu0 0
        %11370 = vmatpush1.bf16.msra.mxu0 %v10975
        %11371 = vmatprep.subr.bf16.mxu0 0
        %11372 = vmatpush1.bf16.msra.mxu0 %v10976
        %11373 = vmatprep.subr.bf16.mxu0 0
        %11374 = vmatpush1.bf16.msra.mxu0 %v10977
        %11375 = vmatprep.subr.bf16.mxu0 0
        %11376 = vmatpush1.bf16.msra.mxu0 %v10978
        %11377 = vmatprep.subr.bf16.mxu0 0
        %11378 = vmatpush1.bf16.msra.mxu0 %v10979
        %11379 = vmatprep.subr.bf16.mxu0 0
        %11380 = vmatpush1.bf16.msra.mxu0 %v10980
        %11381 = vmatprep.subr.bf16.mxu0 0
        %11382 = vmatpush1.bf16.msra.mxu0 %v10981
        %11383 = vmatprep.subr.bf16.mxu0 0
        %11384 = vmatpush1.bf16.msra.mxu0 %v10982
        %11385 = vmatprep.mubr.bf16.mxu0 %v7184
        %11386 = vmatmul.mubr.bf16.gmra.mrb[0].mxu0 %v7172
        %v11387 = vpop.f32.mrb[0].mxu0
        %v11388 = vadd.f32 %v11227, %v11387
        %v11389 = vpop.f32.mrb[0].mxu0
        %v11390 = vpop.f32.mrb[0].mxu0
        %v11391 = vadd.f32 %v11230, %v11390
        %v11392 = vpop.f32.mrb[0].mxu0
        %11393 = vmatprep.mubr.bf16.mxu0 %v7246
        %11394 = vmatmul.mubr.bf16.gmra.mrb[0].mxu0 %v7234
        %v11395 = vpop.f32.mrb[0].mxu0
        %v11396 = vadd.f32 %v11235, %v11395
        %v11397 = vpop.f32.mrb[0].mxu0
        %v11398 = vpop.f32.mrb[0].mxu0
        %v11399 = vadd.f32 %v11238, %v11398
        %v11400 = vpop.f32.mrb[0].mxu0
        %11401 = vmatprep.mubr.bf16.mxu0 %v7308
        %11402 = vmatmul.mubr.bf16.gmra.mrb[0].mxu0 %v7296
        %v11403 = vpop.f32.mrb[0].mxu0
        %v11404 = vadd.f32 %v11243, %v11403
        %v11405 = vpop.f32.mrb[0].mxu0
        %v11406 = vpop.f32.mrb[0].mxu0
        %v11407 = vadd.f32 %v11246, %v11406
        %v11408 = vpop.f32.mrb[0].mxu0
        %11409 = vmatprep.mubr.bf16.mxu0 %v7370
        %11410 = vmatmul.mubr.bf16.gmra.mrb[0].mxu0 %v7358
        %v11411 = vpop.f32.mrb[0].mxu0
        %v11412 = vadd.f32 %v11251, %v11411
        %v11413 = vpop.f32.mrb[0].mxu0
        %v11414 = vpop.f32.mrb[0].mxu0
        %v11415 = vadd.f32 %v11254, %v11414
        %v11416 = vpop.f32.mrb[0].mxu0
        %11417 = vmatprep.mubr.bf16.mxu0 %v7432
        %11418 = vmatmul.mubr.bf16.gmra.mrb[0].mxu0 %v7420
        %v11419 = vpop.f32.mrb[0].mxu0
        %v11420 = vadd.f32 %v11259, %v11419
        %v11421 = vpop.f32.mrb[0].mxu0
        %v11422 = vpop.f32.mrb[0].mxu0
        %v11423 = vadd.f32 %v11262, %v11422
        %v11424 = vpop.f32.mrb[0].mxu0
        %11425 = vmatprep.mubr.bf16.mxu0 %v7494
        %11426 = vmatmul.mubr.bf16.gmra.mrb[0].mxu0 %v7482
        %v11427 = vpop.f32.mrb[0].mxu0
        %v11428 = vadd.f32 %v11267, %v11427
        %v11429 = vpop.f32.mrb[0].mxu0
        %v11430 = vpop.f32.mrb[0].mxu0
        %v11431 = vadd.f32 %v11270, %v11430
        %v11432 = vpop.f32.mrb[0].mxu0
        %11433 = vmatprep.mubr.bf16.mxu0 %v7556
        %11434 = vmatmul.mubr.bf16.gmra.mrb[0].mxu0 %v7544
        %v11435 = vpop.f32.mrb[0].mxu0
        %v11436 = vadd.f32 %v11275, %v11435
        %v11437 = vpop.f32.mrb[0].mxu0
        %v11438 = vpop.f32.mrb[0].mxu0
        %v11439 = vadd.f32 %v11278, %v11438
        %v11440 = vpop.f32.mrb[0].mxu0
        %11441 = vmatprep.mubr.bf16.mxu0 %v7618
        %11442 = vmatmul.mubr.bf16.gmra.mrb[0].mxu0 %v7606
        %v11443 = vpop.f32.mrb[0].mxu0
        %v11444 = vadd.f32 %v11283, %v11443
        %v11445 = vpop.f32.mrb[0].mxu0
        %v11446 = vpop.f32.mrb[0].mxu0
        %v11447 = vadd.f32 %v11286, %v11446
        %v11448 = vpop.f32.mrb[0].mxu0
        %11449 = vmatprep.mubr.bf16.mxu0 %v7680
        %11450 = vmatmul.mubr.bf16.gmra.mrb[0].mxu0 %v7668
        %v11451 = vpop.f32.mrb[0].mxu0
        %v11452 = vadd.f32 %v11291, %v11451
        %v11453 = vpop.f32.mrb[0].mxu0
        %v11454 = vpop.f32.mrb[0].mxu0
        %v11455 = vadd.f32 %v11294, %v11454
        %v11456 = vpop.f32.mrb[0].mxu0
        %11457 = vmatprep.mubr.bf16.mxu0 %v7742
        %11458 = vmatmul.mubr.bf16.gmra.mrb[0].mxu0 %v7730
        %v11459 = vpop.f32.mrb[0].mxu0
        %v11460 = vadd.f32 %v11299, %v11459
        %v11461 = vpop.f32.mrb[0].mxu0
        %v11462 = vpop.f32.mrb[0].mxu0
        %v11463 = vadd.f32 %v11302, %v11462
        %v11464 = vpop.f32.mrb[0].mxu0
        %11465 = vmatprep.mubr.bf16.mxu0 %v7804
        %11466 = vmatmul.mubr.bf16.gmra.mrb[0].mxu0 %v7792
        %v11467 = vpop.f32.mrb[0].mxu0
        %v11468 = vadd.f32 %v11307, %v11467
        %v11469 = vpop.f32.mrb[0].mxu0
        %v11470 = vpop.f32.mrb[0].mxu0
        %v11471 = vadd.f32 %v11310, %v11470
        %v11472 = vpop.f32.mrb[0].mxu0
        %11473 = vmatprep.mubr.bf16.mxu0 %v7866
        %11474 = vmatmul.mubr.bf16.gmra.mrb[0].mxu0 %v7854
        %v11475 = vpop.f32.mrb[0].mxu0
        %v11476 = vadd.f32 %v11315, %v11475
        %v11477 = vpop.f32.mrb[0].mxu0
        %v11478 = vpop.f32.mrb[0].mxu0
        %v11479 = vadd.f32 %v11318, %v11478
        %v11480 = vpop.f32.mrb[0].mxu0
        %11481 = vmatprep.mubr.bf16.mxu0 %v7928
        %11482 = vmatmul.mubr.bf16.gmra.mrb[0].mxu0 %v7916
        %v11483 = vpop.f32.mrb[0].mxu0
        %v11484 = vadd.f32 %v11323, %v11483
        %v11485 = vpop.f32.mrb[0].mxu0
        %v11486 = vpop.f32.mrb[0].mxu0
        %v11487 = vadd.f32 %v11326, %v11486
        %v11488 = vpop.f32.mrb[0].mxu0
        %11489 = vmatprep.mubr.bf16.mxu0 %v7990
        %11490 = vmatmul.mubr.bf16.gmra.mrb[0].mxu0 %v7978
        %v11491 = vpop.f32.mrb[0].mxu0
        %v11492 = vadd.f32 %v11331, %v11491
        %v11493 = vpop.f32.mrb[0].mxu0
        %v11494 = vpop.f32.mrb[0].mxu0
        %v11495 = vadd.f32 %v11334, %v11494
        %v11496 = vpop.f32.mrb[0].mxu0
        %11497 = vmatprep.mubr.bf16.mxu0 %v8052
        %11498 = vmatmul.mubr.bf16.gmra.mrb[0].mxu0 %v8040
        %v11499 = vpop.f32.mrb[0].mxu0
        %v11500 = vadd.f32 %v11339, %v11499
        %v11501 = vpop.f32.mrb[0].mxu0
        %v11502 = vpop.f32.mrb[0].mxu0
        %v11503 = vadd.f32 %v11342, %v11502
        %v11504 = vpop.f32.mrb[0].mxu0
        %11505 = vmatprep.mubr.bf16.mxu0 %v8114
        %11506 = vmatmul.mubr.bf16.gmra.mrb[0].mxu0 %v8102
        %v11507 = vpop.f32.mrb[0].mxu0
        %v11508 = vadd.f32 %v11347, %v11507
        %v11509 = vpop.f32.mrb[0].mxu0
        %v11510 = vpop.f32.mrb[0].mxu0
        %v11511 = vadd.f32 %v11350, %v11510
        %v11512 = vpop.f32.mrb[0].mxu0
        %11513 = vdwg.mxu0
        %s11514 = scalar_lea.vmem [#allocation3], 96
        %v11515 = vld [vmem:[%s11514] sm:$0x80]
        %v11516 = vld [vmem:[%s11514 + $0x8] sm:$0x80]
        %v11517 = vld [vmem:[%s11514 + $0x10] sm:$0xff]
        %v11518 = vld [vmem:[%s11514 + $0x18] sm:$0xff]
        %v11519 = vld [vmem:[%s11514 + $0x30] sm:$0x80]
        %v11520 = vld [vmem:[%s11514 + $0x38] sm:$0x80]
        %v11521 = vld [vmem:[%s11514 + $0x40] sm:$0xff]
        %v11522 = vld [vmem:[%s11514 + $0x48] sm:$0xff]
        %v11523 = vld [vmem:[%s11514 + $0x60] sm:$0x80]
        %v11524 = vld [vmem:[%s11514 + $0x68] sm:$0x80]
        %v11525 = vld [vmem:[%s11514 + $0x70] sm:$0xff]
        %v11526 = vld [vmem:[%s11514 + $0x78] sm:$0xff]
        %v11527 = vld [vmem:[%s11514 + $0x90] sm:$0x80]
        %v11528 = vld [vmem:[%s11514 + $0x98] sm:$0x80]
        %v11529 = vld [vmem:[%s11514 + $0xa0] sm:$0xff]
        %v11530 = vld [vmem:[%s11514 + $0xa8] sm:$0xff]
        %v11531 = vld [vmem:[%s11514 + $0xc0] sm:$0x80]
        %v11532 = vld [vmem:[%s11514 + $0xc8] sm:$0x80]
        %v11533 = vld [vmem:[%s11514 + $0xd0] sm:$0xff]
        %v11534 = vld [vmem:[%s11514 + $0xd8] sm:$0xff]
        %v11535 = vld [vmem:[%s11514 + $0xf0] sm:$0x80]
        %v11536 = vld [vmem:[%s11514 + $0xf8] sm:$0x80]
        %v11537 = vld [vmem:[%s11514 + $0x100] sm:$0xff]
        %v11538 = vld [vmem:[%s11514 + $0x108] sm:$0xff]
        %v11539 = vld [vmem:[%s11514 + $0x120] sm:$0x80]
        %v11540 = vld [vmem:[%s11514 + $0x128] sm:$0x80]
        %v11541 = vld [vmem:[%s11514 + $0x130] sm:$0xff]
        %v11542 = vld [vmem:[%s11514 + $0x138] sm:$0xff]
        %v11543 = vld [vmem:[%s11514 + $0x150] sm:$0x80]
        %v11544 = vld [vmem:[%s11514 + $0x158] sm:$0x80]
        %v11545 = vld [vmem:[%s11514 + $0x160] sm:$0xff]
        %v11546 = vld [vmem:[%s11514 + $0x168] sm:$0xff]
        %v11547 = vld [vmem:[%s11514 + $0x180] sm:$0x80]
        %v11548 = vld [vmem:[%s11514 + $0x188] sm:$0x80]
        %v11549 = vld [vmem:[%s11514 + $0x190] sm:$0xff]
        %v11550 = vld [vmem:[%s11514 + $0x198] sm:$0xff]
        %v11551 = vld [vmem:[%s11514 + $0x1b0] sm:$0x80]
        %v11552 = vld [vmem:[%s11514 + $0x1b8] sm:$0x80]
        %v11553 = vld [vmem:[%s11514 + $0x1c0] sm:$0xff]
        %v11554 = vld [vmem:[%s11514 + $0x1c8] sm:$0xff]
        %v11555 = vld [vmem:[%s11514 + $0x1e0] sm:$0x80]
        %v11556 = vld [vmem:[%s11514 + $0x1e8] sm:$0x80]
        %v11557 = vld [vmem:[%s11514 + $0x1f0] sm:$0xff]
        %v11558 = vld [vmem:[%s11514 + $0x1f8] sm:$0xff]
        %v11559 = vld [vmem:[%s11514 + $0x210] sm:$0x80]
        %v11560 = vld [vmem:[%s11514 + $0x218] sm:$0x80]
        %v11561 = vld [vmem:[%s11514 + $0x220] sm:$0xff]
        %v11562 = vld [vmem:[%s11514 + $0x228] sm:$0xff]
        %v11563 = vld [vmem:[%s11514 + $0x240] sm:$0x80]
        %v11564 = vld [vmem:[%s11514 + $0x248] sm:$0x80]
        %v11565 = vld [vmem:[%s11514 + $0x250] sm:$0xff]
        %v11566 = vld [vmem:[%s11514 + $0x258] sm:$0xff]
        %v11567 = vld [vmem:[%s11514 + $0x270] sm:$0x80]
        %v11568 = vld [vmem:[%s11514 + $0x278] sm:$0x80]
        %v11569 = vld [vmem:[%s11514 + $0x280] sm:$0xff]
        %v11570 = vld [vmem:[%s11514 + $0x288] sm:$0xff]
        %v11571 = vld [vmem:[%s11514 + $0x2a0] sm:$0x80]
        %v11572 = vld [vmem:[%s11514 + $0x2a8] sm:$0x80]
        %v11573 = vld [vmem:[%s11514 + $0x2b0] sm:$0xff]
        %v11574 = vld [vmem:[%s11514 + $0x2b8] sm:$0xff]
        %v11575 = vld [vmem:[%s11514 + $0x2d0] sm:$0x80]
        %v11576 = vld [vmem:[%s11514 + $0x2d8] sm:$0x80]
        %v11577 = vld [vmem:[%s11514 + $0x2e0] sm:$0xff]
        %v11578 = vld [vmem:[%s11514 + $0x2e8] sm:$0xff]
        %v11579 = vld [vmem:[%s11514 + $0x20] sm:$0x1]
        %v11580 = vld [vmem:[%s11514 + $0x28] sm:$0x1]
        %v11581 = vld [vmem:[%s11514 + $0x50] sm:$0x1]
        %v11582 = vld [vmem:[%s11514 + $0x58] sm:$0x1]
        %v11583 = vld [vmem:[%s11514 + $0x80] sm:$0x1]
        %v11584 = vld [vmem:[%s11514 + $0x88] sm:$0x1]
        %v11585 = vld [vmem:[%s11514 + $0xb0] sm:$0x1]
        %v11586 = vld [vmem:[%s11514 + $0xb8] sm:$0x1]
        %v11587 = vld [vmem:[%s11514 + $0xe0] sm:$0x1]
        %v11588 = vld [vmem:[%s11514 + $0xe8] sm:$0x1]
        %v11589 = vld [vmem:[%s11514 + $0x110] sm:$0x1]
        %v11590 = vld [vmem:[%s11514 + $0x118] sm:$0x1]
        %v11591 = vld [vmem:[%s11514 + $0x140] sm:$0x1]
        %v11592 = vld [vmem:[%s11514 + $0x148] sm:$0x1]
        %v11593 = vld [vmem:[%s11514 + $0x170] sm:$0x1]
        %v11594 = vld [vmem:[%s11514 + $0x178] sm:$0x1]
        %v11595 = vld [vmem:[%s11514 + $0x1a0] sm:$0x1]
        %v11596 = vld [vmem:[%s11514 + $0x1a8] sm:$0x1]
        %v11597 = vld [vmem:[%s11514 + $0x1d0] sm:$0x1]
        %v11598 = vld [vmem:[%s11514 + $0x1d8] sm:$0x1]
        %v11599 = vld [vmem:[%s11514 + $0x200] sm:$0x1]
        %v11600 = vld [vmem:[%s11514 + $0x208] sm:$0x1]
        %v11601 = vld [vmem:[%s11514 + $0x230] sm:$0x1]
        %v11602 = vld [vmem:[%s11514 + $0x238] sm:$0x1]
        %v11603 = vld [vmem:[%s11514 + $0x260] sm:$0x1]
        %v11604 = vld [vmem:[%s11514 + $0x268] sm:$0x1]
        %v11605 = vld [vmem:[%s11514 + $0x290] sm:$0x1]
        %v11606 = vld [vmem:[%s11514 + $0x298] sm:$0x1]
        %v11607 = vld [vmem:[%s11514 + $0x2c0] sm:$0x1]
        %v11608 = vld [vmem:[%s11514 + $0x2c8] sm:$0x1]
        %v11609 = vld [vmem:[%s11514 + $0x2f0] sm:$0x1]
        %v11610 = vld [vmem:[%s11514 + $0x2f8] sm:$0x1]
        %v11612 = vshll.u32 %v11517, 16
        %v11614 = vrot.slane %v11612, 1
        %v11616 = vshll.u32 %v11518, 16
        %v11618 = vrot.slane %v11616, 1
        %v11619 = vshrl.u32 %v11517, 16
        %v11621 = vor.u32 %v11619, %v11614
        %v11622 = vshrl.u32 %v11518, 16
        %v11624 = vor.u32 %v11622, %v11618
        %v11626 = vshll.u32 %v11521, 16
        %v11628 = vrot.slane %v11626, 1
        %v11630 = vshll.u32 %v11522, 16
        %v11632 = vrot.slane %v11630, 1
        %v11633 = vshrl.u32 %v11521, 16
        %v11635 = vor.u32 %v11633, %v11628
        %v11636 = vshrl.u32 %v11522, 16
        %v11638 = vor.u32 %v11636, %v11632
        %v11640 = vshll.u32 %v11525, 16
        %v11642 = vrot.slane %v11640, 1
        %v11644 = vshll.u32 %v11526, 16
        %v11646 = vrot.slane %v11644, 1
        %v11647 = vshrl.u32 %v11525, 16
        %v11649 = vor.u32 %v11647, %v11642
        %v11650 = vshrl.u32 %v11526, 16
        %v11652 = vor.u32 %v11650, %v11646
        %v11654 = vshll.u32 %v11529, 16
        %v11656 = vrot.slane %v11654, 1
        %v11658 = vshll.u32 %v11530, 16
        %v11660 = vrot.slane %v11658, 1
        %v11661 = vshrl.u32 %v11529, 16
        %v11663 = vor.u32 %v11661, %v11656
        %v11664 = vshrl.u32 %v11530, 16
        %v11666 = vor.u32 %v11664, %v11660
        %v11668 = vshll.u32 %v11533, 16
        %v11670 = vrot.slane %v11668, 1
        %v11672 = vshll.u32 %v11534, 16
        %v11674 = vrot.slane %v11672, 1
        %v11675 = vshrl.u32 %v11533, 16
        %v11677 = vor.u32 %v11675, %v11670
        %v11678 = vshrl.u32 %v11534, 16
        %v11680 = vor.u32 %v11678, %v11674
        %v11682 = vshll.u32 %v11537, 16
        %v11684 = vrot.slane %v11682, 1
        %v11686 = vshll.u32 %v11538, 16
        %v11688 = vrot.slane %v11686, 1
        %v11689 = vshrl.u32 %v11537, 16
        %v11691 = vor.u32 %v11689, %v11684
        %v11692 = vshrl.u32 %v11538, 16
        %v11694 = vor.u32 %v11692, %v11688
        %v11696 = vshll.u32 %v11541, 16
        %v11698 = vrot.slane %v11696, 1
        %v11700 = vshll.u32 %v11542, 16
        %v11702 = vrot.slane %v11700, 1
        %v11703 = vshrl.u32 %v11541, 16
        %v11705 = vor.u32 %v11703, %v11698
        %v11706 = vshrl.u32 %v11542, 16
        %v11708 = vor.u32 %v11706, %v11702
        %v11710 = vshll.u32 %v11545, 16
        %v11712 = vrot.slane %v11710, 1
        %v11714 = vshll.u32 %v11546, 16
        %v11716 = vrot.slane %v11714, 1
        %v11717 = vshrl.u32 %v11545, 16
        %v11719 = vor.u32 %v11717, %v11712
        %v11720 = vshrl.u32 %v11546, 16
        %v11722 = vor.u32 %v11720, %v11716
        %v11724 = vshll.u32 %v11549, 16
        %v11726 = vrot.slane %v11724, 1
        %v11728 = vshll.u32 %v11550, 16
        %v11730 = vrot.slane %v11728, 1
        %v11731 = vshrl.u32 %v11549, 16
        %v11733 = vor.u32 %v11731, %v11726
        %v11734 = vshrl.u32 %v11550, 16
        %v11736 = vor.u32 %v11734, %v11730
        %v11738 = vshll.u32 %v11553, 16
        %v11740 = vrot.slane %v11738, 1
        %v11742 = vshll.u32 %v11554, 16
        %v11744 = vrot.slane %v11742, 1
        %v11745 = vshrl.u32 %v11553, 16
        %v11747 = vor.u32 %v11745, %v11740
        %v11748 = vshrl.u32 %v11554, 16
        %v11750 = vor.u32 %v11748, %v11744
        %v11752 = vshll.u32 %v11557, 16
        %v11754 = vrot.slane %v11752, 1
        %v11756 = vshll.u32 %v11558, 16
        %v11758 = vrot.slane %v11756, 1
        %v11759 = vshrl.u32 %v11557, 16
        %v11761 = vor.u32 %v11759, %v11754
        %v11762 = vshrl.u32 %v11558, 16
        %v11764 = vor.u32 %v11762, %v11758
        %v11766 = vshll.u32 %v11561, 16
        %v11768 = vrot.slane %v11766, 1
        %v11770 = vshll.u32 %v11562, 16
        %v11772 = vrot.slane %v11770, 1
        %v11773 = vshrl.u32 %v11561, 16
        %v11775 = vor.u32 %v11773, %v11768
        %v11776 = vshrl.u32 %v11562, 16
        %v11778 = vor.u32 %v11776, %v11772
        %v11780 = vshll.u32 %v11565, 16
        %v11782 = vrot.slane %v11780, 1
        %v11784 = vshll.u32 %v11566, 16
        %v11786 = vrot.slane %v11784, 1
        %v11787 = vshrl.u32 %v11565, 16
        %v11789 = vor.u32 %v11787, %v11782
        %v11790 = vshrl.u32 %v11566, 16
        %v11792 = vor.u32 %v11790, %v11786
        %v11794 = vshll.u32 %v11569, 16
        %v11796 = vrot.slane %v11794, 1
        %v11798 = vshll.u32 %v11570, 16
        %v11800 = vrot.slane %v11798, 1
        %v11801 = vshrl.u32 %v11569, 16
        %v11803 = vor.u32 %v11801, %v11796
        %v11804 = vshrl.u32 %v11570, 16
        %v11806 = vor.u32 %v11804, %v11800
        %v11808 = vshll.u32 %v11573, 16
        %v11810 = vrot.slane %v11808, 1
        %v11812 = vshll.u32 %v11574, 16
        %v11814 = vrot.slane %v11812, 1
        %v11815 = vshrl.u32 %v11573, 16
        %v11817 = vor.u32 %v11815, %v11810
        %v11818 = vshrl.u32 %v11574, 16
        %v11820 = vor.u32 %v11818, %v11814
        %v11822 = vshll.u32 %v11577, 16
        %v11824 = vrot.slane %v11822, 1
        %v11826 = vshll.u32 %v11578, 16
        %v11828 = vrot.slane %v11826, 1
        %v11829 = vshrl.u32 %v11577, 16
        %v11831 = vor.u32 %v11829, %v11824
        %v11832 = vshrl.u32 %v11578, 16
        %v11834 = vor.u32 %v11832, %v11828
        %v11899 = vrot.slane %v11517, 1
        %v11900 = vrot.slane %v11518, 1
        %v11901 = vrot.slane %v11579, 1
        %v11902 = vsel %vm1031, %v11899, %v11901
        %v11903 = vrot.slane %v11580, 1
        %v11904 = vsel %vm1031, %v11900, %v11903
        %v11905 = vrot.slane %v11521, 1
        %v11906 = vrot.slane %v11522, 1
        %v11907 = vrot.slane %v11581, 1
        %v11908 = vsel %vm1031, %v11905, %v11907
        %v11909 = vrot.slane %v11582, 1
        %v11910 = vsel %vm1031, %v11906, %v11909
        %v11911 = vrot.slane %v11525, 1
        %v11912 = vrot.slane %v11526, 1
        %v11913 = vrot.slane %v11583, 1
        %v11914 = vsel %vm1031, %v11911, %v11913
        %v11915 = vrot.slane %v11584, 1
        %v11916 = vsel %vm1031, %v11912, %v11915
        %v11917 = vrot.slane %v11529, 1
        %v11918 = vrot.slane %v11530, 1
        %v11919 = vrot.slane %v11585, 1
        %v11920 = vsel %vm1031, %v11917, %v11919
        %v11921 = vrot.slane %v11586, 1
        %v11922 = vsel %vm1031, %v11918, %v11921
        %v11923 = vrot.slane %v11533, 1
        %v11924 = vrot.slane %v11534, 1
        %v11925 = vrot.slane %v11587, 1
        %v11926 = vsel %vm1031, %v11923, %v11925
        %v11927 = vrot.slane %v11588, 1
        %v11928 = vsel %vm1031, %v11924, %v11927
        %v11929 = vrot.slane %v11537, 1
        %v11930 = vrot.slane %v11538, 1
        %v11931 = vrot.slane %v11589, 1
        %v11932 = vsel %vm1031, %v11929, %v11931
        %v11933 = vrot.slane %v11590, 1
        %v11934 = vsel %vm1031, %v11930, %v11933
        %v11935 = vrot.slane %v11541, 1
        %v11936 = vrot.slane %v11542, 1
        %v11937 = vrot.slane %v11591, 1
        %v11938 = vsel %vm1031, %v11935, %v11937
        %v11939 = vrot.slane %v11592, 1
        %v11940 = vsel %vm1031, %v11936, %v11939
        %v11941 = vrot.slane %v11545, 1
        %v11942 = vrot.slane %v11546, 1
        %v11943 = vrot.slane %v11593, 1
        %v11944 = vsel %vm1031, %v11941, %v11943
        %v11945 = vrot.slane %v11594, 1
        %v11946 = vsel %vm1031, %v11942, %v11945
        %v11947 = vrot.slane %v11549, 1
        %v11948 = vrot.slane %v11550, 1
        %v11949 = vrot.slane %v11595, 1
        %v11950 = vsel %vm1031, %v11947, %v11949
        %v11951 = vrot.slane %v11596, 1
        %v11952 = vsel %vm1031, %v11948, %v11951
        %v11953 = vrot.slane %v11553, 1
        %v11954 = vrot.slane %v11554, 1
        %v11955 = vrot.slane %v11597, 1
        %v11956 = vsel %vm1031, %v11953, %v11955
        %v11957 = vrot.slane %v11598, 1
        %v11958 = vsel %vm1031, %v11954, %v11957
        %v11959 = vrot.slane %v11557, 1
        %v11960 = vrot.slane %v11558, 1
        %v11961 = vrot.slane %v11599, 1
        %v11962 = vsel %vm1031, %v11959, %v11961
        %v11963 = vrot.slane %v11600, 1
        %v11964 = vsel %vm1031, %v11960, %v11963
        %v11965 = vrot.slane %v11561, 1
        %v11966 = vrot.slane %v11562, 1
        %v11967 = vrot.slane %v11601, 1
        %v11968 = vsel %vm1031, %v11965, %v11967
        %v11969 = vrot.slane %v11602, 1
        %v11970 = vsel %vm1031, %v11966, %v11969
        %v11971 = vrot.slane %v11565, 1
        %v11972 = vrot.slane %v11566, 1
        %v11973 = vrot.slane %v11603, 1
        %v11974 = vsel %vm1031, %v11971, %v11973
        %v11975 = vrot.slane %v11604, 1
        %v11976 = vsel %vm1031, %v11972, %v11975
        %v11977 = vrot.slane %v11569, 1
        %v11978 = vrot.slane %v11570, 1
        %v11979 = vrot.slane %v11605, 1
        %v11980 = vsel %vm1031, %v11977, %v11979
        %v11981 = vrot.slane %v11606, 1
        %v11982 = vsel %vm1031, %v11978, %v11981
        %v11983 = vrot.slane %v11573, 1
        %v11984 = vrot.slane %v11574, 1
        %v11985 = vrot.slane %v11607, 1
        %v11986 = vsel %vm1031, %v11983, %v11985
        %v11987 = vrot.slane %v11608, 1
        %v11988 = vsel %vm1031, %v11984, %v11987
        %v11989 = vrot.slane %v11577, 1
        %v11990 = vrot.slane %v11578, 1
        %v11991 = vrot.slane %v11609, 1
        %v11992 = vsel %vm1031, %v11989, %v11991
        %v11993 = vrot.slane %v11610, 1
        %v11994 = vsel %vm1031, %v11990, %v11993
        %v11996 = vshrl.u32 %v11515, 16
        %v11998 = vrot.slane %v11996, 7
        %v11999 = vrot.slane %v11619, 7
        %v12000 = vor.u32 %v11999, %v11612
        %v12001 = vsel %vm1056, %v11998, %v12000
        %v12003 = vshrl.u32 %v11516, 16
        %v12005 = vrot.slane %v12003, 7
        %v12006 = vrot.slane %v11622, 7
        %v12007 = vor.u32 %v12006, %v11616
        %v12008 = vsel %vm1056, %v12005, %v12007
        %v12010 = vshrl.u32 %v11614, 16
        %v12012 = vrot.slane %v12010, 7
        %v12014 = vshrl.u32 %v11621, 16
        %v12016 = vrot.slane %v12014, 7
        %v12017 = vshll.u32 %v11621, 16
        %v12019 = vor.u32 %v12016, %v12017
        %v12020 = vsel %vm1056, %v12012, %v12019
        %v12022 = vshrl.u32 %v11618, 16
        %v12024 = vrot.slane %v12022, 7
        %v12026 = vshrl.u32 %v11624, 16
        %v12028 = vrot.slane %v12026, 7
        %v12029 = vshll.u32 %v11624, 16
        %v12031 = vor.u32 %v12028, %v12029
        %v12032 = vsel %vm1056, %v12024, %v12031
        %v12034 = vshrl.u32 %v11899, 16
        %v12036 = vrot.slane %v12034, 7
        %v12038 = vshrl.u32 %v11902, 16
        %v12040 = vrot.slane %v12038, 7
        %v12041 = vshll.u32 %v11902, 16
        %v12043 = vor.u32 %v12040, %v12041
        %v12044 = vsel %vm1056, %v12036, %v12043
        %v12046 = vshrl.u32 %v11900, 16
        %v12048 = vrot.slane %v12046, 7
        %v12050 = vshrl.u32 %v11904, 16
        %v12052 = vrot.slane %v12050, 7
        %v12053 = vshll.u32 %v11904, 16
        %v12055 = vor.u32 %v12052, %v12053
        %v12056 = vsel %vm1056, %v12048, %v12055
        %v12058 = vshrl.u32 %v11519, 16
        %v12060 = vrot.slane %v12058, 7
        %v12061 = vrot.slane %v11633, 7
        %v12062 = vor.u32 %v12061, %v11626
        %v12063 = vsel %vm1056, %v12060, %v12062
        %v12065 = vshrl.u32 %v11520, 16
        %v12067 = vrot.slane %v12065, 7
        %v12068 = vrot.slane %v11636, 7
        %v12069 = vor.u32 %v12068, %v11630
        %v12070 = vsel %vm1056, %v12067, %v12069
        %v12072 = vshrl.u32 %v11628, 16
        %v12074 = vrot.slane %v12072, 7
        %v12076 = vshrl.u32 %v11635, 16
        %v12078 = vrot.slane %v12076, 7
        %v12079 = vshll.u32 %v11635, 16
        %v12081 = vor.u32 %v12078, %v12079
        %v12082 = vsel %vm1056, %v12074, %v12081
        %v12084 = vshrl.u32 %v11632, 16
        %v12086 = vrot.slane %v12084, 7
        %v12088 = vshrl.u32 %v11638, 16
        %v12090 = vrot.slane %v12088, 7
        %v12091 = vshll.u32 %v11638, 16
        %v12093 = vor.u32 %v12090, %v12091
        %v12094 = vsel %vm1056, %v12086, %v12093
        %v12096 = vshrl.u32 %v11905, 16
        %v12098 = vrot.slane %v12096, 7
        %v12100 = vshrl.u32 %v11908, 16
        %v12102 = vrot.slane %v12100, 7
        %v12103 = vshll.u32 %v11908, 16
        %v12105 = vor.u32 %v12102, %v12103
        %v12106 = vsel %vm1056, %v12098, %v12105
        %v12108 = vshrl.u32 %v11906, 16
        %v12110 = vrot.slane %v12108, 7
        %v12112 = vshrl.u32 %v11910, 16
        %v12114 = vrot.slane %v12112, 7
        %v12115 = vshll.u32 %v11910, 16
        %v12117 = vor.u32 %v12114, %v12115
        %v12118 = vsel %vm1056, %v12110, %v12117
        %v12120 = vshrl.u32 %v11523, 16
        %v12122 = vrot.slane %v12120, 7
        %v12123 = vrot.slane %v11647, 7
        %v12124 = vor.u32 %v12123, %v11640
        %v12125 = vsel %vm1056, %v12122, %v12124
        %v12127 = vshrl.u32 %v11524, 16
        %v12129 = vrot.slane %v12127, 7
        %v12130 = vrot.slane %v11650, 7
        %v12131 = vor.u32 %v12130, %v11644
        %v12132 = vsel %vm1056, %v12129, %v12131
        %v12134 = vshrl.u32 %v11642, 16
        %v12136 = vrot.slane %v12134, 7
        %v12138 = vshrl.u32 %v11649, 16
        %v12140 = vrot.slane %v12138, 7
        %v12141 = vshll.u32 %v11649, 16
        %v12143 = vor.u32 %v12140, %v12141
        %v12144 = vsel %vm1056, %v12136, %v12143
        %v12146 = vshrl.u32 %v11646, 16
        %v12148 = vrot.slane %v12146, 7
        %v12150 = vshrl.u32 %v11652, 16
        %v12152 = vrot.slane %v12150, 7
        %v12153 = vshll.u32 %v11652, 16
        %v12155 = vor.u32 %v12152, %v12153
        %v12156 = vsel %vm1056, %v12148, %v12155
        %v12158 = vshrl.u32 %v11911, 16
        %v12160 = vrot.slane %v12158, 7
        %v12162 = vshrl.u32 %v11914, 16
        %v12164 = vrot.slane %v12162, 7
        %v12165 = vshll.u32 %v11914, 16
        %v12167 = vor.u32 %v12164, %v12165
        %v12168 = vsel %vm1056, %v12160, %v12167
        %v12170 = vshrl.u32 %v11912, 16
        %v12172 = vrot.slane %v12170, 7
        %v12174 = vshrl.u32 %v11916, 16
        %v12176 = vrot.slane %v12174, 7
        %v12177 = vshll.u32 %v11916, 16
        %v12179 = vor.u32 %v12176, %v12177
        %v12180 = vsel %vm1056, %v12172, %v12179
        %v12182 = vshrl.u32 %v11527, 16
        %v12184 = vrot.slane %v12182, 7
        %v12185 = vrot.slane %v11661, 7
        %v12186 = vor.u32 %v12185, %v11654
        %v12187 = vsel %vm1056, %v12184, %v12186
        %v12189 = vshrl.u32 %v11528, 16
        %v12191 = vrot.slane %v12189, 7
        %v12192 = vrot.slane %v11664, 7
        %v12193 = vor.u32 %v12192, %v11658
        %v12194 = vsel %vm1056, %v12191, %v12193
        %v12196 = vshrl.u32 %v11656, 16
        %v12198 = vrot.slane %v12196, 7
        %v12200 = vshrl.u32 %v11663, 16
        %v12202 = vrot.slane %v12200, 7
        %v12203 = vshll.u32 %v11663, 16
        %v12205 = vor.u32 %v12202, %v12203
        %v12206 = vsel %vm1056, %v12198, %v12205
        %v12208 = vshrl.u32 %v11660, 16
        %v12210 = vrot.slane %v12208, 7
        %v12212 = vshrl.u32 %v11666, 16
        %v12214 = vrot.slane %v12212, 7
        %v12215 = vshll.u32 %v11666, 16
        %v12217 = vor.u32 %v12214, %v12215
        %v12218 = vsel %vm1056, %v12210, %v12217
        %v12220 = vshrl.u32 %v11917, 16
        %v12222 = vrot.slane %v12220, 7
        %v12224 = vshrl.u32 %v11920, 16
        %v12226 = vrot.slane %v12224, 7
        %v12227 = vshll.u32 %v11920, 16
        %v12229 = vor.u32 %v12226, %v12227
        %v12230 = vsel %vm1056, %v12222, %v12229
        %v12232 = vshrl.u32 %v11918, 16
        %v12234 = vrot.slane %v12232, 7
        %v12236 = vshrl.u32 %v11922, 16
        %v12238 = vrot.slane %v12236, 7
        %v12239 = vshll.u32 %v11922, 16
        %v12241 = vor.u32 %v12238, %v12239
        %v12242 = vsel %vm1056, %v12234, %v12241
        %v12244 = vshrl.u32 %v11531, 16
        %v12246 = vrot.slane %v12244, 7
        %v12247 = vrot.slane %v11675, 7
        %v12248 = vor.u32 %v12247, %v11668
        %v12249 = vsel %vm1056, %v12246, %v12248
        %v12251 = vshrl.u32 %v11532, 16
        %v12253 = vrot.slane %v12251, 7
        %v12254 = vrot.slane %v11678, 7
        %v12255 = vor.u32 %v12254, %v11672
        %v12256 = vsel %vm1056, %v12253, %v12255
        %v12258 = vshrl.u32 %v11670, 16
        %v12260 = vrot.slane %v12258, 7
        %v12262 = vshrl.u32 %v11677, 16
        %v12264 = vrot.slane %v12262, 7
        %v12265 = vshll.u32 %v11677, 16
        %v12267 = vor.u32 %v12264, %v12265
        %v12268 = vsel %vm1056, %v12260, %v12267
        %v12270 = vshrl.u32 %v11674, 16
        %v12272 = vrot.slane %v12270, 7
        %v12274 = vshrl.u32 %v11680, 16
        %v12276 = vrot.slane %v12274, 7
        %v12277 = vshll.u32 %v11680, 16
        %v12279 = vor.u32 %v12276, %v12277
        %v12280 = vsel %vm1056, %v12272, %v12279
        %v12282 = vshrl.u32 %v11923, 16
        %v12284 = vrot.slane %v12282, 7
        %v12286 = vshrl.u32 %v11926, 16
        %v12288 = vrot.slane %v12286, 7
        %v12289 = vshll.u32 %v11926, 16
        %v12291 = vor.u32 %v12288, %v12289
        %v12292 = vsel %vm1056, %v12284, %v12291
        %v12294 = vshrl.u32 %v11924, 16
        %v12296 = vrot.slane %v12294, 7
        %v12298 = vshrl.u32 %v11928, 16
        %v12300 = vrot.slane %v12298, 7
        %v12301 = vshll.u32 %v11928, 16
        %v12303 = vor.u32 %v12300, %v12301
        %v12304 = vsel %vm1056, %v12296, %v12303
        %v12306 = vshrl.u32 %v11535, 16
        %v12308 = vrot.slane %v12306, 7
        %v12309 = vrot.slane %v11689, 7
        %v12310 = vor.u32 %v12309, %v11682
        %v12311 = vsel %vm1056, %v12308, %v12310
        %v12313 = vshrl.u32 %v11536, 16
        %v12315 = vrot.slane %v12313, 7
        %v12316 = vrot.slane %v11692, 7
        %v12317 = vor.u32 %v12316, %v11686
        %v12318 = vsel %vm1056, %v12315, %v12317
        %v12320 = vshrl.u32 %v11684, 16
        %v12322 = vrot.slane %v12320, 7
        %v12324 = vshrl.u32 %v11691, 16
        %v12326 = vrot.slane %v12324, 7
        %v12327 = vshll.u32 %v11691, 16
        %v12329 = vor.u32 %v12326, %v12327
        %v12330 = vsel %vm1056, %v12322, %v12329
        %v12332 = vshrl.u32 %v11688, 16
        %v12334 = vrot.slane %v12332, 7
        %v12336 = vshrl.u32 %v11694, 16
        %v12338 = vrot.slane %v12336, 7
        %v12339 = vshll.u32 %v11694, 16
        %v12341 = vor.u32 %v12338, %v12339
        %v12342 = vsel %vm1056, %v12334, %v12341
        %v12344 = vshrl.u32 %v11929, 16
        %v12346 = vrot.slane %v12344, 7
        %v12348 = vshrl.u32 %v11932, 16
        %v12350 = vrot.slane %v12348, 7
        %v12351 = vshll.u32 %v11932, 16
        %v12353 = vor.u32 %v12350, %v12351
        %v12354 = vsel %vm1056, %v12346, %v12353
        %v12356 = vshrl.u32 %v11930, 16
        %v12358 = vrot.slane %v12356, 7
        %v12360 = vshrl.u32 %v11934, 16
        %v12362 = vrot.slane %v12360, 7
        %v12363 = vshll.u32 %v11934, 16
        %v12365 = vor.u32 %v12362, %v12363
        %v12366 = vsel %vm1056, %v12358, %v12365
        %v12368 = vshrl.u32 %v11539, 16
        %v12370 = vrot.slane %v12368, 7
        %v12371 = vrot.slane %v11703, 7
        %v12372 = vor.u32 %v12371, %v11696
        %v12373 = vsel %vm1056, %v12370, %v12372
        %v12375 = vshrl.u32 %v11540, 16
        %v12377 = vrot.slane %v12375, 7
        %v12378 = vrot.slane %v11706, 7
        %v12379 = vor.u32 %v12378, %v11700
        %v12380 = vsel %vm1056, %v12377, %v12379
        %v12382 = vshrl.u32 %v11698, 16
        %v12384 = vrot.slane %v12382, 7
        %v12386 = vshrl.u32 %v11705, 16
        %v12388 = vrot.slane %v12386, 7
        %v12389 = vshll.u32 %v11705, 16
        %v12391 = vor.u32 %v12388, %v12389
        %v12392 = vsel %vm1056, %v12384, %v12391
        %v12394 = vshrl.u32 %v11702, 16
        %v12396 = vrot.slane %v12394, 7
        %v12398 = vshrl.u32 %v11708, 16
        %v12400 = vrot.slane %v12398, 7
        %v12401 = vshll.u32 %v11708, 16
        %v12403 = vor.u32 %v12400, %v12401
        %v12404 = vsel %vm1056, %v12396, %v12403
        %v12406 = vshrl.u32 %v11935, 16
        %v12408 = vrot.slane %v12406, 7
        %v12410 = vshrl.u32 %v11938, 16
        %v12412 = vrot.slane %v12410, 7
        %v12413 = vshll.u32 %v11938, 16
        %v12415 = vor.u32 %v12412, %v12413
        %v12416 = vsel %vm1056, %v12408, %v12415
        %v12418 = vshrl.u32 %v11936, 16
        %v12420 = vrot.slane %v12418, 7
        %v12422 = vshrl.u32 %v11940, 16
        %v12424 = vrot.slane %v12422, 7
        %v12425 = vshll.u32 %v11940, 16
        %v12427 = vor.u32 %v12424, %v12425
        %v12428 = vsel %vm1056, %v12420, %v12427
        %v12430 = vshrl.u32 %v11543, 16
        %v12432 = vrot.slane %v12430, 7
        %v12433 = vrot.slane %v11717, 7
        %v12434 = vor.u32 %v12433, %v11710
        %v12435 = vsel %vm1056, %v12432, %v12434
        %v12437 = vshrl.u32 %v11544, 16
        %v12439 = vrot.slane %v12437, 7
        %v12440 = vrot.slane %v11720, 7
        %v12441 = vor.u32 %v12440, %v11714
        %v12442 = vsel %vm1056, %v12439, %v12441
        %v12444 = vshrl.u32 %v11712, 16
        %v12446 = vrot.slane %v12444, 7
        %v12448 = vshrl.u32 %v11719, 16
        %v12450 = vrot.slane %v12448, 7
        %v12451 = vshll.u32 %v11719, 16
        %v12453 = vor.u32 %v12450, %v12451
        %v12454 = vsel %vm1056, %v12446, %v12453
        %v12456 = vshrl.u32 %v11716, 16
        %v12458 = vrot.slane %v12456, 7
        %v12460 = vshrl.u32 %v11722, 16
        %v12462 = vrot.slane %v12460, 7
        %v12463 = vshll.u32 %v11722, 16
        %v12465 = vor.u32 %v12462, %v12463
        %v12466 = vsel %vm1056, %v12458, %v12465
        %v12468 = vshrl.u32 %v11941, 16
        %v12470 = vrot.slane %v12468, 7
        %v12472 = vshrl.u32 %v11944, 16
        %v12474 = vrot.slane %v12472, 7
        %v12475 = vshll.u32 %v11944, 16
        %v12477 = vor.u32 %v12474, %v12475
        %v12478 = vsel %vm1056, %v12470, %v12477
        %v12480 = vshrl.u32 %v11942, 16
        %v12482 = vrot.slane %v12480, 7
        %v12484 = vshrl.u32 %v11946, 16
        %v12486 = vrot.slane %v12484, 7
        %v12487 = vshll.u32 %v11946, 16
        %v12489 = vor.u32 %v12486, %v12487
        %v12490 = vsel %vm1056, %v12482, %v12489
        %v12492 = vshrl.u32 %v11547, 16
        %v12494 = vrot.slane %v12492, 7
        %v12495 = vrot.slane %v11731, 7
        %v12496 = vor.u32 %v12495, %v11724
        %v12497 = vsel %vm1056, %v12494, %v12496
        %v12499 = vshrl.u32 %v11548, 16
        %v12501 = vrot.slane %v12499, 7
        %v12502 = vrot.slane %v11734, 7
        %v12503 = vor.u32 %v12502, %v11728
        %v12504 = vsel %vm1056, %v12501, %v12503
        %v12506 = vshrl.u32 %v11726, 16
        %v12508 = vrot.slane %v12506, 7
        %v12510 = vshrl.u32 %v11733, 16
        %v12512 = vrot.slane %v12510, 7
        %v12513 = vshll.u32 %v11733, 16
        %v12515 = vor.u32 %v12512, %v12513
        %v12516 = vsel %vm1056, %v12508, %v12515
        %v12518 = vshrl.u32 %v11730, 16
        %v12520 = vrot.slane %v12518, 7
        %v12522 = vshrl.u32 %v11736, 16
        %v12524 = vrot.slane %v12522, 7
        %v12525 = vshll.u32 %v11736, 16
        %v12527 = vor.u32 %v12524, %v12525
        %v12528 = vsel %vm1056, %v12520, %v12527
        %v12530 = vshrl.u32 %v11947, 16
        %v12532 = vrot.slane %v12530, 7
        %v12534 = vshrl.u32 %v11950, 16
        %v12536 = vrot.slane %v12534, 7
        %v12537 = vshll.u32 %v11950, 16
        %v12539 = vor.u32 %v12536, %v12537
        %v12540 = vsel %vm1056, %v12532, %v12539
        %v12542 = vshrl.u32 %v11948, 16
        %v12544 = vrot.slane %v12542, 7
        %v12546 = vshrl.u32 %v11952, 16
        %v12548 = vrot.slane %v12546, 7
        %v12549 = vshll.u32 %v11952, 16
        %v12551 = vor.u32 %v12548, %v12549
        %v12552 = vsel %vm1056, %v12544, %v12551
        %v12554 = vshrl.u32 %v11551, 16
        %v12556 = vrot.slane %v12554, 7
        %v12557 = vrot.slane %v11745, 7
        %v12558 = vor.u32 %v12557, %v11738
        %v12559 = vsel %vm1056, %v12556, %v12558
        %v12561 = vshrl.u32 %v11552, 16
        %v12563 = vrot.slane %v12561, 7
        %v12564 = vrot.slane %v11748, 7
        %v12565 = vor.u32 %v12564, %v11742
        %v12566 = vsel %vm1056, %v12563, %v12565
        %v12568 = vshrl.u32 %v11740, 16
        %v12570 = vrot.slane %v12568, 7
        %v12572 = vshrl.u32 %v11747, 16
        %v12574 = vrot.slane %v12572, 7
        %v12575 = vshll.u32 %v11747, 16
        %v12577 = vor.u32 %v12574, %v12575
        %v12578 = vsel %vm1056, %v12570, %v12577
        %v12580 = vshrl.u32 %v11744, 16
        %v12582 = vrot.slane %v12580, 7
        %v12584 = vshrl.u32 %v11750, 16
        %v12586 = vrot.slane %v12584, 7
        %v12587 = vshll.u32 %v11750, 16
        %v12589 = vor.u32 %v12586, %v12587
        %v12590 = vsel %vm1056, %v12582, %v12589
        %v12592 = vshrl.u32 %v11953, 16
        %v12594 = vrot.slane %v12592, 7
        %v12596 = vshrl.u32 %v11956, 16
        %v12598 = vrot.slane %v12596, 7
        %v12599 = vshll.u32 %v11956, 16
        %v12601 = vor.u32 %v12598, %v12599
        %v12602 = vsel %vm1056, %v12594, %v12601
        %v12604 = vshrl.u32 %v11954, 16
        %v12606 = vrot.slane %v12604, 7
        %v12608 = vshrl.u32 %v11958, 16
        %v12610 = vrot.slane %v12608, 7
        %v12611 = vshll.u32 %v11958, 16
        %v12613 = vor.u32 %v12610, %v12611
        %v12614 = vsel %vm1056, %v12606, %v12613
        %v12616 = vshrl.u32 %v11555, 16
        %v12618 = vrot.slane %v12616, 7
        %v12619 = vrot.slane %v11759, 7
        %v12620 = vor.u32 %v12619, %v11752
        %v12621 = vsel %vm1056, %v12618, %v12620
        %v12623 = vshrl.u32 %v11556, 16
        %v12625 = vrot.slane %v12623, 7
        %v12626 = vrot.slane %v11762, 7
        %v12627 = vor.u32 %v12626, %v11756
        %v12628 = vsel %vm1056, %v12625, %v12627
        %v12630 = vshrl.u32 %v11754, 16
        %v12632 = vrot.slane %v12630, 7
        %v12634 = vshrl.u32 %v11761, 16
        %v12636 = vrot.slane %v12634, 7
        %v12637 = vshll.u32 %v11761, 16
        %v12639 = vor.u32 %v12636, %v12637
        %v12640 = vsel %vm1056, %v12632, %v12639
        %v12642 = vshrl.u32 %v11758, 16
        %v12644 = vrot.slane %v12642, 7
        %v12646 = vshrl.u32 %v11764, 16
        %v12648 = vrot.slane %v12646, 7
        %v12649 = vshll.u32 %v11764, 16
        %v12651 = vor.u32 %v12648, %v12649
        %v12652 = vsel %vm1056, %v12644, %v12651
        %v12654 = vshrl.u32 %v11959, 16
        %v12656 = vrot.slane %v12654, 7
        %v12658 = vshrl.u32 %v11962, 16
        %v12660 = vrot.slane %v12658, 7
        %v12661 = vshll.u32 %v11962, 16
        %v12663 = vor.u32 %v12660, %v12661
        %v12664 = vsel %vm1056, %v12656, %v12663
        %v12666 = vshrl.u32 %v11960, 16
        %v12668 = vrot.slane %v12666, 7
        %v12670 = vshrl.u32 %v11964, 16
        %v12672 = vrot.slane %v12670, 7
        %v12673 = vshll.u32 %v11964, 16
        %v12675 = vor.u32 %v12672, %v12673
        %v12676 = vsel %vm1056, %v12668, %v12675
        %v12678 = vshrl.u32 %v11559, 16
        %v12680 = vrot.slane %v12678, 7
        %v12681 = vrot.slane %v11773, 7
        %v12682 = vor.u32 %v12681, %v11766
        %v12683 = vsel %vm1056, %v12680, %v12682
        %v12685 = vshrl.u32 %v11560, 16
        %v12687 = vrot.slane %v12685, 7
        %v12688 = vrot.slane %v11776, 7
        %v12689 = vor.u32 %v12688, %v11770
        %v12690 = vsel %vm1056, %v12687, %v12689
        %v12692 = vshrl.u32 %v11768, 16
        %v12694 = vrot.slane %v12692, 7
        %v12696 = vshrl.u32 %v11775, 16
        %v12698 = vrot.slane %v12696, 7
        %v12699 = vshll.u32 %v11775, 16
        %v12701 = vor.u32 %v12698, %v12699
        %v12702 = vsel %vm1056, %v12694, %v12701
        %v12704 = vshrl.u32 %v11772, 16
        %v12706 = vrot.slane %v12704, 7
        %v12708 = vshrl.u32 %v11778, 16
        %v12710 = vrot.slane %v12708, 7
        %v12711 = vshll.u32 %v11778, 16
        %v12713 = vor.u32 %v12710, %v12711
        %v12714 = vsel %vm1056, %v12706, %v12713
        %v12716 = vshrl.u32 %v11965, 16
        %v12718 = vrot.slane %v12716, 7
        %v12720 = vshrl.u32 %v11968, 16
        %v12722 = vrot.slane %v12720, 7
        %v12723 = vshll.u32 %v11968, 16
        %v12725 = vor.u32 %v12722, %v12723
        %v12726 = vsel %vm1056, %v12718, %v12725
        %v12728 = vshrl.u32 %v11966, 16
        %v12730 = vrot.slane %v12728, 7
        %v12732 = vshrl.u32 %v11970, 16
        %v12734 = vrot.slane %v12732, 7
        %v12735 = vshll.u32 %v11970, 16
        %v12737 = vor.u32 %v12734, %v12735
        %v12738 = vsel %vm1056, %v12730, %v12737
        %v12740 = vshrl.u32 %v11563, 16
        %v12742 = vrot.slane %v12740, 7
        %v12743 = vrot.slane %v11787, 7
        %v12744 = vor.u32 %v12743, %v11780
        %v12745 = vsel %vm1056, %v12742, %v12744
        %v12747 = vshrl.u32 %v11564, 16
        %v12749 = vrot.slane %v12747, 7
        %v12750 = vrot.slane %v11790, 7
        %v12751 = vor.u32 %v12750, %v11784
        %v12752 = vsel %vm1056, %v12749, %v12751
        %v12754 = vshrl.u32 %v11782, 16
        %v12756 = vrot.slane %v12754, 7
        %v12758 = vshrl.u32 %v11789, 16
        %v12760 = vrot.slane %v12758, 7
        %v12761 = vshll.u32 %v11789, 16
        %v12763 = vor.u32 %v12760, %v12761
        %v12764 = vsel %vm1056, %v12756, %v12763
        %v12766 = vshrl.u32 %v11786, 16
        %v12768 = vrot.slane %v12766, 7
        %v12770 = vshrl.u32 %v11792, 16
        %v12772 = vrot.slane %v12770, 7
        %v12773 = vshll.u32 %v11792, 16
        %v12775 = vor.u32 %v12772, %v12773
        %v12776 = vsel %vm1056, %v12768, %v12775
        %v12778 = vshrl.u32 %v11971, 16
        %v12780 = vrot.slane %v12778, 7
        %v12782 = vshrl.u32 %v11974, 16
        %v12784 = vrot.slane %v12782, 7
        %v12785 = vshll.u32 %v11974, 16
        %v12787 = vor.u32 %v12784, %v12785
        %v12788 = vsel %vm1056, %v12780, %v12787
        %v12790 = vshrl.u32 %v11972, 16
        %v12792 = vrot.slane %v12790, 7
        %v12794 = vshrl.u32 %v11976, 16
        %v12796 = vrot.slane %v12794, 7
        %v12797 = vshll.u32 %v11976, 16
        %v12799 = vor.u32 %v12796, %v12797
        %v12800 = vsel %vm1056, %v12792, %v12799
        %v12802 = vshrl.u32 %v11567, 16
        %v12804 = vrot.slane %v12802, 7
        %v12805 = vrot.slane %v11801, 7
        %v12806 = vor.u32 %v12805, %v11794
        %v12807 = vsel %vm1056, %v12804, %v12806
        %v12809 = vshrl.u32 %v11568, 16
        %v12811 = vrot.slane %v12809, 7
        %v12812 = vrot.slane %v11804, 7
        %v12813 = vor.u32 %v12812, %v11798
        %v12814 = vsel %vm1056, %v12811, %v12813
        %v12816 = vshrl.u32 %v11796, 16
        %v12818 = vrot.slane %v12816, 7
        %v12820 = vshrl.u32 %v11803, 16
        %v12822 = vrot.slane %v12820, 7
        %v12823 = vshll.u32 %v11803, 16
        %v12825 = vor.u32 %v12822, %v12823
        %v12826 = vsel %vm1056, %v12818, %v12825
        %v12828 = vshrl.u32 %v11800, 16
        %v12830 = vrot.slane %v12828, 7
        %v12832 = vshrl.u32 %v11806, 16
        %v12834 = vrot.slane %v12832, 7
        %v12835 = vshll.u32 %v11806, 16
        %v12837 = vor.u32 %v12834, %v12835
        %v12838 = vsel %vm1056, %v12830, %v12837
        %v12840 = vshrl.u32 %v11977, 16
        %v12842 = vrot.slane %v12840, 7
        %v12844 = vshrl.u32 %v11980, 16
        %v12846 = vrot.slane %v12844, 7
        %v12847 = vshll.u32 %v11980, 16
        %v12849 = vor.u32 %v12846, %v12847
        %v12850 = vsel %vm1056, %v12842, %v12849
        %v12852 = vshrl.u32 %v11978, 16
        %v12854 = vrot.slane %v12852, 7
        %v12856 = vshrl.u32 %v11982, 16
        %v12858 = vrot.slane %v12856, 7
        %v12859 = vshll.u32 %v11982, 16
        %v12861 = vor.u32 %v12858, %v12859
        %v12862 = vsel %vm1056, %v12854, %v12861
        %v12864 = vshrl.u32 %v11571, 16
        %v12866 = vrot.slane %v12864, 7
        %v12867 = vrot.slane %v11815, 7
        %v12868 = vor.u32 %v12867, %v11808
        %v12869 = vsel %vm1056, %v12866, %v12868
        %v12871 = vshrl.u32 %v11572, 16
        %v12873 = vrot.slane %v12871, 7
        %v12874 = vrot.slane %v11818, 7
        %v12875 = vor.u32 %v12874, %v11812
        %v12876 = vsel %vm1056, %v12873, %v12875
        %v12878 = vshrl.u32 %v11810, 16
        %v12880 = vrot.slane %v12878, 7
        %v12882 = vshrl.u32 %v11817, 16
        %v12884 = vrot.slane %v12882, 7
        %v12885 = vshll.u32 %v11817, 16
        %v12887 = vor.u32 %v12884, %v12885
        %v12888 = vsel %vm1056, %v12880, %v12887
        %v12890 = vshrl.u32 %v11814, 16
        %v12892 = vrot.slane %v12890, 7
        %v12894 = vshrl.u32 %v11820, 16
        %v12896 = vrot.slane %v12894, 7
        %v12897 = vshll.u32 %v11820, 16
        %v12899 = vor.u32 %v12896, %v12897
        %v12900 = vsel %vm1056, %v12892, %v12899
        %v12902 = vshrl.u32 %v11983, 16
        %v12904 = vrot.slane %v12902, 7
        %v12906 = vshrl.u32 %v11986, 16
        %v12908 = vrot.slane %v12906, 7
        %v12909 = vshll.u32 %v11986, 16
        %v12911 = vor.u32 %v12908, %v12909
        %v12912 = vsel %vm1056, %v12904, %v12911
        %v12914 = vshrl.u32 %v11984, 16
        %v12916 = vrot.slane %v12914, 7
        %v12918 = vshrl.u32 %v11988, 16
        %v12920 = vrot.slane %v12918, 7
        %v12921 = vshll.u32 %v11988, 16
        %v12923 = vor.u32 %v12920, %v12921
        %v12924 = vsel %vm1056, %v12916, %v12923
        %v12926 = vshrl.u32 %v11575, 16
        %v12928 = vrot.slane %v12926, 7
        %v12929 = vrot.slane %v11829, 7
        %v12930 = vor.u32 %v12929, %v11822
        %v12931 = vsel %vm1056, %v12928, %v12930
        %v12933 = vshrl.u32 %v11576, 16
        %v12935 = vrot.slane %v12933, 7
        %v12936 = vrot.slane %v11832, 7
        %v12937 = vor.u32 %v12936, %v11826
        %v12938 = vsel %vm1056, %v12935, %v12937
        %v12940 = vshrl.u32 %v11824, 16
        %v12942 = vrot.slane %v12940, 7
        %v12944 = vshrl.u32 %v11831, 16
        %v12946 = vrot.slane %v12944, 7
        %v12947 = vshll.u32 %v11831, 16
        %v12949 = vor.u32 %v12946, %v12947
        %v12950 = vsel %vm1056, %v12942, %v12949
        %v12952 = vshrl.u32 %v11828, 16
        %v12954 = vrot.slane %v12952, 7
        %v12956 = vshrl.u32 %v11834, 16
        %v12958 = vrot.slane %v12956, 7
        %v12959 = vshll.u32 %v11834, 16
        %v12961 = vor.u32 %v12958, %v12959
        %v12962 = vsel %vm1056, %v12954, %v12961
        %v12964 = vshrl.u32 %v11989, 16
        %v12966 = vrot.slane %v12964, 7
        %v12968 = vshrl.u32 %v11992, 16
        %v12970 = vrot.slane %v12968, 7
        %v12971 = vshll.u32 %v11992, 16
        %v12973 = vor.u32 %v12970, %v12971
        %v12974 = vsel %vm1056, %v12966, %v12973
        %v12976 = vshrl.u32 %v11990, 16
        %v12978 = vrot.slane %v12976, 7
        %v12980 = vshrl.u32 %v11994, 16
        %v12982 = vrot.slane %v12980, 7
        %v12983 = vshll.u32 %v11994, 16
        %v12985 = vor.u32 %v12982, %v12983
        %v12986 = vsel %vm1056, %v12978, %v12985
        %s13083 = scalar_lea.vmem [#allocation10], 768
        %v13084 = vld [vmem:[%s13083] sm:$0xf]
        %v13085 = vld [vmem:[%s13083 + $0x4] sm:$0xf]
        %v13086 = vld [vmem:[%s13083 + $0x8] sm:$0xf]
        %v13087 = vld [vmem:[%s13083 + $0xc] sm:$0xf]
        %v13088 = vld [vmem:[%s13083 + $0x10] sm:$0xf]
        %v13089 = vld [vmem:[%s13083 + $0x14] sm:$0xf]
        %v13090 = vld [vmem:[%s13083 + $0x18] sm:$0xf]
        %v13091 = vld [vmem:[%s13083 + $0x1c] sm:$0xf]
        %v13092 = vld [vmem:[%s13083 + $0x20] sm:$0xf]
        %v13093 = vld [vmem:[%s13083 + $0x24] sm:$0xf]
        %v13094 = vld [vmem:[%s13083 + $0x28] sm:$0xf]
        %v13095 = vld [vmem:[%s13083 + $0x2c] sm:$0xf]
        %v13096 = vld [vmem:[%s13083 + $0x30] sm:$0xf]
        %v13097 = vld [vmem:[%s13083 + $0x34] sm:$0xf]
        %v13098 = vld [vmem:[%s13083 + $0x38] sm:$0xf]
        %v13099 = vld [vmem:[%s13083 + $0x3c] sm:$0xf]
        %v13100 = vld [vmem:[%s13083 + $0x40] sm:$0xf]
        %v13101 = vld [vmem:[%s13083 + $0x44] sm:$0xf]
        %v13102 = vld [vmem:[%s13083 + $0x48] sm:$0xf]
        %v13103 = vld [vmem:[%s13083 + $0x4c] sm:$0xf]
        %v13104 = vld [vmem:[%s13083 + $0x50] sm:$0xf]
        %v13105 = vld [vmem:[%s13083 + $0x54] sm:$0xf]
        %v13106 = vld [vmem:[%s13083 + $0x58] sm:$0xf]
        %v13107 = vld [vmem:[%s13083 + $0x5c] sm:$0xf]
        %v13108 = vld [vmem:[%s13083 + $0x60] sm:$0xf]
        %v13109 = vld [vmem:[%s13083 + $0x64] sm:$0xf]
        %v13110 = vld [vmem:[%s13083 + $0x68] sm:$0xf]
        %v13111 = vld [vmem:[%s13083 + $0x6c] sm:$0xf]
        %v13112 = vld [vmem:[%s13083 + $0x70] sm:$0xf]
        %v13113 = vld [vmem:[%s13083 + $0x74] sm:$0xf]
        %v13114 = vld [vmem:[%s13083 + $0x78] sm:$0xf]
        %v13115 = vld [vmem:[%s13083 + $0x7c] sm:$0xf]
        %v13116 = vld [vmem:[%s13083 + $0x80] sm:$0xf]
        %v13117 = vld [vmem:[%s13083 + $0x84] sm:$0xf]
        %v13118 = vld [vmem:[%s13083 + $0x88] sm:$0xf]
        %v13119 = vld [vmem:[%s13083 + $0x8c] sm:$0xf]
        %v13120 = vld [vmem:[%s13083 + $0x90] sm:$0xf]
        %v13121 = vld [vmem:[%s13083 + $0x94] sm:$0xf]
        %v13122 = vld [vmem:[%s13083 + $0x98] sm:$0xf]
        %v13123 = vld [vmem:[%s13083 + $0x9c] sm:$0xf]
        %v13124 = vld [vmem:[%s13083 + $0xa0] sm:$0xf]
        %v13125 = vld [vmem:[%s13083 + $0xa4] sm:$0xf]
        %v13126 = vld [vmem:[%s13083 + $0xa8] sm:$0xf]
        %v13127 = vld [vmem:[%s13083 + $0xac] sm:$0xf]
        %v13128 = vld [vmem:[%s13083 + $0xb0] sm:$0xf]
        %v13129 = vld [vmem:[%s13083 + $0xb4] sm:$0xf]
        %v13130 = vld [vmem:[%s13083 + $0xb8] sm:$0xf]
        %v13131 = vld [vmem:[%s13083 + $0xbc] sm:$0xf]
        %v13132 = vld [vmem:[%s13083 + $0xc0] sm:$0xf]
        %v13133 = vld [vmem:[%s13083 + $0xc4] sm:$0xf]
        %v13134 = vld [vmem:[%s13083 + $0xc8] sm:$0xf]
        %v13135 = vld [vmem:[%s13083 + $0xcc] sm:$0xf]
        %v13136 = vld [vmem:[%s13083 + $0xd0] sm:$0xf]
        %v13137 = vld [vmem:[%s13083 + $0xd4] sm:$0xf]
        %v13138 = vld [vmem:[%s13083 + $0xd8] sm:$0xf]
        %v13139 = vld [vmem:[%s13083 + $0xdc] sm:$0xf]
        %v13140 = vld [vmem:[%s13083 + $0xe0] sm:$0xf]
        %v13141 = vld [vmem:[%s13083 + $0xe4] sm:$0xf]
        %v13142 = vld [vmem:[%s13083 + $0xe8] sm:$0xf]
        %v13143 = vld [vmem:[%s13083 + $0xec] sm:$0xf]
        %v13144 = vld [vmem:[%s13083 + $0xf0] sm:$0xf]
        %v13145 = vld [vmem:[%s13083 + $0xf4] sm:$0xf]
        %v13146 = vld [vmem:[%s13083 + $0xf8] sm:$0xf]
        %v13147 = vld [vmem:[%s13083 + $0xfc] sm:$0xf]
        %v13148 = vld [vmem:[%s13083 + $0x100] sm:$0xf]
        %v13149 = vld [vmem:[%s13083 + $0x104] sm:$0xf]
        %v13150 = vld [vmem:[%s13083 + $0x108] sm:$0xf]
        %v13151 = vld [vmem:[%s13083 + $0x10c] sm:$0xf]
        %v13152 = vld [vmem:[%s13083 + $0x110] sm:$0xf]
        %v13153 = vld [vmem:[%s13083 + $0x114] sm:$0xf]
        %v13154 = vld [vmem:[%s13083 + $0x118] sm:$0xf]
        %v13155 = vld [vmem:[%s13083 + $0x11c] sm:$0xf]
        %v13156 = vld [vmem:[%s13083 + $0x120] sm:$0xf]
        %v13157 = vld [vmem:[%s13083 + $0x124] sm:$0xf]
        %v13158 = vld [vmem:[%s13083 + $0x128] sm:$0xf]
        %v13159 = vld [vmem:[%s13083 + $0x12c] sm:$0xf]
        %v13160 = vld [vmem:[%s13083 + $0x130] sm:$0xf]
        %v13161 = vld [vmem:[%s13083 + $0x134] sm:$0xf]
        %v13162 = vld [vmem:[%s13083 + $0x138] sm:$0xf]
        %v13163 = vld [vmem:[%s13083 + $0x13c] sm:$0xf]
        %v13164 = vld [vmem:[%s13083 + $0x140] sm:$0xf]
        %v13165 = vld [vmem:[%s13083 + $0x144] sm:$0xf]
        %v13166 = vld [vmem:[%s13083 + $0x148] sm:$0xf]
        %v13167 = vld [vmem:[%s13083 + $0x14c] sm:$0xf]
        %v13168 = vld [vmem:[%s13083 + $0x150] sm:$0xf]
        %v13169 = vld [vmem:[%s13083 + $0x154] sm:$0xf]
        %v13170 = vld [vmem:[%s13083 + $0x158] sm:$0xf]
        %v13171 = vld [vmem:[%s13083 + $0x15c] sm:$0xf]
        %v13172 = vld [vmem:[%s13083 + $0x160] sm:$0xf]
        %v13173 = vld [vmem:[%s13083 + $0x164] sm:$0xf]
        %v13174 = vld [vmem:[%s13083 + $0x168] sm:$0xf]
        %v13175 = vld [vmem:[%s13083 + $0x16c] sm:$0xf]
        %v13176 = vld [vmem:[%s13083 + $0x170] sm:$0xf]
        %v13177 = vld [vmem:[%s13083 + $0x174] sm:$0xf]
        %v13178 = vld [vmem:[%s13083 + $0x178] sm:$0xf]
        %v13179 = vld [vmem:[%s13083 + $0x17c] sm:$0xf]
        %v13276 = vunpack.c.l.b16 %v13084
        %v13277 = vunpack.c.l.b16 %v13085
        %v13278 = vunpack.c.l.b16 %v13086
        %v13279 = vunpack.c.l.b16 %v13087
        %v13280 = vunpack.c.l.b16 %v13088
        %v13281 = vunpack.c.l.b16 %v13089
        %v13282 = vunpack.c.l.b16 %v13090
        %v13283 = vunpack.c.l.b16 %v13091
        %v13284 = vunpack.c.l.b16 %v13092
        %v13285 = vunpack.c.l.b16 %v13093
        %v13286 = vunpack.c.l.b16 %v13094
        %v13287 = vunpack.c.l.b16 %v13095
        %v13288 = vunpack.c.l.b16 %v13096
        %v13289 = vunpack.c.l.b16 %v13097
        %v13290 = vunpack.c.l.b16 %v13098
        %v13291 = vunpack.c.l.b16 %v13099
        %v13292 = vunpack.c.l.b16 %v13100
        %v13293 = vunpack.c.l.b16 %v13101
        %v13294 = vunpack.c.l.b16 %v13102
        %v13295 = vunpack.c.l.b16 %v13103
        %v13296 = vunpack.c.l.b16 %v13104
        %v13297 = vunpack.c.l.b16 %v13105
        %v13298 = vunpack.c.l.b16 %v13106
        %v13299 = vunpack.c.l.b16 %v13107
        %v13300 = vunpack.c.l.b16 %v13108
        %v13301 = vunpack.c.l.b16 %v13109
        %v13302 = vunpack.c.l.b16 %v13110
        %v13303 = vunpack.c.l.b16 %v13111
        %v13304 = vunpack.c.l.b16 %v13112
        %v13305 = vunpack.c.l.b16 %v13113
        %v13306 = vunpack.c.l.b16 %v13114
        %v13307 = vunpack.c.l.b16 %v13115
        %v13308 = vunpack.c.l.b16 %v13116
        %v13309 = vunpack.c.l.b16 %v13117
        %v13310 = vunpack.c.l.b16 %v13118
        %v13311 = vunpack.c.l.b16 %v13119
        %v13312 = vunpack.c.l.b16 %v13120
        %v13313 = vunpack.c.l.b16 %v13121
        %v13314 = vunpack.c.l.b16 %v13122
        %v13315 = vunpack.c.l.b16 %v13123
        %v13316 = vunpack.c.l.b16 %v13124
        %v13317 = vunpack.c.l.b16 %v13125
        %v13318 = vunpack.c.l.b16 %v13126
        %v13319 = vunpack.c.l.b16 %v13127
        %v13320 = vunpack.c.l.b16 %v13128
        %v13321 = vunpack.c.l.b16 %v13129
        %v13322 = vunpack.c.l.b16 %v13130
        %v13323 = vunpack.c.l.b16 %v13131
        %v13324 = vunpack.c.l.b16 %v13132
        %v13325 = vunpack.c.l.b16 %v13133
        %v13326 = vunpack.c.l.b16 %v13134
        %v13327 = vunpack.c.l.b16 %v13135
        %v13328 = vunpack.c.l.b16 %v13136
        %v13329 = vunpack.c.l.b16 %v13137
        %v13330 = vunpack.c.l.b16 %v13138
        %v13331 = vunpack.c.l.b16 %v13139
        %v13332 = vunpack.c.l.b16 %v13140
        %v13333 = vunpack.c.l.b16 %v13141
        %v13334 = vunpack.c.l.b16 %v13142
        %v13335 = vunpack.c.l.b16 %v13143
        %v13336 = vunpack.c.l.b16 %v13144
        %v13337 = vunpack.c.l.b16 %v13145
        %v13338 = vunpack.c.l.b16 %v13146
        %v13339 = vunpack.c.l.b16 %v13147
        %v13340 = vunpack.c.l.b16 %v13148
        %v13341 = vunpack.c.l.b16 %v13149
        %v13342 = vunpack.c.l.b16 %v13150
        %v13343 = vunpack.c.l.b16 %v13151
        %v13344 = vunpack.c.l.b16 %v13152
        %v13345 = vunpack.c.l.b16 %v13153
        %v13346 = vunpack.c.l.b16 %v13154
        %v13347 = vunpack.c.l.b16 %v13155
        %v13348 = vunpack.c.l.b16 %v13156
        %v13349 = vunpack.c.l.b16 %v13157
        %v13350 = vunpack.c.l.b16 %v13158
        %v13351 = vunpack.c.l.b16 %v13159
        %v13352 = vunpack.c.l.b16 %v13160
        %v13353 = vunpack.c.l.b16 %v13161
        %v13354 = vunpack.c.l.b16 %v13162
        %v13355 = vunpack.c.l.b16 %v13163
        %v13356 = vunpack.c.l.b16 %v13164
        %v13357 = vunpack.c.l.b16 %v13165
        %v13358 = vunpack.c.l.b16 %v13166
        %v13359 = vunpack.c.l.b16 %v13167
        %v13360 = vunpack.c.l.b16 %v13168
        %v13361 = vunpack.c.l.b16 %v13169
        %v13362 = vunpack.c.l.b16 %v13170
        %v13363 = vunpack.c.l.b16 %v13171
        %v13364 = vunpack.c.l.b16 %v13172
        %v13365 = vunpack.c.l.b16 %v13173
        %v13366 = vunpack.c.l.b16 %v13174
        %v13367 = vunpack.c.l.b16 %v13175
        %v13368 = vunpack.c.l.b16 %v13176
        %v13369 = vunpack.c.l.b16 %v13177
        %v13370 = vunpack.c.l.b16 %v13178
        %v13371 = vunpack.c.l.b16 %v13179
        %v13372 = vpack.c.b16 %v13277, %v13276
        %v13373 = vpack.c.b16 %v13279, %v13278
        %v13374 = vpack.c.b16 %v13281, %v13280
        %v13375 = vpack.c.b16 %v13283, %v13282
        %v13376 = vpack.c.b16 %v13285, %v13284
        %v13377 = vpack.c.b16 %v13287, %v13286
        %v13378 = vpack.c.b16 %v13289, %v13288
        %v13379 = vpack.c.b16 %v13291, %v13290
        %v13380 = vpack.c.b16 %v13293, %v13292
        %v13381 = vpack.c.b16 %v13295, %v13294
        %v13382 = vpack.c.b16 %v13297, %v13296
        %v13383 = vpack.c.b16 %v13299, %v13298
        %v13384 = vpack.c.b16 %v13301, %v13300
        %v13385 = vpack.c.b16 %v13303, %v13302
        %v13386 = vpack.c.b16 %v13305, %v13304
        %v13387 = vpack.c.b16 %v13307, %v13306
        %v13388 = vpack.c.b16 %v13309, %v13308
        %v13389 = vpack.c.b16 %v13311, %v13310
        %v13390 = vpack.c.b16 %v13313, %v13312
        %v13391 = vpack.c.b16 %v13315, %v13314
        %v13392 = vpack.c.b16 %v13317, %v13316
        %v13393 = vpack.c.b16 %v13319, %v13318
        %v13394 = vpack.c.b16 %v13321, %v13320
        %v13395 = vpack.c.b16 %v13323, %v13322
        %v13396 = vpack.c.b16 %v13325, %v13324
        %v13397 = vpack.c.b16 %v13327, %v13326
        %v13398 = vpack.c.b16 %v13329, %v13328
        %v13399 = vpack.c.b16 %v13331, %v13330
        %v13400 = vpack.c.b16 %v13333, %v13332
        %v13401 = vpack.c.b16 %v13335, %v13334
        %v13402 = vpack.c.b16 %v13337, %v13336
        %v13403 = vpack.c.b16 %v13339, %v13338
        %v13404 = vpack.c.b16 %v13341, %v13340
        %v13405 = vpack.c.b16 %v13343, %v13342
        %v13406 = vpack.c.b16 %v13345, %v13344
        %v13407 = vpack.c.b16 %v13347, %v13346
        %v13408 = vpack.c.b16 %v13349, %v13348
        %v13409 = vpack.c.b16 %v13351, %v13350
        %v13410 = vpack.c.b16 %v13353, %v13352
        %v13411 = vpack.c.b16 %v13355, %v13354
        %v13412 = vpack.c.b16 %v13357, %v13356
        %v13413 = vpack.c.b16 %v13359, %v13358
        %v13414 = vpack.c.b16 %v13361, %v13360
        %v13415 = vpack.c.b16 %v13363, %v13362
        %v13416 = vpack.c.b16 %v13365, %v13364
        %v13417 = vpack.c.b16 %v13367, %v13366
        %v13418 = vpack.c.b16 %v13369, %v13368
        %v13419 = vpack.c.b16 %v13371, %v13370
        %13468 = vmatprep.subr.bf16.mxu0 0
        %13469 = vmatpush1.bf16.msra.mxu0 %v13372
        %13470 = vmatprep.subr.bf16.mxu0 0
        %13471 = vmatpush1.bf16.msra.mxu0 %v13373
        %13472 = vmatprep.subr.bf16.mxu0 0
        %13473 = vmatpush1.bf16.msra.mxu0 %v13374
        %13474 = vmatprep.subr.bf16.mxu0 0
        %13475 = vmatpush1.bf16.msra.mxu0 %v13375
        %13476 = vmatprep.subr.bf16.mxu0 0
        %13477 = vmatpush1.bf16.msra.mxu0 %v13376
        %13478 = vmatprep.subr.bf16.mxu0 0
        %13479 = vmatpush1.bf16.msra.mxu0 %v13377
        %13480 = vmatprep.subr.bf16.mxu0 0
        %13481 = vmatpush1.bf16.msra.mxu0 %v13378
        %13482 = vmatprep.subr.bf16.mxu0 0
        %13483 = vmatpush1.bf16.msra.mxu0 %v13379
        %13484 = vmatprep.subr.bf16.mxu0 0
        %13485 = vmatpush1.bf16.msra.mxu0 %v13380
        %13486 = vmatprep.subr.bf16.mxu0 0
        %13487 = vmatpush1.bf16.msra.mxu0 %v13381
        %13488 = vmatprep.subr.bf16.mxu0 0
        %13489 = vmatpush1.bf16.msra.mxu0 %v13382
        %13490 = vmatprep.subr.bf16.mxu0 0
        %13491 = vmatpush1.bf16.msra.mxu0 %v13383
        %13492 = vmatprep.subr.bf16.mxu0 0
        %13493 = vmatpush1.bf16.msra.mxu0 %v13384
        %13494 = vmatprep.subr.bf16.mxu0 0
        %13495 = vmatpush1.bf16.msra.mxu0 %v13385
        %13496 = vmatprep.subr.bf16.mxu0 0
        %13497 = vmatpush1.bf16.msra.mxu0 %v13386
        %13498 = vmatprep.subr.bf16.mxu0 0
        %13499 = vmatpush1.bf16.msra.mxu0 %v13387
        %13500 = vmatprep.mubr.bf16.mxu0 %v12008
        %13501 = vmatmul.mubr.bf16.gmra.mrb[0].mxu0 %v12001
        %v13502 = vpop.f32.mrb[0].mxu0
        %v13503 = vadd.f32 0.0, %v13502
        %v13504 = vpop.f32.mrb[0].mxu0
        %v13505 = vpop.f32.mrb[0].mxu0
        %v13506 = vadd.f32 0.0, %v13505
        %v13507 = vpop.f32.mrb[0].mxu0
        %13508 = vmatprep.mubr.bf16.mxu0 %v12070
        %13509 = vmatmul.mubr.bf16.gmra.mrb[0].mxu0 %v12063
        %v13510 = vpop.f32.mrb[0].mxu0
        %v13511 = vadd.f32 0.0, %v13510
        %v13512 = vpop.f32.mrb[0].mxu0
        %v13513 = vpop.f32.mrb[0].mxu0
        %v13514 = vadd.f32 0.0, %v13513
        %v13515 = vpop.f32.mrb[0].mxu0
        %13516 = vmatprep.mubr.bf16.mxu0 %v12132
        %13517 = vmatmul.mubr.bf16.gmra.mrb[0].mxu0 %v12125
        %v13518 = vpop.f32.mrb[0].mxu0
        %v13519 = vadd.f32 0.0, %v13518
        %v13520 = vpop.f32.mrb[0].mxu0
        %v13521 = vpop.f32.mrb[0].mxu0
        %v13522 = vadd.f32 0.0, %v13521
        %v13523 = vpop.f32.mrb[0].mxu0
        %13524 = vmatprep.mubr.bf16.mxu0 %v12194
        %13525 = vmatmul.mubr.bf16.gmra.mrb[0].mxu0 %v12187
        %v13526 = vpop.f32.mrb[0].mxu0
        %v13527 = vadd.f32 0.0, %v13526
        %v13528 = vpop.f32.mrb[0].mxu0
        %v13529 = vpop.f32.mrb[0].mxu0
        %v13530 = vadd.f32 0.0, %v13529
        %v13531 = vpop.f32.mrb[0].mxu0
        %13532 = vmatprep.mubr.bf16.mxu0 %v12256
        %13533 = vmatmul.mubr.bf16.gmra.mrb[0].mxu0 %v12249
        %v13534 = vpop.f32.mrb[0].mxu0
        %v13535 = vadd.f32 0.0, %v13534
        %v13536 = vpop.f32.mrb[0].mxu0
        %v13537 = vpop.f32.mrb[0].mxu0
        %v13538 = vadd.f32 0.0, %v13537
        %v13539 = vpop.f32.mrb[0].mxu0
        %13540 = vmatprep.mubr.bf16.mxu0 %v12318
        %13541 = vmatmul.mubr.bf16.gmra.mrb[0].mxu0 %v12311
        %v13542 = vpop.f32.mrb[0].mxu0
        %v13543 = vadd.f32 0.0, %v13542
        %v13544 = vpop.f32.mrb[0].mxu0
        %v13545 = vpop.f32.mrb[0].mxu0
        %v13546 = vadd.f32 0.0, %v13545
        %v13547 = vpop.f32.mrb[0].mxu0
        %13548 = vmatprep.mubr.bf16.mxu0 %v12380
        %13549 = vmatmul.mubr.bf16.gmra.mrb[0].mxu0 %v12373
        %v13550 = vpop.f32.mrb[0].mxu0
        %v13551 = vadd.f32 0.0, %v13550
        %v13552 = vpop.f32.mrb[0].mxu0
        %v13553 = vpop.f32.mrb[0].mxu0
        %v13554 = vadd.f32 0.0, %v13553
        %v13555 = vpop.f32.mrb[0].mxu0
        %13556 = vmatprep.mubr.bf16.mxu0 %v12442
        %13557 = vmatmul.mubr.bf16.gmra.mrb[0].mxu0 %v12435
        %v13558 = vpop.f32.mrb[0].mxu0
        %v13559 = vadd.f32 0.0, %v13558
        %v13560 = vpop.f32.mrb[0].mxu0
        %v13561 = vpop.f32.mrb[0].mxu0
        %v13562 = vadd.f32 0.0, %v13561
        %v13563 = vpop.f32.mrb[0].mxu0
        %13564 = vmatprep.mubr.bf16.mxu0 %v12504
        %13565 = vmatmul.mubr.bf16.gmra.mrb[0].mxu0 %v12497
        %v13566 = vpop.f32.mrb[0].mxu0
        %v13567 = vadd.f32 0.0, %v13566
        %v13568 = vpop.f32.mrb[0].mxu0
        %v13569 = vpop.f32.mrb[0].mxu0
        %v13570 = vadd.f32 0.0, %v13569
        %v13571 = vpop.f32.mrb[0].mxu0
        %13572 = vmatprep.mubr.bf16.mxu0 %v12566
        %13573 = vmatmul.mubr.bf16.gmra.mrb[0].mxu0 %v12559
        %v13574 = vpop.f32.mrb[0].mxu0
        %v13575 = vadd.f32 0.0, %v13574
        %v13576 = vpop.f32.mrb[0].mxu0
        %v13577 = vpop.f32.mrb[0].mxu0
        %v13578 = vadd.f32 0.0, %v13577
        %v13579 = vpop.f32.mrb[0].mxu0
        %13580 = vmatprep.mubr.bf16.mxu0 %v12628
        %13581 = vmatmul.mubr.bf16.gmra.mrb[0].mxu0 %v12621
        %v13582 = vpop.f32.mrb[0].mxu0
        %v13583 = vadd.f32 0.0, %v13582
        %v13584 = vpop.f32.mrb[0].mxu0
        %v13585 = vpop.f32.mrb[0].mxu0
        %v13586 = vadd.f32 0.0, %v13585
        %v13587 = vpop.f32.mrb[0].mxu0
        %13588 = vmatprep.mubr.bf16.mxu0 %v12690
        %13589 = vmatmul.mubr.bf16.gmra.mrb[0].mxu0 %v12683
        %v13590 = vpop.f32.mrb[0].mxu0
        %v13591 = vadd.f32 0.0, %v13590
        %v13592 = vpop.f32.mrb[0].mxu0
        %v13593 = vpop.f32.mrb[0].mxu0
        %v13594 = vadd.f32 0.0, %v13593
        %v13595 = vpop.f32.mrb[0].mxu0
        %13596 = vmatprep.mubr.bf16.mxu0 %v12752
        %13597 = vmatmul.mubr.bf16.gmra.mrb[0].mxu0 %v12745
        %v13598 = vpop.f32.mrb[0].mxu0
        %v13599 = vadd.f32 0.0, %v13598
        %v13600 = vpop.f32.mrb[0].mxu0
        %v13601 = vpop.f32.mrb[0].mxu0
        %v13602 = vadd.f32 0.0, %v13601
        %v13603 = vpop.f32.mrb[0].mxu0
        %13604 = vmatprep.mubr.bf16.mxu0 %v12814
        %13605 = vmatmul.mubr.bf16.gmra.mrb[0].mxu0 %v12807
        %v13606 = vpop.f32.mrb[0].mxu0
        %v13607 = vadd.f32 0.0, %v13606
        %v13608 = vpop.f32.mrb[0].mxu0
        %v13609 = vpop.f32.mrb[0].mxu0
        %v13610 = vadd.f32 0.0, %v13609
        %v13611 = vpop.f32.mrb[0].mxu0
        %13612 = vmatprep.mubr.bf16.mxu0 %v12876
        %13613 = vmatmul.mubr.bf16.gmra.mrb[0].mxu0 %v12869
        %v13614 = vpop.f32.mrb[0].mxu0
        %v13615 = vadd.f32 0.0, %v13614
        %v13616 = vpop.f32.mrb[0].mxu0
        %v13617 = vpop.f32.mrb[0].mxu0
        %v13618 = vadd.f32 0.0, %v13617
        %v13619 = vpop.f32.mrb[0].mxu0
        %13620 = vmatprep.mubr.bf16.mxu0 %v12938
        %13621 = vmatmul.mubr.bf16.gmra.mrb[0].mxu0 %v12931
        %v13622 = vpop.f32.mrb[0].mxu0
        %v13623 = vadd.f32 0.0, %v13622
        %v13624 = vpop.f32.mrb[0].mxu0
        %v13625 = vpop.f32.mrb[0].mxu0
        %v13626 = vadd.f32 0.0, %v13625
        %v13627 = vpop.f32.mrb[0].mxu0
        %13628 = vdwg.mxu0
        %13629 = vmatprep.subr.bf16.mxu0 0
        %13630 = vmatpush1.bf16.msra.mxu0 %v13388
        %13631 = vmatprep.subr.bf16.mxu0 0
        %13632 = vmatpush1.bf16.msra.mxu0 %v13389
        %13633 = vmatprep.subr.bf16.mxu0 0
        %13634 = vmatpush1.bf16.msra.mxu0 %v13390
        %13635 = vmatprep.subr.bf16.mxu0 0
        %13636 = vmatpush1.bf16.msra.mxu0 %v13391
        %13637 = vmatprep.subr.bf16.mxu0 0
        %13638 = vmatpush1.bf16.msra.mxu0 %v13392
        %13639 = vmatprep.subr.bf16.mxu0 0
        %13640 = vmatpush1.bf16.msra.mxu0 %v13393
        %13641 = vmatprep.subr.bf16.mxu0 0
        %13642 = vmatpush1.bf16.msra.mxu0 %v13394
        %13643 = vmatprep.subr.bf16.mxu0 0
        %13644 = vmatpush1.bf16.msra.mxu0 %v13395
        %13645 = vmatprep.subr.bf16.mxu0 0
        %13646 = vmatpush1.bf16.msra.mxu0 %v13396
        %13647 = vmatprep.subr.bf16.mxu0 0
        %13648 = vmatpush1.bf16.msra.mxu0 %v13397
        %13649 = vmatprep.subr.bf16.mxu0 0
        %13650 = vmatpush1.bf16.msra.mxu0 %v13398
        %13651 = vmatprep.subr.bf16.mxu0 0
        %13652 = vmatpush1.bf16.msra.mxu0 %v13399
        %13653 = vmatprep.subr.bf16.mxu0 0
        %13654 = vmatpush1.bf16.msra.mxu0 %v13400
        %13655 = vmatprep.subr.bf16.mxu0 0
        %13656 = vmatpush1.bf16.msra.mxu0 %v13401
        %13657 = vmatprep.subr.bf16.mxu0 0
        %13658 = vmatpush1.bf16.msra.mxu0 %v13402
        %13659 = vmatprep.subr.bf16.mxu0 0
        %13660 = vmatpush1.bf16.msra.mxu0 %v13403
        %13661 = vmatprep.mubr.bf16.mxu0 %v12032
        %13662 = vmatmul.mubr.bf16.gmra.mrb[0].mxu0 %v12020
        %v13663 = vpop.f32.mrb[0].mxu0
        %v13664 = vadd.f32 %v13503, %v13663
        %v13665 = vpop.f32.mrb[0].mxu0
        %v13666 = vpop.f32.mrb[0].mxu0
        %v13667 = vadd.f32 %v13506, %v13666
        %v13668 = vpop.f32.mrb[0].mxu0
        %13669 = vmatprep.mubr.bf16.mxu0 %v12094
        %13670 = vmatmul.mubr.bf16.gmra.mrb[0].mxu0 %v12082
        %v13671 = vpop.f32.mrb[0].mxu0
        %v13672 = vadd.f32 %v13511, %v13671
        %v13673 = vpop.f32.mrb[0].mxu0
        %v13674 = vpop.f32.mrb[0].mxu0
        %v13675 = vadd.f32 %v13514, %v13674
        %v13676 = vpop.f32.mrb[0].mxu0
        %13677 = vmatprep.mubr.bf16.mxu0 %v12156
        %13678 = vmatmul.mubr.bf16.gmra.mrb[0].mxu0 %v12144
        %v13679 = vpop.f32.mrb[0].mxu0
        %v13680 = vadd.f32 %v13519, %v13679
        %v13681 = vpop.f32.mrb[0].mxu0
        %v13682 = vpop.f32.mrb[0].mxu0
        %v13683 = vadd.f32 %v13522, %v13682
        %v13684 = vpop.f32.mrb[0].mxu0
        %13685 = vmatprep.mubr.bf16.mxu0 %v12218
        %13686 = vmatmul.mubr.bf16.gmra.mrb[0].mxu0 %v12206
        %v13687 = vpop.f32.mrb[0].mxu0
        %v13688 = vadd.f32 %v13527, %v13687
        %v13689 = vpop.f32.mrb[0].mxu0
        %v13690 = vpop.f32.mrb[0].mxu0
        %v13691 = vadd.f32 %v13530, %v13690
        %v13692 = vpop.f32.mrb[0].mxu0
        %13693 = vmatprep.mubr.bf16.mxu0 %v12280
        %13694 = vmatmul.mubr.bf16.gmra.mrb[0].mxu0 %v12268
        %v13695 = vpop.f32.mrb[0].mxu0
        %v13696 = vadd.f32 %v13535, %v13695
        %v13697 = vpop.f32.mrb[0].mxu0
        %v13698 = vpop.f32.mrb[0].mxu0
        %v13699 = vadd.f32 %v13538, %v13698
        %v13700 = vpop.f32.mrb[0].mxu0
        %13701 = vmatprep.mubr.bf16.mxu0 %v12342
        %13702 = vmatmul.mubr.bf16.gmra.mrb[0].mxu0 %v12330
        %v13703 = vpop.f32.mrb[0].mxu0
        %v13704 = vadd.f32 %v13543, %v13703
        %v13705 = vpop.f32.mrb[0].mxu0
        %v13706 = vpop.f32.mrb[0].mxu0
        %v13707 = vadd.f32 %v13546, %v13706
        %v13708 = vpop.f32.mrb[0].mxu0
        %13709 = vmatprep.mubr.bf16.mxu0 %v12404
        %13710 = vmatmul.mubr.bf16.gmra.mrb[0].mxu0 %v12392
        %v13711 = vpop.f32.mrb[0].mxu0
        %v13712 = vadd.f32 %v13551, %v13711
        %v13713 = vpop.f32.mrb[0].mxu0
        %v13714 = vpop.f32.mrb[0].mxu0
        %v13715 = vadd.f32 %v13554, %v13714
        %v13716 = vpop.f32.mrb[0].mxu0
        %13717 = vmatprep.mubr.bf16.mxu0 %v12466
        %13718 = vmatmul.mubr.bf16.gmra.mrb[0].mxu0 %v12454
        %v13719 = vpop.f32.mrb[0].mxu0
        %v13720 = vadd.f32 %v13559, %v13719
        %v13721 = vpop.f32.mrb[0].mxu0
        %v13722 = vpop.f32.mrb[0].mxu0
        %v13723 = vadd.f32 %v13562, %v13722
        %v13724 = vpop.f32.mrb[0].mxu0
        %13725 = vmatprep.mubr.bf16.mxu0 %v12528
        %13726 = vmatmul.mubr.bf16.gmra.mrb[0].mxu0 %v12516
        %v13727 = vpop.f32.mrb[0].mxu0
        %v13728 = vadd.f32 %v13567, %v13727
        %v13729 = vpop.f32.mrb[0].mxu0
        %v13730 = vpop.f32.mrb[0].mxu0
        %v13731 = vadd.f32 %v13570, %v13730
        %v13732 = vpop.f32.mrb[0].mxu0
        %13733 = vmatprep.mubr.bf16.mxu0 %v12590
        %13734 = vmatmul.mubr.bf16.gmra.mrb[0].mxu0 %v12578
        %v13735 = vpop.f32.mrb[0].mxu0
        %v13736 = vadd.f32 %v13575, %v13735
        %v13737 = vpop.f32.mrb[0].mxu0
        %v13738 = vpop.f32.mrb[0].mxu0
        %v13739 = vadd.f32 %v13578, %v13738
        %v13740 = vpop.f32.mrb[0].mxu0
        %13741 = vmatprep.mubr.bf16.mxu0 %v12652
        %13742 = vmatmul.mubr.bf16.gmra.mrb[0].mxu0 %v12640
        %v13743 = vpop.f32.mrb[0].mxu0
        %v13744 = vadd.f32 %v13583, %v13743
        %v13745 = vpop.f32.mrb[0].mxu0
        %v13746 = vpop.f32.mrb[0].mxu0
        %v13747 = vadd.f32 %v13586, %v13746
        %v13748 = vpop.f32.mrb[0].mxu0
        %13749 = vmatprep.mubr.bf16.mxu0 %v12714
        %13750 = vmatmul.mubr.bf16.gmra.mrb[0].mxu0 %v12702
        %v13751 = vpop.f32.mrb[0].mxu0
        %v13752 = vadd.f32 %v13591, %v13751
        %v13753 = vpop.f32.mrb[0].mxu0
        %v13754 = vpop.f32.mrb[0].mxu0
        %v13755 = vadd.f32 %v13594, %v13754
        %v13756 = vpop.f32.mrb[0].mxu0
        %13757 = vmatprep.mubr.bf16.mxu0 %v12776
        %13758 = vmatmul.mubr.bf16.gmra.mrb[0].mxu0 %v12764
        %v13759 = vpop.f32.mrb[0].mxu0
        %v13760 = vadd.f32 %v13599, %v13759
        %v13761 = vpop.f32.mrb[0].mxu0
        %v13762 = vpop.f32.mrb[0].mxu0
        %v13763 = vadd.f32 %v13602, %v13762
        %v13764 = vpop.f32.mrb[0].mxu0
        %13765 = vmatprep.mubr.bf16.mxu0 %v12838
        %13766 = vmatmul.mubr.bf16.gmra.mrb[0].mxu0 %v12826
        %v13767 = vpop.f32.mrb[0].mxu0
        %v13768 = vadd.f32 %v13607, %v13767
        %v13769 = vpop.f32.mrb[0].mxu0
        %v13770 = vpop.f32.mrb[0].mxu0
        %v13771 = vadd.f32 %v13610, %v13770
        %v13772 = vpop.f32.mrb[0].mxu0
        %13773 = vmatprep.mubr.bf16.mxu0 %v12900
        %13774 = vmatmul.mubr.bf16.gmra.mrb[0].mxu0 %v12888
        %v13775 = vpop.f32.mrb[0].mxu0
        %v13776 = vadd.f32 %v13615, %v13775
        %v13777 = vpop.f32.mrb[0].mxu0
        %v13778 = vpop.f32.mrb[0].mxu0
        %v13779 = vadd.f32 %v13618, %v13778
        %v13780 = vpop.f32.mrb[0].mxu0
        %13781 = vmatprep.mubr.bf16.mxu0 %v12962
        %13782 = vmatmul.mubr.bf16.gmra.mrb[0].mxu0 %v12950
        %v13783 = vpop.f32.mrb[0].mxu0
        %v13784 = vadd.f32 %v13623, %v13783
        %v13785 = vpop.f32.mrb[0].mxu0
        %v13786 = vpop.f32.mrb[0].mxu0
        %v13787 = vadd.f32 %v13626, %v13786
        %v13788 = vpop.f32.mrb[0].mxu0
        %13789 = vdwg.mxu0
        %13790 = vmatprep.subr.bf16.mxu0 0
        %13791 = vmatpush1.bf16.msra.mxu0 %v13404
        %13792 = vmatprep.subr.bf16.mxu0 0
        %13793 = vmatpush1.bf16.msra.mxu0 %v13405
        %13794 = vmatprep.subr.bf16.mxu0 0
        %13795 = vmatpush1.bf16.msra.mxu0 %v13406
        %13796 = vmatprep.subr.bf16.mxu0 0
        %13797 = vmatpush1.bf16.msra.mxu0 %v13407
        %13798 = vmatprep.subr.bf16.mxu0 0
        %13799 = vmatpush1.bf16.msra.mxu0 %v13408
        %13800 = vmatprep.subr.bf16.mxu0 0
        %13801 = vmatpush1.bf16.msra.mxu0 %v13409
        %13802 = vmatprep.subr.bf16.mxu0 0
        %13803 = vmatpush1.bf16.msra.mxu0 %v13410
        %13804 = vmatprep.subr.bf16.mxu0 0
        %13805 = vmatpush1.bf16.msra.mxu0 %v13411
        %13806 = vmatprep.subr.bf16.mxu0 0
        %13807 = vmatpush1.bf16.msra.mxu0 %v13412
        %13808 = vmatprep.subr.bf16.mxu0 0
        %13809 = vmatpush1.bf16.msra.mxu0 %v13413
        %13810 = vmatprep.subr.bf16.mxu0 0
        %13811 = vmatpush1.bf16.msra.mxu0 %v13414
        %13812 = vmatprep.subr.bf16.mxu0 0
        %13813 = vmatpush1.bf16.msra.mxu0 %v13415
        %13814 = vmatprep.subr.bf16.mxu0 0
        %13815 = vmatpush1.bf16.msra.mxu0 %v13416
        %13816 = vmatprep.subr.bf16.mxu0 0
        %13817 = vmatpush1.bf16.msra.mxu0 %v13417
        %13818 = vmatprep.subr.bf16.mxu0 0
        %13819 = vmatpush1.bf16.msra.mxu0 %v13418
        %13820 = vmatprep.subr.bf16.mxu0 0
        %13821 = vmatpush1.bf16.msra.mxu0 %v13419
        %13822 = vmatprep.mubr.bf16.mxu0 %v12056
        %13823 = vmatmul.mubr.bf16.gmra.mrb[0].mxu0 %v12044
        %v13824 = vpop.f32.mrb[0].mxu0
        %v13825 = vadd.f32 %v13664, %v13824
        %v13826 = vpop.f32.mrb[0].mxu0
        %v13827 = vpop.f32.mrb[0].mxu0
        %v13828 = vadd.f32 %v13667, %v13827
        %v13829 = vpop.f32.mrb[0].mxu0
        %13830 = vmatprep.mubr.bf16.mxu0 %v12118
        %13831 = vmatmul.mubr.bf16.gmra.mrb[0].mxu0 %v12106
        %v13832 = vpop.f32.mrb[0].mxu0
        %v13833 = vadd.f32 %v13672, %v13832
        %v13834 = vpop.f32.mrb[0].mxu0
        %v13835 = vpop.f32.mrb[0].mxu0
        %v13836 = vadd.f32 %v13675, %v13835
        %v13837 = vpop.f32.mrb[0].mxu0
        %13838 = vmatprep.mubr.bf16.mxu0 %v12180
        %13839 = vmatmul.mubr.bf16.gmra.mrb[0].mxu0 %v12168
        %v13840 = vpop.f32.mrb[0].mxu0
        %v13841 = vadd.f32 %v13680, %v13840
        %v13842 = vpop.f32.mrb[0].mxu0
        %v13843 = vpop.f32.mrb[0].mxu0
        %v13844 = vadd.f32 %v13683, %v13843
        %v13845 = vpop.f32.mrb[0].mxu0
        %13846 = vmatprep.mubr.bf16.mxu0 %v12242
        %13847 = vmatmul.mubr.bf16.gmra.mrb[0].mxu0 %v12230
        %v13848 = vpop.f32.mrb[0].mxu0
        %v13849 = vadd.f32 %v13688, %v13848
        %v13850 = vpop.f32.mrb[0].mxu0
        %v13851 = vpop.f32.mrb[0].mxu0
        %v13852 = vadd.f32 %v13691, %v13851
        %v13853 = vpop.f32.mrb[0].mxu0
        %13854 = vmatprep.mubr.bf16.mxu0 %v12304
        %13855 = vmatmul.mubr.bf16.gmra.mrb[0].mxu0 %v12292
        %v13856 = vpop.f32.mrb[0].mxu0
        %v13857 = vadd.f32 %v13696, %v13856
        %v13858 = vpop.f32.mrb[0].mxu0
        %v13859 = vpop.f32.mrb[0].mxu0
        %v13860 = vadd.f32 %v13699, %v13859
        %v13861 = vpop.f32.mrb[0].mxu0
        %13862 = vmatprep.mubr.bf16.mxu0 %v12366
        %13863 = vmatmul.mubr.bf16.gmra.mrb[0].mxu0 %v12354
        %v13864 = vpop.f32.mrb[0].mxu0
        %v13865 = vadd.f32 %v13704, %v13864
        %v13866 = vpop.f32.mrb[0].mxu0
        %v13867 = vpop.f32.mrb[0].mxu0
        %v13868 = vadd.f32 %v13707, %v13867
        %v13869 = vpop.f32.mrb[0].mxu0
        %13870 = vmatprep.mubr.bf16.mxu0 %v12428
        %13871 = vmatmul.mubr.bf16.gmra.mrb[0].mxu0 %v12416
        %v13872 = vpop.f32.mrb[0].mxu0
        %v13873 = vadd.f32 %v13712, %v13872
        %v13874 = vpop.f32.mrb[0].mxu0
        %v13875 = vpop.f32.mrb[0].mxu0
        %v13876 = vadd.f32 %v13715, %v13875
        %v13877 = vpop.f32.mrb[0].mxu0
        %13878 = vmatprep.mubr.bf16.mxu0 %v12490
        %13879 = vmatmul.mubr.bf16.gmra.mrb[0].mxu0 %v12478
        %v13880 = vpop.f32.mrb[0].mxu0
        %v13881 = vadd.f32 %v13720, %v13880
        %v13882 = vpop.f32.mrb[0].mxu0
        %v13883 = vpop.f32.mrb[0].mxu0
        %v13884 = vadd.f32 %v13723, %v13883
        %v13885 = vpop.f32.mrb[0].mxu0
        %13886 = vmatprep.mubr.bf16.mxu0 %v12552
        %13887 = vmatmul.mubr.bf16.gmra.mrb[0].mxu0 %v12540
        %v13888 = vpop.f32.mrb[0].mxu0
        %v13889 = vadd.f32 %v13728, %v13888
        %v13890 = vpop.f32.mrb[0].mxu0
        %v13891 = vpop.f32.mrb[0].mxu0
        %v13892 = vadd.f32 %v13731, %v13891
        %v13893 = vpop.f32.mrb[0].mxu0
        %13894 = vmatprep.mubr.bf16.mxu0 %v12614
        %13895 = vmatmul.mubr.bf16.gmra.mrb[0].mxu0 %v12602
        %v13896 = vpop.f32.mrb[0].mxu0
        %v13897 = vadd.f32 %v13736, %v13896
        %v13898 = vpop.f32.mrb[0].mxu0
        %v13899 = vpop.f32.mrb[0].mxu0
        %v13900 = vadd.f32 %v13739, %v13899
        %v13901 = vpop.f32.mrb[0].mxu0
        %13902 = vmatprep.mubr.bf16.mxu0 %v12676
        %13903 = vmatmul.mubr.bf16.gmra.mrb[0].mxu0 %v12664
        %v13904 = vpop.f32.mrb[0].mxu0
        %v13905 = vadd.f32 %v13744, %v13904
        %v13906 = vpop.f32.mrb[0].mxu0
        %v13907 = vpop.f32.mrb[0].mxu0
        %v13908 = vadd.f32 %v13747, %v13907
        %v13909 = vpop.f32.mrb[0].mxu0
        %13910 = vmatprep.mubr.bf16.mxu0 %v12738
        %13911 = vmatmul.mubr.bf16.gmra.mrb[0].mxu0 %v12726
        %v13912 = vpop.f32.mrb[0].mxu0
        %v13913 = vadd.f32 %v13752, %v13912
        %v13914 = vpop.f32.mrb[0].mxu0
        %v13915 = vpop.f32.mrb[0].mxu0
        %v13916 = vadd.f32 %v13755, %v13915
        %v13917 = vpop.f32.mrb[0].mxu0
        %13918 = vmatprep.mubr.bf16.mxu0 %v12800
        %13919 = vmatmul.mubr.bf16.gmra.mrb[0].mxu0 %v12788
        %v13920 = vpop.f32.mrb[0].mxu0
        %v13921 = vadd.f32 %v13760, %v13920
        %v13922 = vpop.f32.mrb[0].mxu0
        %v13923 = vpop.f32.mrb[0].mxu0
        %v13924 = vadd.f32 %v13763, %v13923
        %v13925 = vpop.f32.mrb[0].mxu0
        %13926 = vmatprep.mubr.bf16.mxu0 %v12862
        %13927 = vmatmul.mubr.bf16.gmra.mrb[0].mxu0 %v12850
        %v13928 = vpop.f32.mrb[0].mxu0
        %v13929 = vadd.f32 %v13768, %v13928
        %v13930 = vpop.f32.mrb[0].mxu0
        %v13931 = vpop.f32.mrb[0].mxu0
        %v13932 = vadd.f32 %v13771, %v13931
        %v13933 = vpop.f32.mrb[0].mxu0
        %13934 = vmatprep.mubr.bf16.mxu0 %v12924
        %13935 = vmatmul.mubr.bf16.gmra.mrb[0].mxu0 %v12912
        %v13936 = vpop.f32.mrb[0].mxu0
        %v13937 = vadd.f32 %v13776, %v13936
        %v13938 = vpop.f32.mrb[0].mxu0
        %v13939 = vpop.f32.mrb[0].mxu0
        %v13940 = vadd.f32 %v13779, %v13939
        %v13941 = vpop.f32.mrb[0].mxu0
        %13942 = vmatprep.mubr.bf16.mxu0 %v12986
        %13943 = vmatmul.mubr.bf16.gmra.mrb[0].mxu0 %v12974
        %v13944 = vpop.f32.mrb[0].mxu0
        %v13945 = vadd.f32 %v13784, %v13944
        %v13946 = vpop.f32.mrb[0].mxu0
        %v13947 = vpop.f32.mrb[0].mxu0
        %v13948 = vadd.f32 %v13787, %v13947
        %v13949 = vpop.f32.mrb[0].mxu0
        %13950 = vdwg.mxu0
        %v13951 = vadd.f32 %v11388, %v13825
        %v13952 = vadd.f32 %v11391, %v13828
        %v13953 = vadd.f32 %v11396, %v13833
        %v13954 = vadd.f32 %v11399, %v13836
        %v13955 = vadd.f32 %v11404, %v13841
        %v13956 = vadd.f32 %v11407, %v13844
        %v13957 = vadd.f32 %v11412, %v13849
        %v13958 = vadd.f32 %v11415, %v13852
        %v13959 = vadd.f32 %v11420, %v13857
        %v13960 = vadd.f32 %v11423, %v13860
        %v13961 = vadd.f32 %v11428, %v13865
        %v13962 = vadd.f32 %v11431, %v13868
        %v13963 = vadd.f32 %v11436, %v13873
        %v13964 = vadd.f32 %v11439, %v13876
        %v13965 = vadd.f32 %v11444, %v13881
        %v13966 = vadd.f32 %v11447, %v13884
        %v13967 = vadd.f32 %v11452, %v13889
        %v13968 = vadd.f32 %v11455, %v13892
        %v13969 = vadd.f32 %v11460, %v13897
        %v13970 = vadd.f32 %v11463, %v13900
        %v13971 = vadd.f32 %v11468, %v13905
        %v13972 = vadd.f32 %v11471, %v13908
        %v13973 = vadd.f32 %v11476, %v13913
        %v13974 = vadd.f32 %v11479, %v13916
        %v13975 = vadd.f32 %v11484, %v13921
        %v13976 = vadd.f32 %v11487, %v13924
        %v13977 = vadd.f32 %v11492, %v13929
        %v13978 = vadd.f32 %v11495, %v13932
        %v13979 = vadd.f32 %v11500, %v13937
        %v13980 = vadd.f32 %v11503, %v13940
        %v13981 = vadd.f32 %v11508, %v13945
        %v13982 = vadd.f32 %v11511, %v13948
        %v13983 = vadd.f32 %v13951, %v6641
        %v13984 = vadd.f32 %v13952, %v6641
        %v13985 = vadd.f32 %v13953, %v6641
        %v13986 = vadd.f32 %v13954, %v6641
        %v13987 = vadd.f32 %v13955, %v6641
        %v13988 = vadd.f32 %v13956, %v6641
        %v13989 = vadd.f32 %v13957, %v6641
        %v13990 = vadd.f32 %v13958, %v6641
        %v13991 = vadd.f32 %v13959, %v6641
        %v13992 = vadd.f32 %v13960, %v6641
        %v13993 = vadd.f32 %v13961, %v6641
        %v13994 = vadd.f32 %v13962, %v6641
        %v13995 = vadd.f32 %v13963, %v6641
        %v13996 = vadd.f32 %v13964, %v6641
        %v13997 = vadd.f32 %v13965, %v6641
        %v13998 = vadd.f32 %v13966, %v6641
        %v13999 = vadd.f32 %v13967, %v6641
        %v14000 = vadd.f32 %v13968, %v6641
        %v14001 = vadd.f32 %v13969, %v6641
        %v14002 = vadd.f32 %v13970, %v6641
        %v14003 = vadd.f32 %v13971, %v6641
        %v14004 = vadd.f32 %v13972, %v6641
        %v14005 = vadd.f32 %v13973, %v6641
        %v14006 = vadd.f32 %v13974, %v6641
        %v14007 = vadd.f32 %v13975, %v6641
        %v14008 = vadd.f32 %v13976, %v6641
        %v14009 = vadd.f32 %v13977, %v6641
        %v14010 = vadd.f32 %v13978, %v6641
        %v14011 = vadd.f32 %v13979, %v6641
        %v14012 = vadd.f32 %v13980, %v6641
        %v14013 = vadd.f32 %v13981, %v6641
        %v14014 = vadd.f32 %v13982, %v6641
        %v14015 = vmax.f32 %v13983, 0.0
        %v14016 = vmax.f32 %v13984, 0.0
        %v14017 = vmax.f32 %v13985, 0.0
        %v14018 = vmax.f32 %v13986, 0.0
        %v14019 = vmax.f32 %v13987, 0.0
        %v14020 = vmax.f32 %v13988, 0.0
        %v14021 = vmax.f32 %v13989, 0.0
        %v14022 = vmax.f32 %v13990, 0.0
        %v14023 = vmax.f32 %v13991, 0.0
        %v14024 = vmax.f32 %v13992, 0.0
        %v14025 = vmax.f32 %v13993, 0.0
        %v14026 = vmax.f32 %v13994, 0.0
        %v14027 = vmax.f32 %v13995, 0.0
        %v14028 = vmax.f32 %v13996, 0.0
        %v14029 = vmax.f32 %v13997, 0.0
        %v14030 = vmax.f32 %v13998, 0.0
        %v14031 = vmax.f32 %v13999, 0.0
        %v14032 = vmax.f32 %v14000, 0.0
        %v14033 = vmax.f32 %v14001, 0.0
        %v14034 = vmax.f32 %v14002, 0.0
        %v14035 = vmax.f32 %v14003, 0.0
        %v14036 = vmax.f32 %v14004, 0.0
        %v14037 = vmax.f32 %v14005, 0.0
        %v14038 = vmax.f32 %v14006, 0.0
        %v14039 = vmax.f32 %v14007, 0.0
        %v14040 = vmax.f32 %v14008, 0.0
        %v14041 = vmax.f32 %v14009, 0.0
        %v14042 = vmax.f32 %v14010, 0.0
        %v14043 = vmax.f32 %v14011, 0.0
        %v14044 = vmax.f32 %v14012, 0.0
        %v14045 = vmax.f32 %v14013, 0.0
        %v14046 = vmax.f32 %v14014, 0.0
        %14047 = vst [vmem:[%s340] sm:$0xff] %v14015
        %14048 = vst [vmem:[%s340 + $0x8] sm:$0xff] %v14016
        %14049 = vst [vmem:[%s340 + $0x10] sm:$0xff] %v14017
        %14050 = vst [vmem:[%s340 + $0x18] sm:$0xff] %v14018
        %14051 = vst [vmem:[%s340 + $0x20] sm:$0xff] %v14019
        %14052 = vst [vmem:[%s340 + $0x28] sm:$0xff] %v14020
        %14053 = vst [vmem:[%s340 + $0x30] sm:$0xff] %v14021
        %14054 = vst [vmem:[%s340 + $0x38] sm:$0xff] %v14022
        %14055 = vst [vmem:[%s340 + $0x40] sm:$0xff] %v14023
        %14056 = vst [vmem:[%s340 + $0x48] sm:$0xff] %v14024
        %14057 = vst [vmem:[%s340 + $0x50] sm:$0xff] %v14025
        %14058 = vst [vmem:[%s340 + $0x58] sm:$0xff] %v14026
        %14059 = vst [vmem:[%s340 + $0x60] sm:$0xff] %v14027
        %14060 = vst [vmem:[%s340 + $0x68] sm:$0xff] %v14028
        %14061 = vst [vmem:[%s340 + $0x70] sm:$0xff] %v14029
        %14062 = vst [vmem:[%s340 + $0x78] sm:$0xff] %v14030
        %14063 = vst [vmem:[%s340 + $0x80] sm:$0xff] %v14031
        %14064 = vst [vmem:[%s340 + $0x88] sm:$0xff] %v14032
        %14065 = vst [vmem:[%s340 + $0x90] sm:$0xff] %v14033
        %14066 = vst [vmem:[%s340 + $0x98] sm:$0xff] %v14034
        %14067 = vst [vmem:[%s340 + $0xa0] sm:$0xff] %v14035
        %14068 = vst [vmem:[%s340 + $0xa8] sm:$0xff] %v14036
        %14069 = vst [vmem:[%s340 + $0xb0] sm:$0xff] %v14037
        %14070 = vst [vmem:[%s340 + $0xb8] sm:$0xff] %v14038
        %14071 = vst [vmem:[%s340 + $0xc0] sm:$0xff] %v14039
        %14072 = vst [vmem:[%s340 + $0xc8] sm:$0xff] %v14040
        %14073 = vst [vmem:[%s340 + $0xd0] sm:$0xff] %v14041
        %14074 = vst [vmem:[%s340 + $0xd8] sm:$0xff] %v14042
        %14075 = vst [vmem:[%s340 + $0xe0] sm:$0xff] %v14043
        %14076 = vst [vmem:[%s340 + $0xe8] sm:$0xff] %v14044
        %14077 = vst [vmem:[%s340 + $0xf0] sm:$0xff] %v14045
        %14078 = vst [vmem:[%s340 + $0xf8] sm:$0xff] %v14046
        %s14079 = sand.u32 %s186, 1
        %s14080 = scalar_lea.sflag [#allocation6], %s14079
        %s14081 = sand.u32 %s186, 1
        %s14082 = smul.addr %s14081, 256
        %s14083 = scalar_lea.vmem [#allocation12], %s14082
        // Predicated region
        $region65: #{tpu_custom_call.1} parent=47 // pred_check
          %p14084 = pneg %p196
        $region66: #{tpu_custom_call.1} parent=47 // pred_check_branch
          %14086 = sbr.rel (%p14084) target = $region68
        $region67: #{tpu_custom_call.1} parent=47 // pred_region
          %s14088 = ssub.s32 4096, 4096
          %14089 = vsyncadd %s14080, %s14088
          %s14090 = smul.addr %s26, 32
          %s14091 = smul.addr %s14090, 128
          %s14092 = scalar_lea.hbm %s7, %s14091
          %s14093 = sshll.u32 %s14083, 4
          %s14094 = int_to_ptr.vmem [resolvable:$true] %s14093
          %14099 = dma.vmem_to_hbm [thread:$0]  %s14094, 4096, %s14092, %s14080, 128, 128, 8
        $region68: #{tpu_custom_call.1} parent=47 // pred_fallthru
          _
      $region48: #{tpu_custom_call.1} parent=5 // pred_fallthru
        _
      %p14100 = scmp.le.s32.totalorder 2, %s21
      // Predicated region
      $region69: #{tpu_custom_call.1} parent=5 // pred_check
        %p14101 = pneg %p14100
      $region70: #{tpu_custom_call.1} parent=5 // pred_check_branch
        %14103 = sbr.rel (%p14101) target = $region72
      $region71: #{tpu_custom_call.1} parent=5 // pred_region
        %s14104 = ssub.s32 %s21, 2
        // Predicated region
        $region73: #{tpu_custom_call.1} parent=71 // pred_check
          %p14105 = pneg %p202
        $region74: #{tpu_custom_call.1} parent=71 // pred_check_branch
          %14107 = sbr.rel (%p14105) target = $region76
        $region75: #{tpu_custom_call.1} parent=71 // pred_region
          %s14108 = sand.u32 %s187, 1
          %s14109 = scalar_lea.sflag [#allocation6], %s14108
          %s14110 = sand.u32 %s187, 1
          %s14111 = smul.addr %s14110, 256
          %s14112 = scalar_lea.vmem [#allocation12], %s14111
          %14113 = dma.done %s14109, 4096
        $region76: #{tpu_custom_call.1} parent=71 // pred_fallthru
          _
      $region72: #{tpu_custom_call.1} parent=5 // pred_fallthru
        _
    $region6: #{tpu_custom_call.1} parent=1 // loop_footer
      %s25 = sadd.s32 1, %s21
    $region7: #{tpu_custom_call.1} parent=1 // loop_footer_branch
      %20 = sbr.rel target = $region3
    $region8: #{tpu_custom_call.1} parent=1 // loop_exit
      _
    %14114 = vsyncpa [#allocation5], 1
    %s14115 = scalar_lea.sflag [#allocation5], 1
    %14116 = vsyncpa %s14115, 1
    %14117 = vsyncpa [#allocation8], 1
    %14118 = vsyncpa [#allocation11], 1
    %14119 = vsyncpa [#allocation6], 1
    %s14120 = scalar_lea.sflag [#allocation6], 1
    %14121 = vsyncpa %s14120, 1

</llo_original>
